<compile_context>
chip_gen: v5e
topology: v5e:2x2
jax: 0.10.0
libtpu: 0.0.40
codegen_flags: <defaults>
</compile_context>

<pallas_src>
import functools

import numpy as np
import jax
import jax.numpy as jnp
from jax.experimental import pallas as pl
from jax.experimental.pallas import tpu as pltpu

EPS = 1e-5          # PyTorch GroupNorm default eps
NUM_GROUPS = 32     # GroupNorm(32, C) in DilConv


# ---------------------------------------------------------------------------
# host-side constant construction (static shape logic, tiny)
# ---------------------------------------------------------------------------
def _fused_tap_mats(dw, pw, w_in, k, stride, pad):
    """Fold depthwise W-taps + 1x1 pointwise conv (+ W stride/pad) into k mats.

    M_i[win*Ci + c, wo*Co + d] = dw[i, j, c] * pw[c, d], j = win - wo*stride + pad
    (zero where j or win is out of range -> W zero-padding is built in).
    Returns (k, w_in*Ci, w_out*Co) float32.
    """
    ci, co = pw.shape
    w_out = (w_in + 2 * pad - k) // stride + 1

    # Static selection tensor sel[j, win, wo] = 1 iff win == wo*stride + j - pad.
    sel_np = np.zeros((k, w_in, w_out), np.float32)
    wo = np.arange(w_out)
    for j in range(k):
        win = wo * stride + j - pad
        valid = (win >= 0) & (win < w_in)
        sel_np[j, win[valid], wo[valid]] = 1.0
    sel = jnp.asarray(sel_np)

    # T[i, win, wo, c] = sum_j dw[i, j, c] * sel[j, win, wo]
    t = jnp.einsum('ijc,jab->iabc', dw.astype(jnp.float32), sel)
    # M[i, win, c, wo, d] = T[i, win, wo, c] * pw[c, d]
    m = jnp.einsum('iabc,cd->iacbd', t, pw.astype(jnp.float32))
    return m.reshape(k, w_in * ci, w_out * co)


def _gn_matrix(w_out, c_out, groups=NUM_GROUPS):
    """Averaging matrix: (1, w_out*c_out) row-stats @ M -> per-lane group stat."""
    cg = c_out // groups
    grp = (np.arange(w_out * c_out) % c_out) // cg
    same = (grp[:, None] == grp[None, :]).astype(np.float32)
    return jnp.asarray(same / (w_out * cg))


# ---------------------------------------------------------------------------
# fused kernel (one batch sample per grid step)
# ---------------------------------------------------------------------------
def _sepconv_kernel(x_ref,
                    m1_ref, pb1_ref, g1_ref, b1_ref, gn1_ref,
                    m2_ref, pb2_ref, g2_ref, b2_ref, gn2_ref,
                    o_ref,
                    xpad_ref, ypad_ref,
                    *, k, stride, pad, h_in, h1_out, h2_out):
    f32 = jnp.float32
    p = pad

    def dilconv_block(xpad, m_ref, pb_ref, g_ref, b_ref, gn_ref, h_conv, h_out, s):
        """xpad: (h_pad, Win*Ci) f32. Returns (h_out, Wout*Co) post GN+ReLU."""
        n_lanes = m_ref.shape[2]
        # depthwise + pointwise fused: k dense MXU matmuls (no per-tap rolls)
        acc = jnp.zeros((h_conv, n_lanes), f32)
        for i in range(k):
            acc = acc + jnp.dot(xpad[i:i + h_conv, :], m_ref[i],
                                preferred_element_type=f32)
        if s > 1:
            # H-subsample for strided conv (W stride already folded into m_ref).
            # TODO(synk): validate strided sublane-slice lowering cost for stride>1.
            acc = jax.lax.slice(acc, (0, 0), ((h_out - 1) * s + 1, n_lanes), (s, 1))
        y = acc + pb_ref[...]                                   # pointwise bias

        # GroupNorm(32): centered, biased variance (PyTorch semantics).
        row_mean = jnp.mean(y, axis=0, keepdims=True)           # (1, lanes)
        mean = jnp.dot(row_mean, gn_ref[...], preferred_element_type=f32)
        d = y - mean
        row_var = jnp.mean(d * d, axis=0, keepdims=True)
        var = jnp.dot(row_var, gn_ref[...], preferred_element_type=f32)
        scale = jax.lax.rsqrt(var + EPS) * g_ref[...]           # (1, lanes), cheap
        return jnp.maximum(d * scale + b_ref[...], 0.0)         # GN affine + ReLU

    # ---- block 1: in-kernel H zero-padding (W padding lives in the tap mats) ----
    if p > 0:
        xpad_ref[0:p, :] = jnp.zeros((p, xpad_ref.shape[1]), f32)
        xpad_ref[p + h_in:p + h_in + p, :] = jnp.zeros((p, xpad_ref.shape[1]), f32)
        xpad_ref[p:p + h_in, :] = x_ref[0].astype(f32)
        xp1 = xpad_ref[...]
    else:
        xp1 = x_ref[0].astype(f32)

    h1_conv = h_in + 2 * p - k + 1
    y1 = dilconv_block(xp1, m1_ref, pb1_ref, g1_ref, b1_ref, gn1_ref,
                       h1_conv, h1_out, stride)

    # ---- block 2: intermediate stays in VMEM, never touches HBM ----
    if p > 0:
        ypad_ref[0:p, :] = jnp.zeros((p, ypad_ref.shape[1]), f32)
        ypad_ref[p + h1_out:p + h1_out + p, :] = jnp.zeros((p, ypad_ref.shape[1]), f32)
        ypad_ref[p:p + h1_out, :] = y1
        xp2 = ypad_ref[...]
    else:
        xp2 = y1

    h2_conv = h1_out + 2 * p - k + 1
    y2 = dilconv_block(xp2, m2_ref, pb2_ref, g2_ref, b2_ref, gn2_ref,
                       h2_conv, h2_out, 1)

    # lane-dense store: last block dim = W2*C_out (multiple of 128 here)
    o_ref[...] = y2[None, :, :].astype(o_ref.dtype)


# ---------------------------------------------------------------------------
# wrapper: NCHW in / NCHW out, single fused pallas_call
# ---------------------------------------------------------------------------
def sepconv(x_nchw, params, *, kernel_size, stride, padding):
    k, s, p = kernel_size, stride, padding
    n, c_in, h, w = x_nchw.shape
    (dw1, pw1, pb1, g1, b1), (dw2, pw2, pb2, g2, b2) = params
    c_mid = pw1.shape[1]
    c_out = pw2.shape[1]
    assert c_mid % NUM_GROUPS == 0 and c_out % NUM_GROUPS == 0, \
        "GroupNorm(32, C) requires channel counts divisible by 32"
    assert dw1.shape == (k, k, c_in) and dw2.shape == (k, k, c_mid)

    h1 = (h + 2 * p - k) // s + 1
    w1 = (w + 2 * p - k) // s + 1
    h2 = h1 + 2 * p - k + 1
    w2 = w1 + 2 * p - k + 1
    assert h1 > 0 and w1 > 0 and h2 > 0 and w2 > 0

    # NCHW -> lane-merged (N, H, W*C); the reshape is a free contiguous merge.
    x = jnp.transpose(x_nchw, (0, 2, 3, 1)).reshape(n, h, w * c_in)

    # Host-side fused constants (depthwise taps x pointwise, GN averaging, tiled affine).
    m1 = _fused_tap_mats(dw1, pw1, w, k, s, p)       # (k, w*c_in,  w1*c_mid)
    m2 = _fused_tap_mats(dw2, pw2, w1, k, 1, p)      # (k, w1*c_mid, w2*c_out)
    gn1 = _gn_matrix(w1, c_mid)
    gn2 = _gn_matrix(w2, c_out)
    pb1m = jnp.tile(pb1.reshape(1, c_mid), (1, w1))
    g1m = jnp.tile(g1.reshape(1, c_mid), (1, w1))
    b1m = jnp.tile(b1.reshape(1, c_mid), (1, w1))
    pb2m = jnp.tile(pb2.reshape(1, c_out), (1, w2))
    g2m = jnp.tile(g2.reshape(1, c_out), (1, w2))
    b2m = jnp.tile(b2.reshape(1, c_out), (1, w2))

    kernel = functools.partial(_sepconv_kernel, k=k, stride=s, pad=p,
                               h_in=h, h1_out=h1, h2_out=h2)

    out_m = pl.pallas_call(
        kernel,
        out_shape=jax.ShapeDtypeStruct((n, h2, w2 * c_out), x_nchw.dtype),
        grid_spec=pltpu.PrefetchScalarGridSpec(
            num_scalar_prefetch=0,
            grid=(n,),
            in_specs=[
                pl.BlockSpec((1, h, w * c_in), lambda i: (i, 0, 0)),
                pl.BlockSpec(m1.shape, lambda i: (0, 0, 0)),
                pl.BlockSpec(pb1m.shape, lambda i: (0, 0)),
                pl.BlockSpec(g1m.shape, lambda i: (0, 0)),
                pl.BlockSpec(b1m.shape, lambda i: (0, 0)),
                pl.BlockSpec(gn1.shape, lambda i: (0, 0)),
                pl.BlockSpec(m2.shape, lambda i: (0, 0, 0)),
                pl.BlockSpec(pb2m.shape, lambda i: (0, 0)),
                pl.BlockSpec(g2m.shape, lambda i: (0, 0)),
                pl.BlockSpec(b2m.shape, lambda i: (0, 0)),
                pl.BlockSpec(gn2.shape, lambda i: (0, 0)),
            ],
            out_specs=pl.BlockSpec((1, h2, w2 * c_out), lambda i: (i, 0, 0)),
            scratch_shapes=[
                pltpu.VMEM((h + 2 * p, w * c_in), jnp.float32),     # H-padded input
                pltpu.VMEM((h1 + 2 * p, w1 * c_mid), jnp.float32),  # H-padded block-1 output
            ],
        ),
        compiler_params=pltpu.CompilerParams(
            dimension_semantics=("parallel",),
            vmem_limit_bytes=48 * 1024 * 1024,
        ),
    )(x, m1, pb1m, g1m, b1m, gn1, m2, pb2m, g2m, b2m, gn2)

    out = out_m.reshape(n, h2, w2, c_out)            # free contiguous split
    return jnp.transpose(out, (0, 3, 1, 2))          # NHWC -> NCHW


# ---------------------------------------------------------------------------
# pure-JAX reference (for numerical validation) + synthetic parameters
# ---------------------------------------------------------------------------
def _sepconv_reference(x_nchw, params, *, kernel_size, stride, padding):
    x = jnp.transpose(x_nchw, (0, 2, 3, 1))

    def dil(x, prm, s):
        dw, pw, pb, gamma, beta = prm
        ci = x.shape[-1]
        y = jax.lax.conv_general_dilated(
            x, dw.reshape(kernel_size, kernel_size, 1, ci),
            window_strides=(s, s), padding=[(padding, padding)] * 2,
            dimension_numbers=('NHWC', 'HWIO', 'NHWC'),
            feature_group_count=ci, precision=jax.lax.Precision.HIGHEST)
        y = jnp.einsum('nhwc,cd->nhwd', y, pw,
                       precision=jax.lax.Precision.HIGHEST) + pb.reshape(1, 1, 1, -1)
        n, hh, ww, co = y.shape
        cg = co // NUM_GROUPS
        yr = y.reshape(n, hh, ww, NUM_GROUPS, cg)
        mean = yr.mean(axis=(1, 2, 4), keepdims=True)
        var = ((yr - mean) ** 2).mean(axis=(1, 2, 4), keepdims=True)
        yr = (yr - mean) * jax.lax.rsqrt(var + EPS)
        y = yr.reshape(n, hh, ww, co) * gamma.reshape(1, 1, 1, -1) + beta.reshape(1, 1, 1, -1)
        return jnp.maximum(y, 0.0)

    p1, p2 = params
    y = dil(x, p1, stride)
    y = dil(y, p2, 1)
    return jnp.transpose(y, (0, 3, 1, 2))


def init_sepconv_params(key, c_in, c_out, kernel_size):
    """Deterministic synthetic parameters matching the PyTorch module's shapes."""
    keys = jax.random.split(key, 10)

    def dil_params(ks, ci, co):
        dw = 0.1 * jax.random.normal(ks[0], (kernel_size, kernel_size, ci), jnp.float32)
        pw = 0.1 * jax.random.normal(ks[1], (ci, co), jnp.float32)
        pb = 0.1 * jax.random.normal(ks[2], (1, co), jnp.float32)
        gamma = 1.0 + 0.05 * jax.random.normal(ks[3], (1, co), jnp.float32)
        beta = 0.05 * jax.random.normal(ks[4], (1, co), jnp.float32)
        return (dw, pw, pb, gamma, beta)

    p1 = dil_params(keys[:5], c_in, c_in)     # first DilConv: C_in -> C_in, stride=s
    p2 = dil_params(keys[5:], c_in, c_out)    # second DilConv: C_in -> C_out, stride=1
    return (p1, p2)


if __name__ == "__main__":
    key = jax.random.PRNGKey(0)
    k_x, k_p = jax.random.split(key)

    # GroupNorm(32, C) in DilConv requires channels divisible by 32.
    N, C_IN, C_OUT, H, W = 2, 32, 32, 16, 16
    KERNEL_SIZE, STRIDE, PADDING = 3, 1, 1

    x = jax.random.normal(k_x, (N, C_IN, H, W), jnp.float32)
    params = init_sepconv_params(k_p, C_IN, C_OUT, KERNEL_SIZE)

    fwd = jax.jit(functools.partial(sepconv, kernel_size=KERNEL_SIZE,
                                    stride=STRIDE, padding=PADDING))
    out = jax.block_until_ready(fwd(x, params))

    assert out.shape == (N, C_OUT, H, W), out.shape
    assert bool(jnp.all(out >= 0.0))          # final ReLU

    ref = jax.block_until_ready(
        _sepconv_reference(x, params, kernel_size=KERNEL_SIZE,
                           stride=STRIDE, padding=PADDING))
    assert float(jnp.max(jnp.abs(out - ref))) < 5e-2, "mismatch vs reference"

    print("KERNEL_OK")
</pallas_src>

<mosaic_0001>
module attributes {stable_mosaic.version = 11 : i64} {
  func.func @_sepconv_kernel(%arg0: i32, %arg1: memref<1x16x512xf32, #tpu.memory_space<vmem>>, %arg2: memref<3x512x512xf32, #tpu.memory_space<vmem>>, %arg3: memref<1x512xf32, #tpu.memory_space<vmem>>, %arg4: memref<1x512xf32, #tpu.memory_space<vmem>>, %arg5: memref<1x512xf32, #tpu.memory_space<vmem>>, %arg6: memref<512x512xf32, #tpu.memory_space<vmem>>, %arg7: memref<3x512x512xf32, #tpu.memory_space<vmem>>, %arg8: memref<1x512xf32, #tpu.memory_space<vmem>>, %arg9: memref<1x512xf32, #tpu.memory_space<vmem>>, %arg10: memref<1x512xf32, #tpu.memory_space<vmem>>, %arg11: memref<512x512xf32, #tpu.memory_space<vmem>>, %arg12: memref<1x16x512xf32, #tpu.memory_space<vmem>>, %arg13: memref<18x512xf32, #tpu.memory_space<vmem>>, %arg14: memref<18x512xf32, #tpu.memory_space<vmem>>) attributes {dimension_semantics = [#tpu.dimension_semantics<parallel>], iteration_bounds = array<i64: 2>, scalar_prefetch = 0 : i64, scratch_operands = 2 : i64, tpu.core_type = #tpu.core_type<tc>, window_params = [{transform_indices = @transform_0, window_bounds = array<i64: 1, 16, 512>}, {pipeline_mode = #tpu.pipeline_mode<synchronous>, transform_indices = @transform_1, window_bounds = array<i64: 3, 512, 512>}, {pipeline_mode = #tpu.pipeline_mode<synchronous>, transform_indices = @transform_2, window_bounds = array<i64: 1, 512>}, {pipeline_mode = #tpu.pipeline_mode<synchronous>, transform_indices = @transform_3, window_bounds = array<i64: 1, 512>}, {pipeline_mode = #tpu.pipeline_mode<synchronous>, transform_indices = @transform_4, window_bounds = array<i64: 1, 512>}, {pipeline_mode = #tpu.pipeline_mode<synchronous>, transform_indices = @transform_5, window_bounds = array<i64: 512, 512>}, {pipeline_mode = #tpu.pipeline_mode<synchronous>, transform_indices = @transform_6, window_bounds = array<i64: 3, 512, 512>}, {pipeline_mode = #tpu.pipeline_mode<synchronous>, transform_indices = @transform_7, window_bounds = array<i64: 1, 512>}, {pipeline_mode = #tpu.pipeline_mode<synchronous>, transform_indices = @transform_8, window_bounds = array<i64: 1, 512>}, {pipeline_mode = #tpu.pipeline_mode<synchronous>, transform_indices = @transform_9, window_bounds = array<i64: 1, 512>}, {pipeline_mode = #tpu.pipeline_mode<synchronous>, transform_indices = @transform_10, window_bounds = array<i64: 512, 512>}, {transform_indices = @transform_11, window_bounds = array<i64: 1, 16, 512>}]} {
    %cst = arith.constant 0.000000e+00 : f32
    %0 = vector.broadcast %cst : f32 to vector<1x512xf32>
    %c0 = arith.constant 0 : index
    %c0_0 = arith.constant 0 : index
    %1 = vector.load %arg13[%c0, %c0_0] : memref<18x512xf32, #tpu.memory_space<vmem>>, vector<1x512xf32>
    tpu.vector_store %arg13[%c0, %c0_0], %0 {strides = array<i32>} : memref<18x512xf32, #tpu.memory_space<vmem>>, vector<1x512xf32>,
    %cst_1 = arith.constant 0.000000e+00 : f32
    %2 = vector.broadcast %cst_1 : f32 to vector<1x512xf32>
    %c17 = arith.constant 17 : index
    %c0_2 = arith.constant 0 : index
    %3 = vector.load %arg13[%c17, %c0_2] : memref<18x512xf32, #tpu.memory_space<vmem>>, vector<1x512xf32>
    tpu.vector_store %arg13[%c17, %c0_2], %2 {strides = array<i32>} : memref<18x512xf32, #tpu.memory_space<vmem>>, vector<1x512xf32>,
    %c0_3 = arith.constant 0 : index
    %c0_4 = arith.constant 0 : index
    %c0_5 = arith.constant 0 : index
    %4 = vector.load %arg1[%c0_3, %c0_4, %c0_5] : memref<1x16x512xf32, #tpu.memory_space<vmem>>, vector<1x16x512xf32>
    %5 = vector.shape_cast %4 : vector<1x16x512xf32> to vector<16x512xf32>
    %c1 = arith.constant 1 : index
    %c0_6 = arith.constant 0 : index
    %6 = vector.load %arg13[%c1, %c0_6] : memref<18x512xf32, #tpu.memory_space<vmem>>, vector<16x512xf32>
    tpu.vector_store %arg13[%c1, %c0_6], %5 {strides = array<i32>} : memref<18x512xf32, #tpu.memory_space<vmem>>, vector<16x512xf32>,
    %c0_7 = arith.constant 0 : index
    %c0_8 = arith.constant 0 : index
    %7 = vector.load %arg13[%c0_7, %c0_8] : memref<18x512xf32, #tpu.memory_space<vmem>>, vector<18x512xf32>
    %cst_9 = arith.constant 0.000000e+00 : f32
    %8 = vector.broadcast %cst_9 : f32 to vector<16x512xf32>
    %9 = vector.extract_strided_slice %7 {offsets = [0, 0], sizes = [16, 512], strides = [1, 1]} : vector<18x512xf32> to vector<16x512xf32>
    %c0_10 = arith.constant 0 : index
    %c0_11 = arith.constant 0 : index
    %c0_12 = arith.constant 0 : index
    %10 = vector.load %arg2[%c0_10, %c0_11, %c0_12] : memref<3x512x512xf32, #tpu.memory_space<vmem>>, vector<1x512x512xf32>
    %11 = vector.shape_cast %10 : vector<1x512x512xf32> to vector<512x512xf32>
    %cst_13 = arith.constant dense<0.000000e+00> : vector<16x512xf32>
    %12 = tpu.matmul %9, %11, %cst_13 {dimension_numbers = #tpu.dot_dimension_numbers<[1], [0], [0], [1], [0, 0, 1, 1], [], []>} : vector<16x512xf32>, vector<512x512xf32>, vector<16x512xf32> -> vector<16x512xf32>
    %13 = arith.addf %8, %12 : vector<16x512xf32>
    %14 = vector.extract_strided_slice %7 {offsets = [1, 0], sizes = [16, 512], strides = [1, 1]} : vector<18x512xf32> to vector<16x512xf32>
    %c1_14 = arith.constant 1 : index
    %c0_15 = arith.constant 0 : index
    %c0_16 = arith.constant 0 : index
    %15 = vector.load %arg2[%c1_14, %c0_15, %c0_16] : memref<3x512x512xf32, #tpu.memory_space<vmem>>, vector<1x512x512xf32>
    %16 = vector.shape_cast %15 : vector<1x512x512xf32> to vector<512x512xf32>
    %cst_17 = arith.constant dense<0.000000e+00> : vector<16x512xf32>
    %17 = tpu.matmul %14, %16, %cst_17 {dimension_numbers = #tpu.dot_dimension_numbers<[1], [0], [0], [1], [0, 0, 1, 1], [], []>} : vector<16x512xf32>, vector<512x512xf32>, vector<16x512xf32> -> vector<16x512xf32>
    %18 = arith.addf %13, %17 : vector<16x512xf32>
    %19 = vector.extract_strided_slice %7 {offsets = [2, 0], sizes = [16, 512], strides = [1, 1]} : vector<18x512xf32> to vector<16x512xf32>
    %c2 = arith.constant 2 : index
    %c0_18 = arith.constant 0 : index
    %c0_19 = arith.constant 0 : index
    %20 = vector.load %arg2[%c2, %c0_18, %c0_19] : memref<3x512x512xf32, #tpu.memory_space<vmem>>, vector<1x512x512xf32>
    %21 = vector.shape_cast %20 : vector<1x512x512xf32> to vector<512x512xf32>
    %cst_20 = arith.constant dense<0.000000e+00> : vector<16x512xf32>
    %22 = tpu.matmul %19, %21, %cst_20 {dimension_numbers = #tpu.dot_dimension_numbers<[1], [0], [0], [1], [0, 0, 1, 1], [], []>} : vector<16x512xf32>, vector<512x512xf32>, vector<16x512xf32> -> vector<16x512xf32>
    %23 = arith.addf %18, %22 : vector<16x512xf32>
    %c0_21 = arith.constant 0 : index
    %c0_22 = arith.constant 0 : index
    %24 = vector.load %arg3[%c0_21, %c0_22] : memref<1x512xf32, #tpu.memory_space<vmem>>, vector<1x512xf32>
    %25 = vector.broadcast %24 : vector<1x512xf32> to vector<16x512xf32>
    %26 = arith.addf %23, %25 : vector<16x512xf32>
    %cst_23 = arith.constant dense<0.000000e+00> : vector<512xf32>
    %27 = vector.multi_reduction <add>, %26, %cst_23 [0] : vector<16x512xf32> to vector<512xf32>
    %28 = vector.shape_cast %27 : vector<512xf32> to vector<1x512xf32>
    %cst_24 = arith.constant 1.600000e+01 : f32
    %29 = vector.broadcast %cst_24 : f32 to vector<1x512xf32>
    %30 = arith.divf %28, %29 : vector<1x512xf32>
    %c0_25 = arith.constant 0 : index
    %c0_26 = arith.constant 0 : index
    %31 = vector.load %arg6[%c0_25, %c0_26] : memref<512x512xf32, #tpu.memory_space<vmem>>, vector<512x512xf32>
    %cst_27 = arith.constant dense<0.000000e+00> : vector<1x512xf32>
    %32 = tpu.matmul %30, %31, %cst_27 {dimension_numbers = #tpu.dot_dimension_numbers<[1], [0], [0], [1], [0, 0, 1, 1], [], []>} : vector<1x512xf32>, vector<512x512xf32>, vector<1x512xf32> -> vector<1x512xf32>
    %33 = vector.broadcast %32 : vector<1x512xf32> to vector<16x512xf32>
    %34 = arith.subf %26, %33 : vector<16x512xf32>
    %35 = arith.mulf %34, %34 : vector<16x512xf32>
    %cst_28 = arith.constant dense<0.000000e+00> : vector<512xf32>
    %36 = vector.multi_reduction <add>, %35, %cst_28 [0] : vector<16x512xf32> to vector<512xf32>
    %37 = vector.shape_cast %36 : vector<512xf32> to vector<1x512xf32>
    %cst_29 = arith.constant 1.600000e+01 : f32
    %38 = vector.broadcast %cst_29 : f32 to vector<1x512xf32>
    %39 = arith.divf %37, %38 : vector<1x512xf32>
    %c0_30 = arith.constant 0 : index
    %c0_31 = arith.constant 0 : index
    %40 = vector.load %arg6[%c0_30, %c0_31] : memref<512x512xf32, #tpu.memory_space<vmem>>, vector<512x512xf32>
    %cst_32 = arith.constant dense<0.000000e+00> : vector<1x512xf32>
    %41 = tpu.matmul %39, %40, %cst_32 {dimension_numbers = #tpu.dot_dimension_numbers<[1], [0], [0], [1], [0, 0, 1, 1], [], []>} : vector<1x512xf32>, vector<512x512xf32>, vector<1x512xf32> -> vector<1x512xf32>
    %cst_33 = arith.constant 9.99999974E-6 : f32
    %42 = vector.broadcast %cst_33 : f32 to vector<1x512xf32>
    %43 = arith.addf %41, %42 : vector<1x512xf32>
    %44 = math.rsqrt %43 : vector<1x512xf32>
    %c0_34 = arith.constant 0 : index
    %c0_35 = arith.constant 0 : index
    %45 = vector.load %arg4[%c0_34, %c0_35] : memref<1x512xf32, #tpu.memory_space<vmem>>, vector<1x512xf32>
    %46 = arith.mulf %44, %45 : vector<1x512xf32>
    %47 = vector.broadcast %46 : vector<1x512xf32> to vector<16x512xf32>
    %48 = arith.mulf %34, %47 : vector<16x512xf32>
    %c0_36 = arith.constant 0 : index
    %c0_37 = arith.constant 0 : index
    %49 = vector.load %arg5[%c0_36, %c0_37] : memref<1x512xf32, #tpu.memory_space<vmem>>, vector<1x512xf32>
    %50 = vector.broadcast %49 : vector<1x512xf32> to vector<16x512xf32>
    %51 = arith.addf %48, %50 : vector<16x512xf32>
    %cst_38 = arith.constant 0.000000e+00 : f32
    %52 = vector.broadcast %cst_38 : f32 to vector<16x512xf32>
    %53 = arith.maximumf %51, %52 : vector<16x512xf32>
    %cst_39 = arith.constant 0.000000e+00 : f32
    %54 = vector.broadcast %cst_39 : f32 to vector<1x512xf32>
    %c0_40 = arith.constant 0 : index
    %c0_41 = arith.constant 0 : index
    %55 = vector.load %arg14[%c0_40, %c0_41] : memref<18x512xf32, #tpu.memory_space<vmem>>, vector<1x512xf32>
    tpu.vector_store %arg14[%c0_40, %c0_41], %54 {strides = array<i32>} : memref<18x512xf32, #tpu.memory_space<vmem>>, vector<1x512xf32>,
    %cst_42 = arith.constant 0.000000e+00 : f32
    %56 = vector.broadcast %cst_42 : f32 to vector<1x512xf32>
    %c17_43 = arith.constant 17 : index
    %c0_44 = arith.constant 0 : index
    %57 = vector.load %arg14[%c17_43, %c0_44] : memref<18x512xf32, #tpu.memory_space<vmem>>, vector<1x512xf32>
    tpu.vector_store %arg14[%c17_43, %c0_44], %56 {strides = array<i32>} : memref<18x512xf32, #tpu.memory_space<vmem>>, vector<1x512xf32>,
    %c1_45 = arith.constant 1 : index
    %c0_46 = arith.constant 0 : index
    %58 = vector.load %arg14[%c1_45, %c0_46] : memref<18x512xf32, #tpu.memory_space<vmem>>, vector<16x512xf32>
    tpu.vector_store %arg14[%c1_45, %c0_46], %53 {strides = array<i32>} : memref<18x512xf32, #tpu.memory_space<vmem>>, vector<16x512xf32>,
    %c0_47 = arith.constant 0 : index
    %c0_48 = arith.constant 0 : index
    %59 = vector.load %arg14[%c0_47, %c0_48] : memref<18x512xf32, #tpu.memory_space<vmem>>, vector<18x512xf32>
    %cst_49 = arith.constant 0.000000e+00 : f32
    %60 = vector.broadcast %cst_49 : f32 to vector<16x512xf32>
    %61 = vector.extract_strided_slice %59 {offsets = [0, 0], sizes = [16, 512], strides = [1, 1]} : vector<18x512xf32> to vector<16x512xf32>
    %c0_50 = arith.constant 0 : index
    %c0_51 = arith.constant 0 : index
    %c0_52 = arith.constant 0 : index
    %62 = vector.load %arg7[%c0_50, %c0_51, %c0_52] : memref<3x512x512xf32, #tpu.memory_space<vmem>>, vector<1x512x512xf32>
    %63 = vector.shape_cast %62 : vector<1x512x512xf32> to vector<512x512xf32>
    %cst_53 = arith.constant dense<0.000000e+00> : vector<16x512xf32>
    %64 = tpu.matmul %61, %63, %cst_53 {dimension_numbers = #tpu.dot_dimension_numbers<[1], [0], [0], [1], [0, 0, 1, 1], [], []>} : vector<16x512xf32>, vector<512x512xf32>, vector<16x512xf32> -> vector<16x512xf32>
    %65 = arith.addf %60, %64 : vector<16x512xf32>
    %66 = vector.extract_strided_slice %59 {offsets = [1, 0], sizes = [16, 512], strides = [1, 1]} : vector<18x512xf32> to vector<16x512xf32>
    %c1_54 = arith.constant 1 : index
    %c0_55 = arith.constant 0 : index
    %c0_56 = arith.constant 0 : index
    %67 = vector.load %arg7[%c1_54, %c0_55, %c0_56] : memref<3x512x512xf32, #tpu.memory_space<vmem>>, vector<1x512x512xf32>
    %68 = vector.shape_cast %67 : vector<1x512x512xf32> to vector<512x512xf32>
    %cst_57 = arith.constant dense<0.000000e+00> : vector<16x512xf32>
    %69 = tpu.matmul %66, %68, %cst_57 {dimension_numbers = #tpu.dot_dimension_numbers<[1], [0], [0], [1], [0, 0, 1, 1], [], []>} : vector<16x512xf32>, vector<512x512xf32>, vector<16x512xf32> -> vector<16x512xf32>
    %70 = arith.addf %65, %69 : vector<16x512xf32>
    %71 = vector.extract_strided_slice %59 {offsets = [2, 0], sizes = [16, 512], strides = [1, 1]} : vector<18x512xf32> to vector<16x512xf32>
    %c2_58 = arith.constant 2 : index
    %c0_59 = arith.constant 0 : index
    %c0_60 = arith.constant 0 : index
    %72 = vector.load %arg7[%c2_58, %c0_59, %c0_60] : memref<3x512x512xf32, #tpu.memory_space<vmem>>, vector<1x512x512xf32>
    %73 = vector.shape_cast %72 : vector<1x512x512xf32> to vector<512x512xf32>
    %cst_61 = arith.constant dense<0.000000e+00> : vector<16x512xf32>
    %74 = tpu.matmul %71, %73, %cst_61 {dimension_numbers = #tpu.dot_dimension_numbers<[1], [0], [0], [1], [0, 0, 1, 1], [], []>} : vector<16x512xf32>, vector<512x512xf32>, vector<16x512xf32> -> vector<16x512xf32>
    %75 = arith.addf %70, %74 : vector<16x512xf32>
    %c0_62 = arith.constant 0 : index
    %c0_63 = arith.constant 0 : index
    %76 = vector.load %arg8[%c0_62, %c0_63] : memref<1x512xf32, #tpu.memory_space<vmem>>, vector<1x512xf32>
    %77 = vector.broadcast %76 : vector<1x512xf32> to vector<16x512xf32>
    %78 = arith.addf %75, %77 : vector<16x512xf32>
    %cst_64 = arith.constant dense<0.000000e+00> : vector<512xf32>
    %79 = vector.multi_reduction <add>, %78, %cst_64 [0] : vector<16x512xf32> to vector<512xf32>
    %80 = vector.shape_cast %79 : vector<512xf32> to vector<1x512xf32>
    %cst_65 = arith.constant 1.600000e+01 : f32
    %81 = vector.broadcast %cst_65 : f32 to vector<1x512xf32>
    %82 = arith.divf %80, %81 : vector<1x512xf32>
    %c0_66 = arith.constant 0 : index
    %c0_67 = arith.constant 0 : index
    %83 = vector.load %arg11[%c0_66, %c0_67] : memref<512x512xf32, #tpu.memory_space<vmem>>, vector<512x512xf32>
    %cst_68 = arith.constant dense<0.000000e+00> : vector<1x512xf32>
    %84 = tpu.matmul %82, %83, %cst_68 {dimension_numbers = #tpu.dot_dimension_numbers<[1], [0], [0], [1], [0, 0, 1, 1], [], []>} : vector<1x512xf32>, vector<512x512xf32>, vector<1x512xf32> -> vector<1x512xf32>
    %85 = vector.broadcast %84 : vector<1x512xf32> to vector<16x512xf32>
    %86 = arith.subf %78, %85 : vector<16x512xf32>
    %87 = arith.mulf %86, %86 : vector<16x512xf32>
    %cst_69 = arith.constant dense<0.000000e+00> : vector<512xf32>
    %88 = vector.multi_reduction <add>, %87, %cst_69 [0] : vector<16x512xf32> to vector<512xf32>
    %89 = vector.shape_cast %88 : vector<512xf32> to vector<1x512xf32>
    %cst_70 = arith.constant 1.600000e+01 : f32
    %90 = vector.broadcast %cst_70 : f32 to vector<1x512xf32>
    %91 = arith.divf %89, %90 : vector<1x512xf32>
    %c0_71 = arith.constant 0 : index
    %c0_72 = arith.constant 0 : index
    %92 = vector.load %arg11[%c0_71, %c0_72] : memref<512x512xf32, #tpu.memory_space<vmem>>, vector<512x512xf32>
    %cst_73 = arith.constant dense<0.000000e+00> : vector<1x512xf32>
    %93 = tpu.matmul %91, %92, %cst_73 {dimension_numbers = #tpu.dot_dimension_numbers<[1], [0], [0], [1], [0, 0, 1, 1], [], []>} : vector<1x512xf32>, vector<512x512xf32>, vector<1x512xf32> -> vector<1x512xf32>
    %cst_74 = arith.constant 9.99999974E-6 : f32
    %94 = vector.broadcast %cst_74 : f32 to vector<1x512xf32>
    %95 = arith.addf %93, %94 : vector<1x512xf32>
    %96 = math.rsqrt %95 : vector<1x512xf32>
    %c0_75 = arith.constant 0 : index
    %c0_76 = arith.constant 0 : index
    %97 = vector.load %arg9[%c0_75, %c0_76] : memref<1x512xf32, #tpu.memory_space<vmem>>, vector<1x512xf32>
    %98 = arith.mulf %96, %97 : vector<1x512xf32>
    %99 = vector.broadcast %98 : vector<1x512xf32> to vector<16x512xf32>
    %100 = arith.mulf %86, %99 : vector<16x512xf32>
    %c0_77 = arith.constant 0 : index
    %c0_78 = arith.constant 0 : index
    %101 = vector.load %arg10[%c0_77, %c0_78] : memref<1x512xf32, #tpu.memory_space<vmem>>, vector<1x512xf32>
    %102 = vector.broadcast %101 : vector<1x512xf32> to vector<16x512xf32>
    %103 = arith.addf %100, %102 : vector<16x512xf32>
    %cst_79 = arith.constant 0.000000e+00 : f32
    %104 = vector.broadcast %cst_79 : f32 to vector<16x512xf32>
    %105 = arith.maximumf %103, %104 : vector<16x512xf32>
    %106 = vector.shape_cast %105 : vector<16x512xf32> to vector<1x16x512xf32>
    %c0_80 = arith.constant 0 : index
    %c0_81 = arith.constant 0 : index
    %c0_82 = arith.constant 0 : index
    %107 = vector.load %arg12[%c0_80, %c0_81, %c0_82] : memref<1x16x512xf32, #tpu.memory_space<vmem>>, vector<1x16x512xf32>
    tpu.vector_store %arg12[%c0_80, %c0_81, %c0_82], %106 {strides = array<i32>} : memref<1x16x512xf32, #tpu.memory_space<vmem>>, vector<1x16x512xf32>,
    return
  }
  func.func @transform_0(%arg0: i32) -> (i32, i32, i32) {
    %c0_i32 = arith.constant 0 : i32
    %c0_i32_0 = arith.constant 0 : i32
    %c0_i32_1 = arith.constant 0 : i32
    return %arg0, %c0_i32, %c0_i32_0 : i32, i32, i32
  }
  func.func @transform_1(%arg0: i32) -> (i32, i32, i32) {
    %c0_i32 = arith.constant 0 : i32
    %c0_i32_0 = arith.constant 0 : i32
    %c0_i32_1 = arith.constant 0 : i32
    %c0_i32_2 = arith.constant 0 : i32
    return %c0_i32, %c0_i32_0, %c0_i32_1 : i32, i32, i32
  }
  func.func @transform_2(%arg0: i32) -> (i32, i32) {
    %c0_i32 = arith.constant 0 : i32
    %c0_i32_0 = arith.constant 0 : i32
    %c0_i32_1 = arith.constant 0 : i32
    return %c0_i32, %c0_i32_0 : i32, i32
  }
  func.func @transform_3(%arg0: i32) -> (i32, i32) {
    %c0_i32 = arith.constant 0 : i32
    %c0_i32_0 = arith.constant 0 : i32
    %c0_i32_1 = arith.constant 0 : i32
    return %c0_i32, %c0_i32_0 : i32, i32
  }
  func.func @transform_4(%arg0: i32) -> (i32, i32) {
    %c0_i32 = arith.constant 0 : i32
    %c0_i32_0 = arith.constant 0 : i32
    %c0_i32_1 = arith.constant 0 : i32
    return %c0_i32, %c0_i32_0 : i32, i32
  }
  func.func @transform_5(%arg0: i32) -> (i32, i32) {
    %c0_i32 = arith.constant 0 : i32
    %c0_i32_0 = arith.constant 0 : i32
    %c0_i32_1 = arith.constant 0 : i32
    return %c0_i32, %c0_i32_0 : i32, i32
  }
  func.func @transform_6(%arg0: i32) -> (i32, i32, i32) {
    %c0_i32 = arith.constant 0 : i32
    %c0_i32_0 = arith.constant 0 : i32
    %c0_i32_1 = arith.constant 0 : i32
    %c0_i32_2 = arith.constant 0 : i32
    return %c0_i32, %c0_i32_0, %c0_i32_1 : i32, i32, i32
  }
  func.func @transform_7(%arg0: i32) -> (i32, i32) {
    %c0_i32 = arith.constant 0 : i32
    %c0_i32_0 = arith.constant 0 : i32
    %c0_i32_1 = arith.constant 0 : i32
    return %c0_i32, %c0_i32_0 : i32, i32
  }
  func.func @transform_8(%arg0: i32) -> (i32, i32) {
    %c0_i32 = arith.constant 0 : i32
    %c0_i32_0 = arith.constant 0 : i32
    %c0_i32_1 = arith.constant 0 : i32
    return %c0_i32, %c0_i32_0 : i32, i32
  }
  func.func @transform_9(%arg0: i32) -> (i32, i32) {
    %c0_i32 = arith.constant 0 : i32
    %c0_i32_0 = arith.constant 0 : i32
    %c0_i32_1 = arith.constant 0 : i32
    return %c0_i32, %c0_i32_0 : i32, i32
  }
  func.func @transform_10(%arg0: i32) -> (i32, i32) {
    %c0_i32 = arith.constant 0 : i32
    %c0_i32_0 = arith.constant 0 : i32
    %c0_i32_1 = arith.constant 0 : i32
    return %c0_i32, %c0_i32_0 : i32, i32
  }
  func.func @transform_11(%arg0: i32) -> (i32, i32, i32) {
    %c0_i32 = arith.constant 0 : i32
    %c0_i32_0 = arith.constant 0 : i32
    %c0_i32_1 = arith.constant 0 : i32
    return %arg0, %c0_i32, %c0_i32_0 : i32, i32, i32
  }
}

</mosaic_0001>

<llo_original>
// kernel: sepconv.1
$region0: #{sepconv.1}
  #allocation0 [shape = 'u32[]', space=smem, size = 0x4, offset = 0x4, fixed_abs, tag = 'smem constant byte address 0x4 - core index']
  #allocation1 [shape = 'u32[72,128]{1,0:T(1,128)}', space=vmem, size = 0x9000, scoped, tag = 'internal scratch']
  #allocation2 [shape = 'f32[18,512]{1,0:T(8,128)}', space=vmem, size = 0xc000, scoped, tag = 'scratch operand']
  #allocation3 [shape = 'f32[18,512]{1,0:T(8,128)}', space=vmem, size = 0xc000, scoped, tag = 'scratch operand']
  %s0 = inlined_call_operand.vmem [shape: f32[2,16,512], index: 0, kind: input, shape index: {}]
  %s1 = inlined_call_operand.vmem [shape: f32[3,512,512], index: 1, kind: input, shape index: {}]
  %s2 = inlined_call_operand.vmem [shape: f32[1,512], index: 2, kind: input, shape index: {}]
  %s3 = inlined_call_operand.vmem [shape: f32[1,512], index: 3, kind: input, shape index: {}]
  %s4 = inlined_call_operand.vmem [shape: f32[1,512], index: 4, kind: input, shape index: {}]
  %s5 = inlined_call_operand.vmem [shape: f32[512,512], index: 5, kind: input, shape index: {}, may-alias: {5,10}]
  %s6 = inlined_call_operand.vmem [shape: f32[3,512,512], index: 6, kind: input, shape index: {}]
  %s7 = inlined_call_operand.vmem [shape: f32[1,512], index: 7, kind: input, shape index: {}]
  %s8 = inlined_call_operand.vmem [shape: f32[1,512], index: 8, kind: input, shape index: {}]
  %s9 = inlined_call_operand.vmem [shape: f32[1,512], index: 9, kind: input, shape index: {}]
  %s10 = inlined_call_operand.vmem [shape: f32[512,512], index: 10, kind: input, shape index: {}, may-alias: {5,10}]
  %s11 = inlined_call_operand.vmem [shape: f32[2,16,512], index: 11, kind: output, shape index: {}]
  %s12 = sld [smem:[#allocation0]]
  $region77: #{sepconv.1} parent=0
    _
  %s14 = ssub.s32 1, %s12
  %s15 = scalar_select 0, %s14, %s12
  loop: start=0, step=1, limit=4
  $region2: #{sepconv.1} parent=0 // loop_pre_header
    _
  $region3: #{sepconv.1} parent=0 // loop_header
    %s17 = sphi 0, %s21
    %p18 = scmp.ge.s32.totalorder %s17, 4
    %s27 = sphi 0, %s29
    %s30 = sphi 0, %s27
    %s31 = sphi 0, %s30
    %s47 = sphi 0, %s31
    %s51 = sphi 0, %s51
    %s53 = sphi 0, %s51
    %s54 = sphi 0, %s53
    %s68 = sphi 0, %s54
    %s72 = sphi 0, %s72
    %s74 = sphi 0, %s72
    %s75 = sphi 0, %s74
    %s89 = sphi 0, %s75
    %s93 = sphi 0, %s93
    %s95 = sphi 0, %s93
    %s96 = sphi 0, %s95
    %s110 = sphi 0, %s96
    %s114 = sphi 0, %s114
    %s116 = sphi 0, %s114
    %s117 = sphi 0, %s116
    %s131 = sphi 0, %s117
    %s135 = sphi 0, %s135
    %s137 = sphi 0, %s135
    %s138 = sphi 0, %s137
    %s152 = sphi 0, %s138
    %s156 = sphi 0, %s156
    %s158 = sphi 0, %s156
    %s159 = sphi 0, %s158
    %s173 = sphi 0, %s159
    %s177 = sphi 0, %s177
    %s179 = sphi 0, %s177
    %s180 = sphi 0, %s179
    %s194 = sphi 0, %s180
    %s198 = sphi 0, %s198
    %s200 = sphi 0, %s198
    %s201 = sphi 0, %s200
    %s215 = sphi 0, %s201
    %s219 = sphi 0, %s219
    %s221 = sphi 0, %s219
    %s222 = sphi 0, %s221
    %s236 = sphi 0, %s222
    %s240 = sphi 0, %s240
    %s242 = sphi 0, %s240
    %s243 = sphi 0, %s242
    %s257 = sphi 0, %s243
    %s263 = sphi 0, %s265
    %s266 = sphi 0, %s263
    %s267 = sphi 0, %s266
    %s283 = sphi 0, %s267
  $region4: #{sepconv.1} parent=0 // loop_header_branch
    %20 = sbr.rel (%p18) target = $region8
  $region5: #{sepconv.1} parent=0 // loop_body
    %s22 = ssub.s32 %s17, 1
    %s23 = ssub.s32 %s17, 2
    %s24 = sadd.s32 %s17, 1
    %s25 = ssub.s32 %s17, %s24
    %p26 = scmp.eq.s32.totalorder %s25, 0
    %s28 = sadd.s32 %s27, 1
    %s29 = scalar_select %p26, %s27, %s28
    %p32 = pneg %p26
    %p33 = scmp.eq.s32.totalorder %s17, 1
    %p34 = por %p32, %p33
    %p35 = scmp.ne.s32.totalorder %s27, %s30
    %p36 = scmp.eq.s32.totalorder %s17, 0
    %p37 = por %p35, %p36
    %p38 = scmp.ne.s32.totalorder %s27, %s30
    %p39 = scmp.eq.s32.totalorder %s22, 1
    %p40 = por %p38, %p39
    %p41 = scmp.ne.s32.totalorder %s30, %s31
    %p42 = scmp.eq.s32.totalorder %s22, 0
    %p43 = por %p41, %p42
    %p44 = scmp.ne.s32.totalorder %s30, %s31
    %p45 = scmp.eq.s32.totalorder %s23, 1
    %p46 = por %p44, %p45
    %p48 = scmp.ne.s32.totalorder %s31, %s47
    %p49 = scmp.eq.s32.totalorder %s23, 0
    %p50 = por %p48, %p49
    %s52 = sadd.s32 %s51, 1
    %p55 = scmp.eq.s32.totalorder %s17, 1
    %p56 = scmp.ne.s32.totalorder %s51, %s53
    %p57 = scmp.eq.s32.totalorder %s17, 0
    %p58 = por %p56, %p57
    %p59 = scmp.ne.s32.totalorder %s51, %s53
    %p60 = scmp.eq.s32.totalorder %s22, 1
    %p61 = por %p59, %p60
    %p62 = scmp.ne.s32.totalorder %s53, %s54
    %p63 = scmp.eq.s32.totalorder %s22, 0
    %p64 = por %p62, %p63
    %p65 = scmp.ne.s32.totalorder %s53, %s54
    %p66 = scmp.eq.s32.totalorder %s23, 1
    %p67 = por %p65, %p66
    %p69 = scmp.ne.s32.totalorder %s54, %s68
    %p70 = scmp.eq.s32.totalorder %s23, 0
    %p71 = por %p69, %p70
    %s73 = sadd.s32 %s72, 1
    %p76 = scmp.eq.s32.totalorder %s17, 1
    %p77 = scmp.ne.s32.totalorder %s72, %s74
    %p78 = scmp.eq.s32.totalorder %s17, 0
    %p79 = por %p77, %p78
    %p80 = scmp.ne.s32.totalorder %s72, %s74
    %p81 = scmp.eq.s32.totalorder %s22, 1
    %p82 = por %p80, %p81
    %p83 = scmp.ne.s32.totalorder %s74, %s75
    %p84 = scmp.eq.s32.totalorder %s22, 0
    %p85 = por %p83, %p84
    %p86 = scmp.ne.s32.totalorder %s74, %s75
    %p87 = scmp.eq.s32.totalorder %s23, 1
    %p88 = por %p86, %p87
    %p90 = scmp.ne.s32.totalorder %s75, %s89
    %p91 = scmp.eq.s32.totalorder %s23, 0
    %p92 = por %p90, %p91
    %s94 = sadd.s32 %s93, 1
    %p97 = scmp.eq.s32.totalorder %s17, 1
    %p98 = scmp.ne.s32.totalorder %s93, %s95
    %p99 = scmp.eq.s32.totalorder %s17, 0
    %p100 = por %p98, %p99
    %p101 = scmp.ne.s32.totalorder %s93, %s95
    %p102 = scmp.eq.s32.totalorder %s22, 1
    %p103 = por %p101, %p102
    %p104 = scmp.ne.s32.totalorder %s95, %s96
    %p105 = scmp.eq.s32.totalorder %s22, 0
    %p106 = por %p104, %p105
    %p107 = scmp.ne.s32.totalorder %s95, %s96
    %p108 = scmp.eq.s32.totalorder %s23, 1
    %p109 = por %p107, %p108
    %p111 = scmp.ne.s32.totalorder %s96, %s110
    %p112 = scmp.eq.s32.totalorder %s23, 0
    %p113 = por %p111, %p112
    %s115 = sadd.s32 %s114, 1
    %p118 = scmp.eq.s32.totalorder %s17, 1
    %p119 = scmp.ne.s32.totalorder %s114, %s116
    %p120 = scmp.eq.s32.totalorder %s17, 0
    %p121 = por %p119, %p120
    %p122 = scmp.ne.s32.totalorder %s114, %s116
    %p123 = scmp.eq.s32.totalorder %s22, 1
    %p124 = por %p122, %p123
    %p125 = scmp.ne.s32.totalorder %s116, %s117
    %p126 = scmp.eq.s32.totalorder %s22, 0
    %p127 = por %p125, %p126
    %p128 = scmp.ne.s32.totalorder %s116, %s117
    %p129 = scmp.eq.s32.totalorder %s23, 1
    %p130 = por %p128, %p129
    %p132 = scmp.ne.s32.totalorder %s117, %s131
    %p133 = scmp.eq.s32.totalorder %s23, 0
    %p134 = por %p132, %p133
    %s136 = sadd.s32 %s135, 1
    %p139 = scmp.eq.s32.totalorder %s17, 1
    %p140 = scmp.ne.s32.totalorder %s135, %s137
    %p141 = scmp.eq.s32.totalorder %s17, 0
    %p142 = por %p140, %p141
    %p143 = scmp.ne.s32.totalorder %s135, %s137
    %p144 = scmp.eq.s32.totalorder %s22, 1
    %p145 = por %p143, %p144
    %p146 = scmp.ne.s32.totalorder %s137, %s138
    %p147 = scmp.eq.s32.totalorder %s22, 0
    %p148 = por %p146, %p147
    %p149 = scmp.ne.s32.totalorder %s137, %s138
    %p150 = scmp.eq.s32.totalorder %s23, 1
    %p151 = por %p149, %p150
    %p153 = scmp.ne.s32.totalorder %s138, %s152
    %p154 = scmp.eq.s32.totalorder %s23, 0
    %p155 = por %p153, %p154
    %s157 = sadd.s32 %s156, 1
    %p160 = scmp.eq.s32.totalorder %s17, 1
    %p161 = scmp.ne.s32.totalorder %s156, %s158
    %p162 = scmp.eq.s32.totalorder %s17, 0
    %p163 = por %p161, %p162
    %p164 = scmp.ne.s32.totalorder %s156, %s158
    %p165 = scmp.eq.s32.totalorder %s22, 1
    %p166 = por %p164, %p165
    %p167 = scmp.ne.s32.totalorder %s158, %s159
    %p168 = scmp.eq.s32.totalorder %s22, 0
    %p169 = por %p167, %p168
    %p170 = scmp.ne.s32.totalorder %s158, %s159
    %p171 = scmp.eq.s32.totalorder %s23, 1
    %p172 = por %p170, %p171
    %p174 = scmp.ne.s32.totalorder %s159, %s173
    %p175 = scmp.eq.s32.totalorder %s23, 0
    %p176 = por %p174, %p175
    %s178 = sadd.s32 %s177, 1
    %p181 = scmp.eq.s32.totalorder %s17, 1
    %p182 = scmp.ne.s32.totalorder %s177, %s179
    %p183 = scmp.eq.s32.totalorder %s17, 0
    %p184 = por %p182, %p183
    %p185 = scmp.ne.s32.totalorder %s177, %s179
    %p186 = scmp.eq.s32.totalorder %s22, 1
    %p187 = por %p185, %p186
    %p188 = scmp.ne.s32.totalorder %s179, %s180
    %p189 = scmp.eq.s32.totalorder %s22, 0
    %p190 = por %p188, %p189
    %p191 = scmp.ne.s32.totalorder %s179, %s180
    %p192 = scmp.eq.s32.totalorder %s23, 1
    %p193 = por %p191, %p192
    %p195 = scmp.ne.s32.totalorder %s180, %s194
    %p196 = scmp.eq.s32.totalorder %s23, 0
    %p197 = por %p195, %p196
    %s199 = sadd.s32 %s198, 1
    %p202 = scmp.eq.s32.totalorder %s17, 1
    %p203 = scmp.ne.s32.totalorder %s198, %s200
    %p204 = scmp.eq.s32.totalorder %s17, 0
    %p205 = por %p203, %p204
    %p206 = scmp.ne.s32.totalorder %s198, %s200
    %p207 = scmp.eq.s32.totalorder %s22, 1
    %p208 = por %p206, %p207
    %p209 = scmp.ne.s32.totalorder %s200, %s201
    %p210 = scmp.eq.s32.totalorder %s22, 0
    %p211 = por %p209, %p210
    %p212 = scmp.ne.s32.totalorder %s200, %s201
    %p213 = scmp.eq.s32.totalorder %s23, 1
    %p214 = por %p212, %p213
    %p216 = scmp.ne.s32.totalorder %s201, %s215
    %p217 = scmp.eq.s32.totalorder %s23, 0
    %p218 = por %p216, %p217
    %s220 = sadd.s32 %s219, 1
    %p223 = scmp.eq.s32.totalorder %s17, 1
    %p224 = scmp.ne.s32.totalorder %s219, %s221
    %p225 = scmp.eq.s32.totalorder %s17, 0
    %p226 = por %p224, %p225
    %p227 = scmp.ne.s32.totalorder %s219, %s221
    %p228 = scmp.eq.s32.totalorder %s22, 1
    %p229 = por %p227, %p228
    %p230 = scmp.ne.s32.totalorder %s221, %s222
    %p231 = scmp.eq.s32.totalorder %s22, 0
    %p232 = por %p230, %p231
    %p233 = scmp.ne.s32.totalorder %s221, %s222
    %p234 = scmp.eq.s32.totalorder %s23, 1
    %p235 = por %p233, %p234
    %p237 = scmp.ne.s32.totalorder %s222, %s236
    %p238 = scmp.eq.s32.totalorder %s23, 0
    %p239 = por %p237, %p238
    %s241 = sadd.s32 %s240, 1
    %p244 = scmp.eq.s32.totalorder %s17, 1
    %p245 = scmp.ne.s32.totalorder %s240, %s242
    %p246 = scmp.eq.s32.totalorder %s17, 0
    %p247 = por %p245, %p246
    %p248 = scmp.ne.s32.totalorder %s240, %s242
    %p249 = scmp.eq.s32.totalorder %s22, 1
    %p250 = por %p248, %p249
    %p251 = scmp.ne.s32.totalorder %s242, %s243
    %p252 = scmp.eq.s32.totalorder %s22, 0
    %p253 = por %p251, %p252
    %p254 = scmp.ne.s32.totalorder %s242, %s243
    %p255 = scmp.eq.s32.totalorder %s23, 1
    %p256 = por %p254, %p255
    %p258 = scmp.ne.s32.totalorder %s243, %s257
    %p259 = scmp.eq.s32.totalorder %s23, 0
    %p260 = por %p258, %p259
    %s261 = ssub.s32 %s17, %s24
    %p262 = scmp.eq.s32.totalorder %s261, 0
    %s264 = sadd.s32 %s263, 1
    %s265 = scalar_select %p262, %s263, %s264
    %p268 = pneg %p262
    %p269 = scmp.eq.s32.totalorder %s17, 1
    %p270 = por %p268, %p269
    %p271 = scmp.ne.s32.totalorder %s263, %s266
    %p272 = scmp.eq.s32.totalorder %s17, 0
    %p273 = por %p271, %p272
    %p274 = scmp.ne.s32.totalorder %s263, %s266
    %p275 = scmp.eq.s32.totalorder %s22, 1
    %p276 = por %p274, %p275
    %p277 = scmp.ne.s32.totalorder %s266, %s267
    %p278 = scmp.eq.s32.totalorder %s22, 0
    %p279 = por %p277, %p278
    %p280 = scmp.ne.s32.totalorder %s266, %s267
    %p281 = scmp.eq.s32.totalorder %s23, 1
    %p282 = por %p280, %p281
    %p284 = scmp.ne.s32.totalorder %s267, %s283
    %p285 = scmp.eq.s32.totalorder %s23, 0
    %p286 = por %p284, %p285
    %p287 = scmp.le.s32.totalorder 1, %s17
    %p288 = scmp.lt.s32.totalorder %s17, 3
    %p289 = pnand %p287, %p288
    %p290 = pneg %p289
    // Predicated region
    $region9: #{sepconv.1} parent=5 // pred_check
      _
    $region10: #{sepconv.1} parent=5 // pred_check_branch
      %292 = sbr.rel (%p289) target = $region12
    $region11: #{sepconv.1} parent=5 // pred_region
      %s293 = ssub.s32 %s17, 1
      // Predicated region
      $region13: #{sepconv.1} parent=11 // pred_check
        %p294 = pneg %p64
      $region14: #{sepconv.1} parent=11 // pred_check_branch
        %296 = sbr.rel (%p294) target = $region16
      $region15: #{sepconv.1} parent=11 // pred_region
        _
      $region16: #{sepconv.1} parent=11 // pred_fallthru
        _
      // Predicated region
      $region17: #{sepconv.1} parent=11 // pred_check
        %p297 = pneg %p85
      $region18: #{sepconv.1} parent=11 // pred_check_branch
        %299 = sbr.rel (%p297) target = $region20
      $region19: #{sepconv.1} parent=11 // pred_region
        _
      $region20: #{sepconv.1} parent=11 // pred_fallthru
        _
      // Predicated region
      $region21: #{sepconv.1} parent=11 // pred_check
        %p300 = pneg %p106
      $region22: #{sepconv.1} parent=11 // pred_check_branch
        %302 = sbr.rel (%p300) target = $region24
      $region23: #{sepconv.1} parent=11 // pred_region
        _
      $region24: #{sepconv.1} parent=11 // pred_fallthru
        _
      // Predicated region
      $region25: #{sepconv.1} parent=11 // pred_check
        %p303 = pneg %p127
      $region26: #{sepconv.1} parent=11 // pred_check_branch
        %305 = sbr.rel (%p303) target = $region28
      $region27: #{sepconv.1} parent=11 // pred_region
        _
      $region28: #{sepconv.1} parent=11 // pred_fallthru
        _
      // Predicated region
      $region29: #{sepconv.1} parent=11 // pred_check
        %p306 = pneg %p148
      $region30: #{sepconv.1} parent=11 // pred_check_branch
        %308 = sbr.rel (%p306) target = $region32
      $region31: #{sepconv.1} parent=11 // pred_region
        _
      $region32: #{sepconv.1} parent=11 // pred_fallthru
        _
      // Predicated region
      $region33: #{sepconv.1} parent=11 // pred_check
        %p309 = pneg %p169
      $region34: #{sepconv.1} parent=11 // pred_check_branch
        %311 = sbr.rel (%p309) target = $region36
      $region35: #{sepconv.1} parent=11 // pred_region
        _
      $region36: #{sepconv.1} parent=11 // pred_fallthru
        _
      // Predicated region
      $region37: #{sepconv.1} parent=11 // pred_check
        %p312 = pneg %p190
      $region38: #{sepconv.1} parent=11 // pred_check_branch
        %314 = sbr.rel (%p312) target = $region40
      $region39: #{sepconv.1} parent=11 // pred_region
        _
      $region40: #{sepconv.1} parent=11 // pred_fallthru
        _
      // Predicated region
      $region41: #{sepconv.1} parent=11 // pred_check
        %p315 = pneg %p211
      $region42: #{sepconv.1} parent=11 // pred_check_branch
        %317 = sbr.rel (%p315) target = $region44
      $region43: #{sepconv.1} parent=11 // pred_region
        _
      $region44: #{sepconv.1} parent=11 // pred_fallthru
        _
      // Predicated region
      $region45: #{sepconv.1} parent=11 // pred_check
        %p318 = pneg %p232
      $region46: #{sepconv.1} parent=11 // pred_check_branch
        %320 = sbr.rel (%p318) target = $region48
      $region47: #{sepconv.1} parent=11 // pred_region
        _
      $region48: #{sepconv.1} parent=11 // pred_fallthru
        _
      // Predicated region
      $region49: #{sepconv.1} parent=11 // pred_check
        %p321 = pneg %p253
      $region50: #{sepconv.1} parent=11 // pred_check_branch
        %323 = sbr.rel (%p321) target = $region52
      $region51: #{sepconv.1} parent=11 // pred_region
        _
      $region52: #{sepconv.1} parent=11 // pred_fallthru
        _
    $region12: #{sepconv.1} parent=5 // pred_fallthru
      _
    %p324 = scmp.lt.s32.totalorder %s17, 2
    // Predicated region
    $region53: #{sepconv.1} parent=5 // pred_check
      %p325 = pneg %p324
    $region54: #{sepconv.1} parent=5 // pred_check_branch
      %327 = sbr.rel (%p325) target = $region56
    $region55: #{sepconv.1} parent=5 // pred_region
      // Predicated region
      $region57: #{sepconv.1} parent=55 // pred_check
        %p328 = pneg %p37
      $region58: #{sepconv.1} parent=55 // pred_check_branch
        %330 = sbr.rel (%p328) target = $region60
      $region59: #{sepconv.1} parent=55 // pred_region
        %p331 = scmp.lt.s32.totalorder %s17, 1
        %s332 = scalar_select %p331, %s17, 1
        %s333 = smul.addr %s332, 8
        %s334 = smul.addr %s333, 8
        %s335 = scalar_lea.vmem %s0, %s334
      $region60: #{sepconv.1} parent=55 // pred_fallthru
        _
    $region56: #{sepconv.1} parent=5 // pred_fallthru
      _
    %p336 = scmp.le.s32.totalorder 1, %s17
    %p337 = scmp.lt.s32.totalorder %s17, 3
    %p338 = pnand %p336, %p337
    %p339 = pneg %p338
    // Predicated region
    $region61: #{sepconv.1} parent=5 // pred_check
      _
    $region62: #{sepconv.1} parent=5 // pred_check_branch
      %341 = sbr.rel (%p338) target = $region64
    $region63: #{sepconv.1} parent=5 // pred_region
      %s342 = ssub.s32 %s17, 1
      %p343 = scmp.lt.s32.totalorder %s22, 1
      %s344 = scalar_select %p343, %s22, 1
      %s345 = smul.addr %s344, 8
      %s346 = smul.addr %s345, 8
      %s347 = scalar_lea.vmem %s0, %s346
      %p348 = pneg %p43
      %p349 = pneg %p40
      %p350 = pneg %p64
      %p351 = pneg %p61
      %p352 = pneg %p85
      %p353 = pneg %p82
      %p354 = pneg %p106
      %p355 = pneg %p103
      %p356 = pneg %p127
      %p357 = pneg %p124
      %p358 = pneg %p148
      %p359 = pneg %p145
      %p360 = pneg %p169
      %p361 = pneg %p166
      %p362 = pneg %p190
      %p363 = pneg %p187
      %p364 = pneg %p211
      %p365 = pneg %p208
      %p366 = pneg %p232
      %p367 = pneg %p229
      %p368 = pneg %p253
      %p369 = pneg %p250
      %p370 = pneg %p279
      %p371 = pneg %p276
      %p372 = scmp.lt.s32.totalorder %s22, 1
      %s373 = scalar_select %p372, %s22, 1
      %s374 = smul.addr %s373, 8
      %s375 = smul.addr %s374, 8
      %s376 = scalar_lea.vmem %s11, %s375
      %p377 = scmp.lt.s32.totalorder %s22, 1
      %s378 = scalar_select %p377, %s22, 1
      %s379 = smul.addr %s378, 8
      %s380 = smul.addr %s379, 8
      %s381 = scalar_lea.vmem %s0, %s380
      %p382 = scmp.lt.s32.totalorder %s22, 1
      %s383 = scalar_select %p382, %s22, 1
      %s384 = smul.addr %s383, 8
      %s385 = smul.addr %s384, 8
      %s386 = scalar_lea.vmem %s11, %s385
      %v387 = vlaneseq
      %vm388 = vcmp.ge.s32.totalorder %v387, 0
      %vm389 = vcmp.lt.s32.totalorder %v387, 512
      %vm390 = vmand %vm388, %vm389
      %391 = vst.msk [vmem:[#allocation2] ss:$8 sm:$0xf] %vm390, 0.0
      %392 = vst.msk [vmem:[#allocation2] ss:$8 sm:$0x0] %vm390, 0.0
      %s393 = scalar_lea.vmem [#allocation2], 65
      %394 = vst.msk [vmem:[%s393] ss:$8 sm:$0xf] %vm390, 0.0
      %395 = vst.msk [vmem:[%s393] ss:$8 sm:$0x0] %vm390, 0.0
      %v396 = vld [vmem:[%s381] sm:$0xff]
      %v397 = vld [vmem:[%s381 + $0x8] sm:$0xff]
      %v398 = vld [vmem:[%s381 + $0x10] sm:$0xff]
      %v399 = vld [vmem:[%s381 + $0x18] sm:$0xff]
      %v400 = vld [vmem:[%s381 + $0x20] sm:$0xff]
      %v401 = vld [vmem:[%s381 + $0x28] sm:$0xff]
      %v402 = vld [vmem:[%s381 + $0x30] sm:$0xff]
      %v403 = vld [vmem:[%s381 + $0x38] sm:$0xff]
      %vm412 = vcmask 1040384
      %v413 = vrot.slane %v396, 7
      %v414 = vrot.slane %v397, 7
      %v415 = vrot.slane %v398, 7
      %v416 = vrot.slane %v399, 7
      %v417 = vrot.slane %v400, 7
      %v418 = vsel %vm412, %v413, %v417
      %v419 = vrot.slane %v401, 7
      %v420 = vsel %vm412, %v414, %v419
      %v421 = vrot.slane %v402, 7
      %v422 = vsel %vm412, %v415, %v421
      %v423 = vrot.slane %v403, 7
      %v424 = vsel %vm412, %v416, %v423
      %437 = vst [vmem:[#allocation2] sm:$0xfe] %v413
      %438 = vst [vmem:[#allocation2 + $0x8] sm:$0xfe] %v414
      %439 = vst [vmem:[#allocation2 + $0x10] sm:$0xfe] %v415
      %440 = vst [vmem:[#allocation2 + $0x18] sm:$0xfe] %v416
      %441 = vst [vmem:[#allocation2 + $0x20] sm:$0xff] %v418
      %442 = vst [vmem:[#allocation2 + $0x28] sm:$0xff] %v420
      %443 = vst [vmem:[#allocation2 + $0x30] sm:$0xff] %v422
      %444 = vst [vmem:[#allocation2 + $0x38] sm:$0xff] %v424
      %445 = vst [vmem:[#allocation2 + $0x40] sm:$0x1] %v417
      %446 = vst [vmem:[#allocation2 + $0x48] sm:$0x1] %v419
      %447 = vst [vmem:[#allocation2 + $0x50] sm:$0x1] %v421
      %448 = vst [vmem:[#allocation2 + $0x58] sm:$0x1] %v423
      %v449 = vld [vmem:[#allocation2] sm:$0xff]
      %v450 = vld [vmem:[#allocation2 + $0x8] sm:$0xff]
      %v451 = vld [vmem:[#allocation2 + $0x10] sm:$0xff]
      %v452 = vld [vmem:[#allocation2 + $0x18] sm:$0xff]
      %v453 = vld [vmem:[#allocation2 + $0x20] sm:$0xff]
      %v454 = vld [vmem:[#allocation2 + $0x28] sm:$0xff]
      %v455 = vld [vmem:[#allocation2 + $0x30] sm:$0xff]
      %v456 = vld [vmem:[#allocation2 + $0x38] sm:$0xff]
      %v457 = vld [vmem:[#allocation2 + $0x40] sm:$0x3]
      %v458 = vld [vmem:[#allocation2 + $0x48] sm:$0x3]
      %v459 = vld [vmem:[#allocation2 + $0x50] sm:$0x3]
      %v460 = vld [vmem:[#allocation2 + $0x58] sm:$0x3]
      %v461 = vld [vmem:[%s1] sm:$0xff]
      %v462 = vld [vmem:[%s1 + $0x8] sm:$0xff]
      %v463 = vld [vmem:[%s1 + $0x10] sm:$0xff]
      %v464 = vld [vmem:[%s1 + $0x18] sm:$0xff]
      %v465 = vld [vmem:[%s1 + $0x20] sm:$0xff]
      %v466 = vld [vmem:[%s1 + $0x28] sm:$0xff]
      %v467 = vld [vmem:[%s1 + $0x30] sm:$0xff]
      %v468 = vld [vmem:[%s1 + $0x38] sm:$0xff]
      %v469 = vld [vmem:[%s1 + $0x40] sm:$0xff]
      %v470 = vld [vmem:[%s1 + $0x48] sm:$0xff]
      %v471 = vld [vmem:[%s1 + $0x50] sm:$0xff]
      %v472 = vld [vmem:[%s1 + $0x58] sm:$0xff]
      %v473 = vld [vmem:[%s1 + $0x60] sm:$0xff]
      %v474 = vld [vmem:[%s1 + $0x68] sm:$0xff]
      %v475 = vld [vmem:[%s1 + $0x70] sm:$0xff]
      %v476 = vld [vmem:[%s1 + $0x78] sm:$0xff]
      %v477 = vld [vmem:[%s1 + $0x80] sm:$0xff]
      %v478 = vld [vmem:[%s1 + $0x88] sm:$0xff]
      %v479 = vld [vmem:[%s1 + $0x90] sm:$0xff]
      %v480 = vld [vmem:[%s1 + $0x98] sm:$0xff]
      %v481 = vld [vmem:[%s1 + $0xa0] sm:$0xff]
      %v482 = vld [vmem:[%s1 + $0xa8] sm:$0xff]
      %v483 = vld [vmem:[%s1 + $0xb0] sm:$0xff]
      %v484 = vld [vmem:[%s1 + $0xb8] sm:$0xff]
      %v485 = vld [vmem:[%s1 + $0xc0] sm:$0xff]
      %v486 = vld [vmem:[%s1 + $0xc8] sm:$0xff]
      %v487 = vld [vmem:[%s1 + $0xd0] sm:$0xff]
      %v488 = vld [vmem:[%s1 + $0xd8] sm:$0xff]
      %v489 = vld [vmem:[%s1 + $0xe0] sm:$0xff]
      %v490 = vld [vmem:[%s1 + $0xe8] sm:$0xff]
      %v491 = vld [vmem:[%s1 + $0xf0] sm:$0xff]
      %v492 = vld [vmem:[%s1 + $0xf8] sm:$0xff]
      %v493 = vld [vmem:[%s1 + $0x100] sm:$0xff]
      %v494 = vld [vmem:[%s1 + $0x108] sm:$0xff]
      %v495 = vld [vmem:[%s1 + $0x110] sm:$0xff]
      %v496 = vld [vmem:[%s1 + $0x118] sm:$0xff]
      %v497 = vld [vmem:[%s1 + $0x120] sm:$0xff]
      %v498 = vld [vmem:[%s1 + $0x128] sm:$0xff]
      %v499 = vld [vmem:[%s1 + $0x130] sm:$0xff]
      %v500 = vld [vmem:[%s1 + $0x138] sm:$0xff]
      %v501 = vld [vmem:[%s1 + $0x140] sm:$0xff]
      %v502 = vld [vmem:[%s1 + $0x148] sm:$0xff]
      %v503 = vld [vmem:[%s1 + $0x150] sm:$0xff]
      %v504 = vld [vmem:[%s1 + $0x158] sm:$0xff]
      %v505 = vld [vmem:[%s1 + $0x160] sm:$0xff]
      %v506 = vld [vmem:[%s1 + $0x168] sm:$0xff]
      %v507 = vld [vmem:[%s1 + $0x170] sm:$0xff]
      %v508 = vld [vmem:[%s1 + $0x178] sm:$0xff]
      %v509 = vld [vmem:[%s1 + $0x180] sm:$0xff]
      %v510 = vld [vmem:[%s1 + $0x188] sm:$0xff]
      %v511 = vld [vmem:[%s1 + $0x190] sm:$0xff]
      %v512 = vld [vmem:[%s1 + $0x198] sm:$0xff]
      %v513 = vld [vmem:[%s1 + $0x1a0] sm:$0xff]
      %v514 = vld [vmem:[%s1 + $0x1a8] sm:$0xff]
      %v515 = vld [vmem:[%s1 + $0x1b0] sm:$0xff]
      %v516 = vld [vmem:[%s1 + $0x1b8] sm:$0xff]
      %v517 = vld [vmem:[%s1 + $0x1c0] sm:$0xff]
      %v518 = vld [vmem:[%s1 + $0x1c8] sm:$0xff]
      %v519 = vld [vmem:[%s1 + $0x1d0] sm:$0xff]
      %v520 = vld [vmem:[%s1 + $0x1d8] sm:$0xff]
      %v521 = vld [vmem:[%s1 + $0x1e0] sm:$0xff]
      %v522 = vld [vmem:[%s1 + $0x1e8] sm:$0xff]
      %v523 = vld [vmem:[%s1 + $0x1f0] sm:$0xff]
      %v524 = vld [vmem:[%s1 + $0x1f8] sm:$0xff]
      %v525 = vld [vmem:[%s1 + $0x200] sm:$0xff]
      %v526 = vld [vmem:[%s1 + $0x208] sm:$0xff]
      %v527 = vld [vmem:[%s1 + $0x210] sm:$0xff]
      %v528 = vld [vmem:[%s1 + $0x218] sm:$0xff]
      %v529 = vld [vmem:[%s1 + $0x220] sm:$0xff]
      %v530 = vld [vmem:[%s1 + $0x228] sm:$0xff]
      %v531 = vld [vmem:[%s1 + $0x230] sm:$0xff]
      %v532 = vld [vmem:[%s1 + $0x238] sm:$0xff]
      %v533 = vld [vmem:[%s1 + $0x240] sm:$0xff]
      %v534 = vld [vmem:[%s1 + $0x248] sm:$0xff]
      %v535 = vld [vmem:[%s1 + $0x250] sm:$0xff]
      %v536 = vld [vmem:[%s1 + $0x258] sm:$0xff]
      %v537 = vld [vmem:[%s1 + $0x260] sm:$0xff]
      %v538 = vld [vmem:[%s1 + $0x268] sm:$0xff]
      %v539 = vld [vmem:[%s1 + $0x270] sm:$0xff]
      %v540 = vld [vmem:[%s1 + $0x278] sm:$0xff]
      %v541 = vld [vmem:[%s1 + $0x280] sm:$0xff]
      %v542 = vld [vmem:[%s1 + $0x288] sm:$0xff]
      %v543 = vld [vmem:[%s1 + $0x290] sm:$0xff]
      %v544 = vld [vmem:[%s1 + $0x298] sm:$0xff]
      %v545 = vld [vmem:[%s1 + $0x2a0] sm:$0xff]
      %v546 = vld [vmem:[%s1 + $0x2a8] sm:$0xff]
      %v547 = vld [vmem:[%s1 + $0x2b0] sm:$0xff]
      %v548 = vld [vmem:[%s1 + $0x2b8] sm:$0xff]
      %v549 = vld [vmem:[%s1 + $0x2c0] sm:$0xff]
      %v550 = vld [vmem:[%s1 + $0x2c8] sm:$0xff]
      %v551 = vld [vmem:[%s1 + $0x2d0] sm:$0xff]
      %v552 = vld [vmem:[%s1 + $0x2d8] sm:$0xff]
      %v553 = vld [vmem:[%s1 + $0x2e0] sm:$0xff]
      %v554 = vld [vmem:[%s1 + $0x2e8] sm:$0xff]
      %v555 = vld [vmem:[%s1 + $0x2f0] sm:$0xff]
      %v556 = vld [vmem:[%s1 + $0x2f8] sm:$0xff]
      %v557 = vld [vmem:[%s1 + $0x300] sm:$0xff]
      %v558 = vld [vmem:[%s1 + $0x308] sm:$0xff]
      %v559 = vld [vmem:[%s1 + $0x310] sm:$0xff]
      %v560 = vld [vmem:[%s1 + $0x318] sm:$0xff]
      %v561 = vld [vmem:[%s1 + $0x320] sm:$0xff]
      %v562 = vld [vmem:[%s1 + $0x328] sm:$0xff]
      %v563 = vld [vmem:[%s1 + $0x330] sm:$0xff]
      %v564 = vld [vmem:[%s1 + $0x338] sm:$0xff]
      %v565 = vld [vmem:[%s1 + $0x340] sm:$0xff]
      %v566 = vld [vmem:[%s1 + $0x348] sm:$0xff]
      %v567 = vld [vmem:[%s1 + $0x350] sm:$0xff]
      %v568 = vld [vmem:[%s1 + $0x358] sm:$0xff]
      %v569 = vld [vmem:[%s1 + $0x360] sm:$0xff]
      %v570 = vld [vmem:[%s1 + $0x368] sm:$0xff]
      %v571 = vld [vmem:[%s1 + $0x370] sm:$0xff]
      %v572 = vld [vmem:[%s1 + $0x378] sm:$0xff]
      %v573 = vld [vmem:[%s1 + $0x380] sm:$0xff]
      %v574 = vld [vmem:[%s1 + $0x388] sm:$0xff]
      %v575 = vld [vmem:[%s1 + $0x390] sm:$0xff]
      %v576 = vld [vmem:[%s1 + $0x398] sm:$0xff]
      %v577 = vld [vmem:[%s1 + $0x3a0] sm:$0xff]
      %v578 = vld [vmem:[%s1 + $0x3a8] sm:$0xff]
      %v579 = vld [vmem:[%s1 + $0x3b0] sm:$0xff]
      %v580 = vld [vmem:[%s1 + $0x3b8] sm:$0xff]
      %v581 = vld [vmem:[%s1 + $0x3c0] sm:$0xff]
      %v582 = vld [vmem:[%s1 + $0x3c8] sm:$0xff]
      %v583 = vld [vmem:[%s1 + $0x3d0] sm:$0xff]
      %v584 = vld [vmem:[%s1 + $0x3d8] sm:$0xff]
      %v585 = vld [vmem:[%s1 + $0x3e0] sm:$0xff]
      %v586 = vld [vmem:[%s1 + $0x3e8] sm:$0xff]
      %v587 = vld [vmem:[%s1 + $0x3f0] sm:$0xff]
      %v588 = vld [vmem:[%s1 + $0x3f8] sm:$0xff]
      %v589 = vld [vmem:[%s1 + $0x400] sm:$0xff]
      %v590 = vld [vmem:[%s1 + $0x408] sm:$0xff]
      %v591 = vld [vmem:[%s1 + $0x410] sm:$0xff]
      %v592 = vld [vmem:[%s1 + $0x418] sm:$0xff]
      %v593 = vld [vmem:[%s1 + $0x420] sm:$0xff]
      %v594 = vld [vmem:[%s1 + $0x428] sm:$0xff]
      %v595 = vld [vmem:[%s1 + $0x430] sm:$0xff]
      %v596 = vld [vmem:[%s1 + $0x438] sm:$0xff]
      %v597 = vld [vmem:[%s1 + $0x440] sm:$0xff]
      %v598 = vld [vmem:[%s1 + $0x448] sm:$0xff]
      %v599 = vld [vmem:[%s1 + $0x450] sm:$0xff]
      %v600 = vld [vmem:[%s1 + $0x458] sm:$0xff]
      %v601 = vld [vmem:[%s1 + $0x460] sm:$0xff]
      %v602 = vld [vmem:[%s1 + $0x468] sm:$0xff]
      %v603 = vld [vmem:[%s1 + $0x470] sm:$0xff]
      %v604 = vld [vmem:[%s1 + $0x478] sm:$0xff]
      %v605 = vld [vmem:[%s1 + $0x480] sm:$0xff]
      %v606 = vld [vmem:[%s1 + $0x488] sm:$0xff]
      %v607 = vld [vmem:[%s1 + $0x490] sm:$0xff]
      %v608 = vld [vmem:[%s1 + $0x498] sm:$0xff]
      %v609 = vld [vmem:[%s1 + $0x4a0] sm:$0xff]
      %v610 = vld [vmem:[%s1 + $0x4a8] sm:$0xff]
      %v611 = vld [vmem:[%s1 + $0x4b0] sm:$0xff]
      %v612 = vld [vmem:[%s1 + $0x4b8] sm:$0xff]
      %v613 = vld [vmem:[%s1 + $0x4c0] sm:$0xff]
      %v614 = vld [vmem:[%s1 + $0x4c8] sm:$0xff]
      %v615 = vld [vmem:[%s1 + $0x4d0] sm:$0xff]
      %v616 = vld [vmem:[%s1 + $0x4d8] sm:$0xff]
      %v617 = vld [vmem:[%s1 + $0x4e0] sm:$0xff]
      %v618 = vld [vmem:[%s1 + $0x4e8] sm:$0xff]
      %v619 = vld [vmem:[%s1 + $0x4f0] sm:$0xff]
      %v620 = vld [vmem:[%s1 + $0x4f8] sm:$0xff]
      %v621 = vld [vmem:[%s1 + $0x500] sm:$0xff]
      %v622 = vld [vmem:[%s1 + $0x508] sm:$0xff]
      %v623 = vld [vmem:[%s1 + $0x510] sm:$0xff]
      %v624 = vld [vmem:[%s1 + $0x518] sm:$0xff]
      %v625 = vld [vmem:[%s1 + $0x520] sm:$0xff]
      %v626 = vld [vmem:[%s1 + $0x528] sm:$0xff]
      %v627 = vld [vmem:[%s1 + $0x530] sm:$0xff]
      %v628 = vld [vmem:[%s1 + $0x538] sm:$0xff]
      %v629 = vld [vmem:[%s1 + $0x540] sm:$0xff]
      %v630 = vld [vmem:[%s1 + $0x548] sm:$0xff]
      %v631 = vld [vmem:[%s1 + $0x550] sm:$0xff]
      %v632 = vld [vmem:[%s1 + $0x558] sm:$0xff]
      %v633 = vld [vmem:[%s1 + $0x560] sm:$0xff]
      %v634 = vld [vmem:[%s1 + $0x568] sm:$0xff]
      %v635 = vld [vmem:[%s1 + $0x570] sm:$0xff]
      %v636 = vld [vmem:[%s1 + $0x578] sm:$0xff]
      %v637 = vld [vmem:[%s1 + $0x580] sm:$0xff]
      %v638 = vld [vmem:[%s1 + $0x588] sm:$0xff]
      %v639 = vld [vmem:[%s1 + $0x590] sm:$0xff]
      %v640 = vld [vmem:[%s1 + $0x598] sm:$0xff]
      %v641 = vld [vmem:[%s1 + $0x5a0] sm:$0xff]
      %v642 = vld [vmem:[%s1 + $0x5a8] sm:$0xff]
      %v643 = vld [vmem:[%s1 + $0x5b0] sm:$0xff]
      %v644 = vld [vmem:[%s1 + $0x5b8] sm:$0xff]
      %v645 = vld [vmem:[%s1 + $0x5c0] sm:$0xff]
      %v646 = vld [vmem:[%s1 + $0x5c8] sm:$0xff]
      %v647 = vld [vmem:[%s1 + $0x5d0] sm:$0xff]
      %v648 = vld [vmem:[%s1 + $0x5d8] sm:$0xff]
      %v649 = vld [vmem:[%s1 + $0x5e0] sm:$0xff]
      %v650 = vld [vmem:[%s1 + $0x5e8] sm:$0xff]
      %v651 = vld [vmem:[%s1 + $0x5f0] sm:$0xff]
      %v652 = vld [vmem:[%s1 + $0x5f8] sm:$0xff]
      %v653 = vld [vmem:[%s1 + $0x600] sm:$0xff]
      %v654 = vld [vmem:[%s1 + $0x608] sm:$0xff]
      %v655 = vld [vmem:[%s1 + $0x610] sm:$0xff]
      %v656 = vld [vmem:[%s1 + $0x618] sm:$0xff]
      %v657 = vld [vmem:[%s1 + $0x620] sm:$0xff]
      %v658 = vld [vmem:[%s1 + $0x628] sm:$0xff]
      %v659 = vld [vmem:[%s1 + $0x630] sm:$0xff]
      %v660 = vld [vmem:[%s1 + $0x638] sm:$0xff]
      %v661 = vld [vmem:[%s1 + $0x640] sm:$0xff]
      %v662 = vld [vmem:[%s1 + $0x648] sm:$0xff]
      %v663 = vld [vmem:[%s1 + $0x650] sm:$0xff]
      %v664 = vld [vmem:[%s1 + $0x658] sm:$0xff]
      %v665 = vld [vmem:[%s1 + $0x660] sm:$0xff]
      %v666 = vld [vmem:[%s1 + $0x668] sm:$0xff]
      %v667 = vld [vmem:[%s1 + $0x670] sm:$0xff]
      %v668 = vld [vmem:[%s1 + $0x678] sm:$0xff]
      %v669 = vld [vmem:[%s1 + $0x680] sm:$0xff]
      %v670 = vld [vmem:[%s1 + $0x688] sm:$0xff]
      %v671 = vld [vmem:[%s1 + $0x690] sm:$0xff]
      %v672 = vld [vmem:[%s1 + $0x698] sm:$0xff]
      %v673 = vld [vmem:[%s1 + $0x6a0] sm:$0xff]
      %v674 = vld [vmem:[%s1 + $0x6a8] sm:$0xff]
      %v675 = vld [vmem:[%s1 + $0x6b0] sm:$0xff]
      %v676 = vld [vmem:[%s1 + $0x6b8] sm:$0xff]
      %v677 = vld [vmem:[%s1 + $0x6c0] sm:$0xff]
      %v678 = vld [vmem:[%s1 + $0x6c8] sm:$0xff]
      %v679 = vld [vmem:[%s1 + $0x6d0] sm:$0xff]
      %v680 = vld [vmem:[%s1 + $0x6d8] sm:$0xff]
      %v681 = vld [vmem:[%s1 + $0x6e0] sm:$0xff]
      %v682 = vld [vmem:[%s1 + $0x6e8] sm:$0xff]
      %v683 = vld [vmem:[%s1 + $0x6f0] sm:$0xff]
      %v684 = vld [vmem:[%s1 + $0x6f8] sm:$0xff]
      %v685 = vld [vmem:[%s1 + $0x700] sm:$0xff]
      %v686 = vld [vmem:[%s1 + $0x708] sm:$0xff]
      %v687 = vld [vmem:[%s1 + $0x710] sm:$0xff]
      %v688 = vld [vmem:[%s1 + $0x718] sm:$0xff]
      %v689 = vld [vmem:[%s1 + $0x720] sm:$0xff]
      %v690 = vld [vmem:[%s1 + $0x728] sm:$0xff]
      %v691 = vld [vmem:[%s1 + $0x730] sm:$0xff]
      %v692 = vld [vmem:[%s1 + $0x738] sm:$0xff]
      %v693 = vld [vmem:[%s1 + $0x740] sm:$0xff]
      %v694 = vld [vmem:[%s1 + $0x748] sm:$0xff]
      %v695 = vld [vmem:[%s1 + $0x750] sm:$0xff]
      %v696 = vld [vmem:[%s1 + $0x758] sm:$0xff]
      %v697 = vld [vmem:[%s1 + $0x760] sm:$0xff]
      %v698 = vld [vmem:[%s1 + $0x768] sm:$0xff]
      %v699 = vld [vmem:[%s1 + $0x770] sm:$0xff]
      %v700 = vld [vmem:[%s1 + $0x778] sm:$0xff]
      %v701 = vld [vmem:[%s1 + $0x780] sm:$0xff]
      %v702 = vld [vmem:[%s1 + $0x788] sm:$0xff]
      %v703 = vld [vmem:[%s1 + $0x790] sm:$0xff]
      %v704 = vld [vmem:[%s1 + $0x798] sm:$0xff]
      %v705 = vld [vmem:[%s1 + $0x7a0] sm:$0xff]
      %v706 = vld [vmem:[%s1 + $0x7a8] sm:$0xff]
      %v707 = vld [vmem:[%s1 + $0x7b0] sm:$0xff]
      %v708 = vld [vmem:[%s1 + $0x7b8] sm:$0xff]
      %v709 = vld [vmem:[%s1 + $0x7c0] sm:$0xff]
      %v710 = vld [vmem:[%s1 + $0x7c8] sm:$0xff]
      %v711 = vld [vmem:[%s1 + $0x7d0] sm:$0xff]
      %v712 = vld [vmem:[%s1 + $0x7d8] sm:$0xff]
      %v713 = vld [vmem:[%s1 + $0x7e0] sm:$0xff]
      %v714 = vld [vmem:[%s1 + $0x7e8] sm:$0xff]
      %v715 = vld [vmem:[%s1 + $0x7f0] sm:$0xff]
      %v716 = vld [vmem:[%s1 + $0x7f8] sm:$0xff]
      %s717 = scalar_lea.vmem %s1, 2048
      %v718 = vld [vmem:[%s717] sm:$0xff]
      %v719 = vld [vmem:[%s717 + $0x8] sm:$0xff]
      %v720 = vld [vmem:[%s717 + $0x10] sm:$0xff]
      %v721 = vld [vmem:[%s717 + $0x18] sm:$0xff]
      %v722 = vld [vmem:[%s717 + $0x20] sm:$0xff]
      %v723 = vld [vmem:[%s717 + $0x28] sm:$0xff]
      %v724 = vld [vmem:[%s717 + $0x30] sm:$0xff]
      %v725 = vld [vmem:[%s717 + $0x38] sm:$0xff]
      %v726 = vld [vmem:[%s717 + $0x40] sm:$0xff]
      %v727 = vld [vmem:[%s717 + $0x48] sm:$0xff]
      %v728 = vld [vmem:[%s717 + $0x50] sm:$0xff]
      %v729 = vld [vmem:[%s717 + $0x58] sm:$0xff]
      %v730 = vld [vmem:[%s717 + $0x60] sm:$0xff]
      %v731 = vld [vmem:[%s717 + $0x68] sm:$0xff]
      %v732 = vld [vmem:[%s717 + $0x70] sm:$0xff]
      %v733 = vld [vmem:[%s717 + $0x78] sm:$0xff]
      %v734 = vld [vmem:[%s717 + $0x80] sm:$0xff]
      %v735 = vld [vmem:[%s717 + $0x88] sm:$0xff]
      %v736 = vld [vmem:[%s717 + $0x90] sm:$0xff]
      %v737 = vld [vmem:[%s717 + $0x98] sm:$0xff]
      %v738 = vld [vmem:[%s717 + $0xa0] sm:$0xff]
      %v739 = vld [vmem:[%s717 + $0xa8] sm:$0xff]
      %v740 = vld [vmem:[%s717 + $0xb0] sm:$0xff]
      %v741 = vld [vmem:[%s717 + $0xb8] sm:$0xff]
      %v742 = vld [vmem:[%s717 + $0xc0] sm:$0xff]
      %v743 = vld [vmem:[%s717 + $0xc8] sm:$0xff]
      %v744 = vld [vmem:[%s717 + $0xd0] sm:$0xff]
      %v745 = vld [vmem:[%s717 + $0xd8] sm:$0xff]
      %v746 = vld [vmem:[%s717 + $0xe0] sm:$0xff]
      %v747 = vld [vmem:[%s717 + $0xe8] sm:$0xff]
      %v748 = vld [vmem:[%s717 + $0xf0] sm:$0xff]
      %v749 = vld [vmem:[%s717 + $0xf8] sm:$0xff]
      %v750 = vld [vmem:[%s717 + $0x100] sm:$0xff]
      %v751 = vld [vmem:[%s717 + $0x108] sm:$0xff]
      %v752 = vld [vmem:[%s717 + $0x110] sm:$0xff]
      %v753 = vld [vmem:[%s717 + $0x118] sm:$0xff]
      %v754 = vld [vmem:[%s717 + $0x120] sm:$0xff]
      %v755 = vld [vmem:[%s717 + $0x128] sm:$0xff]
      %v756 = vld [vmem:[%s717 + $0x130] sm:$0xff]
      %v757 = vld [vmem:[%s717 + $0x138] sm:$0xff]
      %v758 = vld [vmem:[%s717 + $0x140] sm:$0xff]
      %v759 = vld [vmem:[%s717 + $0x148] sm:$0xff]
      %v760 = vld [vmem:[%s717 + $0x150] sm:$0xff]
      %v761 = vld [vmem:[%s717 + $0x158] sm:$0xff]
      %v762 = vld [vmem:[%s717 + $0x160] sm:$0xff]
      %v763 = vld [vmem:[%s717 + $0x168] sm:$0xff]
      %v764 = vld [vmem:[%s717 + $0x170] sm:$0xff]
      %v765 = vld [vmem:[%s717 + $0x178] sm:$0xff]
      %v766 = vld [vmem:[%s717 + $0x180] sm:$0xff]
      %v767 = vld [vmem:[%s717 + $0x188] sm:$0xff]
      %v768 = vld [vmem:[%s717 + $0x190] sm:$0xff]
      %v769 = vld [vmem:[%s717 + $0x198] sm:$0xff]
      %v770 = vld [vmem:[%s717 + $0x1a0] sm:$0xff]
      %v771 = vld [vmem:[%s717 + $0x1a8] sm:$0xff]
      %v772 = vld [vmem:[%s717 + $0x1b0] sm:$0xff]
      %v773 = vld [vmem:[%s717 + $0x1b8] sm:$0xff]
      %v774 = vld [vmem:[%s717 + $0x1c0] sm:$0xff]
      %v775 = vld [vmem:[%s717 + $0x1c8] sm:$0xff]
      %v776 = vld [vmem:[%s717 + $0x1d0] sm:$0xff]
      %v777 = vld [vmem:[%s717 + $0x1d8] sm:$0xff]
      %v778 = vld [vmem:[%s717 + $0x1e0] sm:$0xff]
      %v779 = vld [vmem:[%s717 + $0x1e8] sm:$0xff]
      %v780 = vld [vmem:[%s717 + $0x1f0] sm:$0xff]
      %v781 = vld [vmem:[%s717 + $0x1f8] sm:$0xff]
      %v782 = vld [vmem:[%s717 + $0x200] sm:$0xff]
      %v783 = vld [vmem:[%s717 + $0x208] sm:$0xff]
      %v784 = vld [vmem:[%s717 + $0x210] sm:$0xff]
      %v785 = vld [vmem:[%s717 + $0x218] sm:$0xff]
      %v786 = vld [vmem:[%s717 + $0x220] sm:$0xff]
      %v787 = vld [vmem:[%s717 + $0x228] sm:$0xff]
      %v788 = vld [vmem:[%s717 + $0x230] sm:$0xff]
      %v789 = vld [vmem:[%s717 + $0x238] sm:$0xff]
      %v790 = vld [vmem:[%s717 + $0x240] sm:$0xff]
      %v791 = vld [vmem:[%s717 + $0x248] sm:$0xff]
      %v792 = vld [vmem:[%s717 + $0x250] sm:$0xff]
      %v793 = vld [vmem:[%s717 + $0x258] sm:$0xff]
      %v794 = vld [vmem:[%s717 + $0x260] sm:$0xff]
      %v795 = vld [vmem:[%s717 + $0x268] sm:$0xff]
      %v796 = vld [vmem:[%s717 + $0x270] sm:$0xff]
      %v797 = vld [vmem:[%s717 + $0x278] sm:$0xff]
      %v798 = vld [vmem:[%s717 + $0x280] sm:$0xff]
      %v799 = vld [vmem:[%s717 + $0x288] sm:$0xff]
      %v800 = vld [vmem:[%s717 + $0x290] sm:$0xff]
      %v801 = vld [vmem:[%s717 + $0x298] sm:$0xff]
      %v802 = vld [vmem:[%s717 + $0x2a0] sm:$0xff]
      %v803 = vld [vmem:[%s717 + $0x2a8] sm:$0xff]
      %v804 = vld [vmem:[%s717 + $0x2b0] sm:$0xff]
      %v805 = vld [vmem:[%s717 + $0x2b8] sm:$0xff]
      %v806 = vld [vmem:[%s717 + $0x2c0] sm:$0xff]
      %v807 = vld [vmem:[%s717 + $0x2c8] sm:$0xff]
      %v808 = vld [vmem:[%s717 + $0x2d0] sm:$0xff]
      %v809 = vld [vmem:[%s717 + $0x2d8] sm:$0xff]
      %v810 = vld [vmem:[%s717 + $0x2e0] sm:$0xff]
      %v811 = vld [vmem:[%s717 + $0x2e8] sm:$0xff]
      %v812 = vld [vmem:[%s717 + $0x2f0] sm:$0xff]
      %v813 = vld [vmem:[%s717 + $0x2f8] sm:$0xff]
      %v814 = vld [vmem:[%s717 + $0x300] sm:$0xff]
      %v815 = vld [vmem:[%s717 + $0x308] sm:$0xff]
      %v816 = vld [vmem:[%s717 + $0x310] sm:$0xff]
      %v817 = vld [vmem:[%s717 + $0x318] sm:$0xff]
      %v818 = vld [vmem:[%s717 + $0x320] sm:$0xff]
      %v819 = vld [vmem:[%s717 + $0x328] sm:$0xff]
      %v820 = vld [vmem:[%s717 + $0x330] sm:$0xff]
      %v821 = vld [vmem:[%s717 + $0x338] sm:$0xff]
      %v822 = vld [vmem:[%s717 + $0x340] sm:$0xff]
      %v823 = vld [vmem:[%s717 + $0x348] sm:$0xff]
      %v824 = vld [vmem:[%s717 + $0x350] sm:$0xff]
      %v825 = vld [vmem:[%s717 + $0x358] sm:$0xff]
      %v826 = vld [vmem:[%s717 + $0x360] sm:$0xff]
      %v827 = vld [vmem:[%s717 + $0x368] sm:$0xff]
      %v828 = vld [vmem:[%s717 + $0x370] sm:$0xff]
      %v829 = vld [vmem:[%s717 + $0x378] sm:$0xff]
      %v830 = vld [vmem:[%s717 + $0x380] sm:$0xff]
      %v831 = vld [vmem:[%s717 + $0x388] sm:$0xff]
      %v832 = vld [vmem:[%s717 + $0x390] sm:$0xff]
      %v833 = vld [vmem:[%s717 + $0x398] sm:$0xff]
      %v834 = vld [vmem:[%s717 + $0x3a0] sm:$0xff]
      %v835 = vld [vmem:[%s717 + $0x3a8] sm:$0xff]
      %v836 = vld [vmem:[%s717 + $0x3b0] sm:$0xff]
      %v837 = vld [vmem:[%s717 + $0x3b8] sm:$0xff]
      %v838 = vld [vmem:[%s717 + $0x3c0] sm:$0xff]
      %v839 = vld [vmem:[%s717 + $0x3c8] sm:$0xff]
      %v840 = vld [vmem:[%s717 + $0x3d0] sm:$0xff]
      %v841 = vld [vmem:[%s717 + $0x3d8] sm:$0xff]
      %v842 = vld [vmem:[%s717 + $0x3e0] sm:$0xff]
      %v843 = vld [vmem:[%s717 + $0x3e8] sm:$0xff]
      %v844 = vld [vmem:[%s717 + $0x3f0] sm:$0xff]
      %v845 = vld [vmem:[%s717 + $0x3f8] sm:$0xff]
      %v846 = vld [vmem:[%s717 + $0x400] sm:$0xff]
      %v847 = vld [vmem:[%s717 + $0x408] sm:$0xff]
      %v848 = vld [vmem:[%s717 + $0x410] sm:$0xff]
      %v849 = vld [vmem:[%s717 + $0x418] sm:$0xff]
      %v850 = vld [vmem:[%s717 + $0x420] sm:$0xff]
      %v851 = vld [vmem:[%s717 + $0x428] sm:$0xff]
      %v852 = vld [vmem:[%s717 + $0x430] sm:$0xff]
      %v853 = vld [vmem:[%s717 + $0x438] sm:$0xff]
      %v854 = vld [vmem:[%s717 + $0x440] sm:$0xff]
      %v855 = vld [vmem:[%s717 + $0x448] sm:$0xff]
      %v856 = vld [vmem:[%s717 + $0x450] sm:$0xff]
      %v857 = vld [vmem:[%s717 + $0x458] sm:$0xff]
      %v858 = vld [vmem:[%s717 + $0x460] sm:$0xff]
      %v859 = vld [vmem:[%s717 + $0x468] sm:$0xff]
      %v860 = vld [vmem:[%s717 + $0x470] sm:$0xff]
      %v861 = vld [vmem:[%s717 + $0x478] sm:$0xff]
      %v862 = vld [vmem:[%s717 + $0x480] sm:$0xff]
      %v863 = vld [vmem:[%s717 + $0x488] sm:$0xff]
      %v864 = vld [vmem:[%s717 + $0x490] sm:$0xff]
      %v865 = vld [vmem:[%s717 + $0x498] sm:$0xff]
      %v866 = vld [vmem:[%s717 + $0x4a0] sm:$0xff]
      %v867 = vld [vmem:[%s717 + $0x4a8] sm:$0xff]
      %v868 = vld [vmem:[%s717 + $0x4b0] sm:$0xff]
      %v869 = vld [vmem:[%s717 + $0x4b8] sm:$0xff]
      %v870 = vld [vmem:[%s717 + $0x4c0] sm:$0xff]
      %v871 = vld [vmem:[%s717 + $0x4c8] sm:$0xff]
      %v872 = vld [vmem:[%s717 + $0x4d0] sm:$0xff]
      %v873 = vld [vmem:[%s717 + $0x4d8] sm:$0xff]
      %v874 = vld [vmem:[%s717 + $0x4e0] sm:$0xff]
      %v875 = vld [vmem:[%s717 + $0x4e8] sm:$0xff]
      %v876 = vld [vmem:[%s717 + $0x4f0] sm:$0xff]
      %v877 = vld [vmem:[%s717 + $0x4f8] sm:$0xff]
      %v878 = vld [vmem:[%s717 + $0x500] sm:$0xff]
      %v879 = vld [vmem:[%s717 + $0x508] sm:$0xff]
      %v880 = vld [vmem:[%s717 + $0x510] sm:$0xff]
      %v881 = vld [vmem:[%s717 + $0x518] sm:$0xff]
      %v882 = vld [vmem:[%s717 + $0x520] sm:$0xff]
      %v883 = vld [vmem:[%s717 + $0x528] sm:$0xff]
      %v884 = vld [vmem:[%s717 + $0x530] sm:$0xff]
      %v885 = vld [vmem:[%s717 + $0x538] sm:$0xff]
      %v886 = vld [vmem:[%s717 + $0x540] sm:$0xff]
      %v887 = vld [vmem:[%s717 + $0x548] sm:$0xff]
      %v888 = vld [vmem:[%s717 + $0x550] sm:$0xff]
      %v889 = vld [vmem:[%s717 + $0x558] sm:$0xff]
      %v890 = vld [vmem:[%s717 + $0x560] sm:$0xff]
      %v891 = vld [vmem:[%s717 + $0x568] sm:$0xff]
      %v892 = vld [vmem:[%s717 + $0x570] sm:$0xff]
      %v893 = vld [vmem:[%s717 + $0x578] sm:$0xff]
      %v894 = vld [vmem:[%s717 + $0x580] sm:$0xff]
      %v895 = vld [vmem:[%s717 + $0x588] sm:$0xff]
      %v896 = vld [vmem:[%s717 + $0x590] sm:$0xff]
      %v897 = vld [vmem:[%s717 + $0x598] sm:$0xff]
      %v898 = vld [vmem:[%s717 + $0x5a0] sm:$0xff]
      %v899 = vld [vmem:[%s717 + $0x5a8] sm:$0xff]
      %v900 = vld [vmem:[%s717 + $0x5b0] sm:$0xff]
      %v901 = vld [vmem:[%s717 + $0x5b8] sm:$0xff]
      %v902 = vld [vmem:[%s717 + $0x5c0] sm:$0xff]
      %v903 = vld [vmem:[%s717 + $0x5c8] sm:$0xff]
      %v904 = vld [vmem:[%s717 + $0x5d0] sm:$0xff]
      %v905 = vld [vmem:[%s717 + $0x5d8] sm:$0xff]
      %v906 = vld [vmem:[%s717 + $0x5e0] sm:$0xff]
      %v907 = vld [vmem:[%s717 + $0x5e8] sm:$0xff]
      %v908 = vld [vmem:[%s717 + $0x5f0] sm:$0xff]
      %v909 = vld [vmem:[%s717 + $0x5f8] sm:$0xff]
      %v910 = vld [vmem:[%s717 + $0x600] sm:$0xff]
      %v911 = vld [vmem:[%s717 + $0x608] sm:$0xff]
      %v912 = vld [vmem:[%s717 + $0x610] sm:$0xff]
      %v913 = vld [vmem:[%s717 + $0x618] sm:$0xff]
      %v914 = vld [vmem:[%s717 + $0x620] sm:$0xff]
      %v915 = vld [vmem:[%s717 + $0x628] sm:$0xff]
      %v916 = vld [vmem:[%s717 + $0x630] sm:$0xff]
      %v917 = vld [vmem:[%s717 + $0x638] sm:$0xff]
      %v918 = vld [vmem:[%s717 + $0x640] sm:$0xff]
      %v919 = vld [vmem:[%s717 + $0x648] sm:$0xff]
      %v920 = vld [vmem:[%s717 + $0x650] sm:$0xff]
      %v921 = vld [vmem:[%s717 + $0x658] sm:$0xff]
      %v922 = vld [vmem:[%s717 + $0x660] sm:$0xff]
      %v923 = vld [vmem:[%s717 + $0x668] sm:$0xff]
      %v924 = vld [vmem:[%s717 + $0x670] sm:$0xff]
      %v925 = vld [vmem:[%s717 + $0x678] sm:$0xff]
      %v926 = vld [vmem:[%s717 + $0x680] sm:$0xff]
      %v927 = vld [vmem:[%s717 + $0x688] sm:$0xff]
      %v928 = vld [vmem:[%s717 + $0x690] sm:$0xff]
      %v929 = vld [vmem:[%s717 + $0x698] sm:$0xff]
      %v930 = vld [vmem:[%s717 + $0x6a0] sm:$0xff]
      %v931 = vld [vmem:[%s717 + $0x6a8] sm:$0xff]
      %v932 = vld [vmem:[%s717 + $0x6b0] sm:$0xff]
      %v933 = vld [vmem:[%s717 + $0x6b8] sm:$0xff]
      %v934 = vld [vmem:[%s717 + $0x6c0] sm:$0xff]
      %v935 = vld [vmem:[%s717 + $0x6c8] sm:$0xff]
      %v936 = vld [vmem:[%s717 + $0x6d0] sm:$0xff]
      %v937 = vld [vmem:[%s717 + $0x6d8] sm:$0xff]
      %v938 = vld [vmem:[%s717 + $0x6e0] sm:$0xff]
      %v939 = vld [vmem:[%s717 + $0x6e8] sm:$0xff]
      %v940 = vld [vmem:[%s717 + $0x6f0] sm:$0xff]
      %v941 = vld [vmem:[%s717 + $0x6f8] sm:$0xff]
      %v942 = vld [vmem:[%s717 + $0x700] sm:$0xff]
      %v943 = vld [vmem:[%s717 + $0x708] sm:$0xff]
      %v944 = vld [vmem:[%s717 + $0x710] sm:$0xff]
      %v945 = vld [vmem:[%s717 + $0x718] sm:$0xff]
      %v946 = vld [vmem:[%s717 + $0x720] sm:$0xff]
      %v947 = vld [vmem:[%s717 + $0x728] sm:$0xff]
      %v948 = vld [vmem:[%s717 + $0x730] sm:$0xff]
      %v949 = vld [vmem:[%s717 + $0x738] sm:$0xff]
      %v950 = vld [vmem:[%s717 + $0x740] sm:$0xff]
      %v951 = vld [vmem:[%s717 + $0x748] sm:$0xff]
      %v952 = vld [vmem:[%s717 + $0x750] sm:$0xff]
      %v953 = vld [vmem:[%s717 + $0x758] sm:$0xff]
      %v954 = vld [vmem:[%s717 + $0x760] sm:$0xff]
      %v955 = vld [vmem:[%s717 + $0x768] sm:$0xff]
      %v956 = vld [vmem:[%s717 + $0x770] sm:$0xff]
      %v957 = vld [vmem:[%s717 + $0x778] sm:$0xff]
      %v958 = vld [vmem:[%s717 + $0x780] sm:$0xff]
      %v959 = vld [vmem:[%s717 + $0x788] sm:$0xff]
      %v960 = vld [vmem:[%s717 + $0x790] sm:$0xff]
      %v961 = vld [vmem:[%s717 + $0x798] sm:$0xff]
      %v962 = vld [vmem:[%s717 + $0x7a0] sm:$0xff]
      %v963 = vld [vmem:[%s717 + $0x7a8] sm:$0xff]
      %v964 = vld [vmem:[%s717 + $0x7b0] sm:$0xff]
      %v965 = vld [vmem:[%s717 + $0x7b8] sm:$0xff]
      %v966 = vld [vmem:[%s717 + $0x7c0] sm:$0xff]
      %v967 = vld [vmem:[%s717 + $0x7c8] sm:$0xff]
      %v968 = vld [vmem:[%s717 + $0x7d0] sm:$0xff]
      %v969 = vld [vmem:[%s717 + $0x7d8] sm:$0xff]
      %v970 = vld [vmem:[%s717 + $0x7e0] sm:$0xff]
      %v971 = vld [vmem:[%s717 + $0x7e8] sm:$0xff]
      %v972 = vld [vmem:[%s717 + $0x7f0] sm:$0xff]
      %v973 = vld [vmem:[%s717 + $0x7f8] sm:$0xff]
      %vm986 = vcmask 1046528
      %v987 = vrot.slane %v449, 1
      %v988 = vrot.slane %v453, 1
      %v989 = vsel %vm986, %v987, %v988
      %v990 = vrot.slane %v450, 1
      %v991 = vrot.slane %v454, 1
      %v992 = vsel %vm986, %v990, %v991
      %v993 = vrot.slane %v451, 1
      %v994 = vrot.slane %v455, 1
      %v995 = vsel %vm986, %v993, %v994
      %v996 = vrot.slane %v452, 1
      %v997 = vrot.slane %v456, 1
      %v998 = vsel %vm986, %v996, %v997
      %v999 = vrot.slane %v457, 1
      %v1000 = vsel %vm986, %v988, %v999
      %v1001 = vrot.slane %v458, 1
      %v1002 = vsel %vm986, %v991, %v1001
      %v1003 = vrot.slane %v459, 1
      %v1004 = vsel %vm986, %v994, %v1003
      %v1005 = vrot.slane %v460, 1
      %v1006 = vsel %vm986, %v997, %v1005
      %1015 = vmatpush.msra.mxu0 %v778
      %1016 = vmatpush.msra.mxu0 %v774
      %1017 = vmatpush.msra.mxu0 %v770
      %1018 = vmatpush.msra.mxu0 %v766
      %1019 = vmatpush.msra.mxu0 %v762
      %1020 = vmatpush.msra.mxu0 %v758
      %1021 = vmatpush.msra.mxu0 %v754
      %1022 = vmatpush.msra.mxu0 %v750
      %1023 = vmatpush.msra.mxu0 %v746
      %1024 = vmatpush.msra.mxu0 %v742
      %1025 = vmatpush.msra.mxu0 %v738
      %1026 = vmatpush.msra.mxu0 %v734
      %1027 = vmatpush.msra.mxu0 %v730
      %1028 = vmatpush.msra.mxu0 %v726
      %1029 = vmatpush.msra.mxu0 %v722
      %1030 = vmatpush.msra.mxu0 %v718
      %1031 = vmatmul.f32.gmra.mxu0 %v989
      %v1032 = vpop.f32.mrf.mxu0
      %v1033 = vadd.f32 0.0, %v1032
      %1034 = vmatmul.f32.gmra.mxu0 %v1000
      %v1035 = vpop.f32.mrf.mxu0
      %v1036 = vadd.f32 0.0, %v1035
      %1037 = vdwg.mxu0
      %1038 = vmatpush.msra.mxu0 %v842
      %1039 = vmatpush.msra.mxu0 %v838
      %1040 = vmatpush.msra.mxu0 %v834
      %1041 = vmatpush.msra.mxu0 %v830
      %1042 = vmatpush.msra.mxu0 %v826
      %1043 = vmatpush.msra.mxu0 %v822
      %1044 = vmatpush.msra.mxu0 %v818
      %1045 = vmatpush.msra.mxu0 %v814
      %1046 = vmatpush.msra.mxu0 %v810
      %1047 = vmatpush.msra.mxu0 %v806
      %1048 = vmatpush.msra.mxu0 %v802
      %1049 = vmatpush.msra.mxu0 %v798
      %1050 = vmatpush.msra.mxu0 %v794
      %1051 = vmatpush.msra.mxu0 %v790
      %1052 = vmatpush.msra.mxu0 %v786
      %1053 = vmatpush.msra.mxu0 %v782
      %1054 = vmatmul.f32.gmra.mxu0 %v992
      %v1055 = vpop.f32.mrf.mxu0
      %v1056 = vadd.f32 %v1033, %v1055
      %1057 = vmatmul.f32.gmra.mxu0 %v1002
      %v1058 = vpop.f32.mrf.mxu0
      %v1059 = vadd.f32 %v1036, %v1058
      %1060 = vdwg.mxu0
      %1061 = vmatpush.msra.mxu0 %v906
      %1062 = vmatpush.msra.mxu0 %v902
      %1063 = vmatpush.msra.mxu0 %v898
      %1064 = vmatpush.msra.mxu0 %v894
      %1065 = vmatpush.msra.mxu0 %v890
      %1066 = vmatpush.msra.mxu0 %v886
      %1067 = vmatpush.msra.mxu0 %v882
      %1068 = vmatpush.msra.mxu0 %v878
      %1069 = vmatpush.msra.mxu0 %v874
      %1070 = vmatpush.msra.mxu0 %v870
      %1071 = vmatpush.msra.mxu0 %v866
      %1072 = vmatpush.msra.mxu0 %v862
      %1073 = vmatpush.msra.mxu0 %v858
      %1074 = vmatpush.msra.mxu0 %v854
      %1075 = vmatpush.msra.mxu0 %v850
      %1076 = vmatpush.msra.mxu0 %v846
      %1077 = vmatmul.f32.gmra.mxu0 %v995
      %v1078 = vpop.f32.mrf.mxu0
      %v1079 = vadd.f32 %v1056, %v1078
      %1080 = vmatmul.f32.gmra.mxu0 %v1004
      %v1081 = vpop.f32.mrf.mxu0
      %v1082 = vadd.f32 %v1059, %v1081
      %1083 = vdwg.mxu0
      %1084 = vmatpush.msra.mxu0 %v970
      %1085 = vmatpush.msra.mxu0 %v966
      %1086 = vmatpush.msra.mxu0 %v962
      %1087 = vmatpush.msra.mxu0 %v958
      %1088 = vmatpush.msra.mxu0 %v954
      %1089 = vmatpush.msra.mxu0 %v950
      %1090 = vmatpush.msra.mxu0 %v946
      %1091 = vmatpush.msra.mxu0 %v942
      %1092 = vmatpush.msra.mxu0 %v938
      %1093 = vmatpush.msra.mxu0 %v934
      %1094 = vmatpush.msra.mxu0 %v930
      %1095 = vmatpush.msra.mxu0 %v926
      %1096 = vmatpush.msra.mxu0 %v922
      %1097 = vmatpush.msra.mxu0 %v918
      %1098 = vmatpush.msra.mxu0 %v914
      %1099 = vmatpush.msra.mxu0 %v910
      %1100 = vmatmul.f32.gmra.mxu0 %v998
      %v1101 = vpop.f32.mrf.mxu0
      %v1102 = vadd.f32 %v1079, %v1101
      %1103 = vmatmul.f32.gmra.mxu0 %v1006
      %v1104 = vpop.f32.mrf.mxu0
      %v1105 = vadd.f32 %v1082, %v1104
      %1106 = vdwg.mxu0
      %1107 = vmatpush.msra.mxu0 %v779
      %1108 = vmatpush.msra.mxu0 %v775
      %1109 = vmatpush.msra.mxu0 %v771
      %1110 = vmatpush.msra.mxu0 %v767
      %1111 = vmatpush.msra.mxu0 %v763
      %1112 = vmatpush.msra.mxu0 %v759
      %1113 = vmatpush.msra.mxu0 %v755
      %1114 = vmatpush.msra.mxu0 %v751
      %1115 = vmatpush.msra.mxu0 %v747
      %1116 = vmatpush.msra.mxu0 %v743
      %1117 = vmatpush.msra.mxu0 %v739
      %1118 = vmatpush.msra.mxu0 %v735
      %1119 = vmatpush.msra.mxu0 %v731
      %1120 = vmatpush.msra.mxu0 %v727
      %1121 = vmatpush.msra.mxu0 %v723
      %1122 = vmatpush.msra.mxu0 %v719
      %1123 = vmatmul.f32.gmra.mxu0 %v989
      %v1124 = vpop.f32.mrf.mxu0
      %v1125 = vadd.f32 0.0, %v1124
      %1126 = vmatmul.f32.gmra.mxu0 %v1000
      %v1127 = vpop.f32.mrf.mxu0
      %v1128 = vadd.f32 0.0, %v1127
      %1129 = vdwg.mxu0
      %1130 = vmatpush.msra.mxu0 %v843
      %1131 = vmatpush.msra.mxu0 %v839
      %1132 = vmatpush.msra.mxu0 %v835
      %1133 = vmatpush.msra.mxu0 %v831
      %1134 = vmatpush.msra.mxu0 %v827
      %1135 = vmatpush.msra.mxu0 %v823
      %1136 = vmatpush.msra.mxu0 %v819
      %1137 = vmatpush.msra.mxu0 %v815
      %1138 = vmatpush.msra.mxu0 %v811
      %1139 = vmatpush.msra.mxu0 %v807
      %1140 = vmatpush.msra.mxu0 %v803
      %1141 = vmatpush.msra.mxu0 %v799
      %1142 = vmatpush.msra.mxu0 %v795
      %1143 = vmatpush.msra.mxu0 %v791
      %1144 = vmatpush.msra.mxu0 %v787
      %1145 = vmatpush.msra.mxu0 %v783
      %1146 = vmatmul.f32.gmra.mxu0 %v992
      %v1147 = vpop.f32.mrf.mxu0
      %v1148 = vadd.f32 %v1125, %v1147
      %1149 = vmatmul.f32.gmra.mxu0 %v1002
      %v1150 = vpop.f32.mrf.mxu0
      %v1151 = vadd.f32 %v1128, %v1150
      %1152 = vdwg.mxu0
      %1153 = vmatpush.msra.mxu0 %v907
      %1154 = vmatpush.msra.mxu0 %v903
      %1155 = vmatpush.msra.mxu0 %v899
      %1156 = vmatpush.msra.mxu0 %v895
      %1157 = vmatpush.msra.mxu0 %v891
      %1158 = vmatpush.msra.mxu0 %v887
      %1159 = vmatpush.msra.mxu0 %v883
      %1160 = vmatpush.msra.mxu0 %v879
      %1161 = vmatpush.msra.mxu0 %v875
      %1162 = vmatpush.msra.mxu0 %v871
      %1163 = vmatpush.msra.mxu0 %v867
      %1164 = vmatpush.msra.mxu0 %v863
      %1165 = vmatpush.msra.mxu0 %v859
      %1166 = vmatpush.msra.mxu0 %v855
      %1167 = vmatpush.msra.mxu0 %v851
      %1168 = vmatpush.msra.mxu0 %v847
      %1169 = vmatmul.f32.gmra.mxu0 %v995
      %v1170 = vpop.f32.mrf.mxu0
      %v1171 = vadd.f32 %v1148, %v1170
      %1172 = vmatmul.f32.gmra.mxu0 %v1004
      %v1173 = vpop.f32.mrf.mxu0
      %v1174 = vadd.f32 %v1151, %v1173
      %1175 = vdwg.mxu0
      %1176 = vmatpush.msra.mxu0 %v971
      %1177 = vmatpush.msra.mxu0 %v967
      %1178 = vmatpush.msra.mxu0 %v963
      %1179 = vmatpush.msra.mxu0 %v959
      %1180 = vmatpush.msra.mxu0 %v955
      %1181 = vmatpush.msra.mxu0 %v951
      %1182 = vmatpush.msra.mxu0 %v947
      %1183 = vmatpush.msra.mxu0 %v943
      %1184 = vmatpush.msra.mxu0 %v939
      %1185 = vmatpush.msra.mxu0 %v935
      %1186 = vmatpush.msra.mxu0 %v931
      %1187 = vmatpush.msra.mxu0 %v927
      %1188 = vmatpush.msra.mxu0 %v923
      %1189 = vmatpush.msra.mxu0 %v919
      %1190 = vmatpush.msra.mxu0 %v915
      %1191 = vmatpush.msra.mxu0 %v911
      %1192 = vmatmul.f32.gmra.mxu0 %v998
      %v1193 = vpop.f32.mrf.mxu0
      %v1194 = vadd.f32 %v1171, %v1193
      %1195 = vmatmul.f32.gmra.mxu0 %v1006
      %v1196 = vpop.f32.mrf.mxu0
      %v1197 = vadd.f32 %v1174, %v1196
      %1198 = vdwg.mxu0
      %1199 = vmatpush.msra.mxu0 %v780
      %1200 = vmatpush.msra.mxu0 %v776
      %1201 = vmatpush.msra.mxu0 %v772
      %1202 = vmatpush.msra.mxu0 %v768
      %1203 = vmatpush.msra.mxu0 %v764
      %1204 = vmatpush.msra.mxu0 %v760
      %1205 = vmatpush.msra.mxu0 %v756
      %1206 = vmatpush.msra.mxu0 %v752
      %1207 = vmatpush.msra.mxu0 %v748
      %1208 = vmatpush.msra.mxu0 %v744
      %1209 = vmatpush.msra.mxu0 %v740
      %1210 = vmatpush.msra.mxu0 %v736
      %1211 = vmatpush.msra.mxu0 %v732
      %1212 = vmatpush.msra.mxu0 %v728
      %1213 = vmatpush.msra.mxu0 %v724
      %1214 = vmatpush.msra.mxu0 %v720
      %1215 = vmatmul.f32.gmra.mxu0 %v989
      %v1216 = vpop.f32.mrf.mxu0
      %v1217 = vadd.f32 0.0, %v1216
      %1218 = vmatmul.f32.gmra.mxu0 %v1000
      %v1219 = vpop.f32.mrf.mxu0
      %v1220 = vadd.f32 0.0, %v1219
      %1221 = vdwg.mxu0
      %1222 = vmatpush.msra.mxu0 %v844
      %1223 = vmatpush.msra.mxu0 %v840
      %1224 = vmatpush.msra.mxu0 %v836
      %1225 = vmatpush.msra.mxu0 %v832
      %1226 = vmatpush.msra.mxu0 %v828
      %1227 = vmatpush.msra.mxu0 %v824
      %1228 = vmatpush.msra.mxu0 %v820
      %1229 = vmatpush.msra.mxu0 %v816
      %1230 = vmatpush.msra.mxu0 %v812
      %1231 = vmatpush.msra.mxu0 %v808
      %1232 = vmatpush.msra.mxu0 %v804
      %1233 = vmatpush.msra.mxu0 %v800
      %1234 = vmatpush.msra.mxu0 %v796
      %1235 = vmatpush.msra.mxu0 %v792
      %1236 = vmatpush.msra.mxu0 %v788
      %1237 = vmatpush.msra.mxu0 %v784
      %1238 = vmatmul.f32.gmra.mxu0 %v992
      %v1239 = vpop.f32.mrf.mxu0
      %v1240 = vadd.f32 %v1217, %v1239
      %1241 = vmatmul.f32.gmra.mxu0 %v1002
      %v1242 = vpop.f32.mrf.mxu0
      %v1243 = vadd.f32 %v1220, %v1242
      %1244 = vdwg.mxu0
      %1245 = vmatpush.msra.mxu0 %v908
      %1246 = vmatpush.msra.mxu0 %v904
      %1247 = vmatpush.msra.mxu0 %v900
      %1248 = vmatpush.msra.mxu0 %v896
      %1249 = vmatpush.msra.mxu0 %v892
      %1250 = vmatpush.msra.mxu0 %v888
      %1251 = vmatpush.msra.mxu0 %v884
      %1252 = vmatpush.msra.mxu0 %v880
      %1253 = vmatpush.msra.mxu0 %v876
      %1254 = vmatpush.msra.mxu0 %v872
      %1255 = vmatpush.msra.mxu0 %v868
      %1256 = vmatpush.msra.mxu0 %v864
      %1257 = vmatpush.msra.mxu0 %v860
      %1258 = vmatpush.msra.mxu0 %v856
      %1259 = vmatpush.msra.mxu0 %v852
      %1260 = vmatpush.msra.mxu0 %v848
      %1261 = vmatmul.f32.gmra.mxu0 %v995
      %v1262 = vpop.f32.mrf.mxu0
      %v1263 = vadd.f32 %v1240, %v1262
      %1264 = vmatmul.f32.gmra.mxu0 %v1004
      %v1265 = vpop.f32.mrf.mxu0
      %v1266 = vadd.f32 %v1243, %v1265
      %1267 = vdwg.mxu0
      %1268 = vmatpush.msra.mxu0 %v972
      %1269 = vmatpush.msra.mxu0 %v968
      %1270 = vmatpush.msra.mxu0 %v964
      %1271 = vmatpush.msra.mxu0 %v960
      %1272 = vmatpush.msra.mxu0 %v956
      %1273 = vmatpush.msra.mxu0 %v952
      %1274 = vmatpush.msra.mxu0 %v948
      %1275 = vmatpush.msra.mxu0 %v944
      %1276 = vmatpush.msra.mxu0 %v940
      %1277 = vmatpush.msra.mxu0 %v936
      %1278 = vmatpush.msra.mxu0 %v932
      %1279 = vmatpush.msra.mxu0 %v928
      %1280 = vmatpush.msra.mxu0 %v924
      %1281 = vmatpush.msra.mxu0 %v920
      %1282 = vmatpush.msra.mxu0 %v916
      %1283 = vmatpush.msra.mxu0 %v912
      %1284 = vmatmul.f32.gmra.mxu0 %v998
      %v1285 = vpop.f32.mrf.mxu0
      %v1286 = vadd.f32 %v1263, %v1285
      %1287 = vmatmul.f32.gmra.mxu0 %v1006
      %v1288 = vpop.f32.mrf.mxu0
      %v1289 = vadd.f32 %v1266, %v1288
      %1290 = vdwg.mxu0
      %1291 = vmatpush.msra.mxu0 %v781
      %1292 = vmatpush.msra.mxu0 %v777
      %1293 = vmatpush.msra.mxu0 %v773
      %1294 = vmatpush.msra.mxu0 %v769
      %1295 = vmatpush.msra.mxu0 %v765
      %1296 = vmatpush.msra.mxu0 %v761
      %1297 = vmatpush.msra.mxu0 %v757
      %1298 = vmatpush.msra.mxu0 %v753
      %1299 = vmatpush.msra.mxu0 %v749
      %1300 = vmatpush.msra.mxu0 %v745
      %1301 = vmatpush.msra.mxu0 %v741
      %1302 = vmatpush.msra.mxu0 %v737
      %1303 = vmatpush.msra.mxu0 %v733
      %1304 = vmatpush.msra.mxu0 %v729
      %1305 = vmatpush.msra.mxu0 %v725
      %1306 = vmatpush.msra.mxu0 %v721
      %1307 = vmatmul.f32.gmra.mxu0 %v989
      %v1308 = vpop.f32.mrf.mxu0
      %v1309 = vadd.f32 0.0, %v1308
      %1310 = vmatmul.f32.gmra.mxu0 %v1000
      %v1311 = vpop.f32.mrf.mxu0
      %v1312 = vadd.f32 0.0, %v1311
      %1313 = vdwg.mxu0
      %1314 = vmatpush.msra.mxu0 %v845
      %1315 = vmatpush.msra.mxu0 %v841
      %1316 = vmatpush.msra.mxu0 %v837
      %1317 = vmatpush.msra.mxu0 %v833
      %1318 = vmatpush.msra.mxu0 %v829
      %1319 = vmatpush.msra.mxu0 %v825
      %1320 = vmatpush.msra.mxu0 %v821
      %1321 = vmatpush.msra.mxu0 %v817
      %1322 = vmatpush.msra.mxu0 %v813
      %1323 = vmatpush.msra.mxu0 %v809
      %1324 = vmatpush.msra.mxu0 %v805
      %1325 = vmatpush.msra.mxu0 %v801
      %1326 = vmatpush.msra.mxu0 %v797
      %1327 = vmatpush.msra.mxu0 %v793
      %1328 = vmatpush.msra.mxu0 %v789
      %1329 = vmatpush.msra.mxu0 %v785
      %1330 = vmatmul.f32.gmra.mxu0 %v992
      %v1331 = vpop.f32.mrf.mxu0
      %v1332 = vadd.f32 %v1309, %v1331
      %1333 = vmatmul.f32.gmra.mxu0 %v1002
      %v1334 = vpop.f32.mrf.mxu0
      %v1335 = vadd.f32 %v1312, %v1334
      %1336 = vdwg.mxu0
      %1337 = vmatpush.msra.mxu0 %v909
      %1338 = vmatpush.msra.mxu0 %v905
      %1339 = vmatpush.msra.mxu0 %v901
      %1340 = vmatpush.msra.mxu0 %v897
      %1341 = vmatpush.msra.mxu0 %v893
      %1342 = vmatpush.msra.mxu0 %v889
      %1343 = vmatpush.msra.mxu0 %v885
      %1344 = vmatpush.msra.mxu0 %v881
      %1345 = vmatpush.msra.mxu0 %v877
      %1346 = vmatpush.msra.mxu0 %v873
      %1347 = vmatpush.msra.mxu0 %v869
      %1348 = vmatpush.msra.mxu0 %v865
      %1349 = vmatpush.msra.mxu0 %v861
      %1350 = vmatpush.msra.mxu0 %v857
      %1351 = vmatpush.msra.mxu0 %v853
      %1352 = vmatpush.msra.mxu0 %v849
      %1353 = vmatmul.f32.gmra.mxu0 %v995
      %v1354 = vpop.f32.mrf.mxu0
      %v1355 = vadd.f32 %v1332, %v1354
      %1356 = vmatmul.f32.gmra.mxu0 %v1004
      %v1357 = vpop.f32.mrf.mxu0
      %v1358 = vadd.f32 %v1335, %v1357
      %1359 = vdwg.mxu0
      %1360 = vmatpush.msra.mxu0 %v973
      %1361 = vmatpush.msra.mxu0 %v969
      %1362 = vmatpush.msra.mxu0 %v965
      %1363 = vmatpush.msra.mxu0 %v961
      %1364 = vmatpush.msra.mxu0 %v957
      %1365 = vmatpush.msra.mxu0 %v953
      %1366 = vmatpush.msra.mxu0 %v949
      %1367 = vmatpush.msra.mxu0 %v945
      %1368 = vmatpush.msra.mxu0 %v941
      %1369 = vmatpush.msra.mxu0 %v937
      %1370 = vmatpush.msra.mxu0 %v933
      %1371 = vmatpush.msra.mxu0 %v929
      %1372 = vmatpush.msra.mxu0 %v925
      %1373 = vmatpush.msra.mxu0 %v921
      %1374 = vmatpush.msra.mxu0 %v917
      %1375 = vmatpush.msra.mxu0 %v913
      %1376 = vmatmul.f32.gmra.mxu0 %v998
      %v1377 = vpop.f32.mrf.mxu0
      %v1378 = vadd.f32 %v1355, %v1377
      %1379 = vmatmul.f32.gmra.mxu0 %v1006
      %v1380 = vpop.f32.mrf.mxu0
      %v1381 = vadd.f32 %v1358, %v1380
      %1382 = vdwg.mxu0
      %1383 = vmatpush.msra.mxu0 %v521
      %1384 = vmatpush.msra.mxu0 %v517
      %1385 = vmatpush.msra.mxu0 %v513
      %1386 = vmatpush.msra.mxu0 %v509
      %1387 = vmatpush.msra.mxu0 %v505
      %1388 = vmatpush.msra.mxu0 %v501
      %1389 = vmatpush.msra.mxu0 %v497
      %1390 = vmatpush.msra.mxu0 %v493
      %1391 = vmatpush.msra.mxu0 %v489
      %1392 = vmatpush.msra.mxu0 %v485
      %1393 = vmatpush.msra.mxu0 %v481
      %1394 = vmatpush.msra.mxu0 %v477
      %1395 = vmatpush.msra.mxu0 %v473
      %1396 = vmatpush.msra.mxu0 %v469
      %1397 = vmatpush.msra.mxu0 %v465
      %1398 = vmatpush.msra.mxu0 %v461
      %1399 = vmatmul.f32.gmra.mxu0 %v449
      %v1400 = vpop.f32.mrf.mxu0
      %v1401 = vadd.f32 %v1102, %v1400
      %1402 = vmatmul.f32.gmra.mxu0 %v453
      %v1403 = vpop.f32.mrf.mxu0
      %v1404 = vadd.f32 %v1105, %v1403
      %1405 = vdwg.mxu0
      %1406 = vmatpush.msra.mxu0 %v585
      %1407 = vmatpush.msra.mxu0 %v581
      %1408 = vmatpush.msra.mxu0 %v577
      %1409 = vmatpush.msra.mxu0 %v573
      %1410 = vmatpush.msra.mxu0 %v569
      %1411 = vmatpush.msra.mxu0 %v565
      %1412 = vmatpush.msra.mxu0 %v561
      %1413 = vmatpush.msra.mxu0 %v557
      %1414 = vmatpush.msra.mxu0 %v553
      %1415 = vmatpush.msra.mxu0 %v549
      %1416 = vmatpush.msra.mxu0 %v545
      %1417 = vmatpush.msra.mxu0 %v541
      %1418 = vmatpush.msra.mxu0 %v537
      %1419 = vmatpush.msra.mxu0 %v533
      %1420 = vmatpush.msra.mxu0 %v529
      %1421 = vmatpush.msra.mxu0 %v525
      %1422 = vmatmul.f32.gmra.mxu0 %v450
      %v1423 = vpop.f32.mrf.mxu0
      %v1424 = vadd.f32 %v1401, %v1423
      %1425 = vmatmul.f32.gmra.mxu0 %v454
      %v1426 = vpop.f32.mrf.mxu0
      %v1427 = vadd.f32 %v1404, %v1426
      %1428 = vdwg.mxu0
      %1429 = vmatpush.msra.mxu0 %v649
      %1430 = vmatpush.msra.mxu0 %v645
      %1431 = vmatpush.msra.mxu0 %v641
      %1432 = vmatpush.msra.mxu0 %v637
      %1433 = vmatpush.msra.mxu0 %v633
      %1434 = vmatpush.msra.mxu0 %v629
      %1435 = vmatpush.msra.mxu0 %v625
      %1436 = vmatpush.msra.mxu0 %v621
      %1437 = vmatpush.msra.mxu0 %v617
      %1438 = vmatpush.msra.mxu0 %v613
      %1439 = vmatpush.msra.mxu0 %v609
      %1440 = vmatpush.msra.mxu0 %v605
      %1441 = vmatpush.msra.mxu0 %v601
      %1442 = vmatpush.msra.mxu0 %v597
      %1443 = vmatpush.msra.mxu0 %v593
      %1444 = vmatpush.msra.mxu0 %v589
      %1445 = vmatmul.f32.gmra.mxu0 %v451
      %v1446 = vpop.f32.mrf.mxu0
      %v1447 = vadd.f32 %v1424, %v1446
      %1448 = vmatmul.f32.gmra.mxu0 %v455
      %v1449 = vpop.f32.mrf.mxu0
      %v1450 = vadd.f32 %v1427, %v1449
      %1451 = vdwg.mxu0
      %1452 = vmatpush.msra.mxu0 %v713
      %1453 = vmatpush.msra.mxu0 %v709
      %1454 = vmatpush.msra.mxu0 %v705
      %1455 = vmatpush.msra.mxu0 %v701
      %1456 = vmatpush.msra.mxu0 %v697
      %1457 = vmatpush.msra.mxu0 %v693
      %1458 = vmatpush.msra.mxu0 %v689
      %1459 = vmatpush.msra.mxu0 %v685
      %1460 = vmatpush.msra.mxu0 %v681
      %1461 = vmatpush.msra.mxu0 %v677
      %1462 = vmatpush.msra.mxu0 %v673
      %1463 = vmatpush.msra.mxu0 %v669
      %1464 = vmatpush.msra.mxu0 %v665
      %1465 = vmatpush.msra.mxu0 %v661
      %1466 = vmatpush.msra.mxu0 %v657
      %1467 = vmatpush.msra.mxu0 %v653
      %1468 = vmatmul.f32.gmra.mxu0 %v452
      %v1469 = vpop.f32.mrf.mxu0
      %v1470 = vadd.f32 %v1447, %v1469
      %1471 = vmatmul.f32.gmra.mxu0 %v456
      %v1472 = vpop.f32.mrf.mxu0
      %v1473 = vadd.f32 %v1450, %v1472
      %1474 = vdwg.mxu0
      %1475 = vmatpush.msra.mxu0 %v522
      %1476 = vmatpush.msra.mxu0 %v518
      %1477 = vmatpush.msra.mxu0 %v514
      %1478 = vmatpush.msra.mxu0 %v510
      %1479 = vmatpush.msra.mxu0 %v506
      %1480 = vmatpush.msra.mxu0 %v502
      %1481 = vmatpush.msra.mxu0 %v498
      %1482 = vmatpush.msra.mxu0 %v494
      %1483 = vmatpush.msra.mxu0 %v490
      %1484 = vmatpush.msra.mxu0 %v486
      %1485 = vmatpush.msra.mxu0 %v482
      %1486 = vmatpush.msra.mxu0 %v478
      %1487 = vmatpush.msra.mxu0 %v474
      %1488 = vmatpush.msra.mxu0 %v470
      %1489 = vmatpush.msra.mxu0 %v466
      %1490 = vmatpush.msra.mxu0 %v462
      %1491 = vmatmul.f32.gmra.mxu0 %v449
      %v1492 = vpop.f32.mrf.mxu0
      %v1493 = vadd.f32 %v1194, %v1492
      %1494 = vmatmul.f32.gmra.mxu0 %v453
      %v1495 = vpop.f32.mrf.mxu0
      %v1496 = vadd.f32 %v1197, %v1495
      %1497 = vdwg.mxu0
      %1498 = vmatpush.msra.mxu0 %v586
      %1499 = vmatpush.msra.mxu0 %v582
      %1500 = vmatpush.msra.mxu0 %v578
      %1501 = vmatpush.msra.mxu0 %v574
      %1502 = vmatpush.msra.mxu0 %v570
      %1503 = vmatpush.msra.mxu0 %v566
      %1504 = vmatpush.msra.mxu0 %v562
      %1505 = vmatpush.msra.mxu0 %v558
      %1506 = vmatpush.msra.mxu0 %v554
      %1507 = vmatpush.msra.mxu0 %v550
      %1508 = vmatpush.msra.mxu0 %v546
      %1509 = vmatpush.msra.mxu0 %v542
      %1510 = vmatpush.msra.mxu0 %v538
      %1511 = vmatpush.msra.mxu0 %v534
      %1512 = vmatpush.msra.mxu0 %v530
      %1513 = vmatpush.msra.mxu0 %v526
      %1514 = vmatmul.f32.gmra.mxu0 %v450
      %v1515 = vpop.f32.mrf.mxu0
      %v1516 = vadd.f32 %v1493, %v1515
      %1517 = vmatmul.f32.gmra.mxu0 %v454
      %v1518 = vpop.f32.mrf.mxu0
      %v1519 = vadd.f32 %v1496, %v1518
      %1520 = vdwg.mxu0
      %1521 = vmatpush.msra.mxu0 %v650
      %1522 = vmatpush.msra.mxu0 %v646
      %1523 = vmatpush.msra.mxu0 %v642
      %1524 = vmatpush.msra.mxu0 %v638
      %1525 = vmatpush.msra.mxu0 %v634
      %1526 = vmatpush.msra.mxu0 %v630
      %1527 = vmatpush.msra.mxu0 %v626
      %1528 = vmatpush.msra.mxu0 %v622
      %1529 = vmatpush.msra.mxu0 %v618
      %1530 = vmatpush.msra.mxu0 %v614
      %1531 = vmatpush.msra.mxu0 %v610
      %1532 = vmatpush.msra.mxu0 %v606
      %1533 = vmatpush.msra.mxu0 %v602
      %1534 = vmatpush.msra.mxu0 %v598
      %1535 = vmatpush.msra.mxu0 %v594
      %1536 = vmatpush.msra.mxu0 %v590
      %1537 = vmatmul.f32.gmra.mxu0 %v451
      %v1538 = vpop.f32.mrf.mxu0
      %v1539 = vadd.f32 %v1516, %v1538
      %1540 = vmatmul.f32.gmra.mxu0 %v455
      %v1541 = vpop.f32.mrf.mxu0
      %v1542 = vadd.f32 %v1519, %v1541
      %1543 = vdwg.mxu0
      %1544 = vmatpush.msra.mxu0 %v714
      %1545 = vmatpush.msra.mxu0 %v710
      %1546 = vmatpush.msra.mxu0 %v706
      %1547 = vmatpush.msra.mxu0 %v702
      %1548 = vmatpush.msra.mxu0 %v698
      %1549 = vmatpush.msra.mxu0 %v694
      %1550 = vmatpush.msra.mxu0 %v690
      %1551 = vmatpush.msra.mxu0 %v686
      %1552 = vmatpush.msra.mxu0 %v682
      %1553 = vmatpush.msra.mxu0 %v678
      %1554 = vmatpush.msra.mxu0 %v674
      %1555 = vmatpush.msra.mxu0 %v670
      %1556 = vmatpush.msra.mxu0 %v666
      %1557 = vmatpush.msra.mxu0 %v662
      %1558 = vmatpush.msra.mxu0 %v658
      %1559 = vmatpush.msra.mxu0 %v654
      %1560 = vmatmul.f32.gmra.mxu0 %v452
      %v1561 = vpop.f32.mrf.mxu0
      %v1562 = vadd.f32 %v1539, %v1561
      %1563 = vmatmul.f32.gmra.mxu0 %v456
      %v1564 = vpop.f32.mrf.mxu0
      %v1565 = vadd.f32 %v1542, %v1564
      %1566 = vdwg.mxu0
      %1567 = vmatpush.msra.mxu0 %v523
      %1568 = vmatpush.msra.mxu0 %v519
      %1569 = vmatpush.msra.mxu0 %v515
      %1570 = vmatpush.msra.mxu0 %v511
      %1571 = vmatpush.msra.mxu0 %v507
      %1572 = vmatpush.msra.mxu0 %v503
      %1573 = vmatpush.msra.mxu0 %v499
      %1574 = vmatpush.msra.mxu0 %v495
      %1575 = vmatpush.msra.mxu0 %v491
      %1576 = vmatpush.msra.mxu0 %v487
      %1577 = vmatpush.msra.mxu0 %v483
      %1578 = vmatpush.msra.mxu0 %v479
      %1579 = vmatpush.msra.mxu0 %v475
      %1580 = vmatpush.msra.mxu0 %v471
      %1581 = vmatpush.msra.mxu0 %v467
      %1582 = vmatpush.msra.mxu0 %v463
      %1583 = vmatmul.f32.gmra.mxu0 %v449
      %v1584 = vpop.f32.mrf.mxu0
      %v1585 = vadd.f32 %v1286, %v1584
      %1586 = vmatmul.f32.gmra.mxu0 %v453
      %v1587 = vpop.f32.mrf.mxu0
      %v1588 = vadd.f32 %v1289, %v1587
      %1589 = vdwg.mxu0
      %1590 = vmatpush.msra.mxu0 %v587
      %1591 = vmatpush.msra.mxu0 %v583
      %1592 = vmatpush.msra.mxu0 %v579
      %1593 = vmatpush.msra.mxu0 %v575
      %1594 = vmatpush.msra.mxu0 %v571
      %1595 = vmatpush.msra.mxu0 %v567
      %1596 = vmatpush.msra.mxu0 %v563
      %1597 = vmatpush.msra.mxu0 %v559
      %1598 = vmatpush.msra.mxu0 %v555
      %1599 = vmatpush.msra.mxu0 %v551
      %1600 = vmatpush.msra.mxu0 %v547
      %1601 = vmatpush.msra.mxu0 %v543
      %1602 = vmatpush.msra.mxu0 %v539
      %1603 = vmatpush.msra.mxu0 %v535
      %1604 = vmatpush.msra.mxu0 %v531
      %1605 = vmatpush.msra.mxu0 %v527
      %1606 = vmatmul.f32.gmra.mxu0 %v450
      %v1607 = vpop.f32.mrf.mxu0
      %v1608 = vadd.f32 %v1585, %v1607
      %1609 = vmatmul.f32.gmra.mxu0 %v454
      %v1610 = vpop.f32.mrf.mxu0
      %v1611 = vadd.f32 %v1588, %v1610
      %1612 = vdwg.mxu0
      %1613 = vmatpush.msra.mxu0 %v651
      %1614 = vmatpush.msra.mxu0 %v647
      %1615 = vmatpush.msra.mxu0 %v643
      %1616 = vmatpush.msra.mxu0 %v639
      %1617 = vmatpush.msra.mxu0 %v635
      %1618 = vmatpush.msra.mxu0 %v631
      %1619 = vmatpush.msra.mxu0 %v627
      %1620 = vmatpush.msra.mxu0 %v623
      %1621 = vmatpush.msra.mxu0 %v619
      %1622 = vmatpush.msra.mxu0 %v615
      %1623 = vmatpush.msra.mxu0 %v611
      %1624 = vmatpush.msra.mxu0 %v607
      %1625 = vmatpush.msra.mxu0 %v603
      %1626 = vmatpush.msra.mxu0 %v599
      %1627 = vmatpush.msra.mxu0 %v595
      %1628 = vmatpush.msra.mxu0 %v591
      %1629 = vmatmul.f32.gmra.mxu0 %v451
      %v1630 = vpop.f32.mrf.mxu0
      %v1631 = vadd.f32 %v1608, %v1630
      %1632 = vmatmul.f32.gmra.mxu0 %v455
      %v1633 = vpop.f32.mrf.mxu0
      %v1634 = vadd.f32 %v1611, %v1633
      %1635 = vdwg.mxu0
      %1636 = vmatpush.msra.mxu0 %v715
      %1637 = vmatpush.msra.mxu0 %v711
      %1638 = vmatpush.msra.mxu0 %v707
      %1639 = vmatpush.msra.mxu0 %v703
      %1640 = vmatpush.msra.mxu0 %v699
      %1641 = vmatpush.msra.mxu0 %v695
      %1642 = vmatpush.msra.mxu0 %v691
      %1643 = vmatpush.msra.mxu0 %v687
      %1644 = vmatpush.msra.mxu0 %v683
      %1645 = vmatpush.msra.mxu0 %v679
      %1646 = vmatpush.msra.mxu0 %v675
      %1647 = vmatpush.msra.mxu0 %v671
      %1648 = vmatpush.msra.mxu0 %v667
      %1649 = vmatpush.msra.mxu0 %v663
      %1650 = vmatpush.msra.mxu0 %v659
      %1651 = vmatpush.msra.mxu0 %v655
      %1652 = vmatmul.f32.gmra.mxu0 %v452
      %v1653 = vpop.f32.mrf.mxu0
      %v1654 = vadd.f32 %v1631, %v1653
      %1655 = vmatmul.f32.gmra.mxu0 %v456
      %v1656 = vpop.f32.mrf.mxu0
      %v1657 = vadd.f32 %v1634, %v1656
      %1658 = vdwg.mxu0
      %1659 = vmatpush.msra.mxu0 %v524
      %1660 = vmatpush.msra.mxu0 %v520
      %1661 = vmatpush.msra.mxu0 %v516
      %1662 = vmatpush.msra.mxu0 %v512
      %1663 = vmatpush.msra.mxu0 %v508
      %1664 = vmatpush.msra.mxu0 %v504
      %1665 = vmatpush.msra.mxu0 %v500
      %1666 = vmatpush.msra.mxu0 %v496
      %1667 = vmatpush.msra.mxu0 %v492
      %1668 = vmatpush.msra.mxu0 %v488
      %1669 = vmatpush.msra.mxu0 %v484
      %1670 = vmatpush.msra.mxu0 %v480
      %1671 = vmatpush.msra.mxu0 %v476
      %1672 = vmatpush.msra.mxu0 %v472
      %1673 = vmatpush.msra.mxu0 %v468
      %1674 = vmatpush.msra.mxu0 %v464
      %1675 = vmatmul.f32.gmra.mxu0 %v449
      %v1676 = vpop.f32.mrf.mxu0
      %v1677 = vadd.f32 %v1378, %v1676
      %1678 = vmatmul.f32.gmra.mxu0 %v453
      %v1679 = vpop.f32.mrf.mxu0
      %v1680 = vadd.f32 %v1381, %v1679
      %1681 = vdwg.mxu0
      %1682 = vmatpush.msra.mxu0 %v588
      %1683 = vmatpush.msra.mxu0 %v584
      %1684 = vmatpush.msra.mxu0 %v580
      %1685 = vmatpush.msra.mxu0 %v576
      %1686 = vmatpush.msra.mxu0 %v572
      %1687 = vmatpush.msra.mxu0 %v568
      %1688 = vmatpush.msra.mxu0 %v564
      %1689 = vmatpush.msra.mxu0 %v560
      %1690 = vmatpush.msra.mxu0 %v556
      %1691 = vmatpush.msra.mxu0 %v552
      %1692 = vmatpush.msra.mxu0 %v548
      %1693 = vmatpush.msra.mxu0 %v544
      %1694 = vmatpush.msra.mxu0 %v540
      %1695 = vmatpush.msra.mxu0 %v536
      %1696 = vmatpush.msra.mxu0 %v532
      %1697 = vmatpush.msra.mxu0 %v528
      %1698 = vmatmul.f32.gmra.mxu0 %v450
      %v1699 = vpop.f32.mrf.mxu0
      %v1700 = vadd.f32 %v1677, %v1699
      %1701 = vmatmul.f32.gmra.mxu0 %v454
      %v1702 = vpop.f32.mrf.mxu0
      %v1703 = vadd.f32 %v1680, %v1702
      %1704 = vdwg.mxu0
      %1705 = vmatpush.msra.mxu0 %v652
      %1706 = vmatpush.msra.mxu0 %v648
      %1707 = vmatpush.msra.mxu0 %v644
      %1708 = vmatpush.msra.mxu0 %v640
      %1709 = vmatpush.msra.mxu0 %v636
      %1710 = vmatpush.msra.mxu0 %v632
      %1711 = vmatpush.msra.mxu0 %v628
      %1712 = vmatpush.msra.mxu0 %v624
      %1713 = vmatpush.msra.mxu0 %v620
      %1714 = vmatpush.msra.mxu0 %v616
      %1715 = vmatpush.msra.mxu0 %v612
      %1716 = vmatpush.msra.mxu0 %v608
      %1717 = vmatpush.msra.mxu0 %v604
      %1718 = vmatpush.msra.mxu0 %v600
      %1719 = vmatpush.msra.mxu0 %v596
      %1720 = vmatpush.msra.mxu0 %v592
      %1721 = vmatmul.f32.gmra.mxu0 %v451
      %v1722 = vpop.f32.mrf.mxu0
      %v1723 = vadd.f32 %v1700, %v1722
      %1724 = vmatmul.f32.gmra.mxu0 %v455
      %v1725 = vpop.f32.mrf.mxu0
      %v1726 = vadd.f32 %v1703, %v1725
      %1727 = vdwg.mxu0
      %1728 = vmatpush.msra.mxu0 %v716
      %1729 = vmatpush.msra.mxu0 %v712
      %1730 = vmatpush.msra.mxu0 %v708
      %1731 = vmatpush.msra.mxu0 %v704
      %1732 = vmatpush.msra.mxu0 %v700
      %1733 = vmatpush.msra.mxu0 %v696
      %1734 = vmatpush.msra.mxu0 %v692
      %1735 = vmatpush.msra.mxu0 %v688
      %1736 = vmatpush.msra.mxu0 %v684
      %1737 = vmatpush.msra.mxu0 %v680
      %1738 = vmatpush.msra.mxu0 %v676
      %1739 = vmatpush.msra.mxu0 %v672
      %1740 = vmatpush.msra.mxu0 %v668
      %1741 = vmatpush.msra.mxu0 %v664
      %1742 = vmatpush.msra.mxu0 %v660
      %1743 = vmatpush.msra.mxu0 %v656
      %1744 = vmatmul.f32.gmra.mxu0 %v452
      %v1745 = vpop.f32.mrf.mxu0
      %v1746 = vadd.f32 %v1723, %v1745
      %1747 = vmatmul.f32.gmra.mxu0 %v456
      %v1748 = vpop.f32.mrf.mxu0
      %v1749 = vadd.f32 %v1726, %v1748
      %1750 = vdwg.mxu0
      %s1751 = scalar_lea.vmem %s1, 4096
      %v1752 = vld [vmem:[%s1751] sm:$0xff]
      %v1753 = vld [vmem:[%s1751 + $0x8] sm:$0xff]
      %v1754 = vld [vmem:[%s1751 + $0x10] sm:$0xff]
      %v1755 = vld [vmem:[%s1751 + $0x18] sm:$0xff]
      %v1756 = vld [vmem:[%s1751 + $0x20] sm:$0xff]
      %v1757 = vld [vmem:[%s1751 + $0x28] sm:$0xff]
      %v1758 = vld [vmem:[%s1751 + $0x30] sm:$0xff]
      %v1759 = vld [vmem:[%s1751 + $0x38] sm:$0xff]
      %v1760 = vld [vmem:[%s1751 + $0x40] sm:$0xff]
      %v1761 = vld [vmem:[%s1751 + $0x48] sm:$0xff]
      %v1762 = vld [vmem:[%s1751 + $0x50] sm:$0xff]
      %v1763 = vld [vmem:[%s1751 + $0x58] sm:$0xff]
      %v1764 = vld [vmem:[%s1751 + $0x60] sm:$0xff]
      %v1765 = vld [vmem:[%s1751 + $0x68] sm:$0xff]
      %v1766 = vld [vmem:[%s1751 + $0x70] sm:$0xff]
      %v1767 = vld [vmem:[%s1751 + $0x78] sm:$0xff]
      %v1768 = vld [vmem:[%s1751 + $0x80] sm:$0xff]
      %v1769 = vld [vmem:[%s1751 + $0x88] sm:$0xff]
      %v1770 = vld [vmem:[%s1751 + $0x90] sm:$0xff]
      %v1771 = vld [vmem:[%s1751 + $0x98] sm:$0xff]
      %v1772 = vld [vmem:[%s1751 + $0xa0] sm:$0xff]
      %v1773 = vld [vmem:[%s1751 + $0xa8] sm:$0xff]
      %v1774 = vld [vmem:[%s1751 + $0xb0] sm:$0xff]
      %v1775 = vld [vmem:[%s1751 + $0xb8] sm:$0xff]
      %v1776 = vld [vmem:[%s1751 + $0xc0] sm:$0xff]
      %v1777 = vld [vmem:[%s1751 + $0xc8] sm:$0xff]
      %v1778 = vld [vmem:[%s1751 + $0xd0] sm:$0xff]
      %v1779 = vld [vmem:[%s1751 + $0xd8] sm:$0xff]
      %v1780 = vld [vmem:[%s1751 + $0xe0] sm:$0xff]
      %v1781 = vld [vmem:[%s1751 + $0xe8] sm:$0xff]
      %v1782 = vld [vmem:[%s1751 + $0xf0] sm:$0xff]
      %v1783 = vld [vmem:[%s1751 + $0xf8] sm:$0xff]
      %v1784 = vld [vmem:[%s1751 + $0x100] sm:$0xff]
      %v1785 = vld [vmem:[%s1751 + $0x108] sm:$0xff]
      %v1786 = vld [vmem:[%s1751 + $0x110] sm:$0xff]
      %v1787 = vld [vmem:[%s1751 + $0x118] sm:$0xff]
      %v1788 = vld [vmem:[%s1751 + $0x120] sm:$0xff]
      %v1789 = vld [vmem:[%s1751 + $0x128] sm:$0xff]
      %v1790 = vld [vmem:[%s1751 + $0x130] sm:$0xff]
      %v1791 = vld [vmem:[%s1751 + $0x138] sm:$0xff]
      %v1792 = vld [vmem:[%s1751 + $0x140] sm:$0xff]
      %v1793 = vld [vmem:[%s1751 + $0x148] sm:$0xff]
      %v1794 = vld [vmem:[%s1751 + $0x150] sm:$0xff]
      %v1795 = vld [vmem:[%s1751 + $0x158] sm:$0xff]
      %v1796 = vld [vmem:[%s1751 + $0x160] sm:$0xff]
      %v1797 = vld [vmem:[%s1751 + $0x168] sm:$0xff]
      %v1798 = vld [vmem:[%s1751 + $0x170] sm:$0xff]
      %v1799 = vld [vmem:[%s1751 + $0x178] sm:$0xff]
      %v1800 = vld [vmem:[%s1751 + $0x180] sm:$0xff]
      %v1801 = vld [vmem:[%s1751 + $0x188] sm:$0xff]
      %v1802 = vld [vmem:[%s1751 + $0x190] sm:$0xff]
      %v1803 = vld [vmem:[%s1751 + $0x198] sm:$0xff]
      %v1804 = vld [vmem:[%s1751 + $0x1a0] sm:$0xff]
      %v1805 = vld [vmem:[%s1751 + $0x1a8] sm:$0xff]
      %v1806 = vld [vmem:[%s1751 + $0x1b0] sm:$0xff]
      %v1807 = vld [vmem:[%s1751 + $0x1b8] sm:$0xff]
      %v1808 = vld [vmem:[%s1751 + $0x1c0] sm:$0xff]
      %v1809 = vld [vmem:[%s1751 + $0x1c8] sm:$0xff]
      %v1810 = vld [vmem:[%s1751 + $0x1d0] sm:$0xff]
      %v1811 = vld [vmem:[%s1751 + $0x1d8] sm:$0xff]
      %v1812 = vld [vmem:[%s1751 + $0x1e0] sm:$0xff]
      %v1813 = vld [vmem:[%s1751 + $0x1e8] sm:$0xff]
      %v1814 = vld [vmem:[%s1751 + $0x1f0] sm:$0xff]
      %v1815 = vld [vmem:[%s1751 + $0x1f8] sm:$0xff]
      %v1816 = vld [vmem:[%s1751 + $0x200] sm:$0xff]
      %v1817 = vld [vmem:[%s1751 + $0x208] sm:$0xff]
      %v1818 = vld [vmem:[%s1751 + $0x210] sm:$0xff]
      %v1819 = vld [vmem:[%s1751 + $0x218] sm:$0xff]
      %v1820 = vld [vmem:[%s1751 + $0x220] sm:$0xff]
      %v1821 = vld [vmem:[%s1751 + $0x228] sm:$0xff]
      %v1822 = vld [vmem:[%s1751 + $0x230] sm:$0xff]
      %v1823 = vld [vmem:[%s1751 + $0x238] sm:$0xff]
      %v1824 = vld [vmem:[%s1751 + $0x240] sm:$0xff]
      %v1825 = vld [vmem:[%s1751 + $0x248] sm:$0xff]
      %v1826 = vld [vmem:[%s1751 + $0x250] sm:$0xff]
      %v1827 = vld [vmem:[%s1751 + $0x258] sm:$0xff]
      %v1828 = vld [vmem:[%s1751 + $0x260] sm:$0xff]
      %v1829 = vld [vmem:[%s1751 + $0x268] sm:$0xff]
      %v1830 = vld [vmem:[%s1751 + $0x270] sm:$0xff]
      %v1831 = vld [vmem:[%s1751 + $0x278] sm:$0xff]
      %v1832 = vld [vmem:[%s1751 + $0x280] sm:$0xff]
      %v1833 = vld [vmem:[%s1751 + $0x288] sm:$0xff]
      %v1834 = vld [vmem:[%s1751 + $0x290] sm:$0xff]
      %v1835 = vld [vmem:[%s1751 + $0x298] sm:$0xff]
      %v1836 = vld [vmem:[%s1751 + $0x2a0] sm:$0xff]
      %v1837 = vld [vmem:[%s1751 + $0x2a8] sm:$0xff]
      %v1838 = vld [vmem:[%s1751 + $0x2b0] sm:$0xff]
      %v1839 = vld [vmem:[%s1751 + $0x2b8] sm:$0xff]
      %v1840 = vld [vmem:[%s1751 + $0x2c0] sm:$0xff]
      %v1841 = vld [vmem:[%s1751 + $0x2c8] sm:$0xff]
      %v1842 = vld [vmem:[%s1751 + $0x2d0] sm:$0xff]
      %v1843 = vld [vmem:[%s1751 + $0x2d8] sm:$0xff]
      %v1844 = vld [vmem:[%s1751 + $0x2e0] sm:$0xff]
      %v1845 = vld [vmem:[%s1751 + $0x2e8] sm:$0xff]
      %v1846 = vld [vmem:[%s1751 + $0x2f0] sm:$0xff]
      %v1847 = vld [vmem:[%s1751 + $0x2f8] sm:$0xff]
      %v1848 = vld [vmem:[%s1751 + $0x300] sm:$0xff]
      %v1849 = vld [vmem:[%s1751 + $0x308] sm:$0xff]
      %v1850 = vld [vmem:[%s1751 + $0x310] sm:$0xff]
      %v1851 = vld [vmem:[%s1751 + $0x318] sm:$0xff]
      %v1852 = vld [vmem:[%s1751 + $0x320] sm:$0xff]
      %v1853 = vld [vmem:[%s1751 + $0x328] sm:$0xff]
      %v1854 = vld [vmem:[%s1751 + $0x330] sm:$0xff]
      %v1855 = vld [vmem:[%s1751 + $0x338] sm:$0xff]
      %v1856 = vld [vmem:[%s1751 + $0x340] sm:$0xff]
      %v1857 = vld [vmem:[%s1751 + $0x348] sm:$0xff]
      %v1858 = vld [vmem:[%s1751 + $0x350] sm:$0xff]
      %v1859 = vld [vmem:[%s1751 + $0x358] sm:$0xff]
      %v1860 = vld [vmem:[%s1751 + $0x360] sm:$0xff]
      %v1861 = vld [vmem:[%s1751 + $0x368] sm:$0xff]
      %v1862 = vld [vmem:[%s1751 + $0x370] sm:$0xff]
      %v1863 = vld [vmem:[%s1751 + $0x378] sm:$0xff]
      %v1864 = vld [vmem:[%s1751 + $0x380] sm:$0xff]
      %v1865 = vld [vmem:[%s1751 + $0x388] sm:$0xff]
      %v1866 = vld [vmem:[%s1751 + $0x390] sm:$0xff]
      %v1867 = vld [vmem:[%s1751 + $0x398] sm:$0xff]
      %v1868 = vld [vmem:[%s1751 + $0x3a0] sm:$0xff]
      %v1869 = vld [vmem:[%s1751 + $0x3a8] sm:$0xff]
      %v1870 = vld [vmem:[%s1751 + $0x3b0] sm:$0xff]
      %v1871 = vld [vmem:[%s1751 + $0x3b8] sm:$0xff]
      %v1872 = vld [vmem:[%s1751 + $0x3c0] sm:$0xff]
      %v1873 = vld [vmem:[%s1751 + $0x3c8] sm:$0xff]
      %v1874 = vld [vmem:[%s1751 + $0x3d0] sm:$0xff]
      %v1875 = vld [vmem:[%s1751 + $0x3d8] sm:$0xff]
      %v1876 = vld [vmem:[%s1751 + $0x3e0] sm:$0xff]
      %v1877 = vld [vmem:[%s1751 + $0x3e8] sm:$0xff]
      %v1878 = vld [vmem:[%s1751 + $0x3f0] sm:$0xff]
      %v1879 = vld [vmem:[%s1751 + $0x3f8] sm:$0xff]
      %v1880 = vld [vmem:[%s1751 + $0x400] sm:$0xff]
      %v1881 = vld [vmem:[%s1751 + $0x408] sm:$0xff]
      %v1882 = vld [vmem:[%s1751 + $0x410] sm:$0xff]
      %v1883 = vld [vmem:[%s1751 + $0x418] sm:$0xff]
      %v1884 = vld [vmem:[%s1751 + $0x420] sm:$0xff]
      %v1885 = vld [vmem:[%s1751 + $0x428] sm:$0xff]
      %v1886 = vld [vmem:[%s1751 + $0x430] sm:$0xff]
      %v1887 = vld [vmem:[%s1751 + $0x438] sm:$0xff]
      %v1888 = vld [vmem:[%s1751 + $0x440] sm:$0xff]
      %v1889 = vld [vmem:[%s1751 + $0x448] sm:$0xff]
      %v1890 = vld [vmem:[%s1751 + $0x450] sm:$0xff]
      %v1891 = vld [vmem:[%s1751 + $0x458] sm:$0xff]
      %v1892 = vld [vmem:[%s1751 + $0x460] sm:$0xff]
      %v1893 = vld [vmem:[%s1751 + $0x468] sm:$0xff]
      %v1894 = vld [vmem:[%s1751 + $0x470] sm:$0xff]
      %v1895 = vld [vmem:[%s1751 + $0x478] sm:$0xff]
      %v1896 = vld [vmem:[%s1751 + $0x480] sm:$0xff]
      %v1897 = vld [vmem:[%s1751 + $0x488] sm:$0xff]
      %v1898 = vld [vmem:[%s1751 + $0x490] sm:$0xff]
      %v1899 = vld [vmem:[%s1751 + $0x498] sm:$0xff]
      %v1900 = vld [vmem:[%s1751 + $0x4a0] sm:$0xff]
      %v1901 = vld [vmem:[%s1751 + $0x4a8] sm:$0xff]
      %v1902 = vld [vmem:[%s1751 + $0x4b0] sm:$0xff]
      %v1903 = vld [vmem:[%s1751 + $0x4b8] sm:$0xff]
      %v1904 = vld [vmem:[%s1751 + $0x4c0] sm:$0xff]
      %v1905 = vld [vmem:[%s1751 + $0x4c8] sm:$0xff]
      %v1906 = vld [vmem:[%s1751 + $0x4d0] sm:$0xff]
      %v1907 = vld [vmem:[%s1751 + $0x4d8] sm:$0xff]
      %v1908 = vld [vmem:[%s1751 + $0x4e0] sm:$0xff]
      %v1909 = vld [vmem:[%s1751 + $0x4e8] sm:$0xff]
      %v1910 = vld [vmem:[%s1751 + $0x4f0] sm:$0xff]
      %v1911 = vld [vmem:[%s1751 + $0x4f8] sm:$0xff]
      %v1912 = vld [vmem:[%s1751 + $0x500] sm:$0xff]
      %v1913 = vld [vmem:[%s1751 + $0x508] sm:$0xff]
      %v1914 = vld [vmem:[%s1751 + $0x510] sm:$0xff]
      %v1915 = vld [vmem:[%s1751 + $0x518] sm:$0xff]
      %v1916 = vld [vmem:[%s1751 + $0x520] sm:$0xff]
      %v1917 = vld [vmem:[%s1751 + $0x528] sm:$0xff]
      %v1918 = vld [vmem:[%s1751 + $0x530] sm:$0xff]
      %v1919 = vld [vmem:[%s1751 + $0x538] sm:$0xff]
      %v1920 = vld [vmem:[%s1751 + $0x540] sm:$0xff]
      %v1921 = vld [vmem:[%s1751 + $0x548] sm:$0xff]
      %v1922 = vld [vmem:[%s1751 + $0x550] sm:$0xff]
      %v1923 = vld [vmem:[%s1751 + $0x558] sm:$0xff]
      %v1924 = vld [vmem:[%s1751 + $0x560] sm:$0xff]
      %v1925 = vld [vmem:[%s1751 + $0x568] sm:$0xff]
      %v1926 = vld [vmem:[%s1751 + $0x570] sm:$0xff]
      %v1927 = vld [vmem:[%s1751 + $0x578] sm:$0xff]
      %v1928 = vld [vmem:[%s1751 + $0x580] sm:$0xff]
      %v1929 = vld [vmem:[%s1751 + $0x588] sm:$0xff]
      %v1930 = vld [vmem:[%s1751 + $0x590] sm:$0xff]
      %v1931 = vld [vmem:[%s1751 + $0x598] sm:$0xff]
      %v1932 = vld [vmem:[%s1751 + $0x5a0] sm:$0xff]
      %v1933 = vld [vmem:[%s1751 + $0x5a8] sm:$0xff]
      %v1934 = vld [vmem:[%s1751 + $0x5b0] sm:$0xff]
      %v1935 = vld [vmem:[%s1751 + $0x5b8] sm:$0xff]
      %v1936 = vld [vmem:[%s1751 + $0x5c0] sm:$0xff]
      %v1937 = vld [vmem:[%s1751 + $0x5c8] sm:$0xff]
      %v1938 = vld [vmem:[%s1751 + $0x5d0] sm:$0xff]
      %v1939 = vld [vmem:[%s1751 + $0x5d8] sm:$0xff]
      %v1940 = vld [vmem:[%s1751 + $0x5e0] sm:$0xff]
      %v1941 = vld [vmem:[%s1751 + $0x5e8] sm:$0xff]
      %v1942 = vld [vmem:[%s1751 + $0x5f0] sm:$0xff]
      %v1943 = vld [vmem:[%s1751 + $0x5f8] sm:$0xff]
      %v1944 = vld [vmem:[%s1751 + $0x600] sm:$0xff]
      %v1945 = vld [vmem:[%s1751 + $0x608] sm:$0xff]
      %v1946 = vld [vmem:[%s1751 + $0x610] sm:$0xff]
      %v1947 = vld [vmem:[%s1751 + $0x618] sm:$0xff]
      %v1948 = vld [vmem:[%s1751 + $0x620] sm:$0xff]
      %v1949 = vld [vmem:[%s1751 + $0x628] sm:$0xff]
      %v1950 = vld [vmem:[%s1751 + $0x630] sm:$0xff]
      %v1951 = vld [vmem:[%s1751 + $0x638] sm:$0xff]
      %v1952 = vld [vmem:[%s1751 + $0x640] sm:$0xff]
      %v1953 = vld [vmem:[%s1751 + $0x648] sm:$0xff]
      %v1954 = vld [vmem:[%s1751 + $0x650] sm:$0xff]
      %v1955 = vld [vmem:[%s1751 + $0x658] sm:$0xff]
      %v1956 = vld [vmem:[%s1751 + $0x660] sm:$0xff]
      %v1957 = vld [vmem:[%s1751 + $0x668] sm:$0xff]
      %v1958 = vld [vmem:[%s1751 + $0x670] sm:$0xff]
      %v1959 = vld [vmem:[%s1751 + $0x678] sm:$0xff]
      %v1960 = vld [vmem:[%s1751 + $0x680] sm:$0xff]
      %v1961 = vld [vmem:[%s1751 + $0x688] sm:$0xff]
      %v1962 = vld [vmem:[%s1751 + $0x690] sm:$0xff]
      %v1963 = vld [vmem:[%s1751 + $0x698] sm:$0xff]
      %v1964 = vld [vmem:[%s1751 + $0x6a0] sm:$0xff]
      %v1965 = vld [vmem:[%s1751 + $0x6a8] sm:$0xff]
      %v1966 = vld [vmem:[%s1751 + $0x6b0] sm:$0xff]
      %v1967 = vld [vmem:[%s1751 + $0x6b8] sm:$0xff]
      %v1968 = vld [vmem:[%s1751 + $0x6c0] sm:$0xff]
      %v1969 = vld [vmem:[%s1751 + $0x6c8] sm:$0xff]
      %v1970 = vld [vmem:[%s1751 + $0x6d0] sm:$0xff]
      %v1971 = vld [vmem:[%s1751 + $0x6d8] sm:$0xff]
      %v1972 = vld [vmem:[%s1751 + $0x6e0] sm:$0xff]
      %v1973 = vld [vmem:[%s1751 + $0x6e8] sm:$0xff]
      %v1974 = vld [vmem:[%s1751 + $0x6f0] sm:$0xff]
      %v1975 = vld [vmem:[%s1751 + $0x6f8] sm:$0xff]
      %v1976 = vld [vmem:[%s1751 + $0x700] sm:$0xff]
      %v1977 = vld [vmem:[%s1751 + $0x708] sm:$0xff]
      %v1978 = vld [vmem:[%s1751 + $0x710] sm:$0xff]
      %v1979 = vld [vmem:[%s1751 + $0x718] sm:$0xff]
      %v1980 = vld [vmem:[%s1751 + $0x720] sm:$0xff]
      %v1981 = vld [vmem:[%s1751 + $0x728] sm:$0xff]
      %v1982 = vld [vmem:[%s1751 + $0x730] sm:$0xff]
      %v1983 = vld [vmem:[%s1751 + $0x738] sm:$0xff]
      %v1984 = vld [vmem:[%s1751 + $0x740] sm:$0xff]
      %v1985 = vld [vmem:[%s1751 + $0x748] sm:$0xff]
      %v1986 = vld [vmem:[%s1751 + $0x750] sm:$0xff]
      %v1987 = vld [vmem:[%s1751 + $0x758] sm:$0xff]
      %v1988 = vld [vmem:[%s1751 + $0x760] sm:$0xff]
      %v1989 = vld [vmem:[%s1751 + $0x768] sm:$0xff]
      %v1990 = vld [vmem:[%s1751 + $0x770] sm:$0xff]
      %v1991 = vld [vmem:[%s1751 + $0x778] sm:$0xff]
      %v1992 = vld [vmem:[%s1751 + $0x780] sm:$0xff]
      %v1993 = vld [vmem:[%s1751 + $0x788] sm:$0xff]
      %v1994 = vld [vmem:[%s1751 + $0x790] sm:$0xff]
      %v1995 = vld [vmem:[%s1751 + $0x798] sm:$0xff]
      %v1996 = vld [vmem:[%s1751 + $0x7a0] sm:$0xff]
      %v1997 = vld [vmem:[%s1751 + $0x7a8] sm:$0xff]
      %v1998 = vld [vmem:[%s1751 + $0x7b0] sm:$0xff]
      %v1999 = vld [vmem:[%s1751 + $0x7b8] sm:$0xff]
      %v2000 = vld [vmem:[%s1751 + $0x7c0] sm:$0xff]
      %v2001 = vld [vmem:[%s1751 + $0x7c8] sm:$0xff]
      %v2002 = vld [vmem:[%s1751 + $0x7d0] sm:$0xff]
      %v2003 = vld [vmem:[%s1751 + $0x7d8] sm:$0xff]
      %v2004 = vld [vmem:[%s1751 + $0x7e0] sm:$0xff]
      %v2005 = vld [vmem:[%s1751 + $0x7e8] sm:$0xff]
      %v2006 = vld [vmem:[%s1751 + $0x7f0] sm:$0xff]
      %v2007 = vld [vmem:[%s1751 + $0x7f8] sm:$0xff]
      %vm2008 = vcmask 1045504
      %v2009 = vrot.slane %v449, 2
      %v2010 = vrot.slane %v453, 2
      %v2011 = vsel %vm2008, %v2009, %v2010
      %v2012 = vrot.slane %v450, 2
      %v2013 = vrot.slane %v454, 2
      %v2014 = vsel %vm2008, %v2012, %v2013
      %v2015 = vrot.slane %v451, 2
      %v2016 = vrot.slane %v455, 2
      %v2017 = vsel %vm2008, %v2015, %v2016
      %v2018 = vrot.slane %v452, 2
      %v2019 = vrot.slane %v456, 2
      %v2020 = vsel %vm2008, %v2018, %v2019
      %v2021 = vrot.slane %v457, 2
      %v2022 = vsel %vm2008, %v2010, %v2021
      %v2023 = vrot.slane %v458, 2
      %v2024 = vsel %vm2008, %v2013, %v2023
      %v2025 = vrot.slane %v459, 2
      %v2026 = vsel %vm2008, %v2016, %v2025
      %v2027 = vrot.slane %v460, 2
      %v2028 = vsel %vm2008, %v2019, %v2027
      %2037 = vmatpush.msra.mxu0 %v1812
      %2038 = vmatpush.msra.mxu0 %v1808
      %2039 = vmatpush.msra.mxu0 %v1804
      %2040 = vmatpush.msra.mxu0 %v1800
      %2041 = vmatpush.msra.mxu0 %v1796
      %2042 = vmatpush.msra.mxu0 %v1792
      %2043 = vmatpush.msra.mxu0 %v1788
      %2044 = vmatpush.msra.mxu0 %v1784
      %2045 = vmatpush.msra.mxu0 %v1780
      %2046 = vmatpush.msra.mxu0 %v1776
      %2047 = vmatpush.msra.mxu0 %v1772
      %2048 = vmatpush.msra.mxu0 %v1768
      %2049 = vmatpush.msra.mxu0 %v1764
      %2050 = vmatpush.msra.mxu0 %v1760
      %2051 = vmatpush.msra.mxu0 %v1756
      %2052 = vmatpush.msra.mxu0 %v1752
      %2053 = vmatmul.f32.gmra.mxu0 %v2011
      %v2054 = vpop.f32.mrf.mxu0
      %v2055 = vadd.f32 0.0, %v2054
      %2056 = vmatmul.f32.gmra.mxu0 %v2022
      %v2057 = vpop.f32.mrf.mxu0
      %v2058 = vadd.f32 0.0, %v2057
      %2059 = vdwg.mxu0
      %2060 = vmatpush.msra.mxu0 %v1876
      %2061 = vmatpush.msra.mxu0 %v1872
      %2062 = vmatpush.msra.mxu0 %v1868
      %2063 = vmatpush.msra.mxu0 %v1864
      %2064 = vmatpush.msra.mxu0 %v1860
      %2065 = vmatpush.msra.mxu0 %v1856
      %2066 = vmatpush.msra.mxu0 %v1852
      %2067 = vmatpush.msra.mxu0 %v1848
      %2068 = vmatpush.msra.mxu0 %v1844
      %2069 = vmatpush.msra.mxu0 %v1840
      %2070 = vmatpush.msra.mxu0 %v1836
      %2071 = vmatpush.msra.mxu0 %v1832
      %2072 = vmatpush.msra.mxu0 %v1828
      %2073 = vmatpush.msra.mxu0 %v1824
      %2074 = vmatpush.msra.mxu0 %v1820
      %2075 = vmatpush.msra.mxu0 %v1816
      %2076 = vmatmul.f32.gmra.mxu0 %v2014
      %v2077 = vpop.f32.mrf.mxu0
      %v2078 = vadd.f32 %v2055, %v2077
      %2079 = vmatmul.f32.gmra.mxu0 %v2024
      %v2080 = vpop.f32.mrf.mxu0
      %v2081 = vadd.f32 %v2058, %v2080
      %2082 = vdwg.mxu0
      %2083 = vmatpush.msra.mxu0 %v1940
      %2084 = vmatpush.msra.mxu0 %v1936
      %2085 = vmatpush.msra.mxu0 %v1932
      %2086 = vmatpush.msra.mxu0 %v1928
      %2087 = vmatpush.msra.mxu0 %v1924
      %2088 = vmatpush.msra.mxu0 %v1920
      %2089 = vmatpush.msra.mxu0 %v1916
      %2090 = vmatpush.msra.mxu0 %v1912
      %2091 = vmatpush.msra.mxu0 %v1908
      %2092 = vmatpush.msra.mxu0 %v1904
      %2093 = vmatpush.msra.mxu0 %v1900
      %2094 = vmatpush.msra.mxu0 %v1896
      %2095 = vmatpush.msra.mxu0 %v1892
      %2096 = vmatpush.msra.mxu0 %v1888
      %2097 = vmatpush.msra.mxu0 %v1884
      %2098 = vmatpush.msra.mxu0 %v1880
      %2099 = vmatmul.f32.gmra.mxu0 %v2017
      %v2100 = vpop.f32.mrf.mxu0
      %v2101 = vadd.f32 %v2078, %v2100
      %2102 = vmatmul.f32.gmra.mxu0 %v2026
      %v2103 = vpop.f32.mrf.mxu0
      %v2104 = vadd.f32 %v2081, %v2103
      %2105 = vdwg.mxu0
      %2106 = vmatpush.msra.mxu0 %v2004
      %2107 = vmatpush.msra.mxu0 %v2000
      %2108 = vmatpush.msra.mxu0 %v1996
      %2109 = vmatpush.msra.mxu0 %v1992
      %2110 = vmatpush.msra.mxu0 %v1988
      %2111 = vmatpush.msra.mxu0 %v1984
      %2112 = vmatpush.msra.mxu0 %v1980
      %2113 = vmatpush.msra.mxu0 %v1976
      %2114 = vmatpush.msra.mxu0 %v1972
      %2115 = vmatpush.msra.mxu0 %v1968
      %2116 = vmatpush.msra.mxu0 %v1964
      %2117 = vmatpush.msra.mxu0 %v1960
      %2118 = vmatpush.msra.mxu0 %v1956
      %2119 = vmatpush.msra.mxu0 %v1952
      %2120 = vmatpush.msra.mxu0 %v1948
      %2121 = vmatpush.msra.mxu0 %v1944
      %2122 = vmatmul.f32.gmra.mxu0 %v2020
      %v2123 = vpop.f32.mrf.mxu0
      %v2124 = vadd.f32 %v2101, %v2123
      %2125 = vmatmul.f32.gmra.mxu0 %v2028
      %v2126 = vpop.f32.mrf.mxu0
      %v2127 = vadd.f32 %v2104, %v2126
      %2128 = vdwg.mxu0
      %2129 = vmatpush.msra.mxu0 %v1813
      %2130 = vmatpush.msra.mxu0 %v1809
      %2131 = vmatpush.msra.mxu0 %v1805
      %2132 = vmatpush.msra.mxu0 %v1801
      %2133 = vmatpush.msra.mxu0 %v1797
      %2134 = vmatpush.msra.mxu0 %v1793
      %2135 = vmatpush.msra.mxu0 %v1789
      %2136 = vmatpush.msra.mxu0 %v1785
      %2137 = vmatpush.msra.mxu0 %v1781
      %2138 = vmatpush.msra.mxu0 %v1777
      %2139 = vmatpush.msra.mxu0 %v1773
      %2140 = vmatpush.msra.mxu0 %v1769
      %2141 = vmatpush.msra.mxu0 %v1765
      %2142 = vmatpush.msra.mxu0 %v1761
      %2143 = vmatpush.msra.mxu0 %v1757
      %2144 = vmatpush.msra.mxu0 %v1753
      %2145 = vmatmul.f32.gmra.mxu0 %v2011
      %v2146 = vpop.f32.mrf.mxu0
      %v2147 = vadd.f32 0.0, %v2146
      %2148 = vmatmul.f32.gmra.mxu0 %v2022
      %v2149 = vpop.f32.mrf.mxu0
      %v2150 = vadd.f32 0.0, %v2149
      %2151 = vdwg.mxu0
      %2152 = vmatpush.msra.mxu0 %v1877
      %2153 = vmatpush.msra.mxu0 %v1873
      %2154 = vmatpush.msra.mxu0 %v1869
      %2155 = vmatpush.msra.mxu0 %v1865
      %2156 = vmatpush.msra.mxu0 %v1861
      %2157 = vmatpush.msra.mxu0 %v1857
      %2158 = vmatpush.msra.mxu0 %v1853
      %2159 = vmatpush.msra.mxu0 %v1849
      %2160 = vmatpush.msra.mxu0 %v1845
      %2161 = vmatpush.msra.mxu0 %v1841
      %2162 = vmatpush.msra.mxu0 %v1837
      %2163 = vmatpush.msra.mxu0 %v1833
      %2164 = vmatpush.msra.mxu0 %v1829
      %2165 = vmatpush.msra.mxu0 %v1825
      %2166 = vmatpush.msra.mxu0 %v1821
      %2167 = vmatpush.msra.mxu0 %v1817
      %2168 = vmatmul.f32.gmra.mxu0 %v2014
      %v2169 = vpop.f32.mrf.mxu0
      %v2170 = vadd.f32 %v2147, %v2169
      %2171 = vmatmul.f32.gmra.mxu0 %v2024
      %v2172 = vpop.f32.mrf.mxu0
      %v2173 = vadd.f32 %v2150, %v2172
      %2174 = vdwg.mxu0
      %2175 = vmatpush.msra.mxu0 %v1941
      %2176 = vmatpush.msra.mxu0 %v1937
      %2177 = vmatpush.msra.mxu0 %v1933
      %2178 = vmatpush.msra.mxu0 %v1929
      %2179 = vmatpush.msra.mxu0 %v1925
      %2180 = vmatpush.msra.mxu0 %v1921
      %2181 = vmatpush.msra.mxu0 %v1917
      %2182 = vmatpush.msra.mxu0 %v1913
      %2183 = vmatpush.msra.mxu0 %v1909
      %2184 = vmatpush.msra.mxu0 %v1905
      %2185 = vmatpush.msra.mxu0 %v1901
      %2186 = vmatpush.msra.mxu0 %v1897
      %2187 = vmatpush.msra.mxu0 %v1893
      %2188 = vmatpush.msra.mxu0 %v1889
      %2189 = vmatpush.msra.mxu0 %v1885
      %2190 = vmatpush.msra.mxu0 %v1881
      %2191 = vmatmul.f32.gmra.mxu0 %v2017
      %v2192 = vpop.f32.mrf.mxu0
      %v2193 = vadd.f32 %v2170, %v2192
      %2194 = vmatmul.f32.gmra.mxu0 %v2026
      %v2195 = vpop.f32.mrf.mxu0
      %v2196 = vadd.f32 %v2173, %v2195
      %2197 = vdwg.mxu0
      %2198 = vmatpush.msra.mxu0 %v2005
      %2199 = vmatpush.msra.mxu0 %v2001
      %2200 = vmatpush.msra.mxu0 %v1997
      %2201 = vmatpush.msra.mxu0 %v1993
      %2202 = vmatpush.msra.mxu0 %v1989
      %2203 = vmatpush.msra.mxu0 %v1985
      %2204 = vmatpush.msra.mxu0 %v1981
      %2205 = vmatpush.msra.mxu0 %v1977
      %2206 = vmatpush.msra.mxu0 %v1973
      %2207 = vmatpush.msra.mxu0 %v1969
      %2208 = vmatpush.msra.mxu0 %v1965
      %2209 = vmatpush.msra.mxu0 %v1961
      %2210 = vmatpush.msra.mxu0 %v1957
      %2211 = vmatpush.msra.mxu0 %v1953
      %2212 = vmatpush.msra.mxu0 %v1949
      %2213 = vmatpush.msra.mxu0 %v1945
      %2214 = vmatmul.f32.gmra.mxu0 %v2020
      %v2215 = vpop.f32.mrf.mxu0
      %v2216 = vadd.f32 %v2193, %v2215
      %2217 = vmatmul.f32.gmra.mxu0 %v2028
      %v2218 = vpop.f32.mrf.mxu0
      %v2219 = vadd.f32 %v2196, %v2218
      %2220 = vdwg.mxu0
      %2221 = vmatpush.msra.mxu0 %v1814
      %2222 = vmatpush.msra.mxu0 %v1810
      %2223 = vmatpush.msra.mxu0 %v1806
      %2224 = vmatpush.msra.mxu0 %v1802
      %2225 = vmatpush.msra.mxu0 %v1798
      %2226 = vmatpush.msra.mxu0 %v1794
      %2227 = vmatpush.msra.mxu0 %v1790
      %2228 = vmatpush.msra.mxu0 %v1786
      %2229 = vmatpush.msra.mxu0 %v1782
      %2230 = vmatpush.msra.mxu0 %v1778
      %2231 = vmatpush.msra.mxu0 %v1774
      %2232 = vmatpush.msra.mxu0 %v1770
      %2233 = vmatpush.msra.mxu0 %v1766
      %2234 = vmatpush.msra.mxu0 %v1762
      %2235 = vmatpush.msra.mxu0 %v1758
      %2236 = vmatpush.msra.mxu0 %v1754
      %2237 = vmatmul.f32.gmra.mxu0 %v2011
      %v2238 = vpop.f32.mrf.mxu0
      %v2239 = vadd.f32 0.0, %v2238
      %2240 = vmatmul.f32.gmra.mxu0 %v2022
      %v2241 = vpop.f32.mrf.mxu0
      %v2242 = vadd.f32 0.0, %v2241
      %2243 = vdwg.mxu0
      %2244 = vmatpush.msra.mxu0 %v1878
      %2245 = vmatpush.msra.mxu0 %v1874
      %2246 = vmatpush.msra.mxu0 %v1870
      %2247 = vmatpush.msra.mxu0 %v1866
      %2248 = vmatpush.msra.mxu0 %v1862
      %2249 = vmatpush.msra.mxu0 %v1858
      %2250 = vmatpush.msra.mxu0 %v1854
      %2251 = vmatpush.msra.mxu0 %v1850
      %2252 = vmatpush.msra.mxu0 %v1846
      %2253 = vmatpush.msra.mxu0 %v1842
      %2254 = vmatpush.msra.mxu0 %v1838
      %2255 = vmatpush.msra.mxu0 %v1834
      %2256 = vmatpush.msra.mxu0 %v1830
      %2257 = vmatpush.msra.mxu0 %v1826
      %2258 = vmatpush.msra.mxu0 %v1822
      %2259 = vmatpush.msra.mxu0 %v1818
      %2260 = vmatmul.f32.gmra.mxu0 %v2014
      %v2261 = vpop.f32.mrf.mxu0
      %v2262 = vadd.f32 %v2239, %v2261
      %2263 = vmatmul.f32.gmra.mxu0 %v2024
      %v2264 = vpop.f32.mrf.mxu0
      %v2265 = vadd.f32 %v2242, %v2264
      %2266 = vdwg.mxu0
      %2267 = vmatpush.msra.mxu0 %v1942
      %2268 = vmatpush.msra.mxu0 %v1938
      %2269 = vmatpush.msra.mxu0 %v1934
      %2270 = vmatpush.msra.mxu0 %v1930
      %2271 = vmatpush.msra.mxu0 %v1926
      %2272 = vmatpush.msra.mxu0 %v1922
      %2273 = vmatpush.msra.mxu0 %v1918
      %2274 = vmatpush.msra.mxu0 %v1914
      %2275 = vmatpush.msra.mxu0 %v1910
      %2276 = vmatpush.msra.mxu0 %v1906
      %2277 = vmatpush.msra.mxu0 %v1902
      %2278 = vmatpush.msra.mxu0 %v1898
      %2279 = vmatpush.msra.mxu0 %v1894
      %2280 = vmatpush.msra.mxu0 %v1890
      %2281 = vmatpush.msra.mxu0 %v1886
      %2282 = vmatpush.msra.mxu0 %v1882
      %2283 = vmatmul.f32.gmra.mxu0 %v2017
      %v2284 = vpop.f32.mrf.mxu0
      %v2285 = vadd.f32 %v2262, %v2284
      %2286 = vmatmul.f32.gmra.mxu0 %v2026
      %v2287 = vpop.f32.mrf.mxu0
      %v2288 = vadd.f32 %v2265, %v2287
      %2289 = vdwg.mxu0
      %2290 = vmatpush.msra.mxu0 %v2006
      %2291 = vmatpush.msra.mxu0 %v2002
      %2292 = vmatpush.msra.mxu0 %v1998
      %2293 = vmatpush.msra.mxu0 %v1994
      %2294 = vmatpush.msra.mxu0 %v1990
      %2295 = vmatpush.msra.mxu0 %v1986
      %2296 = vmatpush.msra.mxu0 %v1982
      %2297 = vmatpush.msra.mxu0 %v1978
      %2298 = vmatpush.msra.mxu0 %v1974
      %2299 = vmatpush.msra.mxu0 %v1970
      %2300 = vmatpush.msra.mxu0 %v1966
      %2301 = vmatpush.msra.mxu0 %v1962
      %2302 = vmatpush.msra.mxu0 %v1958
      %2303 = vmatpush.msra.mxu0 %v1954
      %2304 = vmatpush.msra.mxu0 %v1950
      %2305 = vmatpush.msra.mxu0 %v1946
      %2306 = vmatmul.f32.gmra.mxu0 %v2020
      %v2307 = vpop.f32.mrf.mxu0
      %v2308 = vadd.f32 %v2285, %v2307
      %2309 = vmatmul.f32.gmra.mxu0 %v2028
      %v2310 = vpop.f32.mrf.mxu0
      %v2311 = vadd.f32 %v2288, %v2310
      %2312 = vdwg.mxu0
      %2313 = vmatpush.msra.mxu0 %v1815
      %2314 = vmatpush.msra.mxu0 %v1811
      %2315 = vmatpush.msra.mxu0 %v1807
      %2316 = vmatpush.msra.mxu0 %v1803
      %2317 = vmatpush.msra.mxu0 %v1799
      %2318 = vmatpush.msra.mxu0 %v1795
      %2319 = vmatpush.msra.mxu0 %v1791
      %2320 = vmatpush.msra.mxu0 %v1787
      %2321 = vmatpush.msra.mxu0 %v1783
      %2322 = vmatpush.msra.mxu0 %v1779
      %2323 = vmatpush.msra.mxu0 %v1775
      %2324 = vmatpush.msra.mxu0 %v1771
      %2325 = vmatpush.msra.mxu0 %v1767
      %2326 = vmatpush.msra.mxu0 %v1763
      %2327 = vmatpush.msra.mxu0 %v1759
      %2328 = vmatpush.msra.mxu0 %v1755
      %2329 = vmatmul.f32.gmra.mxu0 %v2011
      %v2330 = vpop.f32.mrf.mxu0
      %v2331 = vadd.f32 0.0, %v2330
      %2332 = vmatmul.f32.gmra.mxu0 %v2022
      %v2333 = vpop.f32.mrf.mxu0
      %v2334 = vadd.f32 0.0, %v2333
      %2335 = vdwg.mxu0
      %2336 = vmatpush.msra.mxu0 %v1879
      %2337 = vmatpush.msra.mxu0 %v1875
      %2338 = vmatpush.msra.mxu0 %v1871
      %2339 = vmatpush.msra.mxu0 %v1867
      %2340 = vmatpush.msra.mxu0 %v1863
      %2341 = vmatpush.msra.mxu0 %v1859
      %2342 = vmatpush.msra.mxu0 %v1855
      %2343 = vmatpush.msra.mxu0 %v1851
      %2344 = vmatpush.msra.mxu0 %v1847
      %2345 = vmatpush.msra.mxu0 %v1843
      %2346 = vmatpush.msra.mxu0 %v1839
      %2347 = vmatpush.msra.mxu0 %v1835
      %2348 = vmatpush.msra.mxu0 %v1831
      %2349 = vmatpush.msra.mxu0 %v1827
      %2350 = vmatpush.msra.mxu0 %v1823
      %2351 = vmatpush.msra.mxu0 %v1819
      %2352 = vmatmul.f32.gmra.mxu0 %v2014
      %v2353 = vpop.f32.mrf.mxu0
      %v2354 = vadd.f32 %v2331, %v2353
      %2355 = vmatmul.f32.gmra.mxu0 %v2024
      %v2356 = vpop.f32.mrf.mxu0
      %v2357 = vadd.f32 %v2334, %v2356
      %2358 = vdwg.mxu0
      %2359 = vmatpush.msra.mxu0 %v1943
      %2360 = vmatpush.msra.mxu0 %v1939
      %2361 = vmatpush.msra.mxu0 %v1935
      %2362 = vmatpush.msra.mxu0 %v1931
      %2363 = vmatpush.msra.mxu0 %v1927
      %2364 = vmatpush.msra.mxu0 %v1923
      %2365 = vmatpush.msra.mxu0 %v1919
      %2366 = vmatpush.msra.mxu0 %v1915
      %2367 = vmatpush.msra.mxu0 %v1911
      %2368 = vmatpush.msra.mxu0 %v1907
      %2369 = vmatpush.msra.mxu0 %v1903
      %2370 = vmatpush.msra.mxu0 %v1899
      %2371 = vmatpush.msra.mxu0 %v1895
      %2372 = vmatpush.msra.mxu0 %v1891
      %2373 = vmatpush.msra.mxu0 %v1887
      %2374 = vmatpush.msra.mxu0 %v1883
      %2375 = vmatmul.f32.gmra.mxu0 %v2017
      %v2376 = vpop.f32.mrf.mxu0
      %v2377 = vadd.f32 %v2354, %v2376
      %2378 = vmatmul.f32.gmra.mxu0 %v2026
      %v2379 = vpop.f32.mrf.mxu0
      %v2380 = vadd.f32 %v2357, %v2379
      %2381 = vdwg.mxu0
      %2382 = vmatpush.msra.mxu0 %v2007
      %2383 = vmatpush.msra.mxu0 %v2003
      %2384 = vmatpush.msra.mxu0 %v1999
      %2385 = vmatpush.msra.mxu0 %v1995
      %2386 = vmatpush.msra.mxu0 %v1991
      %2387 = vmatpush.msra.mxu0 %v1987
      %2388 = vmatpush.msra.mxu0 %v1983
      %2389 = vmatpush.msra.mxu0 %v1979
      %2390 = vmatpush.msra.mxu0 %v1975
      %2391 = vmatpush.msra.mxu0 %v1971
      %2392 = vmatpush.msra.mxu0 %v1967
      %2393 = vmatpush.msra.mxu0 %v1963
      %2394 = vmatpush.msra.mxu0 %v1959
      %2395 = vmatpush.msra.mxu0 %v1955
      %2396 = vmatpush.msra.mxu0 %v1951
      %2397 = vmatpush.msra.mxu0 %v1947
      %2398 = vmatmul.f32.gmra.mxu0 %v2020
      %v2399 = vpop.f32.mrf.mxu0
      %v2400 = vadd.f32 %v2377, %v2399
      %2401 = vmatmul.f32.gmra.mxu0 %v2028
      %v2402 = vpop.f32.mrf.mxu0
      %v2403 = vadd.f32 %v2380, %v2402
      %2404 = vdwg.mxu0
      %v2405 = vadd.f32 %v1470, %v2124
      %v2406 = vadd.f32 %v1562, %v2216
      %v2407 = vadd.f32 %v1654, %v2308
      %v2408 = vadd.f32 %v1746, %v2400
      %v2409 = vadd.f32 %v1473, %v2127
      %v2410 = vadd.f32 %v1565, %v2219
      %v2411 = vadd.f32 %v1657, %v2311
      %v2412 = vadd.f32 %v1749, %v2403
      %v2413 = vld [vmem:[%s2] sm:$0xf]
      %v2415 = vperm.slane %v2413, 0
      %v2416 = vperm.slane %v2413, 1
      %v2417 = vperm.slane %v2413, 2
      %v2418 = vperm.slane %v2413, 3
      %v2423 = vadd.f32 %v2405, %v2415
      %v2424 = vadd.f32 %v2406, %v2416
      %v2425 = vadd.f32 %v2407, %v2417
      %v2426 = vadd.f32 %v2408, %v2418
      %v2427 = vadd.f32 %v2409, %v2415
      %v2428 = vadd.f32 %v2410, %v2416
      %v2429 = vadd.f32 %v2411, %v2417
      %v2430 = vadd.f32 %v2412, %v2418
      %v2431 = vadd.f32 %v2423, %v2427
      %v2432 = vrot.slane %v2431, 4
      %v2433 = vadd.f32 %v2431, %v2432
      %v2434 = vrot.slane %v2433, 2
      %v2435 = vadd.f32 %v2433, %v2434
      %v2436 = vrot.slane %v2435, 1
      %v2437 = vadd.f32 %v2435, %v2436
      %v2438 = vadd.f32 %v2424, %v2428
      %v2439 = vrot.slane %v2438, 4
      %v2440 = vadd.f32 %v2438, %v2439
      %v2441 = vrot.slane %v2440, 2
      %v2442 = vadd.f32 %v2440, %v2441
      %v2443 = vrot.slane %v2442, 1
      %v2444 = vadd.f32 %v2442, %v2443
      %v2445 = vadd.f32 %v2425, %v2429
      %v2446 = vrot.slane %v2445, 4
      %v2447 = vadd.f32 %v2445, %v2446
      %v2448 = vrot.slane %v2447, 2
      %v2449 = vadd.f32 %v2447, %v2448
      %v2450 = vrot.slane %v2449, 1
      %v2451 = vadd.f32 %v2449, %v2450
      %v2452 = vadd.f32 %v2426, %v2430
      %v2453 = vrot.slane %v2452, 4
      %v2454 = vadd.f32 %v2452, %v2453
      %v2455 = vrot.slane %v2454, 2
      %v2456 = vadd.f32 %v2454, %v2455
      %v2457 = vrot.slane %v2456, 1
      %v2458 = vadd.f32 %v2456, %v2457
      %v2459 = vrcp.pop 16.0
      %v2460 = vmul.f32 16.0, %v2459
      %v2461 = vsub.f32 1.0, %v2460
      %v2462 = vmul.f32 %v2459, %v2461
      %v2463 = vadd.f32 %v2459, %v2462
      %vm2464 = vweird.f32 %v2459
      %v2465 = vsel %vm2464, %v2459, %v2463
      %v2466 = vmul.f32 %v2437, %v2465
      %v2467 = vmul.f32 %v2444, %v2465
      %v2468 = vmul.f32 %v2451, %v2465
      %v2469 = vmul.f32 %v2458, %v2465
      %v2470 = vld [vmem:[%s5] sm:$0xff]
      %v2471 = vld [vmem:[%s5 + $0x8] sm:$0xff]
      %v2472 = vld [vmem:[%s5 + $0x10] sm:$0xff]
      %v2473 = vld [vmem:[%s5 + $0x18] sm:$0xff]
      %v2474 = vld [vmem:[%s5 + $0x20] sm:$0xff]
      %v2475 = vld [vmem:[%s5 + $0x28] sm:$0xff]
      %v2476 = vld [vmem:[%s5 + $0x30] sm:$0xff]
      %v2477 = vld [vmem:[%s5 + $0x38] sm:$0xff]
      %v2478 = vld [vmem:[%s5 + $0x40] sm:$0xff]
      %v2479 = vld [vmem:[%s5 + $0x48] sm:$0xff]
      %v2480 = vld [vmem:[%s5 + $0x50] sm:$0xff]
      %v2481 = vld [vmem:[%s5 + $0x58] sm:$0xff]
      %v2482 = vld [vmem:[%s5 + $0x60] sm:$0xff]
      %v2483 = vld [vmem:[%s5 + $0x68] sm:$0xff]
      %v2484 = vld [vmem:[%s5 + $0x70] sm:$0xff]
      %v2485 = vld [vmem:[%s5 + $0x78] sm:$0xff]
      %v2486 = vld [vmem:[%s5 + $0x80] sm:$0xff]
      %v2487 = vld [vmem:[%s5 + $0x88] sm:$0xff]
      %v2488 = vld [vmem:[%s5 + $0x90] sm:$0xff]
      %v2489 = vld [vmem:[%s5 + $0x98] sm:$0xff]
      %v2490 = vld [vmem:[%s5 + $0xa0] sm:$0xff]
      %v2491 = vld [vmem:[%s5 + $0xa8] sm:$0xff]
      %v2492 = vld [vmem:[%s5 + $0xb0] sm:$0xff]
      %v2493 = vld [vmem:[%s5 + $0xb8] sm:$0xff]
      %v2494 = vld [vmem:[%s5 + $0xc0] sm:$0xff]
      %v2495 = vld [vmem:[%s5 + $0xc8] sm:$0xff]
      %v2496 = vld [vmem:[%s5 + $0xd0] sm:$0xff]
      %v2497 = vld [vmem:[%s5 + $0xd8] sm:$0xff]
      %v2498 = vld [vmem:[%s5 + $0xe0] sm:$0xff]
      %v2499 = vld [vmem:[%s5 + $0xe8] sm:$0xff]
      %v2500 = vld [vmem:[%s5 + $0xf0] sm:$0xff]
      %v2501 = vld [vmem:[%s5 + $0xf8] sm:$0xff]
      %v2502 = vld [vmem:[%s5 + $0x100] sm:$0xff]
      %v2503 = vld [vmem:[%s5 + $0x108] sm:$0xff]
      %v2504 = vld [vmem:[%s5 + $0x110] sm:$0xff]
      %v2505 = vld [vmem:[%s5 + $0x118] sm:$0xff]
      %v2506 = vld [vmem:[%s5 + $0x120] sm:$0xff]
      %v2507 = vld [vmem:[%s5 + $0x128] sm:$0xff]
      %v2508 = vld [vmem:[%s5 + $0x130] sm:$0xff]
      %v2509 = vld [vmem:[%s5 + $0x138] sm:$0xff]
      %v2510 = vld [vmem:[%s5 + $0x140] sm:$0xff]
      %v2511 = vld [vmem:[%s5 + $0x148] sm:$0xff]
      %v2512 = vld [vmem:[%s5 + $0x150] sm:$0xff]
      %v2513 = vld [vmem:[%s5 + $0x158] sm:$0xff]
      %v2514 = vld [vmem:[%s5 + $0x160] sm:$0xff]
      %v2515 = vld [vmem:[%s5 + $0x168] sm:$0xff]
      %v2516 = vld [vmem:[%s5 + $0x170] sm:$0xff]
      %v2517 = vld [vmem:[%s5 + $0x178] sm:$0xff]
      %v2518 = vld [vmem:[%s5 + $0x180] sm:$0xff]
      %v2519 = vld [vmem:[%s5 + $0x188] sm:$0xff]
      %v2520 = vld [vmem:[%s5 + $0x190] sm:$0xff]
      %v2521 = vld [vmem:[%s5 + $0x198] sm:$0xff]
      %v2522 = vld [vmem:[%s5 + $0x1a0] sm:$0xff]
      %v2523 = vld [vmem:[%s5 + $0x1a8] sm:$0xff]
      %v2524 = vld [vmem:[%s5 + $0x1b0] sm:$0xff]
      %v2525 = vld [vmem:[%s5 + $0x1b8] sm:$0xff]
      %v2526 = vld [vmem:[%s5 + $0x1c0] sm:$0xff]
      %v2527 = vld [vmem:[%s5 + $0x1c8] sm:$0xff]
      %v2528 = vld [vmem:[%s5 + $0x1d0] sm:$0xff]
      %v2529 = vld [vmem:[%s5 + $0x1d8] sm:$0xff]
      %v2530 = vld [vmem:[%s5 + $0x1e0] sm:$0xff]
      %v2531 = vld [vmem:[%s5 + $0x1e8] sm:$0xff]
      %v2532 = vld [vmem:[%s5 + $0x1f0] sm:$0xff]
      %v2533 = vld [vmem:[%s5 + $0x1f8] sm:$0xff]
      %v2534 = vld [vmem:[%s5 + $0x200] sm:$0xff]
      %v2535 = vld [vmem:[%s5 + $0x208] sm:$0xff]
      %v2536 = vld [vmem:[%s5 + $0x210] sm:$0xff]
      %v2537 = vld [vmem:[%s5 + $0x218] sm:$0xff]
      %v2538 = vld [vmem:[%s5 + $0x220] sm:$0xff]
      %v2539 = vld [vmem:[%s5 + $0x228] sm:$0xff]
      %v2540 = vld [vmem:[%s5 + $0x230] sm:$0xff]
      %v2541 = vld [vmem:[%s5 + $0x238] sm:$0xff]
      %v2542 = vld [vmem:[%s5 + $0x240] sm:$0xff]
      %v2543 = vld [vmem:[%s5 + $0x248] sm:$0xff]
      %v2544 = vld [vmem:[%s5 + $0x250] sm:$0xff]
      %v2545 = vld [vmem:[%s5 + $0x258] sm:$0xff]
      %v2546 = vld [vmem:[%s5 + $0x260] sm:$0xff]
      %v2547 = vld [vmem:[%s5 + $0x268] sm:$0xff]
      %v2548 = vld [vmem:[%s5 + $0x270] sm:$0xff]
      %v2549 = vld [vmem:[%s5 + $0x278] sm:$0xff]
      %v2550 = vld [vmem:[%s5 + $0x280] sm:$0xff]
      %v2551 = vld [vmem:[%s5 + $0x288] sm:$0xff]
      %v2552 = vld [vmem:[%s5 + $0x290] sm:$0xff]
      %v2553 = vld [vmem:[%s5 + $0x298] sm:$0xff]
      %v2554 = vld [vmem:[%s5 + $0x2a0] sm:$0xff]
      %v2555 = vld [vmem:[%s5 + $0x2a8] sm:$0xff]
      %v2556 = vld [vmem:[%s5 + $0x2b0] sm:$0xff]
      %v2557 = vld [vmem:[%s5 + $0x2b8] sm:$0xff]
      %v2558 = vld [vmem:[%s5 + $0x2c0] sm:$0xff]
      %v2559 = vld [vmem:[%s5 + $0x2c8] sm:$0xff]
      %v2560 = vld [vmem:[%s5 + $0x2d0] sm:$0xff]
      %v2561 = vld [vmem:[%s5 + $0x2d8] sm:$0xff]
      %v2562 = vld [vmem:[%s5 + $0x2e0] sm:$0xff]
      %v2563 = vld [vmem:[%s5 + $0x2e8] sm:$0xff]
      %v2564 = vld [vmem:[%s5 + $0x2f0] sm:$0xff]
      %v2565 = vld [vmem:[%s5 + $0x2f8] sm:$0xff]
      %v2566 = vld [vmem:[%s5 + $0x300] sm:$0xff]
      %v2567 = vld [vmem:[%s5 + $0x308] sm:$0xff]
      %v2568 = vld [vmem:[%s5 + $0x310] sm:$0xff]
      %v2569 = vld [vmem:[%s5 + $0x318] sm:$0xff]
      %v2570 = vld [vmem:[%s5 + $0x320] sm:$0xff]
      %v2571 = vld [vmem:[%s5 + $0x328] sm:$0xff]
      %v2572 = vld [vmem:[%s5 + $0x330] sm:$0xff]
      %v2573 = vld [vmem:[%s5 + $0x338] sm:$0xff]
      %v2574 = vld [vmem:[%s5 + $0x340] sm:$0xff]
      %v2575 = vld [vmem:[%s5 + $0x348] sm:$0xff]
      %v2576 = vld [vmem:[%s5 + $0x350] sm:$0xff]
      %v2577 = vld [vmem:[%s5 + $0x358] sm:$0xff]
      %v2578 = vld [vmem:[%s5 + $0x360] sm:$0xff]
      %v2579 = vld [vmem:[%s5 + $0x368] sm:$0xff]
      %v2580 = vld [vmem:[%s5 + $0x370] sm:$0xff]
      %v2581 = vld [vmem:[%s5 + $0x378] sm:$0xff]
      %v2582 = vld [vmem:[%s5 + $0x380] sm:$0xff]
      %v2583 = vld [vmem:[%s5 + $0x388] sm:$0xff]
      %v2584 = vld [vmem:[%s5 + $0x390] sm:$0xff]
      %v2585 = vld [vmem:[%s5 + $0x398] sm:$0xff]
      %v2586 = vld [vmem:[%s5 + $0x3a0] sm:$0xff]
      %v2587 = vld [vmem:[%s5 + $0x3a8] sm:$0xff]
      %v2588 = vld [vmem:[%s5 + $0x3b0] sm:$0xff]
      %v2589 = vld [vmem:[%s5 + $0x3b8] sm:$0xff]
      %v2590 = vld [vmem:[%s5 + $0x3c0] sm:$0xff]
      %v2591 = vld [vmem:[%s5 + $0x3c8] sm:$0xff]
      %v2592 = vld [vmem:[%s5 + $0x3d0] sm:$0xff]
      %v2593 = vld [vmem:[%s5 + $0x3d8] sm:$0xff]
      %v2594 = vld [vmem:[%s5 + $0x3e0] sm:$0xff]
      %v2595 = vld [vmem:[%s5 + $0x3e8] sm:$0xff]
      %v2596 = vld [vmem:[%s5 + $0x3f0] sm:$0xff]
      %v2597 = vld [vmem:[%s5 + $0x3f8] sm:$0xff]
      %v2598 = vld [vmem:[%s5 + $0x400] sm:$0xff]
      %v2599 = vld [vmem:[%s5 + $0x408] sm:$0xff]
      %v2600 = vld [vmem:[%s5 + $0x410] sm:$0xff]
      %v2601 = vld [vmem:[%s5 + $0x418] sm:$0xff]
      %v2602 = vld [vmem:[%s5 + $0x420] sm:$0xff]
      %v2603 = vld [vmem:[%s5 + $0x428] sm:$0xff]
      %v2604 = vld [vmem:[%s5 + $0x430] sm:$0xff]
      %v2605 = vld [vmem:[%s5 + $0x438] sm:$0xff]
      %v2606 = vld [vmem:[%s5 + $0x440] sm:$0xff]
      %v2607 = vld [vmem:[%s5 + $0x448] sm:$0xff]
      %v2608 = vld [vmem:[%s5 + $0x450] sm:$0xff]
      %v2609 = vld [vmem:[%s5 + $0x458] sm:$0xff]
      %v2610 = vld [vmem:[%s5 + $0x460] sm:$0xff]
      %v2611 = vld [vmem:[%s5 + $0x468] sm:$0xff]
      %v2612 = vld [vmem:[%s5 + $0x470] sm:$0xff]
      %v2613 = vld [vmem:[%s5 + $0x478] sm:$0xff]
      %v2614 = vld [vmem:[%s5 + $0x480] sm:$0xff]
      %v2615 = vld [vmem:[%s5 + $0x488] sm:$0xff]
      %v2616 = vld [vmem:[%s5 + $0x490] sm:$0xff]
      %v2617 = vld [vmem:[%s5 + $0x498] sm:$0xff]
      %v2618 = vld [vmem:[%s5 + $0x4a0] sm:$0xff]
      %v2619 = vld [vmem:[%s5 + $0x4a8] sm:$0xff]
      %v2620 = vld [vmem:[%s5 + $0x4b0] sm:$0xff]
      %v2621 = vld [vmem:[%s5 + $0x4b8] sm:$0xff]
      %v2622 = vld [vmem:[%s5 + $0x4c0] sm:$0xff]
      %v2623 = vld [vmem:[%s5 + $0x4c8] sm:$0xff]
      %v2624 = vld [vmem:[%s5 + $0x4d0] sm:$0xff]
      %v2625 = vld [vmem:[%s5 + $0x4d8] sm:$0xff]
      %v2626 = vld [vmem:[%s5 + $0x4e0] sm:$0xff]
      %v2627 = vld [vmem:[%s5 + $0x4e8] sm:$0xff]
      %v2628 = vld [vmem:[%s5 + $0x4f0] sm:$0xff]
      %v2629 = vld [vmem:[%s5 + $0x4f8] sm:$0xff]
      %v2630 = vld [vmem:[%s5 + $0x500] sm:$0xff]
      %v2631 = vld [vmem:[%s5 + $0x508] sm:$0xff]
      %v2632 = vld [vmem:[%s5 + $0x510] sm:$0xff]
      %v2633 = vld [vmem:[%s5 + $0x518] sm:$0xff]
      %v2634 = vld [vmem:[%s5 + $0x520] sm:$0xff]
      %v2635 = vld [vmem:[%s5 + $0x528] sm:$0xff]
      %v2636 = vld [vmem:[%s5 + $0x530] sm:$0xff]
      %v2637 = vld [vmem:[%s5 + $0x538] sm:$0xff]
      %v2638 = vld [vmem:[%s5 + $0x540] sm:$0xff]
      %v2639 = vld [vmem:[%s5 + $0x548] sm:$0xff]
      %v2640 = vld [vmem:[%s5 + $0x550] sm:$0xff]
      %v2641 = vld [vmem:[%s5 + $0x558] sm:$0xff]
      %v2642 = vld [vmem:[%s5 + $0x560] sm:$0xff]
      %v2643 = vld [vmem:[%s5 + $0x568] sm:$0xff]
      %v2644 = vld [vmem:[%s5 + $0x570] sm:$0xff]
      %v2645 = vld [vmem:[%s5 + $0x578] sm:$0xff]
      %v2646 = vld [vmem:[%s5 + $0x580] sm:$0xff]
      %v2647 = vld [vmem:[%s5 + $0x588] sm:$0xff]
      %v2648 = vld [vmem:[%s5 + $0x590] sm:$0xff]
      %v2649 = vld [vmem:[%s5 + $0x598] sm:$0xff]
      %v2650 = vld [vmem:[%s5 + $0x5a0] sm:$0xff]
      %v2651 = vld [vmem:[%s5 + $0x5a8] sm:$0xff]
      %v2652 = vld [vmem:[%s5 + $0x5b0] sm:$0xff]
      %v2653 = vld [vmem:[%s5 + $0x5b8] sm:$0xff]
      %v2654 = vld [vmem:[%s5 + $0x5c0] sm:$0xff]
      %v2655 = vld [vmem:[%s5 + $0x5c8] sm:$0xff]
      %v2656 = vld [vmem:[%s5 + $0x5d0] sm:$0xff]
      %v2657 = vld [vmem:[%s5 + $0x5d8] sm:$0xff]
      %v2658 = vld [vmem:[%s5 + $0x5e0] sm:$0xff]
      %v2659 = vld [vmem:[%s5 + $0x5e8] sm:$0xff]
      %v2660 = vld [vmem:[%s5 + $0x5f0] sm:$0xff]
      %v2661 = vld [vmem:[%s5 + $0x5f8] sm:$0xff]
      %v2662 = vld [vmem:[%s5 + $0x600] sm:$0xff]
      %v2663 = vld [vmem:[%s5 + $0x608] sm:$0xff]
      %v2664 = vld [vmem:[%s5 + $0x610] sm:$0xff]
      %v2665 = vld [vmem:[%s5 + $0x618] sm:$0xff]
      %v2666 = vld [vmem:[%s5 + $0x620] sm:$0xff]
      %v2667 = vld [vmem:[%s5 + $0x628] sm:$0xff]
      %v2668 = vld [vmem:[%s5 + $0x630] sm:$0xff]
      %v2669 = vld [vmem:[%s5 + $0x638] sm:$0xff]
      %v2670 = vld [vmem:[%s5 + $0x640] sm:$0xff]
      %v2671 = vld [vmem:[%s5 + $0x648] sm:$0xff]
      %v2672 = vld [vmem:[%s5 + $0x650] sm:$0xff]
      %v2673 = vld [vmem:[%s5 + $0x658] sm:$0xff]
      %v2674 = vld [vmem:[%s5 + $0x660] sm:$0xff]
      %v2675 = vld [vmem:[%s5 + $0x668] sm:$0xff]
      %v2676 = vld [vmem:[%s5 + $0x670] sm:$0xff]
      %v2677 = vld [vmem:[%s5 + $0x678] sm:$0xff]
      %v2678 = vld [vmem:[%s5 + $0x680] sm:$0xff]
      %v2679 = vld [vmem:[%s5 + $0x688] sm:$0xff]
      %v2680 = vld [vmem:[%s5 + $0x690] sm:$0xff]
      %v2681 = vld [vmem:[%s5 + $0x698] sm:$0xff]
      %v2682 = vld [vmem:[%s5 + $0x6a0] sm:$0xff]
      %v2683 = vld [vmem:[%s5 + $0x6a8] sm:$0xff]
      %v2684 = vld [vmem:[%s5 + $0x6b0] sm:$0xff]
      %v2685 = vld [vmem:[%s5 + $0x6b8] sm:$0xff]
      %v2686 = vld [vmem:[%s5 + $0x6c0] sm:$0xff]
      %v2687 = vld [vmem:[%s5 + $0x6c8] sm:$0xff]
      %v2688 = vld [vmem:[%s5 + $0x6d0] sm:$0xff]
      %v2689 = vld [vmem:[%s5 + $0x6d8] sm:$0xff]
      %v2690 = vld [vmem:[%s5 + $0x6e0] sm:$0xff]
      %v2691 = vld [vmem:[%s5 + $0x6e8] sm:$0xff]
      %v2692 = vld [vmem:[%s5 + $0x6f0] sm:$0xff]
      %v2693 = vld [vmem:[%s5 + $0x6f8] sm:$0xff]
      %v2694 = vld [vmem:[%s5 + $0x700] sm:$0xff]
      %v2695 = vld [vmem:[%s5 + $0x708] sm:$0xff]
      %v2696 = vld [vmem:[%s5 + $0x710] sm:$0xff]
      %v2697 = vld [vmem:[%s5 + $0x718] sm:$0xff]
      %v2698 = vld [vmem:[%s5 + $0x720] sm:$0xff]
      %v2699 = vld [vmem:[%s5 + $0x728] sm:$0xff]
      %v2700 = vld [vmem:[%s5 + $0x730] sm:$0xff]
      %v2701 = vld [vmem:[%s5 + $0x738] sm:$0xff]
      %v2702 = vld [vmem:[%s5 + $0x740] sm:$0xff]
      %v2703 = vld [vmem:[%s5 + $0x748] sm:$0xff]
      %v2704 = vld [vmem:[%s5 + $0x750] sm:$0xff]
      %v2705 = vld [vmem:[%s5 + $0x758] sm:$0xff]
      %v2706 = vld [vmem:[%s5 + $0x760] sm:$0xff]
      %v2707 = vld [vmem:[%s5 + $0x768] sm:$0xff]
      %v2708 = vld [vmem:[%s5 + $0x770] sm:$0xff]
      %v2709 = vld [vmem:[%s5 + $0x778] sm:$0xff]
      %v2710 = vld [vmem:[%s5 + $0x780] sm:$0xff]
      %v2711 = vld [vmem:[%s5 + $0x788] sm:$0xff]
      %v2712 = vld [vmem:[%s5 + $0x790] sm:$0xff]
      %v2713 = vld [vmem:[%s5 + $0x798] sm:$0xff]
      %v2714 = vld [vmem:[%s5 + $0x7a0] sm:$0xff]
      %v2715 = vld [vmem:[%s5 + $0x7a8] sm:$0xff]
      %v2716 = vld [vmem:[%s5 + $0x7b0] sm:$0xff]
      %v2717 = vld [vmem:[%s5 + $0x7b8] sm:$0xff]
      %v2718 = vld [vmem:[%s5 + $0x7c0] sm:$0xff]
      %v2719 = vld [vmem:[%s5 + $0x7c8] sm:$0xff]
      %v2720 = vld [vmem:[%s5 + $0x7d0] sm:$0xff]
      %v2721 = vld [vmem:[%s5 + $0x7d8] sm:$0xff]
      %v2722 = vld [vmem:[%s5 + $0x7e0] sm:$0xff]
      %v2723 = vld [vmem:[%s5 + $0x7e8] sm:$0xff]
      %v2724 = vld [vmem:[%s5 + $0x7f0] sm:$0xff]
      %v2725 = vld [vmem:[%s5 + $0x7f8] sm:$0xff]
      %2726 = vmatpush.msra.mxu0 %v2530
      %2727 = vmatpush.msra.mxu0 %v2526
      %2728 = vmatpush.msra.mxu0 %v2522
      %2729 = vmatpush.msra.mxu0 %v2518
      %2730 = vmatpush.msra.mxu0 %v2514
      %2731 = vmatpush.msra.mxu0 %v2510
      %2732 = vmatpush.msra.mxu0 %v2506
      %2733 = vmatpush.msra.mxu0 %v2502
      %2734 = vmatpush.msra.mxu0 %v2498
      %2735 = vmatpush.msra.mxu0 %v2494
      %2736 = vmatpush.msra.mxu0 %v2490
      %2737 = vmatpush.msra.mxu0 %v2486
      %2738 = vmatpush.msra.mxu0 %v2482
      %2739 = vmatpush.msra.mxu0 %v2478
      %2740 = vmatpush.msra.mxu0 %v2474
      %2741 = vmatpush.msra.mxu0 %v2470
      %2742 = vmatmul.f32.gmra.mxu0 %v2466
      %v2743 = vpop.f32.mrf.mxu0
      %v2744 = vadd.f32 0.0, %v2743
      %2745 = vdwg.mxu0
      %2746 = vmatpush.msra.mxu0 %v2594
      %2747 = vmatpush.msra.mxu0 %v2590
      %2748 = vmatpush.msra.mxu0 %v2586
      %2749 = vmatpush.msra.mxu0 %v2582
      %2750 = vmatpush.msra.mxu0 %v2578
      %2751 = vmatpush.msra.mxu0 %v2574
      %2752 = vmatpush.msra.mxu0 %v2570
      %2753 = vmatpush.msra.mxu0 %v2566
      %2754 = vmatpush.msra.mxu0 %v2562
      %2755 = vmatpush.msra.mxu0 %v2558
      %2756 = vmatpush.msra.mxu0 %v2554
      %2757 = vmatpush.msra.mxu0 %v2550
      %2758 = vmatpush.msra.mxu0 %v2546
      %2759 = vmatpush.msra.mxu0 %v2542
      %2760 = vmatpush.msra.mxu0 %v2538
      %2761 = vmatpush.msra.mxu0 %v2534
      %2762 = vmatmul.f32.gmra.mxu0 %v2467
      %v2763 = vpop.f32.mrf.mxu0
      %v2764 = vadd.f32 %v2744, %v2763
      %2765 = vdwg.mxu0
      %2766 = vmatpush.msra.mxu0 %v2658
      %2767 = vmatpush.msra.mxu0 %v2654
      %2768 = vmatpush.msra.mxu0 %v2650
      %2769 = vmatpush.msra.mxu0 %v2646
      %2770 = vmatpush.msra.mxu0 %v2642
      %2771 = vmatpush.msra.mxu0 %v2638
      %2772 = vmatpush.msra.mxu0 %v2634
      %2773 = vmatpush.msra.mxu0 %v2630
      %2774 = vmatpush.msra.mxu0 %v2626
      %2775 = vmatpush.msra.mxu0 %v2622
      %2776 = vmatpush.msra.mxu0 %v2618
      %2777 = vmatpush.msra.mxu0 %v2614
      %2778 = vmatpush.msra.mxu0 %v2610
      %2779 = vmatpush.msra.mxu0 %v2606
      %2780 = vmatpush.msra.mxu0 %v2602
      %2781 = vmatpush.msra.mxu0 %v2598
      %2782 = vmatmul.f32.gmra.mxu0 %v2468
      %v2783 = vpop.f32.mrf.mxu0
      %v2784 = vadd.f32 %v2764, %v2783
      %2785 = vdwg.mxu0
      %2786 = vmatpush.msra.mxu0 %v2722
      %2787 = vmatpush.msra.mxu0 %v2718
      %2788 = vmatpush.msra.mxu0 %v2714
      %2789 = vmatpush.msra.mxu0 %v2710
      %2790 = vmatpush.msra.mxu0 %v2706
      %2791 = vmatpush.msra.mxu0 %v2702
      %2792 = vmatpush.msra.mxu0 %v2698
      %2793 = vmatpush.msra.mxu0 %v2694
      %2794 = vmatpush.msra.mxu0 %v2690
      %2795 = vmatpush.msra.mxu0 %v2686
      %2796 = vmatpush.msra.mxu0 %v2682
      %2797 = vmatpush.msra.mxu0 %v2678
      %2798 = vmatpush.msra.mxu0 %v2674
      %2799 = vmatpush.msra.mxu0 %v2670
      %2800 = vmatpush.msra.mxu0 %v2666
      %2801 = vmatpush.msra.mxu0 %v2662
      %2802 = vmatmul.f32.gmra.mxu0 %v2469
      %v2803 = vpop.f32.mrf.mxu0
      %v2804 = vadd.f32 %v2784, %v2803
      %2805 = vdwg.mxu0
      %2806 = vmatpush.msra.mxu0 %v2531
      %2807 = vmatpush.msra.mxu0 %v2527
      %2808 = vmatpush.msra.mxu0 %v2523
      %2809 = vmatpush.msra.mxu0 %v2519
      %2810 = vmatpush.msra.mxu0 %v2515
      %2811 = vmatpush.msra.mxu0 %v2511
      %2812 = vmatpush.msra.mxu0 %v2507
      %2813 = vmatpush.msra.mxu0 %v2503
      %2814 = vmatpush.msra.mxu0 %v2499
      %2815 = vmatpush.msra.mxu0 %v2495
      %2816 = vmatpush.msra.mxu0 %v2491
      %2817 = vmatpush.msra.mxu0 %v2487
      %2818 = vmatpush.msra.mxu0 %v2483
      %2819 = vmatpush.msra.mxu0 %v2479
      %2820 = vmatpush.msra.mxu0 %v2475
      %2821 = vmatpush.msra.mxu0 %v2471
      %2822 = vmatmul.f32.gmra.mxu0 %v2466
      %v2823 = vpop.f32.mrf.mxu0
      %v2824 = vadd.f32 0.0, %v2823
      %2825 = vdwg.mxu0
      %2826 = vmatpush.msra.mxu0 %v2595
      %2827 = vmatpush.msra.mxu0 %v2591
      %2828 = vmatpush.msra.mxu0 %v2587
      %2829 = vmatpush.msra.mxu0 %v2583
      %2830 = vmatpush.msra.mxu0 %v2579
      %2831 = vmatpush.msra.mxu0 %v2575
      %2832 = vmatpush.msra.mxu0 %v2571
      %2833 = vmatpush.msra.mxu0 %v2567
      %2834 = vmatpush.msra.mxu0 %v2563
      %2835 = vmatpush.msra.mxu0 %v2559
      %2836 = vmatpush.msra.mxu0 %v2555
      %2837 = vmatpush.msra.mxu0 %v2551
      %2838 = vmatpush.msra.mxu0 %v2547
      %2839 = vmatpush.msra.mxu0 %v2543
      %2840 = vmatpush.msra.mxu0 %v2539
      %2841 = vmatpush.msra.mxu0 %v2535
      %2842 = vmatmul.f32.gmra.mxu0 %v2467
      %v2843 = vpop.f32.mrf.mxu0
      %v2844 = vadd.f32 %v2824, %v2843
      %2845 = vdwg.mxu0
      %2846 = vmatpush.msra.mxu0 %v2659
      %2847 = vmatpush.msra.mxu0 %v2655
      %2848 = vmatpush.msra.mxu0 %v2651
      %2849 = vmatpush.msra.mxu0 %v2647
      %2850 = vmatpush.msra.mxu0 %v2643
      %2851 = vmatpush.msra.mxu0 %v2639
      %2852 = vmatpush.msra.mxu0 %v2635
      %2853 = vmatpush.msra.mxu0 %v2631
      %2854 = vmatpush.msra.mxu0 %v2627
      %2855 = vmatpush.msra.mxu0 %v2623
      %2856 = vmatpush.msra.mxu0 %v2619
      %2857 = vmatpush.msra.mxu0 %v2615
      %2858 = vmatpush.msra.mxu0 %v2611
      %2859 = vmatpush.msra.mxu0 %v2607
      %2860 = vmatpush.msra.mxu0 %v2603
      %2861 = vmatpush.msra.mxu0 %v2599
      %2862 = vmatmul.f32.gmra.mxu0 %v2468
      %v2863 = vpop.f32.mrf.mxu0
      %v2864 = vadd.f32 %v2844, %v2863
      %2865 = vdwg.mxu0
      %2866 = vmatpush.msra.mxu0 %v2723
      %2867 = vmatpush.msra.mxu0 %v2719
      %2868 = vmatpush.msra.mxu0 %v2715
      %2869 = vmatpush.msra.mxu0 %v2711
      %2870 = vmatpush.msra.mxu0 %v2707
      %2871 = vmatpush.msra.mxu0 %v2703
      %2872 = vmatpush.msra.mxu0 %v2699
      %2873 = vmatpush.msra.mxu0 %v2695
      %2874 = vmatpush.msra.mxu0 %v2691
      %2875 = vmatpush.msra.mxu0 %v2687
      %2876 = vmatpush.msra.mxu0 %v2683
      %2877 = vmatpush.msra.mxu0 %v2679
      %2878 = vmatpush.msra.mxu0 %v2675
      %2879 = vmatpush.msra.mxu0 %v2671
      %2880 = vmatpush.msra.mxu0 %v2667
      %2881 = vmatpush.msra.mxu0 %v2663
      %2882 = vmatmul.f32.gmra.mxu0 %v2469
      %v2883 = vpop.f32.mrf.mxu0
      %v2884 = vadd.f32 %v2864, %v2883
      %2885 = vdwg.mxu0
      %2886 = vmatpush.msra.mxu0 %v2532
      %2887 = vmatpush.msra.mxu0 %v2528
      %2888 = vmatpush.msra.mxu0 %v2524
      %2889 = vmatpush.msra.mxu0 %v2520
      %2890 = vmatpush.msra.mxu0 %v2516
      %2891 = vmatpush.msra.mxu0 %v2512
      %2892 = vmatpush.msra.mxu0 %v2508
      %2893 = vmatpush.msra.mxu0 %v2504
      %2894 = vmatpush.msra.mxu0 %v2500
      %2895 = vmatpush.msra.mxu0 %v2496
      %2896 = vmatpush.msra.mxu0 %v2492
      %2897 = vmatpush.msra.mxu0 %v2488
      %2898 = vmatpush.msra.mxu0 %v2484
      %2899 = vmatpush.msra.mxu0 %v2480
      %2900 = vmatpush.msra.mxu0 %v2476
      %2901 = vmatpush.msra.mxu0 %v2472
      %2902 = vmatmul.f32.gmra.mxu0 %v2466
      %v2903 = vpop.f32.mrf.mxu0
      %v2904 = vadd.f32 0.0, %v2903
      %2905 = vdwg.mxu0
      %2906 = vmatpush.msra.mxu0 %v2596
      %2907 = vmatpush.msra.mxu0 %v2592
      %2908 = vmatpush.msra.mxu0 %v2588
      %2909 = vmatpush.msra.mxu0 %v2584
      %2910 = vmatpush.msra.mxu0 %v2580
      %2911 = vmatpush.msra.mxu0 %v2576
      %2912 = vmatpush.msra.mxu0 %v2572
      %2913 = vmatpush.msra.mxu0 %v2568
      %2914 = vmatpush.msra.mxu0 %v2564
      %2915 = vmatpush.msra.mxu0 %v2560
      %2916 = vmatpush.msra.mxu0 %v2556
      %2917 = vmatpush.msra.mxu0 %v2552
      %2918 = vmatpush.msra.mxu0 %v2548
      %2919 = vmatpush.msra.mxu0 %v2544
      %2920 = vmatpush.msra.mxu0 %v2540
      %2921 = vmatpush.msra.mxu0 %v2536
      %2922 = vmatmul.f32.gmra.mxu0 %v2467
      %v2923 = vpop.f32.mrf.mxu0
      %v2924 = vadd.f32 %v2904, %v2923
      %2925 = vdwg.mxu0
      %2926 = vmatpush.msra.mxu0 %v2660
      %2927 = vmatpush.msra.mxu0 %v2656
      %2928 = vmatpush.msra.mxu0 %v2652
      %2929 = vmatpush.msra.mxu0 %v2648
      %2930 = vmatpush.msra.mxu0 %v2644
      %2931 = vmatpush.msra.mxu0 %v2640
      %2932 = vmatpush.msra.mxu0 %v2636
      %2933 = vmatpush.msra.mxu0 %v2632
      %2934 = vmatpush.msra.mxu0 %v2628
      %2935 = vmatpush.msra.mxu0 %v2624
      %2936 = vmatpush.msra.mxu0 %v2620
      %2937 = vmatpush.msra.mxu0 %v2616
      %2938 = vmatpush.msra.mxu0 %v2612
      %2939 = vmatpush.msra.mxu0 %v2608
      %2940 = vmatpush.msra.mxu0 %v2604
      %2941 = vmatpush.msra.mxu0 %v2600
      %2942 = vmatmul.f32.gmra.mxu0 %v2468
      %v2943 = vpop.f32.mrf.mxu0
      %v2944 = vadd.f32 %v2924, %v2943
      %2945 = vdwg.mxu0
      %2946 = vmatpush.msra.mxu0 %v2724
      %2947 = vmatpush.msra.mxu0 %v2720
      %2948 = vmatpush.msra.mxu0 %v2716
      %2949 = vmatpush.msra.mxu0 %v2712
      %2950 = vmatpush.msra.mxu0 %v2708
      %2951 = vmatpush.msra.mxu0 %v2704
      %2952 = vmatpush.msra.mxu0 %v2700
      %2953 = vmatpush.msra.mxu0 %v2696
      %2954 = vmatpush.msra.mxu0 %v2692
      %2955 = vmatpush.msra.mxu0 %v2688
      %2956 = vmatpush.msra.mxu0 %v2684
      %2957 = vmatpush.msra.mxu0 %v2680
      %2958 = vmatpush.msra.mxu0 %v2676
      %2959 = vmatpush.msra.mxu0 %v2672
      %2960 = vmatpush.msra.mxu0 %v2668
      %2961 = vmatpush.msra.mxu0 %v2664
      %2962 = vmatmul.f32.gmra.mxu0 %v2469
      %v2963 = vpop.f32.mrf.mxu0
      %v2964 = vadd.f32 %v2944, %v2963
      %2965 = vdwg.mxu0
      %2966 = vmatpush.msra.mxu0 %v2533
      %2967 = vmatpush.msra.mxu0 %v2529
      %2968 = vmatpush.msra.mxu0 %v2525
      %2969 = vmatpush.msra.mxu0 %v2521
      %2970 = vmatpush.msra.mxu0 %v2517
      %2971 = vmatpush.msra.mxu0 %v2513
      %2972 = vmatpush.msra.mxu0 %v2509
      %2973 = vmatpush.msra.mxu0 %v2505
      %2974 = vmatpush.msra.mxu0 %v2501
      %2975 = vmatpush.msra.mxu0 %v2497
      %2976 = vmatpush.msra.mxu0 %v2493
      %2977 = vmatpush.msra.mxu0 %v2489
      %2978 = vmatpush.msra.mxu0 %v2485
      %2979 = vmatpush.msra.mxu0 %v2481
      %2980 = vmatpush.msra.mxu0 %v2477
      %2981 = vmatpush.msra.mxu0 %v2473
      %2982 = vmatmul.f32.gmra.mxu0 %v2466
      %v2983 = vpop.f32.mrf.mxu0
      %v2984 = vadd.f32 0.0, %v2983
      %2985 = vdwg.mxu0
      %2986 = vmatpush.msra.mxu0 %v2597
      %2987 = vmatpush.msra.mxu0 %v2593
      %2988 = vmatpush.msra.mxu0 %v2589
      %2989 = vmatpush.msra.mxu0 %v2585
      %2990 = vmatpush.msra.mxu0 %v2581
      %2991 = vmatpush.msra.mxu0 %v2577
      %2992 = vmatpush.msra.mxu0 %v2573
      %2993 = vmatpush.msra.mxu0 %v2569
      %2994 = vmatpush.msra.mxu0 %v2565
      %2995 = vmatpush.msra.mxu0 %v2561
      %2996 = vmatpush.msra.mxu0 %v2557
      %2997 = vmatpush.msra.mxu0 %v2553
      %2998 = vmatpush.msra.mxu0 %v2549
      %2999 = vmatpush.msra.mxu0 %v2545
      %3000 = vmatpush.msra.mxu0 %v2541
      %3001 = vmatpush.msra.mxu0 %v2537
      %3002 = vmatmul.f32.gmra.mxu0 %v2467
      %v3003 = vpop.f32.mrf.mxu0
      %v3004 = vadd.f32 %v2984, %v3003
      %3005 = vdwg.mxu0
      %3006 = vmatpush.msra.mxu0 %v2661
      %3007 = vmatpush.msra.mxu0 %v2657
      %3008 = vmatpush.msra.mxu0 %v2653
      %3009 = vmatpush.msra.mxu0 %v2649
      %3010 = vmatpush.msra.mxu0 %v2645
      %3011 = vmatpush.msra.mxu0 %v2641
      %3012 = vmatpush.msra.mxu0 %v2637
      %3013 = vmatpush.msra.mxu0 %v2633
      %3014 = vmatpush.msra.mxu0 %v2629
      %3015 = vmatpush.msra.mxu0 %v2625
      %3016 = vmatpush.msra.mxu0 %v2621
      %3017 = vmatpush.msra.mxu0 %v2617
      %3018 = vmatpush.msra.mxu0 %v2613
      %3019 = vmatpush.msra.mxu0 %v2609
      %3020 = vmatpush.msra.mxu0 %v2605
      %3021 = vmatpush.msra.mxu0 %v2601
      %3022 = vmatmul.f32.gmra.mxu0 %v2468
      %v3023 = vpop.f32.mrf.mxu0
      %v3024 = vadd.f32 %v3004, %v3023
      %3025 = vdwg.mxu0
      %3026 = vmatpush.msra.mxu0 %v2725
      %3027 = vmatpush.msra.mxu0 %v2721
      %3028 = vmatpush.msra.mxu0 %v2717
      %3029 = vmatpush.msra.mxu0 %v2713
      %3030 = vmatpush.msra.mxu0 %v2709
      %3031 = vmatpush.msra.mxu0 %v2705
      %3032 = vmatpush.msra.mxu0 %v2701
      %3033 = vmatpush.msra.mxu0 %v2697
      %3034 = vmatpush.msra.mxu0 %v2693
      %3035 = vmatpush.msra.mxu0 %v2689
      %3036 = vmatpush.msra.mxu0 %v2685
      %3037 = vmatpush.msra.mxu0 %v2681
      %3038 = vmatpush.msra.mxu0 %v2677
      %3039 = vmatpush.msra.mxu0 %v2673
      %3040 = vmatpush.msra.mxu0 %v2669
      %3041 = vmatpush.msra.mxu0 %v2665
      %3042 = vmatmul.f32.gmra.mxu0 %v2469
      %v3043 = vpop.f32.mrf.mxu0
      %v3044 = vadd.f32 %v3024, %v3043
      %3045 = vdwg.mxu0
      %v3046 = vperm.slane %v2804, 0
      %v3047 = vperm.slane %v2884, 0
      %v3048 = vperm.slane %v2964, 0
      %v3049 = vperm.slane %v3044, 0
      %v3050 = vsub.f32 %v2423, %v3046
      %v3051 = vsub.f32 %v2424, %v3047
      %v3052 = vsub.f32 %v2425, %v3048
      %v3053 = vsub.f32 %v2426, %v3049
      %v3054 = vsub.f32 %v2427, %v3046
      %v3055 = vsub.f32 %v2428, %v3047
      %v3056 = vsub.f32 %v2429, %v3048
      %v3057 = vsub.f32 %v2430, %v3049
      %v3058 = vmul.f32 %v3050, %v3050
      %v3059 = vmul.f32 %v3051, %v3051
      %v3060 = vmul.f32 %v3052, %v3052
      %v3061 = vmul.f32 %v3053, %v3053
      %v3062 = vmul.f32 %v3054, %v3054
      %v3063 = vmul.f32 %v3055, %v3055
      %v3064 = vmul.f32 %v3056, %v3056
      %v3065 = vmul.f32 %v3057, %v3057
      %v3066 = vadd.f32 %v3058, %v3062
      %v3067 = vrot.slane %v3066, 4
      %v3068 = vadd.f32 %v3066, %v3067
      %v3069 = vrot.slane %v3068, 2
      %v3070 = vadd.f32 %v3068, %v3069
      %v3071 = vrot.slane %v3070, 1
      %v3072 = vadd.f32 %v3070, %v3071
      %v3073 = vadd.f32 %v3059, %v3063
      %v3074 = vrot.slane %v3073, 4
      %v3075 = vadd.f32 %v3073, %v3074
      %v3076 = vrot.slane %v3075, 2
      %v3077 = vadd.f32 %v3075, %v3076
      %v3078 = vrot.slane %v3077, 1
      %v3079 = vadd.f32 %v3077, %v3078
      %v3080 = vadd.f32 %v3060, %v3064
      %v3081 = vrot.slane %v3080, 4
      %v3082 = vadd.f32 %v3080, %v3081
      %v3083 = vrot.slane %v3082, 2
      %v3084 = vadd.f32 %v3082, %v3083
      %v3085 = vrot.slane %v3084, 1
      %v3086 = vadd.f32 %v3084, %v3085
      %v3087 = vadd.f32 %v3061, %v3065
      %v3088 = vrot.slane %v3087, 4
      %v3089 = vadd.f32 %v3087, %v3088
      %v3090 = vrot.slane %v3089, 2
      %v3091 = vadd.f32 %v3089, %v3090
      %v3092 = vrot.slane %v3091, 1
      %v3093 = vadd.f32 %v3091, %v3092
      %v3094 = vmul.f32 %v3072, %v2465
      %v3095 = vmul.f32 %v3079, %v2465
      %v3096 = vmul.f32 %v3086, %v2465
      %v3097 = vmul.f32 %v3093, %v2465
      %3098 = vmatpush.msra.mxu0 %v2530
      %3099 = vmatpush.msra.mxu0 %v2526
      %3100 = vmatpush.msra.mxu0 %v2522
      %3101 = vmatpush.msra.mxu0 %v2518
      %3102 = vmatpush.msra.mxu0 %v2514
      %3103 = vmatpush.msra.mxu0 %v2510
      %3104 = vmatpush.msra.mxu0 %v2506
      %3105 = vmatpush.msra.mxu0 %v2502
      %3106 = vmatpush.msra.mxu0 %v2498
      %3107 = vmatpush.msra.mxu0 %v2494
      %3108 = vmatpush.msra.mxu0 %v2490
      %3109 = vmatpush.msra.mxu0 %v2486
      %3110 = vmatpush.msra.mxu0 %v2482
      %3111 = vmatpush.msra.mxu0 %v2478
      %3112 = vmatpush.msra.mxu0 %v2474
      %3113 = vmatpush.msra.mxu0 %v2470
      %3114 = vmatmul.f32.gmra.mxu0 %v3094
      %v3115 = vpop.f32.mrf.mxu0
      %v3116 = vadd.f32 1e-05, %v3115
      %3117 = vdwg.mxu0
      %3118 = vmatpush.msra.mxu0 %v2594
      %3119 = vmatpush.msra.mxu0 %v2590
      %3120 = vmatpush.msra.mxu0 %v2586
      %3121 = vmatpush.msra.mxu0 %v2582
      %3122 = vmatpush.msra.mxu0 %v2578
      %3123 = vmatpush.msra.mxu0 %v2574
      %3124 = vmatpush.msra.mxu0 %v2570
      %3125 = vmatpush.msra.mxu0 %v2566
      %3126 = vmatpush.msra.mxu0 %v2562
      %3127 = vmatpush.msra.mxu0 %v2558
      %3128 = vmatpush.msra.mxu0 %v2554
      %3129 = vmatpush.msra.mxu0 %v2550
      %3130 = vmatpush.msra.mxu0 %v2546
      %3131 = vmatpush.msra.mxu0 %v2542
      %3132 = vmatpush.msra.mxu0 %v2538
      %3133 = vmatpush.msra.mxu0 %v2534
      %3134 = vmatmul.f32.gmra.mxu0 %v3095
      %v3135 = vpop.f32.mrf.mxu0
      %v3136 = vadd.f32 %v3116, %v3135
      %3137 = vdwg.mxu0
      %3138 = vmatpush.msra.mxu0 %v2658
      %3139 = vmatpush.msra.mxu0 %v2654
      %3140 = vmatpush.msra.mxu0 %v2650
      %3141 = vmatpush.msra.mxu0 %v2646
      %3142 = vmatpush.msra.mxu0 %v2642
      %3143 = vmatpush.msra.mxu0 %v2638
      %3144 = vmatpush.msra.mxu0 %v2634
      %3145 = vmatpush.msra.mxu0 %v2630
      %3146 = vmatpush.msra.mxu0 %v2626
      %3147 = vmatpush.msra.mxu0 %v2622
      %3148 = vmatpush.msra.mxu0 %v2618
      %3149 = vmatpush.msra.mxu0 %v2614
      %3150 = vmatpush.msra.mxu0 %v2610
      %3151 = vmatpush.msra.mxu0 %v2606
      %3152 = vmatpush.msra.mxu0 %v2602
      %3153 = vmatpush.msra.mxu0 %v2598
      %3154 = vmatmul.f32.gmra.mxu0 %v3096
      %v3155 = vpop.f32.mrf.mxu0
      %v3156 = vadd.f32 %v3136, %v3155
      %3157 = vdwg.mxu0
      %3158 = vmatpush.msra.mxu0 %v2722
      %3159 = vmatpush.msra.mxu0 %v2718
      %3160 = vmatpush.msra.mxu0 %v2714
      %3161 = vmatpush.msra.mxu0 %v2710
      %3162 = vmatpush.msra.mxu0 %v2706
      %3163 = vmatpush.msra.mxu0 %v2702
      %3164 = vmatpush.msra.mxu0 %v2698
      %3165 = vmatpush.msra.mxu0 %v2694
      %3166 = vmatpush.msra.mxu0 %v2690
      %3167 = vmatpush.msra.mxu0 %v2686
      %3168 = vmatpush.msra.mxu0 %v2682
      %3169 = vmatpush.msra.mxu0 %v2678
      %3170 = vmatpush.msra.mxu0 %v2674
      %3171 = vmatpush.msra.mxu0 %v2670
      %3172 = vmatpush.msra.mxu0 %v2666
      %3173 = vmatpush.msra.mxu0 %v2662
      %3174 = vmatmul.f32.gmra.mxu0 %v3097
      %v3175 = vpop.f32.mrf.mxu0
      %v3176 = vadd.f32 %v3156, %v3175
      %3177 = vdwg.mxu0
      %3178 = vmatpush.msra.mxu0 %v2531
      %3179 = vmatpush.msra.mxu0 %v2527
      %3180 = vmatpush.msra.mxu0 %v2523
      %3181 = vmatpush.msra.mxu0 %v2519
      %3182 = vmatpush.msra.mxu0 %v2515
      %3183 = vmatpush.msra.mxu0 %v2511
      %3184 = vmatpush.msra.mxu0 %v2507
      %3185 = vmatpush.msra.mxu0 %v2503
      %3186 = vmatpush.msra.mxu0 %v2499
      %3187 = vmatpush.msra.mxu0 %v2495
      %3188 = vmatpush.msra.mxu0 %v2491
      %3189 = vmatpush.msra.mxu0 %v2487
      %3190 = vmatpush.msra.mxu0 %v2483
      %3191 = vmatpush.msra.mxu0 %v2479
      %3192 = vmatpush.msra.mxu0 %v2475
      %3193 = vmatpush.msra.mxu0 %v2471
      %3194 = vmatmul.f32.gmra.mxu0 %v3094
      %v3195 = vpop.f32.mrf.mxu0
      %v3196 = vadd.f32 1e-05, %v3195
      %3197 = vdwg.mxu0
      %3198 = vmatpush.msra.mxu0 %v2595
      %3199 = vmatpush.msra.mxu0 %v2591
      %3200 = vmatpush.msra.mxu0 %v2587
      %3201 = vmatpush.msra.mxu0 %v2583
      %3202 = vmatpush.msra.mxu0 %v2579
      %3203 = vmatpush.msra.mxu0 %v2575
      %3204 = vmatpush.msra.mxu0 %v2571
      %3205 = vmatpush.msra.mxu0 %v2567
      %3206 = vmatpush.msra.mxu0 %v2563
      %3207 = vmatpush.msra.mxu0 %v2559
      %3208 = vmatpush.msra.mxu0 %v2555
      %3209 = vmatpush.msra.mxu0 %v2551
      %3210 = vmatpush.msra.mxu0 %v2547
      %3211 = vmatpush.msra.mxu0 %v2543
      %3212 = vmatpush.msra.mxu0 %v2539
      %3213 = vmatpush.msra.mxu0 %v2535
      %3214 = vmatmul.f32.gmra.mxu0 %v3095
      %v3215 = vpop.f32.mrf.mxu0
      %v3216 = vadd.f32 %v3196, %v3215
      %3217 = vdwg.mxu0
      %3218 = vmatpush.msra.mxu0 %v2659
      %3219 = vmatpush.msra.mxu0 %v2655
      %3220 = vmatpush.msra.mxu0 %v2651
      %3221 = vmatpush.msra.mxu0 %v2647
      %3222 = vmatpush.msra.mxu0 %v2643
      %3223 = vmatpush.msra.mxu0 %v2639
      %3224 = vmatpush.msra.mxu0 %v2635
      %3225 = vmatpush.msra.mxu0 %v2631
      %3226 = vmatpush.msra.mxu0 %v2627
      %3227 = vmatpush.msra.mxu0 %v2623
      %3228 = vmatpush.msra.mxu0 %v2619
      %3229 = vmatpush.msra.mxu0 %v2615
      %3230 = vmatpush.msra.mxu0 %v2611
      %3231 = vmatpush.msra.mxu0 %v2607
      %3232 = vmatpush.msra.mxu0 %v2603
      %3233 = vmatpush.msra.mxu0 %v2599
      %3234 = vmatmul.f32.gmra.mxu0 %v3096
      %v3235 = vpop.f32.mrf.mxu0
      %v3236 = vadd.f32 %v3216, %v3235
      %3237 = vdwg.mxu0
      %3238 = vmatpush.msra.mxu0 %v2723
      %3239 = vmatpush.msra.mxu0 %v2719
      %3240 = vmatpush.msra.mxu0 %v2715
      %3241 = vmatpush.msra.mxu0 %v2711
      %3242 = vmatpush.msra.mxu0 %v2707
      %3243 = vmatpush.msra.mxu0 %v2703
      %3244 = vmatpush.msra.mxu0 %v2699
      %3245 = vmatpush.msra.mxu0 %v2695
      %3246 = vmatpush.msra.mxu0 %v2691
      %3247 = vmatpush.msra.mxu0 %v2687
      %3248 = vmatpush.msra.mxu0 %v2683
      %3249 = vmatpush.msra.mxu0 %v2679
      %3250 = vmatpush.msra.mxu0 %v2675
      %3251 = vmatpush.msra.mxu0 %v2671
      %3252 = vmatpush.msra.mxu0 %v2667
      %3253 = vmatpush.msra.mxu0 %v2663
      %3254 = vmatmul.f32.gmra.mxu0 %v3097
      %v3255 = vpop.f32.mrf.mxu0
      %v3256 = vadd.f32 %v3236, %v3255
      %3257 = vdwg.mxu0
      %3258 = vmatpush.msra.mxu0 %v2532
      %3259 = vmatpush.msra.mxu0 %v2528
      %3260 = vmatpush.msra.mxu0 %v2524
      %3261 = vmatpush.msra.mxu0 %v2520
      %3262 = vmatpush.msra.mxu0 %v2516
      %3263 = vmatpush.msra.mxu0 %v2512
      %3264 = vmatpush.msra.mxu0 %v2508
      %3265 = vmatpush.msra.mxu0 %v2504
      %3266 = vmatpush.msra.mxu0 %v2500
      %3267 = vmatpush.msra.mxu0 %v2496
      %3268 = vmatpush.msra.mxu0 %v2492
      %3269 = vmatpush.msra.mxu0 %v2488
      %3270 = vmatpush.msra.mxu0 %v2484
      %3271 = vmatpush.msra.mxu0 %v2480
      %3272 = vmatpush.msra.mxu0 %v2476
      %3273 = vmatpush.msra.mxu0 %v2472
      %3274 = vmatmul.f32.gmra.mxu0 %v3094
      %v3275 = vpop.f32.mrf.mxu0
      %v3276 = vadd.f32 1e-05, %v3275
      %3277 = vdwg.mxu0
      %3278 = vmatpush.msra.mxu0 %v2596
      %3279 = vmatpush.msra.mxu0 %v2592
      %3280 = vmatpush.msra.mxu0 %v2588
      %3281 = vmatpush.msra.mxu0 %v2584
      %3282 = vmatpush.msra.mxu0 %v2580
      %3283 = vmatpush.msra.mxu0 %v2576
      %3284 = vmatpush.msra.mxu0 %v2572
      %3285 = vmatpush.msra.mxu0 %v2568
      %3286 = vmatpush.msra.mxu0 %v2564
      %3287 = vmatpush.msra.mxu0 %v2560
      %3288 = vmatpush.msra.mxu0 %v2556
      %3289 = vmatpush.msra.mxu0 %v2552
      %3290 = vmatpush.msra.mxu0 %v2548
      %3291 = vmatpush.msra.mxu0 %v2544
      %3292 = vmatpush.msra.mxu0 %v2540
      %3293 = vmatpush.msra.mxu0 %v2536
      %3294 = vmatmul.f32.gmra.mxu0 %v3095
      %v3295 = vpop.f32.mrf.mxu0
      %v3296 = vadd.f32 %v3276, %v3295
      %3297 = vdwg.mxu0
      %3298 = vmatpush.msra.mxu0 %v2660
      %3299 = vmatpush.msra.mxu0 %v2656
      %3300 = vmatpush.msra.mxu0 %v2652
      %3301 = vmatpush.msra.mxu0 %v2648
      %3302 = vmatpush.msra.mxu0 %v2644
      %3303 = vmatpush.msra.mxu0 %v2640
      %3304 = vmatpush.msra.mxu0 %v2636
      %3305 = vmatpush.msra.mxu0 %v2632
      %3306 = vmatpush.msra.mxu0 %v2628
      %3307 = vmatpush.msra.mxu0 %v2624
      %3308 = vmatpush.msra.mxu0 %v2620
      %3309 = vmatpush.msra.mxu0 %v2616
      %3310 = vmatpush.msra.mxu0 %v2612
      %3311 = vmatpush.msra.mxu0 %v2608
      %3312 = vmatpush.msra.mxu0 %v2604
      %3313 = vmatpush.msra.mxu0 %v2600
      %3314 = vmatmul.f32.gmra.mxu0 %v3096
      %v3315 = vpop.f32.mrf.mxu0
      %v3316 = vadd.f32 %v3296, %v3315
      %3317 = vdwg.mxu0
      %3318 = vmatpush.msra.mxu0 %v2724
      %3319 = vmatpush.msra.mxu0 %v2720
      %3320 = vmatpush.msra.mxu0 %v2716
      %3321 = vmatpush.msra.mxu0 %v2712
      %3322 = vmatpush.msra.mxu0 %v2708
      %3323 = vmatpush.msra.mxu0 %v2704
      %3324 = vmatpush.msra.mxu0 %v2700
      %3325 = vmatpush.msra.mxu0 %v2696
      %3326 = vmatpush.msra.mxu0 %v2692
      %3327 = vmatpush.msra.mxu0 %v2688
      %3328 = vmatpush.msra.mxu0 %v2684
      %3329 = vmatpush.msra.mxu0 %v2680
      %3330 = vmatpush.msra.mxu0 %v2676
      %3331 = vmatpush.msra.mxu0 %v2672
      %3332 = vmatpush.msra.mxu0 %v2668
      %3333 = vmatpush.msra.mxu0 %v2664
      %3334 = vmatmul.f32.gmra.mxu0 %v3097
      %v3335 = vpop.f32.mrf.mxu0
      %v3336 = vadd.f32 %v3316, %v3335
      %3337 = vdwg.mxu0
      %3338 = vmatpush.msra.mxu0 %v2533
      %3339 = vmatpush.msra.mxu0 %v2529
      %3340 = vmatpush.msra.mxu0 %v2525
      %3341 = vmatpush.msra.mxu0 %v2521
      %3342 = vmatpush.msra.mxu0 %v2517
      %3343 = vmatpush.msra.mxu0 %v2513
      %3344 = vmatpush.msra.mxu0 %v2509
      %3345 = vmatpush.msra.mxu0 %v2505
      %3346 = vmatpush.msra.mxu0 %v2501
      %3347 = vmatpush.msra.mxu0 %v2497
      %3348 = vmatpush.msra.mxu0 %v2493
      %3349 = vmatpush.msra.mxu0 %v2489
      %3350 = vmatpush.msra.mxu0 %v2485
      %3351 = vmatpush.msra.mxu0 %v2481
      %3352 = vmatpush.msra.mxu0 %v2477
      %3353 = vmatpush.msra.mxu0 %v2473
      %3354 = vmatmul.f32.gmra.mxu0 %v3094
      %v3355 = vpop.f32.mrf.mxu0
      %v3356 = vadd.f32 1e-05, %v3355
      %3357 = vdwg.mxu0
      %3358 = vmatpush.msra.mxu0 %v2597
      %3359 = vmatpush.msra.mxu0 %v2593
      %3360 = vmatpush.msra.mxu0 %v2589
      %3361 = vmatpush.msra.mxu0 %v2585
      %3362 = vmatpush.msra.mxu0 %v2581
      %3363 = vmatpush.msra.mxu0 %v2577
      %3364 = vmatpush.msra.mxu0 %v2573
      %3365 = vmatpush.msra.mxu0 %v2569
      %3366 = vmatpush.msra.mxu0 %v2565
      %3367 = vmatpush.msra.mxu0 %v2561
      %3368 = vmatpush.msra.mxu0 %v2557
      %3369 = vmatpush.msra.mxu0 %v2553
      %3370 = vmatpush.msra.mxu0 %v2549
      %3371 = vmatpush.msra.mxu0 %v2545
      %3372 = vmatpush.msra.mxu0 %v2541
      %3373 = vmatpush.msra.mxu0 %v2537
      %3374 = vmatmul.f32.gmra.mxu0 %v3095
      %v3375 = vpop.f32.mrf.mxu0
      %v3376 = vadd.f32 %v3356, %v3375
      %3377 = vdwg.mxu0
      %3378 = vmatpush.msra.mxu0 %v2661
      %3379 = vmatpush.msra.mxu0 %v2657
      %3380 = vmatpush.msra.mxu0 %v2653
      %3381 = vmatpush.msra.mxu0 %v2649
      %3382 = vmatpush.msra.mxu0 %v2645
      %3383 = vmatpush.msra.mxu0 %v2641
      %3384 = vmatpush.msra.mxu0 %v2637
      %3385 = vmatpush.msra.mxu0 %v2633
      %3386 = vmatpush.msra.mxu0 %v2629
      %3387 = vmatpush.msra.mxu0 %v2625
      %3388 = vmatpush.msra.mxu0 %v2621
      %3389 = vmatpush.msra.mxu0 %v2617
      %3390 = vmatpush.msra.mxu0 %v2613
      %3391 = vmatpush.msra.mxu0 %v2609
      %3392 = vmatpush.msra.mxu0 %v2605
      %3393 = vmatpush.msra.mxu0 %v2601
      %3394 = vmatmul.f32.gmra.mxu0 %v3096
      %v3395 = vpop.f32.mrf.mxu0
      %v3396 = vadd.f32 %v3376, %v3395
      %3397 = vdwg.mxu0
      %3398 = vmatpush.msra.mxu0 %v2725
      %3399 = vmatpush.msra.mxu0 %v2721
      %3400 = vmatpush.msra.mxu0 %v2717
      %3401 = vmatpush.msra.mxu0 %v2713
      %3402 = vmatpush.msra.mxu0 %v2709
      %3403 = vmatpush.msra.mxu0 %v2705
      %3404 = vmatpush.msra.mxu0 %v2701
      %3405 = vmatpush.msra.mxu0 %v2697
      %3406 = vmatpush.msra.mxu0 %v2693
      %3407 = vmatpush.msra.mxu0 %v2689
      %3408 = vmatpush.msra.mxu0 %v2685
      %3409 = vmatpush.msra.mxu0 %v2681
      %3410 = vmatpush.msra.mxu0 %v2677
      %3411 = vmatpush.msra.mxu0 %v2673
      %3412 = vmatpush.msra.mxu0 %v2669
      %3413 = vmatpush.msra.mxu0 %v2665
      %3414 = vmatmul.f32.gmra.mxu0 %v3097
      %v3415 = vpop.f32.mrf.mxu0
      %v3416 = vadd.f32 %v3396, %v3415
      %3417 = vdwg.mxu0
      %v3418 = vrsqrt.pop %v3176
      %v3419 = vmul.f32 %v3418, %v3176
      %v3420 = vmul.f32 %v3419, %v3418
      %v3421 = vmul.f32 0.5, %v3420
      %v3422 = vsub.f32 1.5, %v3421
      %v3423 = vmul.f32 %v3418, %v3422
      %vm3424 = vweird.f32 %v3176
      %vm3425 = vweird.f32 %v3418
      %vm3426 = vmor %vm3424, %vm3425
      %v3427 = vsel %vm3426, %v3418, %v3423
      %v3428 = vrsqrt.pop %v3256
      %v3429 = vmul.f32 %v3428, %v3256
      %v3430 = vmul.f32 %v3429, %v3428
      %v3431 = vmul.f32 0.5, %v3430
      %v3432 = vsub.f32 1.5, %v3431
      %v3433 = vmul.f32 %v3428, %v3432
      %vm3434 = vweird.f32 %v3256
      %vm3435 = vweird.f32 %v3428
      %vm3436 = vmor %vm3434, %vm3435
      %v3437 = vsel %vm3436, %v3428, %v3433
      %v3438 = vrsqrt.pop %v3336
      %v3439 = vmul.f32 %v3438, %v3336
      %v3440 = vmul.f32 %v3439, %v3438
      %v3441 = vmul.f32 0.5, %v3440
      %v3442 = vsub.f32 1.5, %v3441
      %v3443 = vmul.f32 %v3438, %v3442
      %vm3444 = vweird.f32 %v3336
      %vm3445 = vweird.f32 %v3438
      %vm3446 = vmor %vm3444, %vm3445
      %v3447 = vsel %vm3446, %v3438, %v3443
      %v3448 = vrsqrt.pop %v3416
      %v3449 = vmul.f32 %v3448, %v3416
      %v3450 = vmul.f32 %v3449, %v3448
      %v3451 = vmul.f32 0.5, %v3450
      %v3452 = vsub.f32 1.5, %v3451
      %v3453 = vmul.f32 %v3448, %v3452
      %vm3454 = vweird.f32 %v3416
      %vm3455 = vweird.f32 %v3448
      %vm3456 = vmor %vm3454, %vm3455
      %v3457 = vsel %vm3456, %v3448, %v3453
      %v3458 = vld [vmem:[%s3] sm:$0xf]
      %v3460 = vperm.slane %v3458, 0
      %v3461 = vperm.slane %v3458, 1
      %v3462 = vperm.slane %v3458, 2
      %v3463 = vperm.slane %v3458, 3
      %v3468 = vmul.f32 %v3427, %v3460
      %v3469 = vmul.f32 %v3437, %v3461
      %v3470 = vmul.f32 %v3447, %v3462
      %v3471 = vmul.f32 %v3457, %v3463
      %v3472 = vperm.slane %v3468, 0
      %v3473 = vperm.slane %v3469, 0
      %v3474 = vperm.slane %v3470, 0
      %v3475 = vperm.slane %v3471, 0
      %v3476 = vmul.f32 %v3050, %v3472
      %v3477 = vmul.f32 %v3051, %v3473
      %v3478 = vmul.f32 %v3052, %v3474
      %v3479 = vmul.f32 %v3053, %v3475
      %v3480 = vmul.f32 %v3054, %v3472
      %v3481 = vmul.f32 %v3055, %v3473
      %v3482 = vmul.f32 %v3056, %v3474
      %v3483 = vmul.f32 %v3057, %v3475
      %v3484 = vld [vmem:[%s4] sm:$0xf]
      %v3486 = vperm.slane %v3484, 0
      %v3487 = vperm.slane %v3484, 1
      %v3488 = vperm.slane %v3484, 2
      %v3489 = vperm.slane %v3484, 3
      %v3494 = vadd.f32 %v3476, %v3486
      %v3495 = vadd.f32 %v3477, %v3487
      %v3496 = vadd.f32 %v3478, %v3488
      %v3497 = vadd.f32 %v3479, %v3489
      %v3498 = vadd.f32 %v3480, %v3486
      %v3499 = vadd.f32 %v3481, %v3487
      %v3500 = vadd.f32 %v3482, %v3488
      %v3501 = vadd.f32 %v3483, %v3489
      %v3502 = vmax.f32 %v3494, 0.0
      %v3503 = vmax.f32 %v3495, 0.0
      %v3504 = vmax.f32 %v3496, 0.0
      %v3505 = vmax.f32 %v3497, 0.0
      %v3506 = vmax.f32 %v3498, 0.0
      %v3507 = vmax.f32 %v3499, 0.0
      %v3508 = vmax.f32 %v3500, 0.0
      %v3509 = vmax.f32 %v3501, 0.0
      %3510 = vst.msk [vmem:[#allocation3] ss:$8 sm:$0xf] %vm390, 0.0
      %3511 = vst.msk [vmem:[#allocation3] ss:$8 sm:$0x0] %vm390, 0.0
      %s3512 = scalar_lea.vmem [#allocation3], 65
      %3513 = vst.msk [vmem:[%s3512] ss:$8 sm:$0xf] %vm390, 0.0
      %3514 = vst.msk [vmem:[%s3512] ss:$8 sm:$0x0] %vm390, 0.0
      %v3523 = vrot.slane %v3502, 7
      %v3524 = vrot.slane %v3503, 7
      %v3525 = vrot.slane %v3504, 7
      %v3526 = vrot.slane %v3505, 7
      %v3527 = vrot.slane %v3506, 7
      %v3528 = vsel %vm412, %v3523, %v3527
      %v3529 = vrot.slane %v3507, 7
      %v3530 = vsel %vm412, %v3524, %v3529
      %v3531 = vrot.slane %v3508, 7
      %v3532 = vsel %vm412, %v3525, %v3531
      %v3533 = vrot.slane %v3509, 7
      %v3534 = vsel %vm412, %v3526, %v3533
      %3547 = vst [vmem:[#allocation3] sm:$0xfe] %v3523
      %3548 = vst [vmem:[#allocation3 + $0x8] sm:$0xfe] %v3524
      %3549 = vst [vmem:[#allocation3 + $0x10] sm:$0xfe] %v3525
      %3550 = vst [vmem:[#allocation3 + $0x18] sm:$0xfe] %v3526
      %3551 = vst [vmem:[#allocation3 + $0x20] sm:$0xff] %v3528
      %3552 = vst [vmem:[#allocation3 + $0x28] sm:$0xff] %v3530
      %3553 = vst [vmem:[#allocation3 + $0x30] sm:$0xff] %v3532
      %3554 = vst [vmem:[#allocation3 + $0x38] sm:$0xff] %v3534
      %3555 = vst [vmem:[#allocation3 + $0x40] sm:$0x1] %v3527
      %3556 = vst [vmem:[#allocation3 + $0x48] sm:$0x1] %v3529
      %3557 = vst [vmem:[#allocation3 + $0x50] sm:$0x1] %v3531
      %3558 = vst [vmem:[#allocation3 + $0x58] sm:$0x1] %v3533
      %v3559 = vld [vmem:[#allocation3] sm:$0xff]
      %v3560 = vld [vmem:[#allocation3 + $0x8] sm:$0xff]
      %v3561 = vld [vmem:[#allocation3 + $0x10] sm:$0xff]
      %v3562 = vld [vmem:[#allocation3 + $0x18] sm:$0xff]
      %v3563 = vld [vmem:[#allocation3 + $0x20] sm:$0xff]
      %v3564 = vld [vmem:[#allocation3 + $0x28] sm:$0xff]
      %v3565 = vld [vmem:[#allocation3 + $0x30] sm:$0xff]
      %v3566 = vld [vmem:[#allocation3 + $0x38] sm:$0xff]
      %v3567 = vld [vmem:[#allocation3 + $0x40] sm:$0x3]
      %v3568 = vld [vmem:[#allocation3 + $0x48] sm:$0x3]
      %v3569 = vld [vmem:[#allocation3 + $0x50] sm:$0x3]
      %v3570 = vld [vmem:[#allocation3 + $0x58] sm:$0x3]
      %v3571 = vld [vmem:[%s6] sm:$0xff]
      %v3572 = vld [vmem:[%s6 + $0x8] sm:$0xff]
      %v3573 = vld [vmem:[%s6 + $0x10] sm:$0xff]
      %v3574 = vld [vmem:[%s6 + $0x18] sm:$0xff]
      %v3575 = vld [vmem:[%s6 + $0x20] sm:$0xff]
      %v3576 = vld [vmem:[%s6 + $0x28] sm:$0xff]
      %v3577 = vld [vmem:[%s6 + $0x30] sm:$0xff]
      %v3578 = vld [vmem:[%s6 + $0x38] sm:$0xff]
      %v3579 = vld [vmem:[%s6 + $0x40] sm:$0xff]
      %v3580 = vld [vmem:[%s6 + $0x48] sm:$0xff]
      %v3581 = vld [vmem:[%s6 + $0x50] sm:$0xff]
      %v3582 = vld [vmem:[%s6 + $0x58] sm:$0xff]
      %v3583 = vld [vmem:[%s6 + $0x60] sm:$0xff]
      %v3584 = vld [vmem:[%s6 + $0x68] sm:$0xff]
      %v3585 = vld [vmem:[%s6 + $0x70] sm:$0xff]
      %v3586 = vld [vmem:[%s6 + $0x78] sm:$0xff]
      %v3587 = vld [vmem:[%s6 + $0x80] sm:$0xff]
      %v3588 = vld [vmem:[%s6 + $0x88] sm:$0xff]
      %v3589 = vld [vmem:[%s6 + $0x90] sm:$0xff]
      %v3590 = vld [vmem:[%s6 + $0x98] sm:$0xff]
      %v3591 = vld [vmem:[%s6 + $0xa0] sm:$0xff]
      %v3592 = vld [vmem:[%s6 + $0xa8] sm:$0xff]
      %v3593 = vld [vmem:[%s6 + $0xb0] sm:$0xff]
      %v3594 = vld [vmem:[%s6 + $0xb8] sm:$0xff]
      %v3595 = vld [vmem:[%s6 + $0xc0] sm:$0xff]
      %v3596 = vld [vmem:[%s6 + $0xc8] sm:$0xff]
      %v3597 = vld [vmem:[%s6 + $0xd0] sm:$0xff]
      %v3598 = vld [vmem:[%s6 + $0xd8] sm:$0xff]
      %v3599 = vld [vmem:[%s6 + $0xe0] sm:$0xff]
      %v3600 = vld [vmem:[%s6 + $0xe8] sm:$0xff]
      %v3601 = vld [vmem:[%s6 + $0xf0] sm:$0xff]
      %v3602 = vld [vmem:[%s6 + $0xf8] sm:$0xff]
      %v3603 = vld [vmem:[%s6 + $0x100] sm:$0xff]
      %v3604 = vld [vmem:[%s6 + $0x108] sm:$0xff]
      %v3605 = vld [vmem:[%s6 + $0x110] sm:$0xff]
      %v3606 = vld [vmem:[%s6 + $0x118] sm:$0xff]
      %v3607 = vld [vmem:[%s6 + $0x120] sm:$0xff]
      %v3608 = vld [vmem:[%s6 + $0x128] sm:$0xff]
      %v3609 = vld [vmem:[%s6 + $0x130] sm:$0xff]
      %v3610 = vld [vmem:[%s6 + $0x138] sm:$0xff]
      %v3611 = vld [vmem:[%s6 + $0x140] sm:$0xff]
      %v3612 = vld [vmem:[%s6 + $0x148] sm:$0xff]
      %v3613 = vld [vmem:[%s6 + $0x150] sm:$0xff]
      %v3614 = vld [vmem:[%s6 + $0x158] sm:$0xff]
      %v3615 = vld [vmem:[%s6 + $0x160] sm:$0xff]
      %v3616 = vld [vmem:[%s6 + $0x168] sm:$0xff]
      %v3617 = vld [vmem:[%s6 + $0x170] sm:$0xff]
      %v3618 = vld [vmem:[%s6 + $0x178] sm:$0xff]
      %v3619 = vld [vmem:[%s6 + $0x180] sm:$0xff]
      %v3620 = vld [vmem:[%s6 + $0x188] sm:$0xff]
      %v3621 = vld [vmem:[%s6 + $0x190] sm:$0xff]
      %v3622 = vld [vmem:[%s6 + $0x198] sm:$0xff]
      %v3623 = vld [vmem:[%s6 + $0x1a0] sm:$0xff]
      %v3624 = vld [vmem:[%s6 + $0x1a8] sm:$0xff]
      %v3625 = vld [vmem:[%s6 + $0x1b0] sm:$0xff]
      %v3626 = vld [vmem:[%s6 + $0x1b8] sm:$0xff]
      %v3627 = vld [vmem:[%s6 + $0x1c0] sm:$0xff]
      %v3628 = vld [vmem:[%s6 + $0x1c8] sm:$0xff]
      %v3629 = vld [vmem:[%s6 + $0x1d0] sm:$0xff]
      %v3630 = vld [vmem:[%s6 + $0x1d8] sm:$0xff]
      %v3631 = vld [vmem:[%s6 + $0x1e0] sm:$0xff]
      %v3632 = vld [vmem:[%s6 + $0x1e8] sm:$0xff]
      %v3633 = vld [vmem:[%s6 + $0x1f0] sm:$0xff]
      %v3634 = vld [vmem:[%s6 + $0x1f8] sm:$0xff]
      %v3635 = vld [vmem:[%s6 + $0x200] sm:$0xff]
      %v3636 = vld [vmem:[%s6 + $0x208] sm:$0xff]
      %v3637 = vld [vmem:[%s6 + $0x210] sm:$0xff]
      %v3638 = vld [vmem:[%s6 + $0x218] sm:$0xff]
      %v3639 = vld [vmem:[%s6 + $0x220] sm:$0xff]
      %v3640 = vld [vmem:[%s6 + $0x228] sm:$0xff]
      %v3641 = vld [vmem:[%s6 + $0x230] sm:$0xff]
      %v3642 = vld [vmem:[%s6 + $0x238] sm:$0xff]
      %v3643 = vld [vmem:[%s6 + $0x240] sm:$0xff]
      %v3644 = vld [vmem:[%s6 + $0x248] sm:$0xff]
      %v3645 = vld [vmem:[%s6 + $0x250] sm:$0xff]
      %v3646 = vld [vmem:[%s6 + $0x258] sm:$0xff]
      %v3647 = vld [vmem:[%s6 + $0x260] sm:$0xff]
      %v3648 = vld [vmem:[%s6 + $0x268] sm:$0xff]
      %v3649 = vld [vmem:[%s6 + $0x270] sm:$0xff]
      %v3650 = vld [vmem:[%s6 + $0x278] sm:$0xff]
      %v3651 = vld [vmem:[%s6 + $0x280] sm:$0xff]
      %v3652 = vld [vmem:[%s6 + $0x288] sm:$0xff]
      %v3653 = vld [vmem:[%s6 + $0x290] sm:$0xff]
      %v3654 = vld [vmem:[%s6 + $0x298] sm:$0xff]
      %v3655 = vld [vmem:[%s6 + $0x2a0] sm:$0xff]
      %v3656 = vld [vmem:[%s6 + $0x2a8] sm:$0xff]
      %v3657 = vld [vmem:[%s6 + $0x2b0] sm:$0xff]
      %v3658 = vld [vmem:[%s6 + $0x2b8] sm:$0xff]
      %v3659 = vld [vmem:[%s6 + $0x2c0] sm:$0xff]
      %v3660 = vld [vmem:[%s6 + $0x2c8] sm:$0xff]
      %v3661 = vld [vmem:[%s6 + $0x2d0] sm:$0xff]
      %v3662 = vld [vmem:[%s6 + $0x2d8] sm:$0xff]
      %v3663 = vld [vmem:[%s6 + $0x2e0] sm:$0xff]
      %v3664 = vld [vmem:[%s6 + $0x2e8] sm:$0xff]
      %v3665 = vld [vmem:[%s6 + $0x2f0] sm:$0xff]
      %v3666 = vld [vmem:[%s6 + $0x2f8] sm:$0xff]
      %v3667 = vld [vmem:[%s6 + $0x300] sm:$0xff]
      %v3668 = vld [vmem:[%s6 + $0x308] sm:$0xff]
      %v3669 = vld [vmem:[%s6 + $0x310] sm:$0xff]
      %v3670 = vld [vmem:[%s6 + $0x318] sm:$0xff]
      %v3671 = vld [vmem:[%s6 + $0x320] sm:$0xff]
      %v3672 = vld [vmem:[%s6 + $0x328] sm:$0xff]
      %v3673 = vld [vmem:[%s6 + $0x330] sm:$0xff]
      %v3674 = vld [vmem:[%s6 + $0x338] sm:$0xff]
      %v3675 = vld [vmem:[%s6 + $0x340] sm:$0xff]
      %v3676 = vld [vmem:[%s6 + $0x348] sm:$0xff]
      %v3677 = vld [vmem:[%s6 + $0x350] sm:$0xff]
      %v3678 = vld [vmem:[%s6 + $0x358] sm:$0xff]
      %v3679 = vld [vmem:[%s6 + $0x360] sm:$0xff]
      %v3680 = vld [vmem:[%s6 + $0x368] sm:$0xff]
      %v3681 = vld [vmem:[%s6 + $0x370] sm:$0xff]
      %v3682 = vld [vmem:[%s6 + $0x378] sm:$0xff]
      %v3683 = vld [vmem:[%s6 + $0x380] sm:$0xff]
      %v3684 = vld [vmem:[%s6 + $0x388] sm:$0xff]
      %v3685 = vld [vmem:[%s6 + $0x390] sm:$0xff]
      %v3686 = vld [vmem:[%s6 + $0x398] sm:$0xff]
      %v3687 = vld [vmem:[%s6 + $0x3a0] sm:$0xff]
      %v3688 = vld [vmem:[%s6 + $0x3a8] sm:$0xff]
      %v3689 = vld [vmem:[%s6 + $0x3b0] sm:$0xff]
      %v3690 = vld [vmem:[%s6 + $0x3b8] sm:$0xff]
      %v3691 = vld [vmem:[%s6 + $0x3c0] sm:$0xff]
      %v3692 = vld [vmem:[%s6 + $0x3c8] sm:$0xff]
      %v3693 = vld [vmem:[%s6 + $0x3d0] sm:$0xff]
      %v3694 = vld [vmem:[%s6 + $0x3d8] sm:$0xff]
      %v3695 = vld [vmem:[%s6 + $0x3e0] sm:$0xff]
      %v3696 = vld [vmem:[%s6 + $0x3e8] sm:$0xff]
      %v3697 = vld [vmem:[%s6 + $0x3f0] sm:$0xff]
      %v3698 = vld [vmem:[%s6 + $0x3f8] sm:$0xff]
      %v3699 = vld [vmem:[%s6 + $0x400] sm:$0xff]
      %v3700 = vld [vmem:[%s6 + $0x408] sm:$0xff]
      %v3701 = vld [vmem:[%s6 + $0x410] sm:$0xff]
      %v3702 = vld [vmem:[%s6 + $0x418] sm:$0xff]
      %v3703 = vld [vmem:[%s6 + $0x420] sm:$0xff]
      %v3704 = vld [vmem:[%s6 + $0x428] sm:$0xff]
      %v3705 = vld [vmem:[%s6 + $0x430] sm:$0xff]
      %v3706 = vld [vmem:[%s6 + $0x438] sm:$0xff]
      %v3707 = vld [vmem:[%s6 + $0x440] sm:$0xff]
      %v3708 = vld [vmem:[%s6 + $0x448] sm:$0xff]
      %v3709 = vld [vmem:[%s6 + $0x450] sm:$0xff]
      %v3710 = vld [vmem:[%s6 + $0x458] sm:$0xff]
      %v3711 = vld [vmem:[%s6 + $0x460] sm:$0xff]
      %v3712 = vld [vmem:[%s6 + $0x468] sm:$0xff]
      %v3713 = vld [vmem:[%s6 + $0x470] sm:$0xff]
      %v3714 = vld [vmem:[%s6 + $0x478] sm:$0xff]
      %v3715 = vld [vmem:[%s6 + $0x480] sm:$0xff]
      %v3716 = vld [vmem:[%s6 + $0x488] sm:$0xff]
      %v3717 = vld [vmem:[%s6 + $0x490] sm:$0xff]
      %v3718 = vld [vmem:[%s6 + $0x498] sm:$0xff]
      %v3719 = vld [vmem:[%s6 + $0x4a0] sm:$0xff]
      %v3720 = vld [vmem:[%s6 + $0x4a8] sm:$0xff]
      %v3721 = vld [vmem:[%s6 + $0x4b0] sm:$0xff]
      %v3722 = vld [vmem:[%s6 + $0x4b8] sm:$0xff]
      %v3723 = vld [vmem:[%s6 + $0x4c0] sm:$0xff]
      %v3724 = vld [vmem:[%s6 + $0x4c8] sm:$0xff]
      %v3725 = vld [vmem:[%s6 + $0x4d0] sm:$0xff]
      %v3726 = vld [vmem:[%s6 + $0x4d8] sm:$0xff]
      %v3727 = vld [vmem:[%s6 + $0x4e0] sm:$0xff]
      %v3728 = vld [vmem:[%s6 + $0x4e8] sm:$0xff]
      %v3729 = vld [vmem:[%s6 + $0x4f0] sm:$0xff]
      %v3730 = vld [vmem:[%s6 + $0x4f8] sm:$0xff]
      %v3731 = vld [vmem:[%s6 + $0x500] sm:$0xff]
      %v3732 = vld [vmem:[%s6 + $0x508] sm:$0xff]
      %v3733 = vld [vmem:[%s6 + $0x510] sm:$0xff]
      %v3734 = vld [vmem:[%s6 + $0x518] sm:$0xff]
      %v3735 = vld [vmem:[%s6 + $0x520] sm:$0xff]
      %v3736 = vld [vmem:[%s6 + $0x528] sm:$0xff]
      %v3737 = vld [vmem:[%s6 + $0x530] sm:$0xff]
      %v3738 = vld [vmem:[%s6 + $0x538] sm:$0xff]
      %v3739 = vld [vmem:[%s6 + $0x540] sm:$0xff]
      %v3740 = vld [vmem:[%s6 + $0x548] sm:$0xff]
      %v3741 = vld [vmem:[%s6 + $0x550] sm:$0xff]
      %v3742 = vld [vmem:[%s6 + $0x558] sm:$0xff]
      %v3743 = vld [vmem:[%s6 + $0x560] sm:$0xff]
      %v3744 = vld [vmem:[%s6 + $0x568] sm:$0xff]
      %v3745 = vld [vmem:[%s6 + $0x570] sm:$0xff]
      %v3746 = vld [vmem:[%s6 + $0x578] sm:$0xff]
      %v3747 = vld [vmem:[%s6 + $0x580] sm:$0xff]
      %v3748 = vld [vmem:[%s6 + $0x588] sm:$0xff]
      %v3749 = vld [vmem:[%s6 + $0x590] sm:$0xff]
      %v3750 = vld [vmem:[%s6 + $0x598] sm:$0xff]
      %v3751 = vld [vmem:[%s6 + $0x5a0] sm:$0xff]
      %v3752 = vld [vmem:[%s6 + $0x5a8] sm:$0xff]
      %v3753 = vld [vmem:[%s6 + $0x5b0] sm:$0xff]
      %v3754 = vld [vmem:[%s6 + $0x5b8] sm:$0xff]
      %v3755 = vld [vmem:[%s6 + $0x5c0] sm:$0xff]
      %v3756 = vld [vmem:[%s6 + $0x5c8] sm:$0xff]
      %v3757 = vld [vmem:[%s6 + $0x5d0] sm:$0xff]
      %v3758 = vld [vmem:[%s6 + $0x5d8] sm:$0xff]
      %v3759 = vld [vmem:[%s6 + $0x5e0] sm:$0xff]
      %v3760 = vld [vmem:[%s6 + $0x5e8] sm:$0xff]
      %v3761 = vld [vmem:[%s6 + $0x5f0] sm:$0xff]
      %v3762 = vld [vmem:[%s6 + $0x5f8] sm:$0xff]
      %v3763 = vld [vmem:[%s6 + $0x600] sm:$0xff]
      %v3764 = vld [vmem:[%s6 + $0x608] sm:$0xff]
      %v3765 = vld [vmem:[%s6 + $0x610] sm:$0xff]
      %v3766 = vld [vmem:[%s6 + $0x618] sm:$0xff]
      %v3767 = vld [vmem:[%s6 + $0x620] sm:$0xff]
      %v3768 = vld [vmem:[%s6 + $0x628] sm:$0xff]
      %v3769 = vld [vmem:[%s6 + $0x630] sm:$0xff]
      %v3770 = vld [vmem:[%s6 + $0x638] sm:$0xff]
      %v3771 = vld [vmem:[%s6 + $0x640] sm:$0xff]
      %v3772 = vld [vmem:[%s6 + $0x648] sm:$0xff]
      %v3773 = vld [vmem:[%s6 + $0x650] sm:$0xff]
      %v3774 = vld [vmem:[%s6 + $0x658] sm:$0xff]
      %v3775 = vld [vmem:[%s6 + $0x660] sm:$0xff]
      %v3776 = vld [vmem:[%s6 + $0x668] sm:$0xff]
      %v3777 = vld [vmem:[%s6 + $0x670] sm:$0xff]
      %v3778 = vld [vmem:[%s6 + $0x678] sm:$0xff]
      %v3779 = vld [vmem:[%s6 + $0x680] sm:$0xff]
      %v3780 = vld [vmem:[%s6 + $0x688] sm:$0xff]
      %v3781 = vld [vmem:[%s6 + $0x690] sm:$0xff]
      %v3782 = vld [vmem:[%s6 + $0x698] sm:$0xff]
      %v3783 = vld [vmem:[%s6 + $0x6a0] sm:$0xff]
      %v3784 = vld [vmem:[%s6 + $0x6a8] sm:$0xff]
      %v3785 = vld [vmem:[%s6 + $0x6b0] sm:$0xff]
      %v3786 = vld [vmem:[%s6 + $0x6b8] sm:$0xff]
      %v3787 = vld [vmem:[%s6 + $0x6c0] sm:$0xff]
      %v3788 = vld [vmem:[%s6 + $0x6c8] sm:$0xff]
      %v3789 = vld [vmem:[%s6 + $0x6d0] sm:$0xff]
      %v3790 = vld [vmem:[%s6 + $0x6d8] sm:$0xff]
      %v3791 = vld [vmem:[%s6 + $0x6e0] sm:$0xff]
      %v3792 = vld [vmem:[%s6 + $0x6e8] sm:$0xff]
      %v3793 = vld [vmem:[%s6 + $0x6f0] sm:$0xff]
      %v3794 = vld [vmem:[%s6 + $0x6f8] sm:$0xff]
      %v3795 = vld [vmem:[%s6 + $0x700] sm:$0xff]
      %v3796 = vld [vmem:[%s6 + $0x708] sm:$0xff]
      %v3797 = vld [vmem:[%s6 + $0x710] sm:$0xff]
      %v3798 = vld [vmem:[%s6 + $0x718] sm:$0xff]
      %v3799 = vld [vmem:[%s6 + $0x720] sm:$0xff]
      %v3800 = vld [vmem:[%s6 + $0x728] sm:$0xff]
      %v3801 = vld [vmem:[%s6 + $0x730] sm:$0xff]
      %v3802 = vld [vmem:[%s6 + $0x738] sm:$0xff]
      %v3803 = vld [vmem:[%s6 + $0x740] sm:$0xff]
      %v3804 = vld [vmem:[%s6 + $0x748] sm:$0xff]
      %v3805 = vld [vmem:[%s6 + $0x750] sm:$0xff]
      %v3806 = vld [vmem:[%s6 + $0x758] sm:$0xff]
      %v3807 = vld [vmem:[%s6 + $0x760] sm:$0xff]
      %v3808 = vld [vmem:[%s6 + $0x768] sm:$0xff]
      %v3809 = vld [vmem:[%s6 + $0x770] sm:$0xff]
      %v3810 = vld [vmem:[%s6 + $0x778] sm:$0xff]
      %v3811 = vld [vmem:[%s6 + $0x780] sm:$0xff]
      %v3812 = vld [vmem:[%s6 + $0x788] sm:$0xff]
      %v3813 = vld [vmem:[%s6 + $0x790] sm:$0xff]
      %v3814 = vld [vmem:[%s6 + $0x798] sm:$0xff]
      %v3815 = vld [vmem:[%s6 + $0x7a0] sm:$0xff]
      %v3816 = vld [vmem:[%s6 + $0x7a8] sm:$0xff]
      %v3817 = vld [vmem:[%s6 + $0x7b0] sm:$0xff]
      %v3818 = vld [vmem:[%s6 + $0x7b8] sm:$0xff]
      %v3819 = vld [vmem:[%s6 + $0x7c0] sm:$0xff]
      %v3820 = vld [vmem:[%s6 + $0x7c8] sm:$0xff]
      %v3821 = vld [vmem:[%s6 + $0x7d0] sm:$0xff]
      %v3822 = vld [vmem:[%s6 + $0x7d8] sm:$0xff]
      %v3823 = vld [vmem:[%s6 + $0x7e0] sm:$0xff]
      %v3824 = vld [vmem:[%s6 + $0x7e8] sm:$0xff]
      %v3825 = vld [vmem:[%s6 + $0x7f0] sm:$0xff]
      %v3826 = vld [vmem:[%s6 + $0x7f8] sm:$0xff]
      %s3827 = scalar_lea.vmem %s6, 2048
      %v3828 = vld [vmem:[%s3827] sm:$0xff]
      %v3829 = vld [vmem:[%s3827 + $0x8] sm:$0xff]
      %v3830 = vld [vmem:[%s3827 + $0x10] sm:$0xff]
      %v3831 = vld [vmem:[%s3827 + $0x18] sm:$0xff]
      %v3832 = vld [vmem:[%s3827 + $0x20] sm:$0xff]
      %v3833 = vld [vmem:[%s3827 + $0x28] sm:$0xff]
      %v3834 = vld [vmem:[%s3827 + $0x30] sm:$0xff]
      %v3835 = vld [vmem:[%s3827 + $0x38] sm:$0xff]
      %v3836 = vld [vmem:[%s3827 + $0x40] sm:$0xff]
      %v3837 = vld [vmem:[%s3827 + $0x48] sm:$0xff]
      %v3838 = vld [vmem:[%s3827 + $0x50] sm:$0xff]
      %v3839 = vld [vmem:[%s3827 + $0x58] sm:$0xff]
      %v3840 = vld [vmem:[%s3827 + $0x60] sm:$0xff]
      %v3841 = vld [vmem:[%s3827 + $0x68] sm:$0xff]
      %v3842 = vld [vmem:[%s3827 + $0x70] sm:$0xff]
      %v3843 = vld [vmem:[%s3827 + $0x78] sm:$0xff]
      %v3844 = vld [vmem:[%s3827 + $0x80] sm:$0xff]
      %v3845 = vld [vmem:[%s3827 + $0x88] sm:$0xff]
      %v3846 = vld [vmem:[%s3827 + $0x90] sm:$0xff]
      %v3847 = vld [vmem:[%s3827 + $0x98] sm:$0xff]
      %v3848 = vld [vmem:[%s3827 + $0xa0] sm:$0xff]
      %v3849 = vld [vmem:[%s3827 + $0xa8] sm:$0xff]
      %v3850 = vld [vmem:[%s3827 + $0xb0] sm:$0xff]
      %v3851 = vld [vmem:[%s3827 + $0xb8] sm:$0xff]
      %v3852 = vld [vmem:[%s3827 + $0xc0] sm:$0xff]
      %v3853 = vld [vmem:[%s3827 + $0xc8] sm:$0xff]
      %v3854 = vld [vmem:[%s3827 + $0xd0] sm:$0xff]
      %v3855 = vld [vmem:[%s3827 + $0xd8] sm:$0xff]
      %v3856 = vld [vmem:[%s3827 + $0xe0] sm:$0xff]
      %v3857 = vld [vmem:[%s3827 + $0xe8] sm:$0xff]
      %v3858 = vld [vmem:[%s3827 + $0xf0] sm:$0xff]
      %v3859 = vld [vmem:[%s3827 + $0xf8] sm:$0xff]
      %v3860 = vld [vmem:[%s3827 + $0x100] sm:$0xff]
      %v3861 = vld [vmem:[%s3827 + $0x108] sm:$0xff]
      %v3862 = vld [vmem:[%s3827 + $0x110] sm:$0xff]
      %v3863 = vld [vmem:[%s3827 + $0x118] sm:$0xff]
      %v3864 = vld [vmem:[%s3827 + $0x120] sm:$0xff]
      %v3865 = vld [vmem:[%s3827 + $0x128] sm:$0xff]
      %v3866 = vld [vmem:[%s3827 + $0x130] sm:$0xff]
      %v3867 = vld [vmem:[%s3827 + $0x138] sm:$0xff]
      %v3868 = vld [vmem:[%s3827 + $0x140] sm:$0xff]
      %v3869 = vld [vmem:[%s3827 + $0x148] sm:$0xff]
      %v3870 = vld [vmem:[%s3827 + $0x150] sm:$0xff]
      %v3871 = vld [vmem:[%s3827 + $0x158] sm:$0xff]
      %v3872 = vld [vmem:[%s3827 + $0x160] sm:$0xff]
      %v3873 = vld [vmem:[%s3827 + $0x168] sm:$0xff]
      %v3874 = vld [vmem:[%s3827 + $0x170] sm:$0xff]
      %v3875 = vld [vmem:[%s3827 + $0x178] sm:$0xff]
      %v3876 = vld [vmem:[%s3827 + $0x180] sm:$0xff]
      %v3877 = vld [vmem:[%s3827 + $0x188] sm:$0xff]
      %v3878 = vld [vmem:[%s3827 + $0x190] sm:$0xff]
      %v3879 = vld [vmem:[%s3827 + $0x198] sm:$0xff]
      %v3880 = vld [vmem:[%s3827 + $0x1a0] sm:$0xff]
      %v3881 = vld [vmem:[%s3827 + $0x1a8] sm:$0xff]
      %v3882 = vld [vmem:[%s3827 + $0x1b0] sm:$0xff]
      %v3883 = vld [vmem:[%s3827 + $0x1b8] sm:$0xff]
      %v3884 = vld [vmem:[%s3827 + $0x1c0] sm:$0xff]
      %v3885 = vld [vmem:[%s3827 + $0x1c8] sm:$0xff]
      %v3886 = vld [vmem:[%s3827 + $0x1d0] sm:$0xff]
      %v3887 = vld [vmem:[%s3827 + $0x1d8] sm:$0xff]
      %v3888 = vld [vmem:[%s3827 + $0x1e0] sm:$0xff]
      %v3889 = vld [vmem:[%s3827 + $0x1e8] sm:$0xff]
      %v3890 = vld [vmem:[%s3827 + $0x1f0] sm:$0xff]
      %v3891 = vld [vmem:[%s3827 + $0x1f8] sm:$0xff]
      %v3892 = vld [vmem:[%s3827 + $0x200] sm:$0xff]
      %v3893 = vld [vmem:[%s3827 + $0x208] sm:$0xff]
      %v3894 = vld [vmem:[%s3827 + $0x210] sm:$0xff]
      %v3895 = vld [vmem:[%s3827 + $0x218] sm:$0xff]
      %v3896 = vld [vmem:[%s3827 + $0x220] sm:$0xff]
      %v3897 = vld [vmem:[%s3827 + $0x228] sm:$0xff]
      %v3898 = vld [vmem:[%s3827 + $0x230] sm:$0xff]
      %v3899 = vld [vmem:[%s3827 + $0x238] sm:$0xff]
      %v3900 = vld [vmem:[%s3827 + $0x240] sm:$0xff]
      %v3901 = vld [vmem:[%s3827 + $0x248] sm:$0xff]
      %v3902 = vld [vmem:[%s3827 + $0x250] sm:$0xff]
      %v3903 = vld [vmem:[%s3827 + $0x258] sm:$0xff]
      %v3904 = vld [vmem:[%s3827 + $0x260] sm:$0xff]
      %v3905 = vld [vmem:[%s3827 + $0x268] sm:$0xff]
      %v3906 = vld [vmem:[%s3827 + $0x270] sm:$0xff]
      %v3907 = vld [vmem:[%s3827 + $0x278] sm:$0xff]
      %v3908 = vld [vmem:[%s3827 + $0x280] sm:$0xff]
      %v3909 = vld [vmem:[%s3827 + $0x288] sm:$0xff]
      %v3910 = vld [vmem:[%s3827 + $0x290] sm:$0xff]
      %v3911 = vld [vmem:[%s3827 + $0x298] sm:$0xff]
      %v3912 = vld [vmem:[%s3827 + $0x2a0] sm:$0xff]
      %v3913 = vld [vmem:[%s3827 + $0x2a8] sm:$0xff]
      %v3914 = vld [vmem:[%s3827 + $0x2b0] sm:$0xff]
      %v3915 = vld [vmem:[%s3827 + $0x2b8] sm:$0xff]
      %v3916 = vld [vmem:[%s3827 + $0x2c0] sm:$0xff]
      %v3917 = vld [vmem:[%s3827 + $0x2c8] sm:$0xff]
      %v3918 = vld [vmem:[%s3827 + $0x2d0] sm:$0xff]
      %v3919 = vld [vmem:[%s3827 + $0x2d8] sm:$0xff]
      %v3920 = vld [vmem:[%s3827 + $0x2e0] sm:$0xff]
      %v3921 = vld [vmem:[%s3827 + $0x2e8] sm:$0xff]
      %v3922 = vld [vmem:[%s3827 + $0x2f0] sm:$0xff]
      %v3923 = vld [vmem:[%s3827 + $0x2f8] sm:$0xff]
      %v3924 = vld [vmem:[%s3827 + $0x300] sm:$0xff]
      %v3925 = vld [vmem:[%s3827 + $0x308] sm:$0xff]
      %v3926 = vld [vmem:[%s3827 + $0x310] sm:$0xff]
      %v3927 = vld [vmem:[%s3827 + $0x318] sm:$0xff]
      %v3928 = vld [vmem:[%s3827 + $0x320] sm:$0xff]
      %v3929 = vld [vmem:[%s3827 + $0x328] sm:$0xff]
      %v3930 = vld [vmem:[%s3827 + $0x330] sm:$0xff]
      %v3931 = vld [vmem:[%s3827 + $0x338] sm:$0xff]
      %v3932 = vld [vmem:[%s3827 + $0x340] sm:$0xff]
      %v3933 = vld [vmem:[%s3827 + $0x348] sm:$0xff]
      %v3934 = vld [vmem:[%s3827 + $0x350] sm:$0xff]
      %v3935 = vld [vmem:[%s3827 + $0x358] sm:$0xff]
      %v3936 = vld [vmem:[%s3827 + $0x360] sm:$0xff]
      %v3937 = vld [vmem:[%s3827 + $0x368] sm:$0xff]
      %v3938 = vld [vmem:[%s3827 + $0x370] sm:$0xff]
      %v3939 = vld [vmem:[%s3827 + $0x378] sm:$0xff]
      %v3940 = vld [vmem:[%s3827 + $0x380] sm:$0xff]
      %v3941 = vld [vmem:[%s3827 + $0x388] sm:$0xff]
      %v3942 = vld [vmem:[%s3827 + $0x390] sm:$0xff]
      %v3943 = vld [vmem:[%s3827 + $0x398] sm:$0xff]
      %v3944 = vld [vmem:[%s3827 + $0x3a0] sm:$0xff]
      %v3945 = vld [vmem:[%s3827 + $0x3a8] sm:$0xff]
      %v3946 = vld [vmem:[%s3827 + $0x3b0] sm:$0xff]
      %v3947 = vld [vmem:[%s3827 + $0x3b8] sm:$0xff]
      %v3948 = vld [vmem:[%s3827 + $0x3c0] sm:$0xff]
      %v3949 = vld [vmem:[%s3827 + $0x3c8] sm:$0xff]
      %v3950 = vld [vmem:[%s3827 + $0x3d0] sm:$0xff]
      %v3951 = vld [vmem:[%s3827 + $0x3d8] sm:$0xff]
      %v3952 = vld [vmem:[%s3827 + $0x3e0] sm:$0xff]
      %v3953 = vld [vmem:[%s3827 + $0x3e8] sm:$0xff]
      %v3954 = vld [vmem:[%s3827 + $0x3f0] sm:$0xff]
      %v3955 = vld [vmem:[%s3827 + $0x3f8] sm:$0xff]
      %v3956 = vld [vmem:[%s3827 + $0x400] sm:$0xff]
      %v3957 = vld [vmem:[%s3827 + $0x408] sm:$0xff]
      %v3958 = vld [vmem:[%s3827 + $0x410] sm:$0xff]
      %v3959 = vld [vmem:[%s3827 + $0x418] sm:$0xff]
      %v3960 = vld [vmem:[%s3827 + $0x420] sm:$0xff]
      %v3961 = vld [vmem:[%s3827 + $0x428] sm:$0xff]
      %v3962 = vld [vmem:[%s3827 + $0x430] sm:$0xff]
      %v3963 = vld [vmem:[%s3827 + $0x438] sm:$0xff]
      %v3964 = vld [vmem:[%s3827 + $0x440] sm:$0xff]
      %v3965 = vld [vmem:[%s3827 + $0x448] sm:$0xff]
      %v3966 = vld [vmem:[%s3827 + $0x450] sm:$0xff]
      %v3967 = vld [vmem:[%s3827 + $0x458] sm:$0xff]
      %v3968 = vld [vmem:[%s3827 + $0x460] sm:$0xff]
      %v3969 = vld [vmem:[%s3827 + $0x468] sm:$0xff]
      %v3970 = vld [vmem:[%s3827 + $0x470] sm:$0xff]
      %v3971 = vld [vmem:[%s3827 + $0x478] sm:$0xff]
      %v3972 = vld [vmem:[%s3827 + $0x480] sm:$0xff]
      %v3973 = vld [vmem:[%s3827 + $0x488] sm:$0xff]
      %v3974 = vld [vmem:[%s3827 + $0x490] sm:$0xff]
      %v3975 = vld [vmem:[%s3827 + $0x498] sm:$0xff]
      %v3976 = vld [vmem:[%s3827 + $0x4a0] sm:$0xff]
      %v3977 = vld [vmem:[%s3827 + $0x4a8] sm:$0xff]
      %v3978 = vld [vmem:[%s3827 + $0x4b0] sm:$0xff]
      %v3979 = vld [vmem:[%s3827 + $0x4b8] sm:$0xff]
      %v3980 = vld [vmem:[%s3827 + $0x4c0] sm:$0xff]
      %v3981 = vld [vmem:[%s3827 + $0x4c8] sm:$0xff]
      %v3982 = vld [vmem:[%s3827 + $0x4d0] sm:$0xff]
      %v3983 = vld [vmem:[%s3827 + $0x4d8] sm:$0xff]
      %v3984 = vld [vmem:[%s3827 + $0x4e0] sm:$0xff]
      %v3985 = vld [vmem:[%s3827 + $0x4e8] sm:$0xff]
      %v3986 = vld [vmem:[%s3827 + $0x4f0] sm:$0xff]
      %v3987 = vld [vmem:[%s3827 + $0x4f8] sm:$0xff]
      %v3988 = vld [vmem:[%s3827 + $0x500] sm:$0xff]
      %v3989 = vld [vmem:[%s3827 + $0x508] sm:$0xff]
      %v3990 = vld [vmem:[%s3827 + $0x510] sm:$0xff]
      %v3991 = vld [vmem:[%s3827 + $0x518] sm:$0xff]
      %v3992 = vld [vmem:[%s3827 + $0x520] sm:$0xff]
      %v3993 = vld [vmem:[%s3827 + $0x528] sm:$0xff]
      %v3994 = vld [vmem:[%s3827 + $0x530] sm:$0xff]
      %v3995 = vld [vmem:[%s3827 + $0x538] sm:$0xff]
      %v3996 = vld [vmem:[%s3827 + $0x540] sm:$0xff]
      %v3997 = vld [vmem:[%s3827 + $0x548] sm:$0xff]
      %v3998 = vld [vmem:[%s3827 + $0x550] sm:$0xff]
      %v3999 = vld [vmem:[%s3827 + $0x558] sm:$0xff]
      %v4000 = vld [vmem:[%s3827 + $0x560] sm:$0xff]
      %v4001 = vld [vmem:[%s3827 + $0x568] sm:$0xff]
      %v4002 = vld [vmem:[%s3827 + $0x570] sm:$0xff]
      %v4003 = vld [vmem:[%s3827 + $0x578] sm:$0xff]
      %v4004 = vld [vmem:[%s3827 + $0x580] sm:$0xff]
      %v4005 = vld [vmem:[%s3827 + $0x588] sm:$0xff]
      %v4006 = vld [vmem:[%s3827 + $0x590] sm:$0xff]
      %v4007 = vld [vmem:[%s3827 + $0x598] sm:$0xff]
      %v4008 = vld [vmem:[%s3827 + $0x5a0] sm:$0xff]
      %v4009 = vld [vmem:[%s3827 + $0x5a8] sm:$0xff]
      %v4010 = vld [vmem:[%s3827 + $0x5b0] sm:$0xff]
      %v4011 = vld [vmem:[%s3827 + $0x5b8] sm:$0xff]
      %v4012 = vld [vmem:[%s3827 + $0x5c0] sm:$0xff]
      %v4013 = vld [vmem:[%s3827 + $0x5c8] sm:$0xff]
      %v4014 = vld [vmem:[%s3827 + $0x5d0] sm:$0xff]
      %v4015 = vld [vmem:[%s3827 + $0x5d8] sm:$0xff]
      %v4016 = vld [vmem:[%s3827 + $0x5e0] sm:$0xff]
      %v4017 = vld [vmem:[%s3827 + $0x5e8] sm:$0xff]
      %v4018 = vld [vmem:[%s3827 + $0x5f0] sm:$0xff]
      %v4019 = vld [vmem:[%s3827 + $0x5f8] sm:$0xff]
      %v4020 = vld [vmem:[%s3827 + $0x600] sm:$0xff]
      %v4021 = vld [vmem:[%s3827 + $0x608] sm:$0xff]
      %v4022 = vld [vmem:[%s3827 + $0x610] sm:$0xff]
      %v4023 = vld [vmem:[%s3827 + $0x618] sm:$0xff]
      %v4024 = vld [vmem:[%s3827 + $0x620] sm:$0xff]
      %v4025 = vld [vmem:[%s3827 + $0x628] sm:$0xff]
      %v4026 = vld [vmem:[%s3827 + $0x630] sm:$0xff]
      %v4027 = vld [vmem:[%s3827 + $0x638] sm:$0xff]
      %v4028 = vld [vmem:[%s3827 + $0x640] sm:$0xff]
      %v4029 = vld [vmem:[%s3827 + $0x648] sm:$0xff]
      %v4030 = vld [vmem:[%s3827 + $0x650] sm:$0xff]
      %v4031 = vld [vmem:[%s3827 + $0x658] sm:$0xff]
      %v4032 = vld [vmem:[%s3827 + $0x660] sm:$0xff]
      %v4033 = vld [vmem:[%s3827 + $0x668] sm:$0xff]
      %v4034 = vld [vmem:[%s3827 + $0x670] sm:$0xff]
      %v4035 = vld [vmem:[%s3827 + $0x678] sm:$0xff]
      %v4036 = vld [vmem:[%s3827 + $0x680] sm:$0xff]
      %v4037 = vld [vmem:[%s3827 + $0x688] sm:$0xff]
      %v4038 = vld [vmem:[%s3827 + $0x690] sm:$0xff]
      %v4039 = vld [vmem:[%s3827 + $0x698] sm:$0xff]
      %v4040 = vld [vmem:[%s3827 + $0x6a0] sm:$0xff]
      %v4041 = vld [vmem:[%s3827 + $0x6a8] sm:$0xff]
      %v4042 = vld [vmem:[%s3827 + $0x6b0] sm:$0xff]
      %v4043 = vld [vmem:[%s3827 + $0x6b8] sm:$0xff]
      %v4044 = vld [vmem:[%s3827 + $0x6c0] sm:$0xff]
      %v4045 = vld [vmem:[%s3827 + $0x6c8] sm:$0xff]
      %v4046 = vld [vmem:[%s3827 + $0x6d0] sm:$0xff]
      %v4047 = vld [vmem:[%s3827 + $0x6d8] sm:$0xff]
      %v4048 = vld [vmem:[%s3827 + $0x6e0] sm:$0xff]
      %v4049 = vld [vmem:[%s3827 + $0x6e8] sm:$0xff]
      %v4050 = vld [vmem:[%s3827 + $0x6f0] sm:$0xff]
      %v4051 = vld [vmem:[%s3827 + $0x6f8] sm:$0xff]
      %v4052 = vld [vmem:[%s3827 + $0x700] sm:$0xff]
      %v4053 = vld [vmem:[%s3827 + $0x708] sm:$0xff]
      %v4054 = vld [vmem:[%s3827 + $0x710] sm:$0xff]
      %v4055 = vld [vmem:[%s3827 + $0x718] sm:$0xff]
      %v4056 = vld [vmem:[%s3827 + $0x720] sm:$0xff]
      %v4057 = vld [vmem:[%s3827 + $0x728] sm:$0xff]
      %v4058 = vld [vmem:[%s3827 + $0x730] sm:$0xff]
      %v4059 = vld [vmem:[%s3827 + $0x738] sm:$0xff]
      %v4060 = vld [vmem:[%s3827 + $0x740] sm:$0xff]
      %v4061 = vld [vmem:[%s3827 + $0x748] sm:$0xff]
      %v4062 = vld [vmem:[%s3827 + $0x750] sm:$0xff]
      %v4063 = vld [vmem:[%s3827 + $0x758] sm:$0xff]
      %v4064 = vld [vmem:[%s3827 + $0x760] sm:$0xff]
      %v4065 = vld [vmem:[%s3827 + $0x768] sm:$0xff]
      %v4066 = vld [vmem:[%s3827 + $0x770] sm:$0xff]
      %v4067 = vld [vmem:[%s3827 + $0x778] sm:$0xff]
      %v4068 = vld [vmem:[%s3827 + $0x780] sm:$0xff]
      %v4069 = vld [vmem:[%s3827 + $0x788] sm:$0xff]
      %v4070 = vld [vmem:[%s3827 + $0x790] sm:$0xff]
      %v4071 = vld [vmem:[%s3827 + $0x798] sm:$0xff]
      %v4072 = vld [vmem:[%s3827 + $0x7a0] sm:$0xff]
      %v4073 = vld [vmem:[%s3827 + $0x7a8] sm:$0xff]
      %v4074 = vld [vmem:[%s3827 + $0x7b0] sm:$0xff]
      %v4075 = vld [vmem:[%s3827 + $0x7b8] sm:$0xff]
      %v4076 = vld [vmem:[%s3827 + $0x7c0] sm:$0xff]
      %v4077 = vld [vmem:[%s3827 + $0x7c8] sm:$0xff]
      %v4078 = vld [vmem:[%s3827 + $0x7d0] sm:$0xff]
      %v4079 = vld [vmem:[%s3827 + $0x7d8] sm:$0xff]
      %v4080 = vld [vmem:[%s3827 + $0x7e0] sm:$0xff]
      %v4081 = vld [vmem:[%s3827 + $0x7e8] sm:$0xff]
      %v4082 = vld [vmem:[%s3827 + $0x7f0] sm:$0xff]
      %v4083 = vld [vmem:[%s3827 + $0x7f8] sm:$0xff]
      %v4096 = vrot.slane %v3559, 1
      %v4097 = vrot.slane %v3563, 1
      %v4098 = vsel %vm986, %v4096, %v4097
      %v4099 = vrot.slane %v3560, 1
      %v4100 = vrot.slane %v3564, 1
      %v4101 = vsel %vm986, %v4099, %v4100
      %v4102 = vrot.slane %v3561, 1
      %v4103 = vrot.slane %v3565, 1
      %v4104 = vsel %vm986, %v4102, %v4103
      %v4105 = vrot.slane %v3562, 1
      %v4106 = vrot.slane %v3566, 1
      %v4107 = vsel %vm986, %v4105, %v4106
      %v4108 = vrot.slane %v3567, 1
      %v4109 = vsel %vm986, %v4097, %v4108
      %v4110 = vrot.slane %v3568, 1
      %v4111 = vsel %vm986, %v4100, %v4110
      %v4112 = vrot.slane %v3569, 1
      %v4113 = vsel %vm986, %v4103, %v4112
      %v4114 = vrot.slane %v3570, 1
      %v4115 = vsel %vm986, %v4106, %v4114
      %4124 = vmatpush.msra.mxu0 %v3888
      %4125 = vmatpush.msra.mxu0 %v3884
      %4126 = vmatpush.msra.mxu0 %v3880
      %4127 = vmatpush.msra.mxu0 %v3876
      %4128 = vmatpush.msra.mxu0 %v3872
      %4129 = vmatpush.msra.mxu0 %v3868
      %4130 = vmatpush.msra.mxu0 %v3864
      %4131 = vmatpush.msra.mxu0 %v3860
      %4132 = vmatpush.msra.mxu0 %v3856
      %4133 = vmatpush.msra.mxu0 %v3852
      %4134 = vmatpush.msra.mxu0 %v3848
      %4135 = vmatpush.msra.mxu0 %v3844
      %4136 = vmatpush.msra.mxu0 %v3840
      %4137 = vmatpush.msra.mxu0 %v3836
      %4138 = vmatpush.msra.mxu0 %v3832
      %4139 = vmatpush.msra.mxu0 %v3828
      %4140 = vmatmul.f32.gmra.mxu0 %v4098
      %v4141 = vpop.f32.mrf.mxu0
      %v4142 = vadd.f32 0.0, %v4141
      %4143 = vmatmul.f32.gmra.mxu0 %v4109
      %v4144 = vpop.f32.mrf.mxu0
      %v4145 = vadd.f32 0.0, %v4144
      %4146 = vdwg.mxu0
      %4147 = vmatpush.msra.mxu0 %v3952
      %4148 = vmatpush.msra.mxu0 %v3948
      %4149 = vmatpush.msra.mxu0 %v3944
      %4150 = vmatpush.msra.mxu0 %v3940
      %4151 = vmatpush.msra.mxu0 %v3936
      %4152 = vmatpush.msra.mxu0 %v3932
      %4153 = vmatpush.msra.mxu0 %v3928
      %4154 = vmatpush.msra.mxu0 %v3924
      %4155 = vmatpush.msra.mxu0 %v3920
      %4156 = vmatpush.msra.mxu0 %v3916
      %4157 = vmatpush.msra.mxu0 %v3912
      %4158 = vmatpush.msra.mxu0 %v3908
      %4159 = vmatpush.msra.mxu0 %v3904
      %4160 = vmatpush.msra.mxu0 %v3900
      %4161 = vmatpush.msra.mxu0 %v3896
      %4162 = vmatpush.msra.mxu0 %v3892
      %4163 = vmatmul.f32.gmra.mxu0 %v4101
      %v4164 = vpop.f32.mrf.mxu0
      %v4165 = vadd.f32 %v4142, %v4164
      %4166 = vmatmul.f32.gmra.mxu0 %v4111
      %v4167 = vpop.f32.mrf.mxu0
      %v4168 = vadd.f32 %v4145, %v4167
      %4169 = vdwg.mxu0
      %4170 = vmatpush.msra.mxu0 %v4016
      %4171 = vmatpush.msra.mxu0 %v4012
      %4172 = vmatpush.msra.mxu0 %v4008
      %4173 = vmatpush.msra.mxu0 %v4004
      %4174 = vmatpush.msra.mxu0 %v4000
      %4175 = vmatpush.msra.mxu0 %v3996
      %4176 = vmatpush.msra.mxu0 %v3992
      %4177 = vmatpush.msra.mxu0 %v3988
      %4178 = vmatpush.msra.mxu0 %v3984
      %4179 = vmatpush.msra.mxu0 %v3980
      %4180 = vmatpush.msra.mxu0 %v3976
      %4181 = vmatpush.msra.mxu0 %v3972
      %4182 = vmatpush.msra.mxu0 %v3968
      %4183 = vmatpush.msra.mxu0 %v3964
      %4184 = vmatpush.msra.mxu0 %v3960
      %4185 = vmatpush.msra.mxu0 %v3956
      %4186 = vmatmul.f32.gmra.mxu0 %v4104
      %v4187 = vpop.f32.mrf.mxu0
      %v4188 = vadd.f32 %v4165, %v4187
      %4189 = vmatmul.f32.gmra.mxu0 %v4113
      %v4190 = vpop.f32.mrf.mxu0
      %v4191 = vadd.f32 %v4168, %v4190
      %4192 = vdwg.mxu0
      %4193 = vmatpush.msra.mxu0 %v4080
      %4194 = vmatpush.msra.mxu0 %v4076
      %4195 = vmatpush.msra.mxu0 %v4072
      %4196 = vmatpush.msra.mxu0 %v4068
      %4197 = vmatpush.msra.mxu0 %v4064
      %4198 = vmatpush.msra.mxu0 %v4060
      %4199 = vmatpush.msra.mxu0 %v4056
      %4200 = vmatpush.msra.mxu0 %v4052
      %4201 = vmatpush.msra.mxu0 %v4048
      %4202 = vmatpush.msra.mxu0 %v4044
      %4203 = vmatpush.msra.mxu0 %v4040
      %4204 = vmatpush.msra.mxu0 %v4036
      %4205 = vmatpush.msra.mxu0 %v4032
      %4206 = vmatpush.msra.mxu0 %v4028
      %4207 = vmatpush.msra.mxu0 %v4024
      %4208 = vmatpush.msra.mxu0 %v4020
      %4209 = vmatmul.f32.gmra.mxu0 %v4107
      %v4210 = vpop.f32.mrf.mxu0
      %v4211 = vadd.f32 %v4188, %v4210
      %4212 = vmatmul.f32.gmra.mxu0 %v4115
      %v4213 = vpop.f32.mrf.mxu0
      %v4214 = vadd.f32 %v4191, %v4213
      %4215 = vdwg.mxu0
      %4216 = vmatpush.msra.mxu0 %v3889
      %4217 = vmatpush.msra.mxu0 %v3885
      %4218 = vmatpush.msra.mxu0 %v3881
      %4219 = vmatpush.msra.mxu0 %v3877
      %4220 = vmatpush.msra.mxu0 %v3873
      %4221 = vmatpush.msra.mxu0 %v3869
      %4222 = vmatpush.msra.mxu0 %v3865
      %4223 = vmatpush.msra.mxu0 %v3861
      %4224 = vmatpush.msra.mxu0 %v3857
      %4225 = vmatpush.msra.mxu0 %v3853
      %4226 = vmatpush.msra.mxu0 %v3849
      %4227 = vmatpush.msra.mxu0 %v3845
      %4228 = vmatpush.msra.mxu0 %v3841
      %4229 = vmatpush.msra.mxu0 %v3837
      %4230 = vmatpush.msra.mxu0 %v3833
      %4231 = vmatpush.msra.mxu0 %v3829
      %4232 = vmatmul.f32.gmra.mxu0 %v4098
      %v4233 = vpop.f32.mrf.mxu0
      %v4234 = vadd.f32 0.0, %v4233
      %4235 = vmatmul.f32.gmra.mxu0 %v4109
      %v4236 = vpop.f32.mrf.mxu0
      %v4237 = vadd.f32 0.0, %v4236
      %4238 = vdwg.mxu0
      %4239 = vmatpush.msra.mxu0 %v3953
      %4240 = vmatpush.msra.mxu0 %v3949
      %4241 = vmatpush.msra.mxu0 %v3945
      %4242 = vmatpush.msra.mxu0 %v3941
      %4243 = vmatpush.msra.mxu0 %v3937
      %4244 = vmatpush.msra.mxu0 %v3933
      %4245 = vmatpush.msra.mxu0 %v3929
      %4246 = vmatpush.msra.mxu0 %v3925
      %4247 = vmatpush.msra.mxu0 %v3921
      %4248 = vmatpush.msra.mxu0 %v3917
      %4249 = vmatpush.msra.mxu0 %v3913
      %4250 = vmatpush.msra.mxu0 %v3909
      %4251 = vmatpush.msra.mxu0 %v3905
      %4252 = vmatpush.msra.mxu0 %v3901
      %4253 = vmatpush.msra.mxu0 %v3897
      %4254 = vmatpush.msra.mxu0 %v3893
      %4255 = vmatmul.f32.gmra.mxu0 %v4101
      %v4256 = vpop.f32.mrf.mxu0
      %v4257 = vadd.f32 %v4234, %v4256
      %4258 = vmatmul.f32.gmra.mxu0 %v4111
      %v4259 = vpop.f32.mrf.mxu0
      %v4260 = vadd.f32 %v4237, %v4259
      %4261 = vdwg.mxu0
      %4262 = vmatpush.msra.mxu0 %v4017
      %4263 = vmatpush.msra.mxu0 %v4013
      %4264 = vmatpush.msra.mxu0 %v4009
      %4265 = vmatpush.msra.mxu0 %v4005
      %4266 = vmatpush.msra.mxu0 %v4001
      %4267 = vmatpush.msra.mxu0 %v3997
      %4268 = vmatpush.msra.mxu0 %v3993
      %4269 = vmatpush.msra.mxu0 %v3989
      %4270 = vmatpush.msra.mxu0 %v3985
      %4271 = vmatpush.msra.mxu0 %v3981
      %4272 = vmatpush.msra.mxu0 %v3977
      %4273 = vmatpush.msra.mxu0 %v3973
      %4274 = vmatpush.msra.mxu0 %v3969
      %4275 = vmatpush.msra.mxu0 %v3965
      %4276 = vmatpush.msra.mxu0 %v3961
      %4277 = vmatpush.msra.mxu0 %v3957
      %4278 = vmatmul.f32.gmra.mxu0 %v4104
      %v4279 = vpop.f32.mrf.mxu0
      %v4280 = vadd.f32 %v4257, %v4279
      %4281 = vmatmul.f32.gmra.mxu0 %v4113
      %v4282 = vpop.f32.mrf.mxu0
      %v4283 = vadd.f32 %v4260, %v4282
      %4284 = vdwg.mxu0
      %4285 = vmatpush.msra.mxu0 %v4081
      %4286 = vmatpush.msra.mxu0 %v4077
      %4287 = vmatpush.msra.mxu0 %v4073
      %4288 = vmatpush.msra.mxu0 %v4069
      %4289 = vmatpush.msra.mxu0 %v4065
      %4290 = vmatpush.msra.mxu0 %v4061
      %4291 = vmatpush.msra.mxu0 %v4057
      %4292 = vmatpush.msra.mxu0 %v4053
      %4293 = vmatpush.msra.mxu0 %v4049
      %4294 = vmatpush.msra.mxu0 %v4045
      %4295 = vmatpush.msra.mxu0 %v4041
      %4296 = vmatpush.msra.mxu0 %v4037
      %4297 = vmatpush.msra.mxu0 %v4033
      %4298 = vmatpush.msra.mxu0 %v4029
      %4299 = vmatpush.msra.mxu0 %v4025
      %4300 = vmatpush.msra.mxu0 %v4021
      %4301 = vmatmul.f32.gmra.mxu0 %v4107
      %v4302 = vpop.f32.mrf.mxu0
      %v4303 = vadd.f32 %v4280, %v4302
      %4304 = vmatmul.f32.gmra.mxu0 %v4115
      %v4305 = vpop.f32.mrf.mxu0
      %v4306 = vadd.f32 %v4283, %v4305
      %4307 = vdwg.mxu0
      %4308 = vmatpush.msra.mxu0 %v3890
      %4309 = vmatpush.msra.mxu0 %v3886
      %4310 = vmatpush.msra.mxu0 %v3882
      %4311 = vmatpush.msra.mxu0 %v3878
      %4312 = vmatpush.msra.mxu0 %v3874
      %4313 = vmatpush.msra.mxu0 %v3870
      %4314 = vmatpush.msra.mxu0 %v3866
      %4315 = vmatpush.msra.mxu0 %v3862
      %4316 = vmatpush.msra.mxu0 %v3858
      %4317 = vmatpush.msra.mxu0 %v3854
      %4318 = vmatpush.msra.mxu0 %v3850
      %4319 = vmatpush.msra.mxu0 %v3846
      %4320 = vmatpush.msra.mxu0 %v3842
      %4321 = vmatpush.msra.mxu0 %v3838
      %4322 = vmatpush.msra.mxu0 %v3834
      %4323 = vmatpush.msra.mxu0 %v3830
      %4324 = vmatmul.f32.gmra.mxu0 %v4098
      %v4325 = vpop.f32.mrf.mxu0
      %v4326 = vadd.f32 0.0, %v4325
      %4327 = vmatmul.f32.gmra.mxu0 %v4109
      %v4328 = vpop.f32.mrf.mxu0
      %v4329 = vadd.f32 0.0, %v4328
      %4330 = vdwg.mxu0
      %4331 = vmatpush.msra.mxu0 %v3954
      %4332 = vmatpush.msra.mxu0 %v3950
      %4333 = vmatpush.msra.mxu0 %v3946
      %4334 = vmatpush.msra.mxu0 %v3942
      %4335 = vmatpush.msra.mxu0 %v3938
      %4336 = vmatpush.msra.mxu0 %v3934
      %4337 = vmatpush.msra.mxu0 %v3930
      %4338 = vmatpush.msra.mxu0 %v3926
      %4339 = vmatpush.msra.mxu0 %v3922
      %4340 = vmatpush.msra.mxu0 %v3918
      %4341 = vmatpush.msra.mxu0 %v3914
      %4342 = vmatpush.msra.mxu0 %v3910
      %4343 = vmatpush.msra.mxu0 %v3906
      %4344 = vmatpush.msra.mxu0 %v3902
      %4345 = vmatpush.msra.mxu0 %v3898
      %4346 = vmatpush.msra.mxu0 %v3894
      %4347 = vmatmul.f32.gmra.mxu0 %v4101
      %v4348 = vpop.f32.mrf.mxu0
      %v4349 = vadd.f32 %v4326, %v4348
      %4350 = vmatmul.f32.gmra.mxu0 %v4111
      %v4351 = vpop.f32.mrf.mxu0
      %v4352 = vadd.f32 %v4329, %v4351
      %4353 = vdwg.mxu0
      %4354 = vmatpush.msra.mxu0 %v4018
      %4355 = vmatpush.msra.mxu0 %v4014
      %4356 = vmatpush.msra.mxu0 %v4010
      %4357 = vmatpush.msra.mxu0 %v4006
      %4358 = vmatpush.msra.mxu0 %v4002
      %4359 = vmatpush.msra.mxu0 %v3998
      %4360 = vmatpush.msra.mxu0 %v3994
      %4361 = vmatpush.msra.mxu0 %v3990
      %4362 = vmatpush.msra.mxu0 %v3986
      %4363 = vmatpush.msra.mxu0 %v3982
      %4364 = vmatpush.msra.mxu0 %v3978
      %4365 = vmatpush.msra.mxu0 %v3974
      %4366 = vmatpush.msra.mxu0 %v3970
      %4367 = vmatpush.msra.mxu0 %v3966
      %4368 = vmatpush.msra.mxu0 %v3962
      %4369 = vmatpush.msra.mxu0 %v3958
      %4370 = vmatmul.f32.gmra.mxu0 %v4104
      %v4371 = vpop.f32.mrf.mxu0
      %v4372 = vadd.f32 %v4349, %v4371
      %4373 = vmatmul.f32.gmra.mxu0 %v4113
      %v4374 = vpop.f32.mrf.mxu0
      %v4375 = vadd.f32 %v4352, %v4374
      %4376 = vdwg.mxu0
      %4377 = vmatpush.msra.mxu0 %v4082
      %4378 = vmatpush.msra.mxu0 %v4078
      %4379 = vmatpush.msra.mxu0 %v4074
      %4380 = vmatpush.msra.mxu0 %v4070
      %4381 = vmatpush.msra.mxu0 %v4066
      %4382 = vmatpush.msra.mxu0 %v4062
      %4383 = vmatpush.msra.mxu0 %v4058
      %4384 = vmatpush.msra.mxu0 %v4054
      %4385 = vmatpush.msra.mxu0 %v4050
      %4386 = vmatpush.msra.mxu0 %v4046
      %4387 = vmatpush.msra.mxu0 %v4042
      %4388 = vmatpush.msra.mxu0 %v4038
      %4389 = vmatpush.msra.mxu0 %v4034
      %4390 = vmatpush.msra.mxu0 %v4030
      %4391 = vmatpush.msra.mxu0 %v4026
      %4392 = vmatpush.msra.mxu0 %v4022
      %4393 = vmatmul.f32.gmra.mxu0 %v4107
      %v4394 = vpop.f32.mrf.mxu0
      %v4395 = vadd.f32 %v4372, %v4394
      %4396 = vmatmul.f32.gmra.mxu0 %v4115
      %v4397 = vpop.f32.mrf.mxu0
      %v4398 = vadd.f32 %v4375, %v4397
      %4399 = vdwg.mxu0
      %4400 = vmatpush.msra.mxu0 %v3891
      %4401 = vmatpush.msra.mxu0 %v3887
      %4402 = vmatpush.msra.mxu0 %v3883
      %4403 = vmatpush.msra.mxu0 %v3879
      %4404 = vmatpush.msra.mxu0 %v3875
      %4405 = vmatpush.msra.mxu0 %v3871
      %4406 = vmatpush.msra.mxu0 %v3867
      %4407 = vmatpush.msra.mxu0 %v3863
      %4408 = vmatpush.msra.mxu0 %v3859
      %4409 = vmatpush.msra.mxu0 %v3855
      %4410 = vmatpush.msra.mxu0 %v3851
      %4411 = vmatpush.msra.mxu0 %v3847
      %4412 = vmatpush.msra.mxu0 %v3843
      %4413 = vmatpush.msra.mxu0 %v3839
      %4414 = vmatpush.msra.mxu0 %v3835
      %4415 = vmatpush.msra.mxu0 %v3831
      %4416 = vmatmul.f32.gmra.mxu0 %v4098
      %v4417 = vpop.f32.mrf.mxu0
      %v4418 = vadd.f32 0.0, %v4417
      %4419 = vmatmul.f32.gmra.mxu0 %v4109
      %v4420 = vpop.f32.mrf.mxu0
      %v4421 = vadd.f32 0.0, %v4420
      %4422 = vdwg.mxu0
      %4423 = vmatpush.msra.mxu0 %v3955
      %4424 = vmatpush.msra.mxu0 %v3951
      %4425 = vmatpush.msra.mxu0 %v3947
      %4426 = vmatpush.msra.mxu0 %v3943
      %4427 = vmatpush.msra.mxu0 %v3939
      %4428 = vmatpush.msra.mxu0 %v3935
      %4429 = vmatpush.msra.mxu0 %v3931
      %4430 = vmatpush.msra.mxu0 %v3927
      %4431 = vmatpush.msra.mxu0 %v3923
      %4432 = vmatpush.msra.mxu0 %v3919
      %4433 = vmatpush.msra.mxu0 %v3915
      %4434 = vmatpush.msra.mxu0 %v3911
      %4435 = vmatpush.msra.mxu0 %v3907
      %4436 = vmatpush.msra.mxu0 %v3903
      %4437 = vmatpush.msra.mxu0 %v3899
      %4438 = vmatpush.msra.mxu0 %v3895
      %4439 = vmatmul.f32.gmra.mxu0 %v4101
      %v4440 = vpop.f32.mrf.mxu0
      %v4441 = vadd.f32 %v4418, %v4440
      %4442 = vmatmul.f32.gmra.mxu0 %v4111
      %v4443 = vpop.f32.mrf.mxu0
      %v4444 = vadd.f32 %v4421, %v4443
      %4445 = vdwg.mxu0
      %4446 = vmatpush.msra.mxu0 %v4019
      %4447 = vmatpush.msra.mxu0 %v4015
      %4448 = vmatpush.msra.mxu0 %v4011
      %4449 = vmatpush.msra.mxu0 %v4007
      %4450 = vmatpush.msra.mxu0 %v4003
      %4451 = vmatpush.msra.mxu0 %v3999
      %4452 = vmatpush.msra.mxu0 %v3995
      %4453 = vmatpush.msra.mxu0 %v3991
      %4454 = vmatpush.msra.mxu0 %v3987
      %4455 = vmatpush.msra.mxu0 %v3983
      %4456 = vmatpush.msra.mxu0 %v3979
      %4457 = vmatpush.msra.mxu0 %v3975
      %4458 = vmatpush.msra.mxu0 %v3971
      %4459 = vmatpush.msra.mxu0 %v3967
      %4460 = vmatpush.msra.mxu0 %v3963
      %4461 = vmatpush.msra.mxu0 %v3959
      %4462 = vmatmul.f32.gmra.mxu0 %v4104
      %v4463 = vpop.f32.mrf.mxu0
      %v4464 = vadd.f32 %v4441, %v4463
      %4465 = vmatmul.f32.gmra.mxu0 %v4113
      %v4466 = vpop.f32.mrf.mxu0
      %v4467 = vadd.f32 %v4444, %v4466
      %4468 = vdwg.mxu0
      %4469 = vmatpush.msra.mxu0 %v4083
      %4470 = vmatpush.msra.mxu0 %v4079
      %4471 = vmatpush.msra.mxu0 %v4075
      %4472 = vmatpush.msra.mxu0 %v4071
      %4473 = vmatpush.msra.mxu0 %v4067
      %4474 = vmatpush.msra.mxu0 %v4063
      %4475 = vmatpush.msra.mxu0 %v4059
      %4476 = vmatpush.msra.mxu0 %v4055
      %4477 = vmatpush.msra.mxu0 %v4051
      %4478 = vmatpush.msra.mxu0 %v4047
      %4479 = vmatpush.msra.mxu0 %v4043
      %4480 = vmatpush.msra.mxu0 %v4039
      %4481 = vmatpush.msra.mxu0 %v4035
      %4482 = vmatpush.msra.mxu0 %v4031
      %4483 = vmatpush.msra.mxu0 %v4027
      %4484 = vmatpush.msra.mxu0 %v4023
      %4485 = vmatmul.f32.gmra.mxu0 %v4107
      %v4486 = vpop.f32.mrf.mxu0
      %v4487 = vadd.f32 %v4464, %v4486
      %4488 = vmatmul.f32.gmra.mxu0 %v4115
      %v4489 = vpop.f32.mrf.mxu0
      %v4490 = vadd.f32 %v4467, %v4489
      %4491 = vdwg.mxu0
      %4492 = vmatpush.msra.mxu0 %v3631
      %4493 = vmatpush.msra.mxu0 %v3627
      %4494 = vmatpush.msra.mxu0 %v3623
      %4495 = vmatpush.msra.mxu0 %v3619
      %4496 = vmatpush.msra.mxu0 %v3615
      %4497 = vmatpush.msra.mxu0 %v3611
      %4498 = vmatpush.msra.mxu0 %v3607
      %4499 = vmatpush.msra.mxu0 %v3603
      %4500 = vmatpush.msra.mxu0 %v3599
      %4501 = vmatpush.msra.mxu0 %v3595
      %4502 = vmatpush.msra.mxu0 %v3591
      %4503 = vmatpush.msra.mxu0 %v3587
      %4504 = vmatpush.msra.mxu0 %v3583
      %4505 = vmatpush.msra.mxu0 %v3579
      %4506 = vmatpush.msra.mxu0 %v3575
      %4507 = vmatpush.msra.mxu0 %v3571
      %4508 = vmatmul.f32.gmra.mxu0 %v3559
      %v4509 = vpop.f32.mrf.mxu0
      %v4510 = vadd.f32 %v4211, %v4509
      %4511 = vmatmul.f32.gmra.mxu0 %v3563
      %v4512 = vpop.f32.mrf.mxu0
      %v4513 = vadd.f32 %v4214, %v4512
      %4514 = vdwg.mxu0
      %4515 = vmatpush.msra.mxu0 %v3695
      %4516 = vmatpush.msra.mxu0 %v3691
      %4517 = vmatpush.msra.mxu0 %v3687
      %4518 = vmatpush.msra.mxu0 %v3683
      %4519 = vmatpush.msra.mxu0 %v3679
      %4520 = vmatpush.msra.mxu0 %v3675
      %4521 = vmatpush.msra.mxu0 %v3671
      %4522 = vmatpush.msra.mxu0 %v3667
      %4523 = vmatpush.msra.mxu0 %v3663
      %4524 = vmatpush.msra.mxu0 %v3659
      %4525 = vmatpush.msra.mxu0 %v3655
      %4526 = vmatpush.msra.mxu0 %v3651
      %4527 = vmatpush.msra.mxu0 %v3647
      %4528 = vmatpush.msra.mxu0 %v3643
      %4529 = vmatpush.msra.mxu0 %v3639
      %4530 = vmatpush.msra.mxu0 %v3635
      %4531 = vmatmul.f32.gmra.mxu0 %v3560
      %v4532 = vpop.f32.mrf.mxu0
      %v4533 = vadd.f32 %v4510, %v4532
      %4534 = vmatmul.f32.gmra.mxu0 %v3564
      %v4535 = vpop.f32.mrf.mxu0
      %v4536 = vadd.f32 %v4513, %v4535
      %4537 = vdwg.mxu0
      %4538 = vmatpush.msra.mxu0 %v3759
      %4539 = vmatpush.msra.mxu0 %v3755
      %4540 = vmatpush.msra.mxu0 %v3751
      %4541 = vmatpush.msra.mxu0 %v3747
      %4542 = vmatpush.msra.mxu0 %v3743
      %4543 = vmatpush.msra.mxu0 %v3739
      %4544 = vmatpush.msra.mxu0 %v3735
      %4545 = vmatpush.msra.mxu0 %v3731
      %4546 = vmatpush.msra.mxu0 %v3727
      %4547 = vmatpush.msra.mxu0 %v3723
      %4548 = vmatpush.msra.mxu0 %v3719
      %4549 = vmatpush.msra.mxu0 %v3715
      %4550 = vmatpush.msra.mxu0 %v3711
      %4551 = vmatpush.msra.mxu0 %v3707
      %4552 = vmatpush.msra.mxu0 %v3703
      %4553 = vmatpush.msra.mxu0 %v3699
      %4554 = vmatmul.f32.gmra.mxu0 %v3561
      %v4555 = vpop.f32.mrf.mxu0
      %v4556 = vadd.f32 %v4533, %v4555
      %4557 = vmatmul.f32.gmra.mxu0 %v3565
      %v4558 = vpop.f32.mrf.mxu0
      %v4559 = vadd.f32 %v4536, %v4558
      %4560 = vdwg.mxu0
      %4561 = vmatpush.msra.mxu0 %v3823
      %4562 = vmatpush.msra.mxu0 %v3819
      %4563 = vmatpush.msra.mxu0 %v3815
      %4564 = vmatpush.msra.mxu0 %v3811
      %4565 = vmatpush.msra.mxu0 %v3807
      %4566 = vmatpush.msra.mxu0 %v3803
      %4567 = vmatpush.msra.mxu0 %v3799
      %4568 = vmatpush.msra.mxu0 %v3795
      %4569 = vmatpush.msra.mxu0 %v3791
      %4570 = vmatpush.msra.mxu0 %v3787
      %4571 = vmatpush.msra.mxu0 %v3783
      %4572 = vmatpush.msra.mxu0 %v3779
      %4573 = vmatpush.msra.mxu0 %v3775
      %4574 = vmatpush.msra.mxu0 %v3771
      %4575 = vmatpush.msra.mxu0 %v3767
      %4576 = vmatpush.msra.mxu0 %v3763
      %4577 = vmatmul.f32.gmra.mxu0 %v3562
      %v4578 = vpop.f32.mrf.mxu0
      %v4579 = vadd.f32 %v4556, %v4578
      %4580 = vmatmul.f32.gmra.mxu0 %v3566
      %v4581 = vpop.f32.mrf.mxu0
      %v4582 = vadd.f32 %v4559, %v4581
      %4583 = vdwg.mxu0
      %4584 = vmatpush.msra.mxu0 %v3632
      %4585 = vmatpush.msra.mxu0 %v3628
      %4586 = vmatpush.msra.mxu0 %v3624
      %4587 = vmatpush.msra.mxu0 %v3620
      %4588 = vmatpush.msra.mxu0 %v3616
      %4589 = vmatpush.msra.mxu0 %v3612
      %4590 = vmatpush.msra.mxu0 %v3608
      %4591 = vmatpush.msra.mxu0 %v3604
      %4592 = vmatpush.msra.mxu0 %v3600
      %4593 = vmatpush.msra.mxu0 %v3596
      %4594 = vmatpush.msra.mxu0 %v3592
      %4595 = vmatpush.msra.mxu0 %v3588
      %4596 = vmatpush.msra.mxu0 %v3584
      %4597 = vmatpush.msra.mxu0 %v3580
      %4598 = vmatpush.msra.mxu0 %v3576
      %4599 = vmatpush.msra.mxu0 %v3572
      %4600 = vmatmul.f32.gmra.mxu0 %v3559
      %v4601 = vpop.f32.mrf.mxu0
      %v4602 = vadd.f32 %v4303, %v4601
      %4603 = vmatmul.f32.gmra.mxu0 %v3563
      %v4604 = vpop.f32.mrf.mxu0
      %v4605 = vadd.f32 %v4306, %v4604
      %4606 = vdwg.mxu0
      %4607 = vmatpush.msra.mxu0 %v3696
      %4608 = vmatpush.msra.mxu0 %v3692
      %4609 = vmatpush.msra.mxu0 %v3688
      %4610 = vmatpush.msra.mxu0 %v3684
      %4611 = vmatpush.msra.mxu0 %v3680
      %4612 = vmatpush.msra.mxu0 %v3676
      %4613 = vmatpush.msra.mxu0 %v3672
      %4614 = vmatpush.msra.mxu0 %v3668
      %4615 = vmatpush.msra.mxu0 %v3664
      %4616 = vmatpush.msra.mxu0 %v3660
      %4617 = vmatpush.msra.mxu0 %v3656
      %4618 = vmatpush.msra.mxu0 %v3652
      %4619 = vmatpush.msra.mxu0 %v3648
      %4620 = vmatpush.msra.mxu0 %v3644
      %4621 = vmatpush.msra.mxu0 %v3640
      %4622 = vmatpush.msra.mxu0 %v3636
      %4623 = vmatmul.f32.gmra.mxu0 %v3560
      %v4624 = vpop.f32.mrf.mxu0
      %v4625 = vadd.f32 %v4602, %v4624
      %4626 = vmatmul.f32.gmra.mxu0 %v3564
      %v4627 = vpop.f32.mrf.mxu0
      %v4628 = vadd.f32 %v4605, %v4627
      %4629 = vdwg.mxu0
      %4630 = vmatpush.msra.mxu0 %v3760
      %4631 = vmatpush.msra.mxu0 %v3756
      %4632 = vmatpush.msra.mxu0 %v3752
      %4633 = vmatpush.msra.mxu0 %v3748
      %4634 = vmatpush.msra.mxu0 %v3744
      %4635 = vmatpush.msra.mxu0 %v3740
      %4636 = vmatpush.msra.mxu0 %v3736
      %4637 = vmatpush.msra.mxu0 %v3732
      %4638 = vmatpush.msra.mxu0 %v3728
      %4639 = vmatpush.msra.mxu0 %v3724
      %4640 = vmatpush.msra.mxu0 %v3720
      %4641 = vmatpush.msra.mxu0 %v3716
      %4642 = vmatpush.msra.mxu0 %v3712
      %4643 = vmatpush.msra.mxu0 %v3708
      %4644 = vmatpush.msra.mxu0 %v3704
      %4645 = vmatpush.msra.mxu0 %v3700
      %4646 = vmatmul.f32.gmra.mxu0 %v3561
      %v4647 = vpop.f32.mrf.mxu0
      %v4648 = vadd.f32 %v4625, %v4647
      %4649 = vmatmul.f32.gmra.mxu0 %v3565
      %v4650 = vpop.f32.mrf.mxu0
      %v4651 = vadd.f32 %v4628, %v4650
      %4652 = vdwg.mxu0
      %4653 = vmatpush.msra.mxu0 %v3824
      %4654 = vmatpush.msra.mxu0 %v3820
      %4655 = vmatpush.msra.mxu0 %v3816
      %4656 = vmatpush.msra.mxu0 %v3812
      %4657 = vmatpush.msra.mxu0 %v3808
      %4658 = vmatpush.msra.mxu0 %v3804
      %4659 = vmatpush.msra.mxu0 %v3800
      %4660 = vmatpush.msra.mxu0 %v3796
      %4661 = vmatpush.msra.mxu0 %v3792
      %4662 = vmatpush.msra.mxu0 %v3788
      %4663 = vmatpush.msra.mxu0 %v3784
      %4664 = vmatpush.msra.mxu0 %v3780
      %4665 = vmatpush.msra.mxu0 %v3776
      %4666 = vmatpush.msra.mxu0 %v3772
      %4667 = vmatpush.msra.mxu0 %v3768
      %4668 = vmatpush.msra.mxu0 %v3764
      %4669 = vmatmul.f32.gmra.mxu0 %v3562
      %v4670 = vpop.f32.mrf.mxu0
      %v4671 = vadd.f32 %v4648, %v4670
      %4672 = vmatmul.f32.gmra.mxu0 %v3566
      %v4673 = vpop.f32.mrf.mxu0
      %v4674 = vadd.f32 %v4651, %v4673
      %4675 = vdwg.mxu0
      %4676 = vmatpush.msra.mxu0 %v3633
      %4677 = vmatpush.msra.mxu0 %v3629
      %4678 = vmatpush.msra.mxu0 %v3625
      %4679 = vmatpush.msra.mxu0 %v3621
      %4680 = vmatpush.msra.mxu0 %v3617
      %4681 = vmatpush.msra.mxu0 %v3613
      %4682 = vmatpush.msra.mxu0 %v3609
      %4683 = vmatpush.msra.mxu0 %v3605
      %4684 = vmatpush.msra.mxu0 %v3601
      %4685 = vmatpush.msra.mxu0 %v3597
      %4686 = vmatpush.msra.mxu0 %v3593
      %4687 = vmatpush.msra.mxu0 %v3589
      %4688 = vmatpush.msra.mxu0 %v3585
      %4689 = vmatpush.msra.mxu0 %v3581
      %4690 = vmatpush.msra.mxu0 %v3577
      %4691 = vmatpush.msra.mxu0 %v3573
      %4692 = vmatmul.f32.gmra.mxu0 %v3559
      %v4693 = vpop.f32.mrf.mxu0
      %v4694 = vadd.f32 %v4395, %v4693
      %4695 = vmatmul.f32.gmra.mxu0 %v3563
      %v4696 = vpop.f32.mrf.mxu0
      %v4697 = vadd.f32 %v4398, %v4696
      %4698 = vdwg.mxu0
      %4699 = vmatpush.msra.mxu0 %v3697
      %4700 = vmatpush.msra.mxu0 %v3693
      %4701 = vmatpush.msra.mxu0 %v3689
      %4702 = vmatpush.msra.mxu0 %v3685
      %4703 = vmatpush.msra.mxu0 %v3681
      %4704 = vmatpush.msra.mxu0 %v3677
      %4705 = vmatpush.msra.mxu0 %v3673
      %4706 = vmatpush.msra.mxu0 %v3669
      %4707 = vmatpush.msra.mxu0 %v3665
      %4708 = vmatpush.msra.mxu0 %v3661
      %4709 = vmatpush.msra.mxu0 %v3657
      %4710 = vmatpush.msra.mxu0 %v3653
      %4711 = vmatpush.msra.mxu0 %v3649
      %4712 = vmatpush.msra.mxu0 %v3645
      %4713 = vmatpush.msra.mxu0 %v3641
      %4714 = vmatpush.msra.mxu0 %v3637
      %4715 = vmatmul.f32.gmra.mxu0 %v3560
      %v4716 = vpop.f32.mrf.mxu0
      %v4717 = vadd.f32 %v4694, %v4716
      %4718 = vmatmul.f32.gmra.mxu0 %v3564
      %v4719 = vpop.f32.mrf.mxu0
      %v4720 = vadd.f32 %v4697, %v4719
      %4721 = vdwg.mxu0
      %4722 = vmatpush.msra.mxu0 %v3761
      %4723 = vmatpush.msra.mxu0 %v3757
      %4724 = vmatpush.msra.mxu0 %v3753
      %4725 = vmatpush.msra.mxu0 %v3749
      %4726 = vmatpush.msra.mxu0 %v3745
      %4727 = vmatpush.msra.mxu0 %v3741
      %4728 = vmatpush.msra.mxu0 %v3737
      %4729 = vmatpush.msra.mxu0 %v3733
      %4730 = vmatpush.msra.mxu0 %v3729
      %4731 = vmatpush.msra.mxu0 %v3725
      %4732 = vmatpush.msra.mxu0 %v3721
      %4733 = vmatpush.msra.mxu0 %v3717
      %4734 = vmatpush.msra.mxu0 %v3713
      %4735 = vmatpush.msra.mxu0 %v3709
      %4736 = vmatpush.msra.mxu0 %v3705
      %4737 = vmatpush.msra.mxu0 %v3701
      %4738 = vmatmul.f32.gmra.mxu0 %v3561
      %v4739 = vpop.f32.mrf.mxu0
      %v4740 = vadd.f32 %v4717, %v4739
      %4741 = vmatmul.f32.gmra.mxu0 %v3565
      %v4742 = vpop.f32.mrf.mxu0
      %v4743 = vadd.f32 %v4720, %v4742
      %4744 = vdwg.mxu0
      %4745 = vmatpush.msra.mxu0 %v3825
      %4746 = vmatpush.msra.mxu0 %v3821
      %4747 = vmatpush.msra.mxu0 %v3817
      %4748 = vmatpush.msra.mxu0 %v3813
      %4749 = vmatpush.msra.mxu0 %v3809
      %4750 = vmatpush.msra.mxu0 %v3805
      %4751 = vmatpush.msra.mxu0 %v3801
      %4752 = vmatpush.msra.mxu0 %v3797
      %4753 = vmatpush.msra.mxu0 %v3793
      %4754 = vmatpush.msra.mxu0 %v3789
      %4755 = vmatpush.msra.mxu0 %v3785
      %4756 = vmatpush.msra.mxu0 %v3781
      %4757 = vmatpush.msra.mxu0 %v3777
      %4758 = vmatpush.msra.mxu0 %v3773
      %4759 = vmatpush.msra.mxu0 %v3769
      %4760 = vmatpush.msra.mxu0 %v3765
      %4761 = vmatmul.f32.gmra.mxu0 %v3562
      %v4762 = vpop.f32.mrf.mxu0
      %v4763 = vadd.f32 %v4740, %v4762
      %4764 = vmatmul.f32.gmra.mxu0 %v3566
      %v4765 = vpop.f32.mrf.mxu0
      %v4766 = vadd.f32 %v4743, %v4765
      %4767 = vdwg.mxu0
      %4768 = vmatpush.msra.mxu0 %v3634
      %4769 = vmatpush.msra.mxu0 %v3630
      %4770 = vmatpush.msra.mxu0 %v3626
      %4771 = vmatpush.msra.mxu0 %v3622
      %4772 = vmatpush.msra.mxu0 %v3618
      %4773 = vmatpush.msra.mxu0 %v3614
      %4774 = vmatpush.msra.mxu0 %v3610
      %4775 = vmatpush.msra.mxu0 %v3606
      %4776 = vmatpush.msra.mxu0 %v3602
      %4777 = vmatpush.msra.mxu0 %v3598
      %4778 = vmatpush.msra.mxu0 %v3594
      %4779 = vmatpush.msra.mxu0 %v3590
      %4780 = vmatpush.msra.mxu0 %v3586
      %4781 = vmatpush.msra.mxu0 %v3582
      %4782 = vmatpush.msra.mxu0 %v3578
      %4783 = vmatpush.msra.mxu0 %v3574
      %4784 = vmatmul.f32.gmra.mxu0 %v3559
      %v4785 = vpop.f32.mrf.mxu0
      %v4786 = vadd.f32 %v4487, %v4785
      %4787 = vmatmul.f32.gmra.mxu0 %v3563
      %v4788 = vpop.f32.mrf.mxu0
      %v4789 = vadd.f32 %v4490, %v4788
      %4790 = vdwg.mxu0
      %4791 = vmatpush.msra.mxu0 %v3698
      %4792 = vmatpush.msra.mxu0 %v3694
      %4793 = vmatpush.msra.mxu0 %v3690
      %4794 = vmatpush.msra.mxu0 %v3686
      %4795 = vmatpush.msra.mxu0 %v3682
      %4796 = vmatpush.msra.mxu0 %v3678
      %4797 = vmatpush.msra.mxu0 %v3674
      %4798 = vmatpush.msra.mxu0 %v3670
      %4799 = vmatpush.msra.mxu0 %v3666
      %4800 = vmatpush.msra.mxu0 %v3662
      %4801 = vmatpush.msra.mxu0 %v3658
      %4802 = vmatpush.msra.mxu0 %v3654
      %4803 = vmatpush.msra.mxu0 %v3650
      %4804 = vmatpush.msra.mxu0 %v3646
      %4805 = vmatpush.msra.mxu0 %v3642
      %4806 = vmatpush.msra.mxu0 %v3638
      %4807 = vmatmul.f32.gmra.mxu0 %v3560
      %v4808 = vpop.f32.mrf.mxu0
      %v4809 = vadd.f32 %v4786, %v4808
      %4810 = vmatmul.f32.gmra.mxu0 %v3564
      %v4811 = vpop.f32.mrf.mxu0
      %v4812 = vadd.f32 %v4789, %v4811
      %4813 = vdwg.mxu0
      %4814 = vmatpush.msra.mxu0 %v3762
      %4815 = vmatpush.msra.mxu0 %v3758
      %4816 = vmatpush.msra.mxu0 %v3754
      %4817 = vmatpush.msra.mxu0 %v3750
      %4818 = vmatpush.msra.mxu0 %v3746
      %4819 = vmatpush.msra.mxu0 %v3742
      %4820 = vmatpush.msra.mxu0 %v3738
      %4821 = vmatpush.msra.mxu0 %v3734
      %4822 = vmatpush.msra.mxu0 %v3730
      %4823 = vmatpush.msra.mxu0 %v3726
      %4824 = vmatpush.msra.mxu0 %v3722
      %4825 = vmatpush.msra.mxu0 %v3718
      %4826 = vmatpush.msra.mxu0 %v3714
      %4827 = vmatpush.msra.mxu0 %v3710
      %4828 = vmatpush.msra.mxu0 %v3706
      %4829 = vmatpush.msra.mxu0 %v3702
      %4830 = vmatmul.f32.gmra.mxu0 %v3561
      %v4831 = vpop.f32.mrf.mxu0
      %v4832 = vadd.f32 %v4809, %v4831
      %4833 = vmatmul.f32.gmra.mxu0 %v3565
      %v4834 = vpop.f32.mrf.mxu0
      %v4835 = vadd.f32 %v4812, %v4834
      %4836 = vdwg.mxu0
      %4837 = vmatpush.msra.mxu0 %v3826
      %4838 = vmatpush.msra.mxu0 %v3822
      %4839 = vmatpush.msra.mxu0 %v3818
      %4840 = vmatpush.msra.mxu0 %v3814
      %4841 = vmatpush.msra.mxu0 %v3810
      %4842 = vmatpush.msra.mxu0 %v3806
      %4843 = vmatpush.msra.mxu0 %v3802
      %4844 = vmatpush.msra.mxu0 %v3798
      %4845 = vmatpush.msra.mxu0 %v3794
      %4846 = vmatpush.msra.mxu0 %v3790
      %4847 = vmatpush.msra.mxu0 %v3786
      %4848 = vmatpush.msra.mxu0 %v3782
      %4849 = vmatpush.msra.mxu0 %v3778
      %4850 = vmatpush.msra.mxu0 %v3774
      %4851 = vmatpush.msra.mxu0 %v3770
      %4852 = vmatpush.msra.mxu0 %v3766
      %4853 = vmatmul.f32.gmra.mxu0 %v3562
      %v4854 = vpop.f32.mrf.mxu0
      %v4855 = vadd.f32 %v4832, %v4854
      %4856 = vmatmul.f32.gmra.mxu0 %v3566
      %v4857 = vpop.f32.mrf.mxu0
      %v4858 = vadd.f32 %v4835, %v4857
      %4859 = vdwg.mxu0
      %s4860 = scalar_lea.vmem %s6, 4096
      %v4861 = vld [vmem:[%s4860] sm:$0xff]
      %v4862 = vld [vmem:[%s4860 + $0x8] sm:$0xff]
      %v4863 = vld [vmem:[%s4860 + $0x10] sm:$0xff]
      %v4864 = vld [vmem:[%s4860 + $0x18] sm:$0xff]
      %v4865 = vld [vmem:[%s4860 + $0x20] sm:$0xff]
      %v4866 = vld [vmem:[%s4860 + $0x28] sm:$0xff]
      %v4867 = vld [vmem:[%s4860 + $0x30] sm:$0xff]
      %v4868 = vld [vmem:[%s4860 + $0x38] sm:$0xff]
      %v4869 = vld [vmem:[%s4860 + $0x40] sm:$0xff]
      %v4870 = vld [vmem:[%s4860 + $0x48] sm:$0xff]
      %v4871 = vld [vmem:[%s4860 + $0x50] sm:$0xff]
      %v4872 = vld [vmem:[%s4860 + $0x58] sm:$0xff]
      %v4873 = vld [vmem:[%s4860 + $0x60] sm:$0xff]
      %v4874 = vld [vmem:[%s4860 + $0x68] sm:$0xff]
      %v4875 = vld [vmem:[%s4860 + $0x70] sm:$0xff]
      %v4876 = vld [vmem:[%s4860 + $0x78] sm:$0xff]
      %v4877 = vld [vmem:[%s4860 + $0x80] sm:$0xff]
      %v4878 = vld [vmem:[%s4860 + $0x88] sm:$0xff]
      %v4879 = vld [vmem:[%s4860 + $0x90] sm:$0xff]
      %v4880 = vld [vmem:[%s4860 + $0x98] sm:$0xff]
      %v4881 = vld [vmem:[%s4860 + $0xa0] sm:$0xff]
      %v4882 = vld [vmem:[%s4860 + $0xa8] sm:$0xff]
      %v4883 = vld [vmem:[%s4860 + $0xb0] sm:$0xff]
      %v4884 = vld [vmem:[%s4860 + $0xb8] sm:$0xff]
      %v4885 = vld [vmem:[%s4860 + $0xc0] sm:$0xff]
      %v4886 = vld [vmem:[%s4860 + $0xc8] sm:$0xff]
      %v4887 = vld [vmem:[%s4860 + $0xd0] sm:$0xff]
      %v4888 = vld [vmem:[%s4860 + $0xd8] sm:$0xff]
      %v4889 = vld [vmem:[%s4860 + $0xe0] sm:$0xff]
      %v4890 = vld [vmem:[%s4860 + $0xe8] sm:$0xff]
      %v4891 = vld [vmem:[%s4860 + $0xf0] sm:$0xff]
      %v4892 = vld [vmem:[%s4860 + $0xf8] sm:$0xff]
      %v4893 = vld [vmem:[%s4860 + $0x100] sm:$0xff]
      %v4894 = vld [vmem:[%s4860 + $0x108] sm:$0xff]
      %v4895 = vld [vmem:[%s4860 + $0x110] sm:$0xff]
      %v4896 = vld [vmem:[%s4860 + $0x118] sm:$0xff]
      %v4897 = vld [vmem:[%s4860 + $0x120] sm:$0xff]
      %v4898 = vld [vmem:[%s4860 + $0x128] sm:$0xff]
      %v4899 = vld [vmem:[%s4860 + $0x130] sm:$0xff]
      %v4900 = vld [vmem:[%s4860 + $0x138] sm:$0xff]
      %v4901 = vld [vmem:[%s4860 + $0x140] sm:$0xff]
      %v4902 = vld [vmem:[%s4860 + $0x148] sm:$0xff]
      %v4903 = vld [vmem:[%s4860 + $0x150] sm:$0xff]
      %v4904 = vld [vmem:[%s4860 + $0x158] sm:$0xff]
      %v4905 = vld [vmem:[%s4860 + $0x160] sm:$0xff]
      %v4906 = vld [vmem:[%s4860 + $0x168] sm:$0xff]
      %v4907 = vld [vmem:[%s4860 + $0x170] sm:$0xff]
      %v4908 = vld [vmem:[%s4860 + $0x178] sm:$0xff]
      %v4909 = vld [vmem:[%s4860 + $0x180] sm:$0xff]
      %v4910 = vld [vmem:[%s4860 + $0x188] sm:$0xff]
      %v4911 = vld [vmem:[%s4860 + $0x190] sm:$0xff]
      %v4912 = vld [vmem:[%s4860 + $0x198] sm:$0xff]
      %v4913 = vld [vmem:[%s4860 + $0x1a0] sm:$0xff]
      %v4914 = vld [vmem:[%s4860 + $0x1a8] sm:$0xff]
      %v4915 = vld [vmem:[%s4860 + $0x1b0] sm:$0xff]
      %v4916 = vld [vmem:[%s4860 + $0x1b8] sm:$0xff]
      %v4917 = vld [vmem:[%s4860 + $0x1c0] sm:$0xff]
      %v4918 = vld [vmem:[%s4860 + $0x1c8] sm:$0xff]
      %v4919 = vld [vmem:[%s4860 + $0x1d0] sm:$0xff]
      %v4920 = vld [vmem:[%s4860 + $0x1d8] sm:$0xff]
      %v4921 = vld [vmem:[%s4860 + $0x1e0] sm:$0xff]
      %v4922 = vld [vmem:[%s4860 + $0x1e8] sm:$0xff]
      %v4923 = vld [vmem:[%s4860 + $0x1f0] sm:$0xff]
      %v4924 = vld [vmem:[%s4860 + $0x1f8] sm:$0xff]
      %v4925 = vld [vmem:[%s4860 + $0x200] sm:$0xff]
      %v4926 = vld [vmem:[%s4860 + $0x208] sm:$0xff]
      %v4927 = vld [vmem:[%s4860 + $0x210] sm:$0xff]
      %v4928 = vld [vmem:[%s4860 + $0x218] sm:$0xff]
      %v4929 = vld [vmem:[%s4860 + $0x220] sm:$0xff]
      %v4930 = vld [vmem:[%s4860 + $0x228] sm:$0xff]
      %v4931 = vld [vmem:[%s4860 + $0x230] sm:$0xff]
      %v4932 = vld [vmem:[%s4860 + $0x238] sm:$0xff]
      %v4933 = vld [vmem:[%s4860 + $0x240] sm:$0xff]
      %v4934 = vld [vmem:[%s4860 + $0x248] sm:$0xff]
      %v4935 = vld [vmem:[%s4860 + $0x250] sm:$0xff]
      %v4936 = vld [vmem:[%s4860 + $0x258] sm:$0xff]
      %v4937 = vld [vmem:[%s4860 + $0x260] sm:$0xff]
      %v4938 = vld [vmem:[%s4860 + $0x268] sm:$0xff]
      %v4939 = vld [vmem:[%s4860 + $0x270] sm:$0xff]
      %v4940 = vld [vmem:[%s4860 + $0x278] sm:$0xff]
      %v4941 = vld [vmem:[%s4860 + $0x280] sm:$0xff]
      %v4942 = vld [vmem:[%s4860 + $0x288] sm:$0xff]
      %v4943 = vld [vmem:[%s4860 + $0x290] sm:$0xff]
      %v4944 = vld [vmem:[%s4860 + $0x298] sm:$0xff]
      %v4945 = vld [vmem:[%s4860 + $0x2a0] sm:$0xff]
      %v4946 = vld [vmem:[%s4860 + $0x2a8] sm:$0xff]
      %v4947 = vld [vmem:[%s4860 + $0x2b0] sm:$0xff]
      %v4948 = vld [vmem:[%s4860 + $0x2b8] sm:$0xff]
      %v4949 = vld [vmem:[%s4860 + $0x2c0] sm:$0xff]
      %v4950 = vld [vmem:[%s4860 + $0x2c8] sm:$0xff]
      %v4951 = vld [vmem:[%s4860 + $0x2d0] sm:$0xff]
      %v4952 = vld [vmem:[%s4860 + $0x2d8] sm:$0xff]
      %v4953 = vld [vmem:[%s4860 + $0x2e0] sm:$0xff]
      %v4954 = vld [vmem:[%s4860 + $0x2e8] sm:$0xff]
      %v4955 = vld [vmem:[%s4860 + $0x2f0] sm:$0xff]
      %v4956 = vld [vmem:[%s4860 + $0x2f8] sm:$0xff]
      %v4957 = vld [vmem:[%s4860 + $0x300] sm:$0xff]
      %v4958 = vld [vmem:[%s4860 + $0x308] sm:$0xff]
      %v4959 = vld [vmem:[%s4860 + $0x310] sm:$0xff]
      %v4960 = vld [vmem:[%s4860 + $0x318] sm:$0xff]
      %v4961 = vld [vmem:[%s4860 + $0x320] sm:$0xff]
      %v4962 = vld [vmem:[%s4860 + $0x328] sm:$0xff]
      %v4963 = vld [vmem:[%s4860 + $0x330] sm:$0xff]
      %v4964 = vld [vmem:[%s4860 + $0x338] sm:$0xff]
      %v4965 = vld [vmem:[%s4860 + $0x340] sm:$0xff]
      %v4966 = vld [vmem:[%s4860 + $0x348] sm:$0xff]
      %v4967 = vld [vmem:[%s4860 + $0x350] sm:$0xff]
      %v4968 = vld [vmem:[%s4860 + $0x358] sm:$0xff]
      %v4969 = vld [vmem:[%s4860 + $0x360] sm:$0xff]
      %v4970 = vld [vmem:[%s4860 + $0x368] sm:$0xff]
      %v4971 = vld [vmem:[%s4860 + $0x370] sm:$0xff]
      %v4972 = vld [vmem:[%s4860 + $0x378] sm:$0xff]
      %v4973 = vld [vmem:[%s4860 + $0x380] sm:$0xff]
      %v4974 = vld [vmem:[%s4860 + $0x388] sm:$0xff]
      %v4975 = vld [vmem:[%s4860 + $0x390] sm:$0xff]
      %v4976 = vld [vmem:[%s4860 + $0x398] sm:$0xff]
      %v4977 = vld [vmem:[%s4860 + $0x3a0] sm:$0xff]
      %v4978 = vld [vmem:[%s4860 + $0x3a8] sm:$0xff]
      %v4979 = vld [vmem:[%s4860 + $0x3b0] sm:$0xff]
      %v4980 = vld [vmem:[%s4860 + $0x3b8] sm:$0xff]
      %v4981 = vld [vmem:[%s4860 + $0x3c0] sm:$0xff]
      %v4982 = vld [vmem:[%s4860 + $0x3c8] sm:$0xff]
      %v4983 = vld [vmem:[%s4860 + $0x3d0] sm:$0xff]
      %v4984 = vld [vmem:[%s4860 + $0x3d8] sm:$0xff]
      %v4985 = vld [vmem:[%s4860 + $0x3e0] sm:$0xff]
      %v4986 = vld [vmem:[%s4860 + $0x3e8] sm:$0xff]
      %v4987 = vld [vmem:[%s4860 + $0x3f0] sm:$0xff]
      %v4988 = vld [vmem:[%s4860 + $0x3f8] sm:$0xff]
      %v4989 = vld [vmem:[%s4860 + $0x400] sm:$0xff]
      %v4990 = vld [vmem:[%s4860 + $0x408] sm:$0xff]
      %v4991 = vld [vmem:[%s4860 + $0x410] sm:$0xff]
      %v4992 = vld [vmem:[%s4860 + $0x418] sm:$0xff]
      %v4993 = vld [vmem:[%s4860 + $0x420] sm:$0xff]
      %v4994 = vld [vmem:[%s4860 + $0x428] sm:$0xff]
      %v4995 = vld [vmem:[%s4860 + $0x430] sm:$0xff]
      %v4996 = vld [vmem:[%s4860 + $0x438] sm:$0xff]
      %v4997 = vld [vmem:[%s4860 + $0x440] sm:$0xff]
      %v4998 = vld [vmem:[%s4860 + $0x448] sm:$0xff]
      %v4999 = vld [vmem:[%s4860 + $0x450] sm:$0xff]
      %v5000 = vld [vmem:[%s4860 + $0x458] sm:$0xff]
      %v5001 = vld [vmem:[%s4860 + $0x460] sm:$0xff]
      %v5002 = vld [vmem:[%s4860 + $0x468] sm:$0xff]
      %v5003 = vld [vmem:[%s4860 + $0x470] sm:$0xff]
      %v5004 = vld [vmem:[%s4860 + $0x478] sm:$0xff]
      %v5005 = vld [vmem:[%s4860 + $0x480] sm:$0xff]
      %v5006 = vld [vmem:[%s4860 + $0x488] sm:$0xff]
      %v5007 = vld [vmem:[%s4860 + $0x490] sm:$0xff]
      %v5008 = vld [vmem:[%s4860 + $0x498] sm:$0xff]
      %v5009 = vld [vmem:[%s4860 + $0x4a0] sm:$0xff]
      %v5010 = vld [vmem:[%s4860 + $0x4a8] sm:$0xff]
      %v5011 = vld [vmem:[%s4860 + $0x4b0] sm:$0xff]
      %v5012 = vld [vmem:[%s4860 + $0x4b8] sm:$0xff]
      %v5013 = vld [vmem:[%s4860 + $0x4c0] sm:$0xff]
      %v5014 = vld [vmem:[%s4860 + $0x4c8] sm:$0xff]
      %v5015 = vld [vmem:[%s4860 + $0x4d0] sm:$0xff]
      %v5016 = vld [vmem:[%s4860 + $0x4d8] sm:$0xff]
      %v5017 = vld [vmem:[%s4860 + $0x4e0] sm:$0xff]
      %v5018 = vld [vmem:[%s4860 + $0x4e8] sm:$0xff]
      %v5019 = vld [vmem:[%s4860 + $0x4f0] sm:$0xff]
      %v5020 = vld [vmem:[%s4860 + $0x4f8] sm:$0xff]
      %v5021 = vld [vmem:[%s4860 + $0x500] sm:$0xff]
      %v5022 = vld [vmem:[%s4860 + $0x508] sm:$0xff]
      %v5023 = vld [vmem:[%s4860 + $0x510] sm:$0xff]
      %v5024 = vld [vmem:[%s4860 + $0x518] sm:$0xff]
      %v5025 = vld [vmem:[%s4860 + $0x520] sm:$0xff]
      %v5026 = vld [vmem:[%s4860 + $0x528] sm:$0xff]
      %v5027 = vld [vmem:[%s4860 + $0x530] sm:$0xff]
      %v5028 = vld [vmem:[%s4860 + $0x538] sm:$0xff]
      %v5029 = vld [vmem:[%s4860 + $0x540] sm:$0xff]
      %v5030 = vld [vmem:[%s4860 + $0x548] sm:$0xff]
      %v5031 = vld [vmem:[%s4860 + $0x550] sm:$0xff]
      %v5032 = vld [vmem:[%s4860 + $0x558] sm:$0xff]
      %v5033 = vld [vmem:[%s4860 + $0x560] sm:$0xff]
      %v5034 = vld [vmem:[%s4860 + $0x568] sm:$0xff]
      %v5035 = vld [vmem:[%s4860 + $0x570] sm:$0xff]
      %v5036 = vld [vmem:[%s4860 + $0x578] sm:$0xff]
      %v5037 = vld [vmem:[%s4860 + $0x580] sm:$0xff]
      %v5038 = vld [vmem:[%s4860 + $0x588] sm:$0xff]
      %v5039 = vld [vmem:[%s4860 + $0x590] sm:$0xff]
      %v5040 = vld [vmem:[%s4860 + $0x598] sm:$0xff]
      %v5041 = vld [vmem:[%s4860 + $0x5a0] sm:$0xff]
      %v5042 = vld [vmem:[%s4860 + $0x5a8] sm:$0xff]
      %v5043 = vld [vmem:[%s4860 + $0x5b0] sm:$0xff]
      %v5044 = vld [vmem:[%s4860 + $0x5b8] sm:$0xff]
      %v5045 = vld [vmem:[%s4860 + $0x5c0] sm:$0xff]
      %v5046 = vld [vmem:[%s4860 + $0x5c8] sm:$0xff]
      %v5047 = vld [vmem:[%s4860 + $0x5d0] sm:$0xff]
      %v5048 = vld [vmem:[%s4860 + $0x5d8] sm:$0xff]
      %v5049 = vld [vmem:[%s4860 + $0x5e0] sm:$0xff]
      %v5050 = vld [vmem:[%s4860 + $0x5e8] sm:$0xff]
      %v5051 = vld [vmem:[%s4860 + $0x5f0] sm:$0xff]
      %v5052 = vld [vmem:[%s4860 + $0x5f8] sm:$0xff]
      %v5053 = vld [vmem:[%s4860 + $0x600] sm:$0xff]
      %v5054 = vld [vmem:[%s4860 + $0x608] sm:$0xff]
      %v5055 = vld [vmem:[%s4860 + $0x610] sm:$0xff]
      %v5056 = vld [vmem:[%s4860 + $0x618] sm:$0xff]
      %v5057 = vld [vmem:[%s4860 + $0x620] sm:$0xff]
      %v5058 = vld [vmem:[%s4860 + $0x628] sm:$0xff]
      %v5059 = vld [vmem:[%s4860 + $0x630] sm:$0xff]
      %v5060 = vld [vmem:[%s4860 + $0x638] sm:$0xff]
      %v5061 = vld [vmem:[%s4860 + $0x640] sm:$0xff]
      %v5062 = vld [vmem:[%s4860 + $0x648] sm:$0xff]
      %v5063 = vld [vmem:[%s4860 + $0x650] sm:$0xff]
      %v5064 = vld [vmem:[%s4860 + $0x658] sm:$0xff]
      %v5065 = vld [vmem:[%s4860 + $0x660] sm:$0xff]
      %v5066 = vld [vmem:[%s4860 + $0x668] sm:$0xff]
      %v5067 = vld [vmem:[%s4860 + $0x670] sm:$0xff]
      %v5068 = vld [vmem:[%s4860 + $0x678] sm:$0xff]
      %v5069 = vld [vmem:[%s4860 + $0x680] sm:$0xff]
      %v5070 = vld [vmem:[%s4860 + $0x688] sm:$0xff]
      %v5071 = vld [vmem:[%s4860 + $0x690] sm:$0xff]
      %v5072 = vld [vmem:[%s4860 + $0x698] sm:$0xff]
      %v5073 = vld [vmem:[%s4860 + $0x6a0] sm:$0xff]
      %v5074 = vld [vmem:[%s4860 + $0x6a8] sm:$0xff]
      %v5075 = vld [vmem:[%s4860 + $0x6b0] sm:$0xff]
      %v5076 = vld [vmem:[%s4860 + $0x6b8] sm:$0xff]
      %v5077 = vld [vmem:[%s4860 + $0x6c0] sm:$0xff]
      %v5078 = vld [vmem:[%s4860 + $0x6c8] sm:$0xff]
      %v5079 = vld [vmem:[%s4860 + $0x6d0] sm:$0xff]
      %v5080 = vld [vmem:[%s4860 + $0x6d8] sm:$0xff]
      %v5081 = vld [vmem:[%s4860 + $0x6e0] sm:$0xff]
      %v5082 = vld [vmem:[%s4860 + $0x6e8] sm:$0xff]
      %v5083 = vld [vmem:[%s4860 + $0x6f0] sm:$0xff]
      %v5084 = vld [vmem:[%s4860 + $0x6f8] sm:$0xff]
      %v5085 = vld [vmem:[%s4860 + $0x700] sm:$0xff]
      %v5086 = vld [vmem:[%s4860 + $0x708] sm:$0xff]
      %v5087 = vld [vmem:[%s4860 + $0x710] sm:$0xff]
      %v5088 = vld [vmem:[%s4860 + $0x718] sm:$0xff]
      %v5089 = vld [vmem:[%s4860 + $0x720] sm:$0xff]
      %v5090 = vld [vmem:[%s4860 + $0x728] sm:$0xff]
      %v5091 = vld [vmem:[%s4860 + $0x730] sm:$0xff]
      %v5092 = vld [vmem:[%s4860 + $0x738] sm:$0xff]
      %v5093 = vld [vmem:[%s4860 + $0x740] sm:$0xff]
      %v5094 = vld [vmem:[%s4860 + $0x748] sm:$0xff]
      %v5095 = vld [vmem:[%s4860 + $0x750] sm:$0xff]
      %v5096 = vld [vmem:[%s4860 + $0x758] sm:$0xff]
      %v5097 = vld [vmem:[%s4860 + $0x760] sm:$0xff]
      %v5098 = vld [vmem:[%s4860 + $0x768] sm:$0xff]
      %v5099 = vld [vmem:[%s4860 + $0x770] sm:$0xff]
      %v5100 = vld [vmem:[%s4860 + $0x778] sm:$0xff]
      %v5101 = vld [vmem:[%s4860 + $0x780] sm:$0xff]
      %v5102 = vld [vmem:[%s4860 + $0x788] sm:$0xff]
      %v5103 = vld [vmem:[%s4860 + $0x790] sm:$0xff]
      %v5104 = vld [vmem:[%s4860 + $0x798] sm:$0xff]
      %v5105 = vld [vmem:[%s4860 + $0x7a0] sm:$0xff]
      %v5106 = vld [vmem:[%s4860 + $0x7a8] sm:$0xff]
      %v5107 = vld [vmem:[%s4860 + $0x7b0] sm:$0xff]
      %v5108 = vld [vmem:[%s4860 + $0x7b8] sm:$0xff]
      %v5109 = vld [vmem:[%s4860 + $0x7c0] sm:$0xff]
      %v5110 = vld [vmem:[%s4860 + $0x7c8] sm:$0xff]
      %v5111 = vld [vmem:[%s4860 + $0x7d0] sm:$0xff]
      %v5112 = vld [vmem:[%s4860 + $0x7d8] sm:$0xff]
      %v5113 = vld [vmem:[%s4860 + $0x7e0] sm:$0xff]
      %v5114 = vld [vmem:[%s4860 + $0x7e8] sm:$0xff]
      %v5115 = vld [vmem:[%s4860 + $0x7f0] sm:$0xff]
      %v5116 = vld [vmem:[%s4860 + $0x7f8] sm:$0xff]
      %v5117 = vrot.slane %v3559, 2
      %v5118 = vrot.slane %v3563, 2
      %v5119 = vsel %vm2008, %v5117, %v5118
      %v5120 = vrot.slane %v3560, 2
      %v5121 = vrot.slane %v3564, 2
      %v5122 = vsel %vm2008, %v5120, %v5121
      %v5123 = vrot.slane %v3561, 2
      %v5124 = vrot.slane %v3565, 2
      %v5125 = vsel %vm2008, %v5123, %v5124
      %v5126 = vrot.slane %v3562, 2
      %v5127 = vrot.slane %v3566, 2
      %v5128 = vsel %vm2008, %v5126, %v5127
      %v5129 = vrot.slane %v3567, 2
      %v5130 = vsel %vm2008, %v5118, %v5129
      %v5131 = vrot.slane %v3568, 2
      %v5132 = vsel %vm2008, %v5121, %v5131
      %v5133 = vrot.slane %v3569, 2
      %v5134 = vsel %vm2008, %v5124, %v5133
      %v5135 = vrot.slane %v3570, 2
      %v5136 = vsel %vm2008, %v5127, %v5135
      %5145 = vmatpush.msra.mxu0 %v4921
      %5146 = vmatpush.msra.mxu0 %v4917
      %5147 = vmatpush.msra.mxu0 %v4913
      %5148 = vmatpush.msra.mxu0 %v4909
      %5149 = vmatpush.msra.mxu0 %v4905
      %5150 = vmatpush.msra.mxu0 %v4901
      %5151 = vmatpush.msra.mxu0 %v4897
      %5152 = vmatpush.msra.mxu0 %v4893
      %5153 = vmatpush.msra.mxu0 %v4889
      %5154 = vmatpush.msra.mxu0 %v4885
      %5155 = vmatpush.msra.mxu0 %v4881
      %5156 = vmatpush.msra.mxu0 %v4877
      %5157 = vmatpush.msra.mxu0 %v4873
      %5158 = vmatpush.msra.mxu0 %v4869
      %5159 = vmatpush.msra.mxu0 %v4865
      %5160 = vmatpush.msra.mxu0 %v4861
      %5161 = vmatmul.f32.gmra.mxu0 %v5119
      %v5162 = vpop.f32.mrf.mxu0
      %v5163 = vadd.f32 0.0, %v5162
      %5164 = vmatmul.f32.gmra.mxu0 %v5130
      %v5165 = vpop.f32.mrf.mxu0
      %v5166 = vadd.f32 0.0, %v5165
      %5167 = vdwg.mxu0
      %5168 = vmatpush.msra.mxu0 %v4985
      %5169 = vmatpush.msra.mxu0 %v4981
      %5170 = vmatpush.msra.mxu0 %v4977
      %5171 = vmatpush.msra.mxu0 %v4973
      %5172 = vmatpush.msra.mxu0 %v4969
      %5173 = vmatpush.msra.mxu0 %v4965
      %5174 = vmatpush.msra.mxu0 %v4961
      %5175 = vmatpush.msra.mxu0 %v4957
      %5176 = vmatpush.msra.mxu0 %v4953
      %5177 = vmatpush.msra.mxu0 %v4949
      %5178 = vmatpush.msra.mxu0 %v4945
      %5179 = vmatpush.msra.mxu0 %v4941
      %5180 = vmatpush.msra.mxu0 %v4937
      %5181 = vmatpush.msra.mxu0 %v4933
      %5182 = vmatpush.msra.mxu0 %v4929
      %5183 = vmatpush.msra.mxu0 %v4925
      %5184 = vmatmul.f32.gmra.mxu0 %v5122
      %v5185 = vpop.f32.mrf.mxu0
      %v5186 = vadd.f32 %v5163, %v5185
      %5187 = vmatmul.f32.gmra.mxu0 %v5132
      %v5188 = vpop.f32.mrf.mxu0
      %v5189 = vadd.f32 %v5166, %v5188
      %5190 = vdwg.mxu0
      %5191 = vmatpush.msra.mxu0 %v5049
      %5192 = vmatpush.msra.mxu0 %v5045
      %5193 = vmatpush.msra.mxu0 %v5041
      %5194 = vmatpush.msra.mxu0 %v5037
      %5195 = vmatpush.msra.mxu0 %v5033
      %5196 = vmatpush.msra.mxu0 %v5029
      %5197 = vmatpush.msra.mxu0 %v5025
      %5198 = vmatpush.msra.mxu0 %v5021
      %5199 = vmatpush.msra.mxu0 %v5017
      %5200 = vmatpush.msra.mxu0 %v5013
      %5201 = vmatpush.msra.mxu0 %v5009
      %5202 = vmatpush.msra.mxu0 %v5005
      %5203 = vmatpush.msra.mxu0 %v5001
      %5204 = vmatpush.msra.mxu0 %v4997
      %5205 = vmatpush.msra.mxu0 %v4993
      %5206 = vmatpush.msra.mxu0 %v4989
      %5207 = vmatmul.f32.gmra.mxu0 %v5125
      %v5208 = vpop.f32.mrf.mxu0
      %v5209 = vadd.f32 %v5186, %v5208
      %5210 = vmatmul.f32.gmra.mxu0 %v5134
      %v5211 = vpop.f32.mrf.mxu0
      %v5212 = vadd.f32 %v5189, %v5211
      %5213 = vdwg.mxu0
      %5214 = vmatpush.msra.mxu0 %v5113
      %5215 = vmatpush.msra.mxu0 %v5109
      %5216 = vmatpush.msra.mxu0 %v5105
      %5217 = vmatpush.msra.mxu0 %v5101
      %5218 = vmatpush.msra.mxu0 %v5097
      %5219 = vmatpush.msra.mxu0 %v5093
      %5220 = vmatpush.msra.mxu0 %v5089
      %5221 = vmatpush.msra.mxu0 %v5085
      %5222 = vmatpush.msra.mxu0 %v5081
      %5223 = vmatpush.msra.mxu0 %v5077
      %5224 = vmatpush.msra.mxu0 %v5073
      %5225 = vmatpush.msra.mxu0 %v5069
      %5226 = vmatpush.msra.mxu0 %v5065
      %5227 = vmatpush.msra.mxu0 %v5061
      %5228 = vmatpush.msra.mxu0 %v5057
      %5229 = vmatpush.msra.mxu0 %v5053
      %5230 = vmatmul.f32.gmra.mxu0 %v5128
      %v5231 = vpop.f32.mrf.mxu0
      %v5232 = vadd.f32 %v5209, %v5231
      %5233 = vmatmul.f32.gmra.mxu0 %v5136
      %v5234 = vpop.f32.mrf.mxu0
      %v5235 = vadd.f32 %v5212, %v5234
      %5236 = vdwg.mxu0
      %5237 = vmatpush.msra.mxu0 %v4922
      %5238 = vmatpush.msra.mxu0 %v4918
      %5239 = vmatpush.msra.mxu0 %v4914
      %5240 = vmatpush.msra.mxu0 %v4910
      %5241 = vmatpush.msra.mxu0 %v4906
      %5242 = vmatpush.msra.mxu0 %v4902
      %5243 = vmatpush.msra.mxu0 %v4898
      %5244 = vmatpush.msra.mxu0 %v4894
      %5245 = vmatpush.msra.mxu0 %v4890
      %5246 = vmatpush.msra.mxu0 %v4886
      %5247 = vmatpush.msra.mxu0 %v4882
      %5248 = vmatpush.msra.mxu0 %v4878
      %5249 = vmatpush.msra.mxu0 %v4874
      %5250 = vmatpush.msra.mxu0 %v4870
      %5251 = vmatpush.msra.mxu0 %v4866
      %5252 = vmatpush.msra.mxu0 %v4862
      %5253 = vmatmul.f32.gmra.mxu0 %v5119
      %v5254 = vpop.f32.mrf.mxu0
      %v5255 = vadd.f32 0.0, %v5254
      %5256 = vmatmul.f32.gmra.mxu0 %v5130
      %v5257 = vpop.f32.mrf.mxu0
      %v5258 = vadd.f32 0.0, %v5257
      %5259 = vdwg.mxu0
      %5260 = vmatpush.msra.mxu0 %v4986
      %5261 = vmatpush.msra.mxu0 %v4982
      %5262 = vmatpush.msra.mxu0 %v4978
      %5263 = vmatpush.msra.mxu0 %v4974
      %5264 = vmatpush.msra.mxu0 %v4970
      %5265 = vmatpush.msra.mxu0 %v4966
      %5266 = vmatpush.msra.mxu0 %v4962
      %5267 = vmatpush.msra.mxu0 %v4958
      %5268 = vmatpush.msra.mxu0 %v4954
      %5269 = vmatpush.msra.mxu0 %v4950
      %5270 = vmatpush.msra.mxu0 %v4946
      %5271 = vmatpush.msra.mxu0 %v4942
      %5272 = vmatpush.msra.mxu0 %v4938
      %5273 = vmatpush.msra.mxu0 %v4934
      %5274 = vmatpush.msra.mxu0 %v4930
      %5275 = vmatpush.msra.mxu0 %v4926
      %5276 = vmatmul.f32.gmra.mxu0 %v5122
      %v5277 = vpop.f32.mrf.mxu0
      %v5278 = vadd.f32 %v5255, %v5277
      %5279 = vmatmul.f32.gmra.mxu0 %v5132
      %v5280 = vpop.f32.mrf.mxu0
      %v5281 = vadd.f32 %v5258, %v5280
      %5282 = vdwg.mxu0
      %5283 = vmatpush.msra.mxu0 %v5050
      %5284 = vmatpush.msra.mxu0 %v5046
      %5285 = vmatpush.msra.mxu0 %v5042
      %5286 = vmatpush.msra.mxu0 %v5038
      %5287 = vmatpush.msra.mxu0 %v5034
      %5288 = vmatpush.msra.mxu0 %v5030
      %5289 = vmatpush.msra.mxu0 %v5026
      %5290 = vmatpush.msra.mxu0 %v5022
      %5291 = vmatpush.msra.mxu0 %v5018
      %5292 = vmatpush.msra.mxu0 %v5014
      %5293 = vmatpush.msra.mxu0 %v5010
      %5294 = vmatpush.msra.mxu0 %v5006
      %5295 = vmatpush.msra.mxu0 %v5002
      %5296 = vmatpush.msra.mxu0 %v4998
      %5297 = vmatpush.msra.mxu0 %v4994
      %5298 = vmatpush.msra.mxu0 %v4990
      %5299 = vmatmul.f32.gmra.mxu0 %v5125
      %v5300 = vpop.f32.mrf.mxu0
      %v5301 = vadd.f32 %v5278, %v5300
      %5302 = vmatmul.f32.gmra.mxu0 %v5134
      %v5303 = vpop.f32.mrf.mxu0
      %v5304 = vadd.f32 %v5281, %v5303
      %5305 = vdwg.mxu0
      %5306 = vmatpush.msra.mxu0 %v5114
      %5307 = vmatpush.msra.mxu0 %v5110
      %5308 = vmatpush.msra.mxu0 %v5106
      %5309 = vmatpush.msra.mxu0 %v5102
      %5310 = vmatpush.msra.mxu0 %v5098
      %5311 = vmatpush.msra.mxu0 %v5094
      %5312 = vmatpush.msra.mxu0 %v5090
      %5313 = vmatpush.msra.mxu0 %v5086
      %5314 = vmatpush.msra.mxu0 %v5082
      %5315 = vmatpush.msra.mxu0 %v5078
      %5316 = vmatpush.msra.mxu0 %v5074
      %5317 = vmatpush.msra.mxu0 %v5070
      %5318 = vmatpush.msra.mxu0 %v5066
      %5319 = vmatpush.msra.mxu0 %v5062
      %5320 = vmatpush.msra.mxu0 %v5058
      %5321 = vmatpush.msra.mxu0 %v5054
      %5322 = vmatmul.f32.gmra.mxu0 %v5128
      %v5323 = vpop.f32.mrf.mxu0
      %v5324 = vadd.f32 %v5301, %v5323
      %5325 = vmatmul.f32.gmra.mxu0 %v5136
      %v5326 = vpop.f32.mrf.mxu0
      %v5327 = vadd.f32 %v5304, %v5326
      %5328 = vdwg.mxu0
      %5329 = vmatpush.msra.mxu0 %v4923
      %5330 = vmatpush.msra.mxu0 %v4919
      %5331 = vmatpush.msra.mxu0 %v4915
      %5332 = vmatpush.msra.mxu0 %v4911
      %5333 = vmatpush.msra.mxu0 %v4907
      %5334 = vmatpush.msra.mxu0 %v4903
      %5335 = vmatpush.msra.mxu0 %v4899
      %5336 = vmatpush.msra.mxu0 %v4895
      %5337 = vmatpush.msra.mxu0 %v4891
      %5338 = vmatpush.msra.mxu0 %v4887
      %5339 = vmatpush.msra.mxu0 %v4883
      %5340 = vmatpush.msra.mxu0 %v4879
      %5341 = vmatpush.msra.mxu0 %v4875
      %5342 = vmatpush.msra.mxu0 %v4871
      %5343 = vmatpush.msra.mxu0 %v4867
      %5344 = vmatpush.msra.mxu0 %v4863
      %5345 = vmatmul.f32.gmra.mxu0 %v5119
      %v5346 = vpop.f32.mrf.mxu0
      %v5347 = vadd.f32 0.0, %v5346
      %5348 = vmatmul.f32.gmra.mxu0 %v5130
      %v5349 = vpop.f32.mrf.mxu0
      %v5350 = vadd.f32 0.0, %v5349
      %5351 = vdwg.mxu0
      %5352 = vmatpush.msra.mxu0 %v4987
      %5353 = vmatpush.msra.mxu0 %v4983
      %5354 = vmatpush.msra.mxu0 %v4979
      %5355 = vmatpush.msra.mxu0 %v4975
      %5356 = vmatpush.msra.mxu0 %v4971
      %5357 = vmatpush.msra.mxu0 %v4967
      %5358 = vmatpush.msra.mxu0 %v4963
      %5359 = vmatpush.msra.mxu0 %v4959
      %5360 = vmatpush.msra.mxu0 %v4955
      %5361 = vmatpush.msra.mxu0 %v4951
      %5362 = vmatpush.msra.mxu0 %v4947
      %5363 = vmatpush.msra.mxu0 %v4943
      %5364 = vmatpush.msra.mxu0 %v4939
      %5365 = vmatpush.msra.mxu0 %v4935
      %5366 = vmatpush.msra.mxu0 %v4931
      %5367 = vmatpush.msra.mxu0 %v4927
      %5368 = vmatmul.f32.gmra.mxu0 %v5122
      %v5369 = vpop.f32.mrf.mxu0
      %v5370 = vadd.f32 %v5347, %v5369
      %5371 = vmatmul.f32.gmra.mxu0 %v5132
      %v5372 = vpop.f32.mrf.mxu0
      %v5373 = vadd.f32 %v5350, %v5372
      %5374 = vdwg.mxu0
      %5375 = vmatpush.msra.mxu0 %v5051
      %5376 = vmatpush.msra.mxu0 %v5047
      %5377 = vmatpush.msra.mxu0 %v5043
      %5378 = vmatpush.msra.mxu0 %v5039
      %5379 = vmatpush.msra.mxu0 %v5035
      %5380 = vmatpush.msra.mxu0 %v5031
      %5381 = vmatpush.msra.mxu0 %v5027
      %5382 = vmatpush.msra.mxu0 %v5023
      %5383 = vmatpush.msra.mxu0 %v5019
      %5384 = vmatpush.msra.mxu0 %v5015
      %5385 = vmatpush.msra.mxu0 %v5011
      %5386 = vmatpush.msra.mxu0 %v5007
      %5387 = vmatpush.msra.mxu0 %v5003
      %5388 = vmatpush.msra.mxu0 %v4999
      %5389 = vmatpush.msra.mxu0 %v4995
      %5390 = vmatpush.msra.mxu0 %v4991
      %5391 = vmatmul.f32.gmra.mxu0 %v5125
      %v5392 = vpop.f32.mrf.mxu0
      %v5393 = vadd.f32 %v5370, %v5392
      %5394 = vmatmul.f32.gmra.mxu0 %v5134
      %v5395 = vpop.f32.mrf.mxu0
      %v5396 = vadd.f32 %v5373, %v5395
      %5397 = vdwg.mxu0
      %5398 = vmatpush.msra.mxu0 %v5115
      %5399 = vmatpush.msra.mxu0 %v5111
      %5400 = vmatpush.msra.mxu0 %v5107
      %5401 = vmatpush.msra.mxu0 %v5103
      %5402 = vmatpush.msra.mxu0 %v5099
      %5403 = vmatpush.msra.mxu0 %v5095
      %5404 = vmatpush.msra.mxu0 %v5091
      %5405 = vmatpush.msra.mxu0 %v5087
      %5406 = vmatpush.msra.mxu0 %v5083
      %5407 = vmatpush.msra.mxu0 %v5079
      %5408 = vmatpush.msra.mxu0 %v5075
      %5409 = vmatpush.msra.mxu0 %v5071
      %5410 = vmatpush.msra.mxu0 %v5067
      %5411 = vmatpush.msra.mxu0 %v5063
      %5412 = vmatpush.msra.mxu0 %v5059
      %5413 = vmatpush.msra.mxu0 %v5055
      %5414 = vmatmul.f32.gmra.mxu0 %v5128
      %v5415 = vpop.f32.mrf.mxu0
      %v5416 = vadd.f32 %v5393, %v5415
      %5417 = vmatmul.f32.gmra.mxu0 %v5136
      %v5418 = vpop.f32.mrf.mxu0
      %v5419 = vadd.f32 %v5396, %v5418
      %5420 = vdwg.mxu0
      %5421 = vmatpush.msra.mxu0 %v4924
      %5422 = vmatpush.msra.mxu0 %v4920
      %5423 = vmatpush.msra.mxu0 %v4916
      %5424 = vmatpush.msra.mxu0 %v4912
      %5425 = vmatpush.msra.mxu0 %v4908
      %5426 = vmatpush.msra.mxu0 %v4904
      %5427 = vmatpush.msra.mxu0 %v4900
      %5428 = vmatpush.msra.mxu0 %v4896
      %5429 = vmatpush.msra.mxu0 %v4892
      %5430 = vmatpush.msra.mxu0 %v4888
      %5431 = vmatpush.msra.mxu0 %v4884
      %5432 = vmatpush.msra.mxu0 %v4880
      %5433 = vmatpush.msra.mxu0 %v4876
      %5434 = vmatpush.msra.mxu0 %v4872
      %5435 = vmatpush.msra.mxu0 %v4868
      %5436 = vmatpush.msra.mxu0 %v4864
      %5437 = vmatmul.f32.gmra.mxu0 %v5119
      %v5438 = vpop.f32.mrf.mxu0
      %v5439 = vadd.f32 0.0, %v5438
      %5440 = vmatmul.f32.gmra.mxu0 %v5130
      %v5441 = vpop.f32.mrf.mxu0
      %v5442 = vadd.f32 0.0, %v5441
      %5443 = vdwg.mxu0
      %5444 = vmatpush.msra.mxu0 %v4988
      %5445 = vmatpush.msra.mxu0 %v4984
      %5446 = vmatpush.msra.mxu0 %v4980
      %5447 = vmatpush.msra.mxu0 %v4976
      %5448 = vmatpush.msra.mxu0 %v4972
      %5449 = vmatpush.msra.mxu0 %v4968
      %5450 = vmatpush.msra.mxu0 %v4964
      %5451 = vmatpush.msra.mxu0 %v4960
      %5452 = vmatpush.msra.mxu0 %v4956
      %5453 = vmatpush.msra.mxu0 %v4952
      %5454 = vmatpush.msra.mxu0 %v4948
      %5455 = vmatpush.msra.mxu0 %v4944
      %5456 = vmatpush.msra.mxu0 %v4940
      %5457 = vmatpush.msra.mxu0 %v4936
      %5458 = vmatpush.msra.mxu0 %v4932
      %5459 = vmatpush.msra.mxu0 %v4928
      %5460 = vmatmul.f32.gmra.mxu0 %v5122
      %v5461 = vpop.f32.mrf.mxu0
      %v5462 = vadd.f32 %v5439, %v5461
      %5463 = vmatmul.f32.gmra.mxu0 %v5132
      %v5464 = vpop.f32.mrf.mxu0
      %v5465 = vadd.f32 %v5442, %v5464
      %5466 = vdwg.mxu0
      %5467 = vmatpush.msra.mxu0 %v5052
      %5468 = vmatpush.msra.mxu0 %v5048
      %5469 = vmatpush.msra.mxu0 %v5044
      %5470 = vmatpush.msra.mxu0 %v5040
      %5471 = vmatpush.msra.mxu0 %v5036
      %5472 = vmatpush.msra.mxu0 %v5032
      %5473 = vmatpush.msra.mxu0 %v5028
      %5474 = vmatpush.msra.mxu0 %v5024
      %5475 = vmatpush.msra.mxu0 %v5020
      %5476 = vmatpush.msra.mxu0 %v5016
      %5477 = vmatpush.msra.mxu0 %v5012
      %5478 = vmatpush.msra.mxu0 %v5008
      %5479 = vmatpush.msra.mxu0 %v5004
      %5480 = vmatpush.msra.mxu0 %v5000
      %5481 = vmatpush.msra.mxu0 %v4996
      %5482 = vmatpush.msra.mxu0 %v4992
      %5483 = vmatmul.f32.gmra.mxu0 %v5125
      %v5484 = vpop.f32.mrf.mxu0
      %v5485 = vadd.f32 %v5462, %v5484
      %5486 = vmatmul.f32.gmra.mxu0 %v5134
      %v5487 = vpop.f32.mrf.mxu0
      %v5488 = vadd.f32 %v5465, %v5487
      %5489 = vdwg.mxu0
      %5490 = vmatpush.msra.mxu0 %v5116
      %5491 = vmatpush.msra.mxu0 %v5112
      %5492 = vmatpush.msra.mxu0 %v5108
      %5493 = vmatpush.msra.mxu0 %v5104
      %5494 = vmatpush.msra.mxu0 %v5100
      %5495 = vmatpush.msra.mxu0 %v5096
      %5496 = vmatpush.msra.mxu0 %v5092
      %5497 = vmatpush.msra.mxu0 %v5088
      %5498 = vmatpush.msra.mxu0 %v5084
      %5499 = vmatpush.msra.mxu0 %v5080
      %5500 = vmatpush.msra.mxu0 %v5076
      %5501 = vmatpush.msra.mxu0 %v5072
      %5502 = vmatpush.msra.mxu0 %v5068
      %5503 = vmatpush.msra.mxu0 %v5064
      %5504 = vmatpush.msra.mxu0 %v5060
      %5505 = vmatpush.msra.mxu0 %v5056
      %5506 = vmatmul.f32.gmra.mxu0 %v5128
      %v5507 = vpop.f32.mrf.mxu0
      %v5508 = vadd.f32 %v5485, %v5507
      %5509 = vmatmul.f32.gmra.mxu0 %v5136
      %v5510 = vpop.f32.mrf.mxu0
      %v5511 = vadd.f32 %v5488, %v5510
      %5512 = vdwg.mxu0
      %v5513 = vadd.f32 %v4579, %v5232
      %v5514 = vadd.f32 %v4671, %v5324
      %v5515 = vadd.f32 %v4763, %v5416
      %v5516 = vadd.f32 %v4855, %v5508
      %v5517 = vadd.f32 %v4582, %v5235
      %v5518 = vadd.f32 %v4674, %v5327
      %v5519 = vadd.f32 %v4766, %v5419
      %v5520 = vadd.f32 %v4858, %v5511
      %v5521 = vld [vmem:[%s7] sm:$0xf]
      %v5523 = vperm.slane %v5521, 0
      %v5524 = vperm.slane %v5521, 1
      %v5525 = vperm.slane %v5521, 2
      %v5526 = vperm.slane %v5521, 3
      %v5531 = vadd.f32 %v5513, %v5523
      %v5532 = vadd.f32 %v5514, %v5524
      %v5533 = vadd.f32 %v5515, %v5525
      %v5534 = vadd.f32 %v5516, %v5526
      %v5535 = vadd.f32 %v5517, %v5523
      %v5536 = vadd.f32 %v5518, %v5524
      %v5537 = vadd.f32 %v5519, %v5525
      %v5538 = vadd.f32 %v5520, %v5526
      %v5539 = vadd.f32 %v5531, %v5535
      %v5540 = vrot.slane %v5539, 4
      %v5541 = vadd.f32 %v5539, %v5540
      %v5542 = vrot.slane %v5541, 2
      %v5543 = vadd.f32 %v5541, %v5542
      %v5544 = vrot.slane %v5543, 1
      %v5545 = vadd.f32 %v5543, %v5544
      %v5546 = vadd.f32 %v5532, %v5536
      %v5547 = vrot.slane %v5546, 4
      %v5548 = vadd.f32 %v5546, %v5547
      %v5549 = vrot.slane %v5548, 2
      %v5550 = vadd.f32 %v5548, %v5549
      %v5551 = vrot.slane %v5550, 1
      %v5552 = vadd.f32 %v5550, %v5551
      %v5553 = vadd.f32 %v5533, %v5537
      %v5554 = vrot.slane %v5553, 4
      %v5555 = vadd.f32 %v5553, %v5554
      %v5556 = vrot.slane %v5555, 2
      %v5557 = vadd.f32 %v5555, %v5556
      %v5558 = vrot.slane %v5557, 1
      %v5559 = vadd.f32 %v5557, %v5558
      %v5560 = vadd.f32 %v5534, %v5538
      %v5561 = vrot.slane %v5560, 4
      %v5562 = vadd.f32 %v5560, %v5561
      %v5563 = vrot.slane %v5562, 2
      %v5564 = vadd.f32 %v5562, %v5563
      %v5565 = vrot.slane %v5564, 1
      %v5566 = vadd.f32 %v5564, %v5565
      %v5567 = vmul.f32 %v5545, %v2465
      %v5568 = vmul.f32 %v5552, %v2465
      %v5569 = vmul.f32 %v5559, %v2465
      %v5570 = vmul.f32 %v5566, %v2465
      %v5571 = vld [vmem:[%s10] sm:$0xff]
      %v5572 = vld [vmem:[%s10 + $0x8] sm:$0xff]
      %v5573 = vld [vmem:[%s10 + $0x10] sm:$0xff]
      %v5574 = vld [vmem:[%s10 + $0x18] sm:$0xff]
      %v5575 = vld [vmem:[%s10 + $0x20] sm:$0xff]
      %v5576 = vld [vmem:[%s10 + $0x28] sm:$0xff]
      %v5577 = vld [vmem:[%s10 + $0x30] sm:$0xff]
      %v5578 = vld [vmem:[%s10 + $0x38] sm:$0xff]
      %v5579 = vld [vmem:[%s10 + $0x40] sm:$0xff]
      %v5580 = vld [vmem:[%s10 + $0x48] sm:$0xff]
      %v5581 = vld [vmem:[%s10 + $0x50] sm:$0xff]
      %v5582 = vld [vmem:[%s10 + $0x58] sm:$0xff]
      %v5583 = vld [vmem:[%s10 + $0x60] sm:$0xff]
      %v5584 = vld [vmem:[%s10 + $0x68] sm:$0xff]
      %v5585 = vld [vmem:[%s10 + $0x70] sm:$0xff]
      %v5586 = vld [vmem:[%s10 + $0x78] sm:$0xff]
      %v5587 = vld [vmem:[%s10 + $0x80] sm:$0xff]
      %v5588 = vld [vmem:[%s10 + $0x88] sm:$0xff]
      %v5589 = vld [vmem:[%s10 + $0x90] sm:$0xff]
      %v5590 = vld [vmem:[%s10 + $0x98] sm:$0xff]
      %v5591 = vld [vmem:[%s10 + $0xa0] sm:$0xff]
      %v5592 = vld [vmem:[%s10 + $0xa8] sm:$0xff]
      %v5593 = vld [vmem:[%s10 + $0xb0] sm:$0xff]
      %v5594 = vld [vmem:[%s10 + $0xb8] sm:$0xff]
      %v5595 = vld [vmem:[%s10 + $0xc0] sm:$0xff]
      %v5596 = vld [vmem:[%s10 + $0xc8] sm:$0xff]
      %v5597 = vld [vmem:[%s10 + $0xd0] sm:$0xff]
      %v5598 = vld [vmem:[%s10 + $0xd8] sm:$0xff]
      %v5599 = vld [vmem:[%s10 + $0xe0] sm:$0xff]
      %v5600 = vld [vmem:[%s10 + $0xe8] sm:$0xff]
      %v5601 = vld [vmem:[%s10 + $0xf0] sm:$0xff]
      %v5602 = vld [vmem:[%s10 + $0xf8] sm:$0xff]
      %v5603 = vld [vmem:[%s10 + $0x100] sm:$0xff]
      %v5604 = vld [vmem:[%s10 + $0x108] sm:$0xff]
      %v5605 = vld [vmem:[%s10 + $0x110] sm:$0xff]
      %v5606 = vld [vmem:[%s10 + $0x118] sm:$0xff]
      %v5607 = vld [vmem:[%s10 + $0x120] sm:$0xff]
      %v5608 = vld [vmem:[%s10 + $0x128] sm:$0xff]
      %v5609 = vld [vmem:[%s10 + $0x130] sm:$0xff]
      %v5610 = vld [vmem:[%s10 + $0x138] sm:$0xff]
      %v5611 = vld [vmem:[%s10 + $0x140] sm:$0xff]
      %v5612 = vld [vmem:[%s10 + $0x148] sm:$0xff]
      %v5613 = vld [vmem:[%s10 + $0x150] sm:$0xff]
      %v5614 = vld [vmem:[%s10 + $0x158] sm:$0xff]
      %v5615 = vld [vmem:[%s10 + $0x160] sm:$0xff]
      %v5616 = vld [vmem:[%s10 + $0x168] sm:$0xff]
      %v5617 = vld [vmem:[%s10 + $0x170] sm:$0xff]
      %v5618 = vld [vmem:[%s10 + $0x178] sm:$0xff]
      %v5619 = vld [vmem:[%s10 + $0x180] sm:$0xff]
      %v5620 = vld [vmem:[%s10 + $0x188] sm:$0xff]
      %v5621 = vld [vmem:[%s10 + $0x190] sm:$0xff]
      %v5622 = vld [vmem:[%s10 + $0x198] sm:$0xff]
      %v5623 = vld [vmem:[%s10 + $0x1a0] sm:$0xff]
      %v5624 = vld [vmem:[%s10 + $0x1a8] sm:$0xff]
      %v5625 = vld [vmem:[%s10 + $0x1b0] sm:$0xff]
      %v5626 = vld [vmem:[%s10 + $0x1b8] sm:$0xff]
      %v5627 = vld [vmem:[%s10 + $0x1c0] sm:$0xff]
      %v5628 = vld [vmem:[%s10 + $0x1c8] sm:$0xff]
      %v5629 = vld [vmem:[%s10 + $0x1d0] sm:$0xff]
      %v5630 = vld [vmem:[%s10 + $0x1d8] sm:$0xff]
      %v5631 = vld [vmem:[%s10 + $0x1e0] sm:$0xff]
      %v5632 = vld [vmem:[%s10 + $0x1e8] sm:$0xff]
      %v5633 = vld [vmem:[%s10 + $0x1f0] sm:$0xff]
      %v5634 = vld [vmem:[%s10 + $0x1f8] sm:$0xff]
      %v5635 = vld [vmem:[%s10 + $0x200] sm:$0xff]
      %v5636 = vld [vmem:[%s10 + $0x208] sm:$0xff]
      %v5637 = vld [vmem:[%s10 + $0x210] sm:$0xff]
      %v5638 = vld [vmem:[%s10 + $0x218] sm:$0xff]
      %v5639 = vld [vmem:[%s10 + $0x220] sm:$0xff]
      %v5640 = vld [vmem:[%s10 + $0x228] sm:$0xff]
      %v5641 = vld [vmem:[%s10 + $0x230] sm:$0xff]
      %v5642 = vld [vmem:[%s10 + $0x238] sm:$0xff]
      %v5643 = vld [vmem:[%s10 + $0x240] sm:$0xff]
      %v5644 = vld [vmem:[%s10 + $0x248] sm:$0xff]
      %v5645 = vld [vmem:[%s10 + $0x250] sm:$0xff]
      %v5646 = vld [vmem:[%s10 + $0x258] sm:$0xff]
      %v5647 = vld [vmem:[%s10 + $0x260] sm:$0xff]
      %v5648 = vld [vmem:[%s10 + $0x268] sm:$0xff]
      %v5649 = vld [vmem:[%s10 + $0x270] sm:$0xff]
      %v5650 = vld [vmem:[%s10 + $0x278] sm:$0xff]
      %v5651 = vld [vmem:[%s10 + $0x280] sm:$0xff]
      %v5652 = vld [vmem:[%s10 + $0x288] sm:$0xff]
      %v5653 = vld [vmem:[%s10 + $0x290] sm:$0xff]
      %v5654 = vld [vmem:[%s10 + $0x298] sm:$0xff]
      %v5655 = vld [vmem:[%s10 + $0x2a0] sm:$0xff]
      %v5656 = vld [vmem:[%s10 + $0x2a8] sm:$0xff]
      %v5657 = vld [vmem:[%s10 + $0x2b0] sm:$0xff]
      %v5658 = vld [vmem:[%s10 + $0x2b8] sm:$0xff]
      %v5659 = vld [vmem:[%s10 + $0x2c0] sm:$0xff]
      %v5660 = vld [vmem:[%s10 + $0x2c8] sm:$0xff]
      %v5661 = vld [vmem:[%s10 + $0x2d0] sm:$0xff]
      %v5662 = vld [vmem:[%s10 + $0x2d8] sm:$0xff]
      %v5663 = vld [vmem:[%s10 + $0x2e0] sm:$0xff]
      %v5664 = vld [vmem:[%s10 + $0x2e8] sm:$0xff]
      %v5665 = vld [vmem:[%s10 + $0x2f0] sm:$0xff]
      %v5666 = vld [vmem:[%s10 + $0x2f8] sm:$0xff]
      %v5667 = vld [vmem:[%s10 + $0x300] sm:$0xff]
      %v5668 = vld [vmem:[%s10 + $0x308] sm:$0xff]
      %v5669 = vld [vmem:[%s10 + $0x310] sm:$0xff]
      %v5670 = vld [vmem:[%s10 + $0x318] sm:$0xff]
      %v5671 = vld [vmem:[%s10 + $0x320] sm:$0xff]
      %v5672 = vld [vmem:[%s10 + $0x328] sm:$0xff]
      %v5673 = vld [vmem:[%s10 + $0x330] sm:$0xff]
      %v5674 = vld [vmem:[%s10 + $0x338] sm:$0xff]
      %v5675 = vld [vmem:[%s10 + $0x340] sm:$0xff]
      %v5676 = vld [vmem:[%s10 + $0x348] sm:$0xff]
      %v5677 = vld [vmem:[%s10 + $0x350] sm:$0xff]
      %v5678 = vld [vmem:[%s10 + $0x358] sm:$0xff]
      %v5679 = vld [vmem:[%s10 + $0x360] sm:$0xff]
      %v5680 = vld [vmem:[%s10 + $0x368] sm:$0xff]
      %v5681 = vld [vmem:[%s10 + $0x370] sm:$0xff]
      %v5682 = vld [vmem:[%s10 + $0x378] sm:$0xff]
      %v5683 = vld [vmem:[%s10 + $0x380] sm:$0xff]
      %v5684 = vld [vmem:[%s10 + $0x388] sm:$0xff]
      %v5685 = vld [vmem:[%s10 + $0x390] sm:$0xff]
      %v5686 = vld [vmem:[%s10 + $0x398] sm:$0xff]
      %v5687 = vld [vmem:[%s10 + $0x3a0] sm:$0xff]
      %v5688 = vld [vmem:[%s10 + $0x3a8] sm:$0xff]
      %v5689 = vld [vmem:[%s10 + $0x3b0] sm:$0xff]
      %v5690 = vld [vmem:[%s10 + $0x3b8] sm:$0xff]
      %v5691 = vld [vmem:[%s10 + $0x3c0] sm:$0xff]
      %v5692 = vld [vmem:[%s10 + $0x3c8] sm:$0xff]
      %v5693 = vld [vmem:[%s10 + $0x3d0] sm:$0xff]
      %v5694 = vld [vmem:[%s10 + $0x3d8] sm:$0xff]
      %v5695 = vld [vmem:[%s10 + $0x3e0] sm:$0xff]
      %v5696 = vld [vmem:[%s10 + $0x3e8] sm:$0xff]
      %v5697 = vld [vmem:[%s10 + $0x3f0] sm:$0xff]
      %v5698 = vld [vmem:[%s10 + $0x3f8] sm:$0xff]
      %v5699 = vld [vmem:[%s10 + $0x400] sm:$0xff]
      %v5700 = vld [vmem:[%s10 + $0x408] sm:$0xff]
      %v5701 = vld [vmem:[%s10 + $0x410] sm:$0xff]
      %v5702 = vld [vmem:[%s10 + $0x418] sm:$0xff]
      %v5703 = vld [vmem:[%s10 + $0x420] sm:$0xff]
      %v5704 = vld [vmem:[%s10 + $0x428] sm:$0xff]
      %v5705 = vld [vmem:[%s10 + $0x430] sm:$0xff]
      %v5706 = vld [vmem:[%s10 + $0x438] sm:$0xff]
      %v5707 = vld [vmem:[%s10 + $0x440] sm:$0xff]
      %v5708 = vld [vmem:[%s10 + $0x448] sm:$0xff]
      %v5709 = vld [vmem:[%s10 + $0x450] sm:$0xff]
      %v5710 = vld [vmem:[%s10 + $0x458] sm:$0xff]
      %v5711 = vld [vmem:[%s10 + $0x460] sm:$0xff]
      %v5712 = vld [vmem:[%s10 + $0x468] sm:$0xff]
      %v5713 = vld [vmem:[%s10 + $0x470] sm:$0xff]
      %v5714 = vld [vmem:[%s10 + $0x478] sm:$0xff]
      %v5715 = vld [vmem:[%s10 + $0x480] sm:$0xff]
      %v5716 = vld [vmem:[%s10 + $0x488] sm:$0xff]
      %v5717 = vld [vmem:[%s10 + $0x490] sm:$0xff]
      %v5718 = vld [vmem:[%s10 + $0x498] sm:$0xff]
      %v5719 = vld [vmem:[%s10 + $0x4a0] sm:$0xff]
      %v5720 = vld [vmem:[%s10 + $0x4a8] sm:$0xff]
      %v5721 = vld [vmem:[%s10 + $0x4b0] sm:$0xff]
      %v5722 = vld [vmem:[%s10 + $0x4b8] sm:$0xff]
      %v5723 = vld [vmem:[%s10 + $0x4c0] sm:$0xff]
      %v5724 = vld [vmem:[%s10 + $0x4c8] sm:$0xff]
      %v5725 = vld [vmem:[%s10 + $0x4d0] sm:$0xff]
      %v5726 = vld [vmem:[%s10 + $0x4d8] sm:$0xff]
      %v5727 = vld [vmem:[%s10 + $0x4e0] sm:$0xff]
      %v5728 = vld [vmem:[%s10 + $0x4e8] sm:$0xff]
      %v5729 = vld [vmem:[%s10 + $0x4f0] sm:$0xff]
      %v5730 = vld [vmem:[%s10 + $0x4f8] sm:$0xff]
      %v5731 = vld [vmem:[%s10 + $0x500] sm:$0xff]
      %v5732 = vld [vmem:[%s10 + $0x508] sm:$0xff]
      %v5733 = vld [vmem:[%s10 + $0x510] sm:$0xff]
      %v5734 = vld [vmem:[%s10 + $0x518] sm:$0xff]
      %v5735 = vld [vmem:[%s10 + $0x520] sm:$0xff]
      %v5736 = vld [vmem:[%s10 + $0x528] sm:$0xff]
      %v5737 = vld [vmem:[%s10 + $0x530] sm:$0xff]
      %v5738 = vld [vmem:[%s10 + $0x538] sm:$0xff]
      %v5739 = vld [vmem:[%s10 + $0x540] sm:$0xff]
      %v5740 = vld [vmem:[%s10 + $0x548] sm:$0xff]
      %v5741 = vld [vmem:[%s10 + $0x550] sm:$0xff]
      %v5742 = vld [vmem:[%s10 + $0x558] sm:$0xff]
      %v5743 = vld [vmem:[%s10 + $0x560] sm:$0xff]
      %v5744 = vld [vmem:[%s10 + $0x568] sm:$0xff]
      %v5745 = vld [vmem:[%s10 + $0x570] sm:$0xff]
      %v5746 = vld [vmem:[%s10 + $0x578] sm:$0xff]
      %v5747 = vld [vmem:[%s10 + $0x580] sm:$0xff]
      %v5748 = vld [vmem:[%s10 + $0x588] sm:$0xff]
      %v5749 = vld [vmem:[%s10 + $0x590] sm:$0xff]
      %v5750 = vld [vmem:[%s10 + $0x598] sm:$0xff]
      %v5751 = vld [vmem:[%s10 + $0x5a0] sm:$0xff]
      %v5752 = vld [vmem:[%s10 + $0x5a8] sm:$0xff]
      %v5753 = vld [vmem:[%s10 + $0x5b0] sm:$0xff]
      %v5754 = vld [vmem:[%s10 + $0x5b8] sm:$0xff]
      %v5755 = vld [vmem:[%s10 + $0x5c0] sm:$0xff]
      %v5756 = vld [vmem:[%s10 + $0x5c8] sm:$0xff]
      %v5757 = vld [vmem:[%s10 + $0x5d0] sm:$0xff]
      %v5758 = vld [vmem:[%s10 + $0x5d8] sm:$0xff]
      %v5759 = vld [vmem:[%s10 + $0x5e0] sm:$0xff]
      %v5760 = vld [vmem:[%s10 + $0x5e8] sm:$0xff]
      %v5761 = vld [vmem:[%s10 + $0x5f0] sm:$0xff]
      %v5762 = vld [vmem:[%s10 + $0x5f8] sm:$0xff]
      %v5763 = vld [vmem:[%s10 + $0x600] sm:$0xff]
      %v5764 = vld [vmem:[%s10 + $0x608] sm:$0xff]
      %v5765 = vld [vmem:[%s10 + $0x610] sm:$0xff]
      %v5766 = vld [vmem:[%s10 + $0x618] sm:$0xff]
      %v5767 = vld [vmem:[%s10 + $0x620] sm:$0xff]
      %v5768 = vld [vmem:[%s10 + $0x628] sm:$0xff]
      %v5769 = vld [vmem:[%s10 + $0x630] sm:$0xff]
      %v5770 = vld [vmem:[%s10 + $0x638] sm:$0xff]
      %v5771 = vld [vmem:[%s10 + $0x640] sm:$0xff]
      %v5772 = vld [vmem:[%s10 + $0x648] sm:$0xff]
      %v5773 = vld [vmem:[%s10 + $0x650] sm:$0xff]
      %v5774 = vld [vmem:[%s10 + $0x658] sm:$0xff]
      %v5775 = vld [vmem:[%s10 + $0x660] sm:$0xff]
      %v5776 = vld [vmem:[%s10 + $0x668] sm:$0xff]
      %v5777 = vld [vmem:[%s10 + $0x670] sm:$0xff]
      %v5778 = vld [vmem:[%s10 + $0x678] sm:$0xff]
      %v5779 = vld [vmem:[%s10 + $0x680] sm:$0xff]
      %v5780 = vld [vmem:[%s10 + $0x688] sm:$0xff]
      %v5781 = vld [vmem:[%s10 + $0x690] sm:$0xff]
      %v5782 = vld [vmem:[%s10 + $0x698] sm:$0xff]
      %v5783 = vld [vmem:[%s10 + $0x6a0] sm:$0xff]
      %v5784 = vld [vmem:[%s10 + $0x6a8] sm:$0xff]
      %v5785 = vld [vmem:[%s10 + $0x6b0] sm:$0xff]
      %v5786 = vld [vmem:[%s10 + $0x6b8] sm:$0xff]
      %v5787 = vld [vmem:[%s10 + $0x6c0] sm:$0xff]
      %v5788 = vld [vmem:[%s10 + $0x6c8] sm:$0xff]
      %v5789 = vld [vmem:[%s10 + $0x6d0] sm:$0xff]
      %v5790 = vld [vmem:[%s10 + $0x6d8] sm:$0xff]
      %v5791 = vld [vmem:[%s10 + $0x6e0] sm:$0xff]
      %v5792 = vld [vmem:[%s10 + $0x6e8] sm:$0xff]
      %v5793 = vld [vmem:[%s10 + $0x6f0] sm:$0xff]
      %v5794 = vld [vmem:[%s10 + $0x6f8] sm:$0xff]
      %v5795 = vld [vmem:[%s10 + $0x700] sm:$0xff]
      %v5796 = vld [vmem:[%s10 + $0x708] sm:$0xff]
      %v5797 = vld [vmem:[%s10 + $0x710] sm:$0xff]
      %v5798 = vld [vmem:[%s10 + $0x718] sm:$0xff]
      %v5799 = vld [vmem:[%s10 + $0x720] sm:$0xff]
      %v5800 = vld [vmem:[%s10 + $0x728] sm:$0xff]
      %v5801 = vld [vmem:[%s10 + $0x730] sm:$0xff]
      %v5802 = vld [vmem:[%s10 + $0x738] sm:$0xff]
      %v5803 = vld [vmem:[%s10 + $0x740] sm:$0xff]
      %v5804 = vld [vmem:[%s10 + $0x748] sm:$0xff]
      %v5805 = vld [vmem:[%s10 + $0x750] sm:$0xff]
      %v5806 = vld [vmem:[%s10 + $0x758] sm:$0xff]
      %v5807 = vld [vmem:[%s10 + $0x760] sm:$0xff]
      %v5808 = vld [vmem:[%s10 + $0x768] sm:$0xff]
      %v5809 = vld [vmem:[%s10 + $0x770] sm:$0xff]
      %v5810 = vld [vmem:[%s10 + $0x778] sm:$0xff]
      %v5811 = vld [vmem:[%s10 + $0x780] sm:$0xff]
      %v5812 = vld [vmem:[%s10 + $0x788] sm:$0xff]
      %v5813 = vld [vmem:[%s10 + $0x790] sm:$0xff]
      %v5814 = vld [vmem:[%s10 + $0x798] sm:$0xff]
      %v5815 = vld [vmem:[%s10 + $0x7a0] sm:$0xff]
      %v5816 = vld [vmem:[%s10 + $0x7a8] sm:$0xff]
      %v5817 = vld [vmem:[%s10 + $0x7b0] sm:$0xff]
      %v5818 = vld [vmem:[%s10 + $0x7b8] sm:$0xff]
      %v5819 = vld [vmem:[%s10 + $0x7c0] sm:$0xff]
      %v5820 = vld [vmem:[%s10 + $0x7c8] sm:$0xff]
      %v5821 = vld [vmem:[%s10 + $0x7d0] sm:$0xff]
      %v5822 = vld [vmem:[%s10 + $0x7d8] sm:$0xff]
      %v5823 = vld [vmem:[%s10 + $0x7e0] sm:$0xff]
      %v5824 = vld [vmem:[%s10 + $0x7e8] sm:$0xff]
      %v5825 = vld [vmem:[%s10 + $0x7f0] sm:$0xff]
      %v5826 = vld [vmem:[%s10 + $0x7f8] sm:$0xff]
      %5827 = vmatpush.msra.mxu0 %v5631
      %5828 = vmatpush.msra.mxu0 %v5627
      %5829 = vmatpush.msra.mxu0 %v5623
      %5830 = vmatpush.msra.mxu0 %v5619
      %5831 = vmatpush.msra.mxu0 %v5615
      %5832 = vmatpush.msra.mxu0 %v5611
      %5833 = vmatpush.msra.mxu0 %v5607
      %5834 = vmatpush.msra.mxu0 %v5603
      %5835 = vmatpush.msra.mxu0 %v5599
      %5836 = vmatpush.msra.mxu0 %v5595
      %5837 = vmatpush.msra.mxu0 %v5591
      %5838 = vmatpush.msra.mxu0 %v5587
      %5839 = vmatpush.msra.mxu0 %v5583
      %5840 = vmatpush.msra.mxu0 %v5579
      %5841 = vmatpush.msra.mxu0 %v5575
      %5842 = vmatpush.msra.mxu0 %v5571
      %5843 = vmatmul.f32.gmra.mxu0 %v5567
      %v5844 = vpop.f32.mrf.mxu0
      %v5845 = vadd.f32 0.0, %v5844
      %5846 = vdwg.mxu0
      %5847 = vmatpush.msra.mxu0 %v5695
      %5848 = vmatpush.msra.mxu0 %v5691
      %5849 = vmatpush.msra.mxu0 %v5687
      %5850 = vmatpush.msra.mxu0 %v5683
      %5851 = vmatpush.msra.mxu0 %v5679
      %5852 = vmatpush.msra.mxu0 %v5675
      %5853 = vmatpush.msra.mxu0 %v5671
      %5854 = vmatpush.msra.mxu0 %v5667
      %5855 = vmatpush.msra.mxu0 %v5663
      %5856 = vmatpush.msra.mxu0 %v5659
      %5857 = vmatpush.msra.mxu0 %v5655
      %5858 = vmatpush.msra.mxu0 %v5651
      %5859 = vmatpush.msra.mxu0 %v5647
      %5860 = vmatpush.msra.mxu0 %v5643
      %5861 = vmatpush.msra.mxu0 %v5639
      %5862 = vmatpush.msra.mxu0 %v5635
      %5863 = vmatmul.f32.gmra.mxu0 %v5568
      %v5864 = vpop.f32.mrf.mxu0
      %v5865 = vadd.f32 %v5845, %v5864
      %5866 = vdwg.mxu0
      %5867 = vmatpush.msra.mxu0 %v5759
      %5868 = vmatpush.msra.mxu0 %v5755
      %5869 = vmatpush.msra.mxu0 %v5751
      %5870 = vmatpush.msra.mxu0 %v5747
      %5871 = vmatpush.msra.mxu0 %v5743
      %5872 = vmatpush.msra.mxu0 %v5739
      %5873 = vmatpush.msra.mxu0 %v5735
      %5874 = vmatpush.msra.mxu0 %v5731
      %5875 = vmatpush.msra.mxu0 %v5727
      %5876 = vmatpush.msra.mxu0 %v5723
      %5877 = vmatpush.msra.mxu0 %v5719
      %5878 = vmatpush.msra.mxu0 %v5715
      %5879 = vmatpush.msra.mxu0 %v5711
      %5880 = vmatpush.msra.mxu0 %v5707
      %5881 = vmatpush.msra.mxu0 %v5703
      %5882 = vmatpush.msra.mxu0 %v5699
      %5883 = vmatmul.f32.gmra.mxu0 %v5569
      %v5884 = vpop.f32.mrf.mxu0
      %v5885 = vadd.f32 %v5865, %v5884
      %5886 = vdwg.mxu0
      %5887 = vmatpush.msra.mxu0 %v5823
      %5888 = vmatpush.msra.mxu0 %v5819
      %5889 = vmatpush.msra.mxu0 %v5815
      %5890 = vmatpush.msra.mxu0 %v5811
      %5891 = vmatpush.msra.mxu0 %v5807
      %5892 = vmatpush.msra.mxu0 %v5803
      %5893 = vmatpush.msra.mxu0 %v5799
      %5894 = vmatpush.msra.mxu0 %v5795
      %5895 = vmatpush.msra.mxu0 %v5791
      %5896 = vmatpush.msra.mxu0 %v5787
      %5897 = vmatpush.msra.mxu0 %v5783
      %5898 = vmatpush.msra.mxu0 %v5779
      %5899 = vmatpush.msra.mxu0 %v5775
      %5900 = vmatpush.msra.mxu0 %v5771
      %5901 = vmatpush.msra.mxu0 %v5767
      %5902 = vmatpush.msra.mxu0 %v5763
      %5903 = vmatmul.f32.gmra.mxu0 %v5570
      %v5904 = vpop.f32.mrf.mxu0
      %v5905 = vadd.f32 %v5885, %v5904
      %5906 = vdwg.mxu0
      %5907 = vmatpush.msra.mxu0 %v5632
      %5908 = vmatpush.msra.mxu0 %v5628
      %5909 = vmatpush.msra.mxu0 %v5624
      %5910 = vmatpush.msra.mxu0 %v5620
      %5911 = vmatpush.msra.mxu0 %v5616
      %5912 = vmatpush.msra.mxu0 %v5612
      %5913 = vmatpush.msra.mxu0 %v5608
      %5914 = vmatpush.msra.mxu0 %v5604
      %5915 = vmatpush.msra.mxu0 %v5600
      %5916 = vmatpush.msra.mxu0 %v5596
      %5917 = vmatpush.msra.mxu0 %v5592
      %5918 = vmatpush.msra.mxu0 %v5588
      %5919 = vmatpush.msra.mxu0 %v5584
      %5920 = vmatpush.msra.mxu0 %v5580
      %5921 = vmatpush.msra.mxu0 %v5576
      %5922 = vmatpush.msra.mxu0 %v5572
      %5923 = vmatmul.f32.gmra.mxu0 %v5567
      %v5924 = vpop.f32.mrf.mxu0
      %v5925 = vadd.f32 0.0, %v5924
      %5926 = vdwg.mxu0
      %5927 = vmatpush.msra.mxu0 %v5696
      %5928 = vmatpush.msra.mxu0 %v5692
      %5929 = vmatpush.msra.mxu0 %v5688
      %5930 = vmatpush.msra.mxu0 %v5684
      %5931 = vmatpush.msra.mxu0 %v5680
      %5932 = vmatpush.msra.mxu0 %v5676
      %5933 = vmatpush.msra.mxu0 %v5672
      %5934 = vmatpush.msra.mxu0 %v5668
      %5935 = vmatpush.msra.mxu0 %v5664
      %5936 = vmatpush.msra.mxu0 %v5660
      %5937 = vmatpush.msra.mxu0 %v5656
      %5938 = vmatpush.msra.mxu0 %v5652
      %5939 = vmatpush.msra.mxu0 %v5648
      %5940 = vmatpush.msra.mxu0 %v5644
      %5941 = vmatpush.msra.mxu0 %v5640
      %5942 = vmatpush.msra.mxu0 %v5636
      %5943 = vmatmul.f32.gmra.mxu0 %v5568
      %v5944 = vpop.f32.mrf.mxu0
      %v5945 = vadd.f32 %v5925, %v5944
      %5946 = vdwg.mxu0
      %5947 = vmatpush.msra.mxu0 %v5760
      %5948 = vmatpush.msra.mxu0 %v5756
      %5949 = vmatpush.msra.mxu0 %v5752
      %5950 = vmatpush.msra.mxu0 %v5748
      %5951 = vmatpush.msra.mxu0 %v5744
      %5952 = vmatpush.msra.mxu0 %v5740
      %5953 = vmatpush.msra.mxu0 %v5736
      %5954 = vmatpush.msra.mxu0 %v5732
      %5955 = vmatpush.msra.mxu0 %v5728
      %5956 = vmatpush.msra.mxu0 %v5724
      %5957 = vmatpush.msra.mxu0 %v5720
      %5958 = vmatpush.msra.mxu0 %v5716
      %5959 = vmatpush.msra.mxu0 %v5712
      %5960 = vmatpush.msra.mxu0 %v5708
      %5961 = vmatpush.msra.mxu0 %v5704
      %5962 = vmatpush.msra.mxu0 %v5700
      %5963 = vmatmul.f32.gmra.mxu0 %v5569
      %v5964 = vpop.f32.mrf.mxu0
      %v5965 = vadd.f32 %v5945, %v5964
      %5966 = vdwg.mxu0
      %5967 = vmatpush.msra.mxu0 %v5824
      %5968 = vmatpush.msra.mxu0 %v5820
      %5969 = vmatpush.msra.mxu0 %v5816
      %5970 = vmatpush.msra.mxu0 %v5812
      %5971 = vmatpush.msra.mxu0 %v5808
      %5972 = vmatpush.msra.mxu0 %v5804
      %5973 = vmatpush.msra.mxu0 %v5800
      %5974 = vmatpush.msra.mxu0 %v5796
      %5975 = vmatpush.msra.mxu0 %v5792
      %5976 = vmatpush.msra.mxu0 %v5788
      %5977 = vmatpush.msra.mxu0 %v5784
      %5978 = vmatpush.msra.mxu0 %v5780
      %5979 = vmatpush.msra.mxu0 %v5776
      %5980 = vmatpush.msra.mxu0 %v5772
      %5981 = vmatpush.msra.mxu0 %v5768
      %5982 = vmatpush.msra.mxu0 %v5764
      %5983 = vmatmul.f32.gmra.mxu0 %v5570
      %v5984 = vpop.f32.mrf.mxu0
      %v5985 = vadd.f32 %v5965, %v5984
      %5986 = vdwg.mxu0
      %5987 = vmatpush.msra.mxu0 %v5633
      %5988 = vmatpush.msra.mxu0 %v5629
      %5989 = vmatpush.msra.mxu0 %v5625
      %5990 = vmatpush.msra.mxu0 %v5621
      %5991 = vmatpush.msra.mxu0 %v5617
      %5992 = vmatpush.msra.mxu0 %v5613
      %5993 = vmatpush.msra.mxu0 %v5609
      %5994 = vmatpush.msra.mxu0 %v5605
      %5995 = vmatpush.msra.mxu0 %v5601
      %5996 = vmatpush.msra.mxu0 %v5597
      %5997 = vmatpush.msra.mxu0 %v5593
      %5998 = vmatpush.msra.mxu0 %v5589
      %5999 = vmatpush.msra.mxu0 %v5585
      %6000 = vmatpush.msra.mxu0 %v5581
      %6001 = vmatpush.msra.mxu0 %v5577
      %6002 = vmatpush.msra.mxu0 %v5573
      %6003 = vmatmul.f32.gmra.mxu0 %v5567
      %v6004 = vpop.f32.mrf.mxu0
      %v6005 = vadd.f32 0.0, %v6004
      %6006 = vdwg.mxu0
      %6007 = vmatpush.msra.mxu0 %v5697
      %6008 = vmatpush.msra.mxu0 %v5693
      %6009 = vmatpush.msra.mxu0 %v5689
      %6010 = vmatpush.msra.mxu0 %v5685
      %6011 = vmatpush.msra.mxu0 %v5681
      %6012 = vmatpush.msra.mxu0 %v5677
      %6013 = vmatpush.msra.mxu0 %v5673
      %6014 = vmatpush.msra.mxu0 %v5669
      %6015 = vmatpush.msra.mxu0 %v5665
      %6016 = vmatpush.msra.mxu0 %v5661
      %6017 = vmatpush.msra.mxu0 %v5657
      %6018 = vmatpush.msra.mxu0 %v5653
      %6019 = vmatpush.msra.mxu0 %v5649
      %6020 = vmatpush.msra.mxu0 %v5645
      %6021 = vmatpush.msra.mxu0 %v5641
      %6022 = vmatpush.msra.mxu0 %v5637
      %6023 = vmatmul.f32.gmra.mxu0 %v5568
      %v6024 = vpop.f32.mrf.mxu0
      %v6025 = vadd.f32 %v6005, %v6024
      %6026 = vdwg.mxu0
      %6027 = vmatpush.msra.mxu0 %v5761
      %6028 = vmatpush.msra.mxu0 %v5757
      %6029 = vmatpush.msra.mxu0 %v5753
      %6030 = vmatpush.msra.mxu0 %v5749
      %6031 = vmatpush.msra.mxu0 %v5745
      %6032 = vmatpush.msra.mxu0 %v5741
      %6033 = vmatpush.msra.mxu0 %v5737
      %6034 = vmatpush.msra.mxu0 %v5733
      %6035 = vmatpush.msra.mxu0 %v5729
      %6036 = vmatpush.msra.mxu0 %v5725
      %6037 = vmatpush.msra.mxu0 %v5721
      %6038 = vmatpush.msra.mxu0 %v5717
      %6039 = vmatpush.msra.mxu0 %v5713
      %6040 = vmatpush.msra.mxu0 %v5709
      %6041 = vmatpush.msra.mxu0 %v5705
      %6042 = vmatpush.msra.mxu0 %v5701
      %6043 = vmatmul.f32.gmra.mxu0 %v5569
      %v6044 = vpop.f32.mrf.mxu0
      %v6045 = vadd.f32 %v6025, %v6044
      %6046 = vdwg.mxu0
      %6047 = vmatpush.msra.mxu0 %v5825
      %6048 = vmatpush.msra.mxu0 %v5821
      %6049 = vmatpush.msra.mxu0 %v5817
      %6050 = vmatpush.msra.mxu0 %v5813
      %6051 = vmatpush.msra.mxu0 %v5809
      %6052 = vmatpush.msra.mxu0 %v5805
      %6053 = vmatpush.msra.mxu0 %v5801
      %6054 = vmatpush.msra.mxu0 %v5797
      %6055 = vmatpush.msra.mxu0 %v5793
      %6056 = vmatpush.msra.mxu0 %v5789
      %6057 = vmatpush.msra.mxu0 %v5785
      %6058 = vmatpush.msra.mxu0 %v5781
      %6059 = vmatpush.msra.mxu0 %v5777
      %6060 = vmatpush.msra.mxu0 %v5773
      %6061 = vmatpush.msra.mxu0 %v5769
      %6062 = vmatpush.msra.mxu0 %v5765
      %6063 = vmatmul.f32.gmra.mxu0 %v5570
      %v6064 = vpop.f32.mrf.mxu0
      %v6065 = vadd.f32 %v6045, %v6064
      %6066 = vdwg.mxu0
      %6067 = vmatpush.msra.mxu0 %v5634
      %6068 = vmatpush.msra.mxu0 %v5630
      %6069 = vmatpush.msra.mxu0 %v5626
      %6070 = vmatpush.msra.mxu0 %v5622
      %6071 = vmatpush.msra.mxu0 %v5618
      %6072 = vmatpush.msra.mxu0 %v5614
      %6073 = vmatpush.msra.mxu0 %v5610
      %6074 = vmatpush.msra.mxu0 %v5606
      %6075 = vmatpush.msra.mxu0 %v5602
      %6076 = vmatpush.msra.mxu0 %v5598
      %6077 = vmatpush.msra.mxu0 %v5594
      %6078 = vmatpush.msra.mxu0 %v5590
      %6079 = vmatpush.msra.mxu0 %v5586
      %6080 = vmatpush.msra.mxu0 %v5582
      %6081 = vmatpush.msra.mxu0 %v5578
      %6082 = vmatpush.msra.mxu0 %v5574
      %6083 = vmatmul.f32.gmra.mxu0 %v5567
      %v6084 = vpop.f32.mrf.mxu0
      %v6085 = vadd.f32 0.0, %v6084
      %6086 = vdwg.mxu0
      %6087 = vmatpush.msra.mxu0 %v5698
      %6088 = vmatpush.msra.mxu0 %v5694
      %6089 = vmatpush.msra.mxu0 %v5690
      %6090 = vmatpush.msra.mxu0 %v5686
      %6091 = vmatpush.msra.mxu0 %v5682
      %6092 = vmatpush.msra.mxu0 %v5678
      %6093 = vmatpush.msra.mxu0 %v5674
      %6094 = vmatpush.msra.mxu0 %v5670
      %6095 = vmatpush.msra.mxu0 %v5666
      %6096 = vmatpush.msra.mxu0 %v5662
      %6097 = vmatpush.msra.mxu0 %v5658
      %6098 = vmatpush.msra.mxu0 %v5654
      %6099 = vmatpush.msra.mxu0 %v5650
      %6100 = vmatpush.msra.mxu0 %v5646
      %6101 = vmatpush.msra.mxu0 %v5642
      %6102 = vmatpush.msra.mxu0 %v5638
      %6103 = vmatmul.f32.gmra.mxu0 %v5568
      %v6104 = vpop.f32.mrf.mxu0
      %v6105 = vadd.f32 %v6085, %v6104
      %6106 = vdwg.mxu0
      %6107 = vmatpush.msra.mxu0 %v5762
      %6108 = vmatpush.msra.mxu0 %v5758
      %6109 = vmatpush.msra.mxu0 %v5754
      %6110 = vmatpush.msra.mxu0 %v5750
      %6111 = vmatpush.msra.mxu0 %v5746
      %6112 = vmatpush.msra.mxu0 %v5742
      %6113 = vmatpush.msra.mxu0 %v5738
      %6114 = vmatpush.msra.mxu0 %v5734
      %6115 = vmatpush.msra.mxu0 %v5730
      %6116 = vmatpush.msra.mxu0 %v5726
      %6117 = vmatpush.msra.mxu0 %v5722
      %6118 = vmatpush.msra.mxu0 %v5718
      %6119 = vmatpush.msra.mxu0 %v5714
      %6120 = vmatpush.msra.mxu0 %v5710
      %6121 = vmatpush.msra.mxu0 %v5706
      %6122 = vmatpush.msra.mxu0 %v5702
      %6123 = vmatmul.f32.gmra.mxu0 %v5569
      %v6124 = vpop.f32.mrf.mxu0
      %v6125 = vadd.f32 %v6105, %v6124
      %6126 = vdwg.mxu0
      %6127 = vmatpush.msra.mxu0 %v5826
      %6128 = vmatpush.msra.mxu0 %v5822
      %6129 = vmatpush.msra.mxu0 %v5818
      %6130 = vmatpush.msra.mxu0 %v5814
      %6131 = vmatpush.msra.mxu0 %v5810
      %6132 = vmatpush.msra.mxu0 %v5806
      %6133 = vmatpush.msra.mxu0 %v5802
      %6134 = vmatpush.msra.mxu0 %v5798
      %6135 = vmatpush.msra.mxu0 %v5794
      %6136 = vmatpush.msra.mxu0 %v5790
      %6137 = vmatpush.msra.mxu0 %v5786
      %6138 = vmatpush.msra.mxu0 %v5782
      %6139 = vmatpush.msra.mxu0 %v5778
      %6140 = vmatpush.msra.mxu0 %v5774
      %6141 = vmatpush.msra.mxu0 %v5770
      %6142 = vmatpush.msra.mxu0 %v5766
      %6143 = vmatmul.f32.gmra.mxu0 %v5570
      %v6144 = vpop.f32.mrf.mxu0
      %v6145 = vadd.f32 %v6125, %v6144
      %6146 = vdwg.mxu0
      %v6147 = vperm.slane %v5905, 0
      %v6148 = vperm.slane %v5985, 0
      %v6149 = vperm.slane %v6065, 0
      %v6150 = vperm.slane %v6145, 0
      %v6151 = vsub.f32 %v5531, %v6147
      %v6152 = vsub.f32 %v5532, %v6148
      %v6153 = vsub.f32 %v5533, %v6149
      %v6154 = vsub.f32 %v5534, %v6150
      %v6155 = vsub.f32 %v5535, %v6147
      %v6156 = vsub.f32 %v5536, %v6148
      %v6157 = vsub.f32 %v5537, %v6149
      %v6158 = vsub.f32 %v5538, %v6150
      %v6159 = vmul.f32 %v6151, %v6151
      %v6160 = vmul.f32 %v6152, %v6152
      %v6161 = vmul.f32 %v6153, %v6153
      %v6162 = vmul.f32 %v6154, %v6154
      %v6163 = vmul.f32 %v6155, %v6155
      %v6164 = vmul.f32 %v6156, %v6156
      %v6165 = vmul.f32 %v6157, %v6157
      %v6166 = vmul.f32 %v6158, %v6158
      %v6167 = vadd.f32 %v6159, %v6163
      %v6168 = vrot.slane %v6167, 4
      %v6169 = vadd.f32 %v6167, %v6168
      %v6170 = vrot.slane %v6169, 2
      %v6171 = vadd.f32 %v6169, %v6170
      %v6172 = vrot.slane %v6171, 1
      %v6173 = vadd.f32 %v6171, %v6172
      %v6174 = vadd.f32 %v6160, %v6164
      %v6175 = vrot.slane %v6174, 4
      %v6176 = vadd.f32 %v6174, %v6175
      %v6177 = vrot.slane %v6176, 2
      %v6178 = vadd.f32 %v6176, %v6177
      %v6179 = vrot.slane %v6178, 1
      %v6180 = vadd.f32 %v6178, %v6179
      %v6181 = vadd.f32 %v6161, %v6165
      %v6182 = vrot.slane %v6181, 4
      %v6183 = vadd.f32 %v6181, %v6182
      %v6184 = vrot.slane %v6183, 2
      %v6185 = vadd.f32 %v6183, %v6184
      %v6186 = vrot.slane %v6185, 1
      %v6187 = vadd.f32 %v6185, %v6186
      %v6188 = vadd.f32 %v6162, %v6166
      %v6189 = vrot.slane %v6188, 4
      %v6190 = vadd.f32 %v6188, %v6189
      %v6191 = vrot.slane %v6190, 2
      %v6192 = vadd.f32 %v6190, %v6191
      %v6193 = vrot.slane %v6192, 1
      %v6194 = vadd.f32 %v6192, %v6193
      %v6195 = vmul.f32 %v6173, %v2465
      %v6196 = vmul.f32 %v6180, %v2465
      %v6197 = vmul.f32 %v6187, %v2465
      %v6198 = vmul.f32 %v6194, %v2465
      %6199 = vmatpush.msra.mxu0 %v5631
      %6200 = vmatpush.msra.mxu0 %v5627
      %6201 = vmatpush.msra.mxu0 %v5623
      %6202 = vmatpush.msra.mxu0 %v5619
      %6203 = vmatpush.msra.mxu0 %v5615
      %6204 = vmatpush.msra.mxu0 %v5611
      %6205 = vmatpush.msra.mxu0 %v5607
      %6206 = vmatpush.msra.mxu0 %v5603
      %6207 = vmatpush.msra.mxu0 %v5599
      %6208 = vmatpush.msra.mxu0 %v5595
      %6209 = vmatpush.msra.mxu0 %v5591
      %6210 = vmatpush.msra.mxu0 %v5587
      %6211 = vmatpush.msra.mxu0 %v5583
      %6212 = vmatpush.msra.mxu0 %v5579
      %6213 = vmatpush.msra.mxu0 %v5575
      %6214 = vmatpush.msra.mxu0 %v5571
      %6215 = vmatmul.f32.gmra.mxu0 %v6195
      %v6216 = vpop.f32.mrf.mxu0
      %v6217 = vadd.f32 1e-05, %v6216
      %6218 = vdwg.mxu0
      %6219 = vmatpush.msra.mxu0 %v5695
      %6220 = vmatpush.msra.mxu0 %v5691
      %6221 = vmatpush.msra.mxu0 %v5687
      %6222 = vmatpush.msra.mxu0 %v5683
      %6223 = vmatpush.msra.mxu0 %v5679
      %6224 = vmatpush.msra.mxu0 %v5675
      %6225 = vmatpush.msra.mxu0 %v5671
      %6226 = vmatpush.msra.mxu0 %v5667
      %6227 = vmatpush.msra.mxu0 %v5663
      %6228 = vmatpush.msra.mxu0 %v5659
      %6229 = vmatpush.msra.mxu0 %v5655
      %6230 = vmatpush.msra.mxu0 %v5651
      %6231 = vmatpush.msra.mxu0 %v5647
      %6232 = vmatpush.msra.mxu0 %v5643
      %6233 = vmatpush.msra.mxu0 %v5639
      %6234 = vmatpush.msra.mxu0 %v5635
      %6235 = vmatmul.f32.gmra.mxu0 %v6196
      %v6236 = vpop.f32.mrf.mxu0
      %v6237 = vadd.f32 %v6217, %v6236
      %6238 = vdwg.mxu0
      %6239 = vmatpush.msra.mxu0 %v5759
      %6240 = vmatpush.msra.mxu0 %v5755
      %6241 = vmatpush.msra.mxu0 %v5751
      %6242 = vmatpush.msra.mxu0 %v5747
      %6243 = vmatpush.msra.mxu0 %v5743
      %6244 = vmatpush.msra.mxu0 %v5739
      %6245 = vmatpush.msra.mxu0 %v5735
      %6246 = vmatpush.msra.mxu0 %v5731
      %6247 = vmatpush.msra.mxu0 %v5727
      %6248 = vmatpush.msra.mxu0 %v5723
      %6249 = vmatpush.msra.mxu0 %v5719
      %6250 = vmatpush.msra.mxu0 %v5715
      %6251 = vmatpush.msra.mxu0 %v5711
      %6252 = vmatpush.msra.mxu0 %v5707
      %6253 = vmatpush.msra.mxu0 %v5703
      %6254 = vmatpush.msra.mxu0 %v5699
      %6255 = vmatmul.f32.gmra.mxu0 %v6197
      %v6256 = vpop.f32.mrf.mxu0
      %v6257 = vadd.f32 %v6237, %v6256
      %6258 = vdwg.mxu0
      %6259 = vmatpush.msra.mxu0 %v5823
      %6260 = vmatpush.msra.mxu0 %v5819
      %6261 = vmatpush.msra.mxu0 %v5815
      %6262 = vmatpush.msra.mxu0 %v5811
      %6263 = vmatpush.msra.mxu0 %v5807
      %6264 = vmatpush.msra.mxu0 %v5803
      %6265 = vmatpush.msra.mxu0 %v5799
      %6266 = vmatpush.msra.mxu0 %v5795
      %6267 = vmatpush.msra.mxu0 %v5791
      %6268 = vmatpush.msra.mxu0 %v5787
      %6269 = vmatpush.msra.mxu0 %v5783
      %6270 = vmatpush.msra.mxu0 %v5779
      %6271 = vmatpush.msra.mxu0 %v5775
      %6272 = vmatpush.msra.mxu0 %v5771
      %6273 = vmatpush.msra.mxu0 %v5767
      %6274 = vmatpush.msra.mxu0 %v5763
      %6275 = vmatmul.f32.gmra.mxu0 %v6198
      %v6276 = vpop.f32.mrf.mxu0
      %v6277 = vadd.f32 %v6257, %v6276
      %6278 = vdwg.mxu0
      %6279 = vmatpush.msra.mxu0 %v5632
      %6280 = vmatpush.msra.mxu0 %v5628
      %6281 = vmatpush.msra.mxu0 %v5624
      %6282 = vmatpush.msra.mxu0 %v5620
      %6283 = vmatpush.msra.mxu0 %v5616
      %6284 = vmatpush.msra.mxu0 %v5612
      %6285 = vmatpush.msra.mxu0 %v5608
      %6286 = vmatpush.msra.mxu0 %v5604
      %6287 = vmatpush.msra.mxu0 %v5600
      %6288 = vmatpush.msra.mxu0 %v5596
      %6289 = vmatpush.msra.mxu0 %v5592
      %6290 = vmatpush.msra.mxu0 %v5588
      %6291 = vmatpush.msra.mxu0 %v5584
      %6292 = vmatpush.msra.mxu0 %v5580
      %6293 = vmatpush.msra.mxu0 %v5576
      %6294 = vmatpush.msra.mxu0 %v5572
      %6295 = vmatmul.f32.gmra.mxu0 %v6195
      %v6296 = vpop.f32.mrf.mxu0
      %v6297 = vadd.f32 1e-05, %v6296
      %6298 = vdwg.mxu0
      %6299 = vmatpush.msra.mxu0 %v5696
      %6300 = vmatpush.msra.mxu0 %v5692
      %6301 = vmatpush.msra.mxu0 %v5688
      %6302 = vmatpush.msra.mxu0 %v5684
      %6303 = vmatpush.msra.mxu0 %v5680
      %6304 = vmatpush.msra.mxu0 %v5676
      %6305 = vmatpush.msra.mxu0 %v5672
      %6306 = vmatpush.msra.mxu0 %v5668
      %6307 = vmatpush.msra.mxu0 %v5664
      %6308 = vmatpush.msra.mxu0 %v5660
      %6309 = vmatpush.msra.mxu0 %v5656
      %6310 = vmatpush.msra.mxu0 %v5652
      %6311 = vmatpush.msra.mxu0 %v5648
      %6312 = vmatpush.msra.mxu0 %v5644
      %6313 = vmatpush.msra.mxu0 %v5640
      %6314 = vmatpush.msra.mxu0 %v5636
      %6315 = vmatmul.f32.gmra.mxu0 %v6196
      %v6316 = vpop.f32.mrf.mxu0
      %v6317 = vadd.f32 %v6297, %v6316
      %6318 = vdwg.mxu0
      %6319 = vmatpush.msra.mxu0 %v5760
      %6320 = vmatpush.msra.mxu0 %v5756
      %6321 = vmatpush.msra.mxu0 %v5752
      %6322 = vmatpush.msra.mxu0 %v5748
      %6323 = vmatpush.msra.mxu0 %v5744
      %6324 = vmatpush.msra.mxu0 %v5740
      %6325 = vmatpush.msra.mxu0 %v5736
      %6326 = vmatpush.msra.mxu0 %v5732
      %6327 = vmatpush.msra.mxu0 %v5728
      %6328 = vmatpush.msra.mxu0 %v5724
      %6329 = vmatpush.msra.mxu0 %v5720
      %6330 = vmatpush.msra.mxu0 %v5716
      %6331 = vmatpush.msra.mxu0 %v5712
      %6332 = vmatpush.msra.mxu0 %v5708
      %6333 = vmatpush.msra.mxu0 %v5704
      %6334 = vmatpush.msra.mxu0 %v5700
      %6335 = vmatmul.f32.gmra.mxu0 %v6197
      %v6336 = vpop.f32.mrf.mxu0
      %v6337 = vadd.f32 %v6317, %v6336
      %6338 = vdwg.mxu0
      %6339 = vmatpush.msra.mxu0 %v5824
      %6340 = vmatpush.msra.mxu0 %v5820
      %6341 = vmatpush.msra.mxu0 %v5816
      %6342 = vmatpush.msra.mxu0 %v5812
      %6343 = vmatpush.msra.mxu0 %v5808
      %6344 = vmatpush.msra.mxu0 %v5804
      %6345 = vmatpush.msra.mxu0 %v5800
      %6346 = vmatpush.msra.mxu0 %v5796
      %6347 = vmatpush.msra.mxu0 %v5792
      %6348 = vmatpush.msra.mxu0 %v5788
      %6349 = vmatpush.msra.mxu0 %v5784
      %6350 = vmatpush.msra.mxu0 %v5780
      %6351 = vmatpush.msra.mxu0 %v5776
      %6352 = vmatpush.msra.mxu0 %v5772
      %6353 = vmatpush.msra.mxu0 %v5768
      %6354 = vmatpush.msra.mxu0 %v5764
      %6355 = vmatmul.f32.gmra.mxu0 %v6198
      %v6356 = vpop.f32.mrf.mxu0
      %v6357 = vadd.f32 %v6337, %v6356
      %6358 = vdwg.mxu0
      %6359 = vmatpush.msra.mxu0 %v5633
      %6360 = vmatpush.msra.mxu0 %v5629
      %6361 = vmatpush.msra.mxu0 %v5625
      %6362 = vmatpush.msra.mxu0 %v5621
      %6363 = vmatpush.msra.mxu0 %v5617
      %6364 = vmatpush.msra.mxu0 %v5613
      %6365 = vmatpush.msra.mxu0 %v5609
      %6366 = vmatpush.msra.mxu0 %v5605
      %6367 = vmatpush.msra.mxu0 %v5601
      %6368 = vmatpush.msra.mxu0 %v5597
      %6369 = vmatpush.msra.mxu0 %v5593
      %6370 = vmatpush.msra.mxu0 %v5589
      %6371 = vmatpush.msra.mxu0 %v5585
      %6372 = vmatpush.msra.mxu0 %v5581
      %6373 = vmatpush.msra.mxu0 %v5577
      %6374 = vmatpush.msra.mxu0 %v5573
      %6375 = vmatmul.f32.gmra.mxu0 %v6195
      %v6376 = vpop.f32.mrf.mxu0
      %v6377 = vadd.f32 1e-05, %v6376
      %6378 = vdwg.mxu0
      %6379 = vmatpush.msra.mxu0 %v5697
      %6380 = vmatpush.msra.mxu0 %v5693
      %6381 = vmatpush.msra.mxu0 %v5689
      %6382 = vmatpush.msra.mxu0 %v5685
      %6383 = vmatpush.msra.mxu0 %v5681
      %6384 = vmatpush.msra.mxu0 %v5677
      %6385 = vmatpush.msra.mxu0 %v5673
      %6386 = vmatpush.msra.mxu0 %v5669
      %6387 = vmatpush.msra.mxu0 %v5665
      %6388 = vmatpush.msra.mxu0 %v5661
      %6389 = vmatpush.msra.mxu0 %v5657
      %6390 = vmatpush.msra.mxu0 %v5653
      %6391 = vmatpush.msra.mxu0 %v5649
      %6392 = vmatpush.msra.mxu0 %v5645
      %6393 = vmatpush.msra.mxu0 %v5641
      %6394 = vmatpush.msra.mxu0 %v5637
      %6395 = vmatmul.f32.gmra.mxu0 %v6196
      %v6396 = vpop.f32.mrf.mxu0
      %v6397 = vadd.f32 %v6377, %v6396
      %6398 = vdwg.mxu0
      %6399 = vmatpush.msra.mxu0 %v5761
      %6400 = vmatpush.msra.mxu0 %v5757
      %6401 = vmatpush.msra.mxu0 %v5753
      %6402 = vmatpush.msra.mxu0 %v5749
      %6403 = vmatpush.msra.mxu0 %v5745
      %6404 = vmatpush.msra.mxu0 %v5741
      %6405 = vmatpush.msra.mxu0 %v5737
      %6406 = vmatpush.msra.mxu0 %v5733
      %6407 = vmatpush.msra.mxu0 %v5729
      %6408 = vmatpush.msra.mxu0 %v5725
      %6409 = vmatpush.msra.mxu0 %v5721
      %6410 = vmatpush.msra.mxu0 %v5717
      %6411 = vmatpush.msra.mxu0 %v5713
      %6412 = vmatpush.msra.mxu0 %v5709
      %6413 = vmatpush.msra.mxu0 %v5705
      %6414 = vmatpush.msra.mxu0 %v5701
      %6415 = vmatmul.f32.gmra.mxu0 %v6197
      %v6416 = vpop.f32.mrf.mxu0
      %v6417 = vadd.f32 %v6397, %v6416
      %6418 = vdwg.mxu0
      %6419 = vmatpush.msra.mxu0 %v5825
      %6420 = vmatpush.msra.mxu0 %v5821
      %6421 = vmatpush.msra.mxu0 %v5817
      %6422 = vmatpush.msra.mxu0 %v5813
      %6423 = vmatpush.msra.mxu0 %v5809
      %6424 = vmatpush.msra.mxu0 %v5805
      %6425 = vmatpush.msra.mxu0 %v5801
      %6426 = vmatpush.msra.mxu0 %v5797
      %6427 = vmatpush.msra.mxu0 %v5793
      %6428 = vmatpush.msra.mxu0 %v5789
      %6429 = vmatpush.msra.mxu0 %v5785
      %6430 = vmatpush.msra.mxu0 %v5781
      %6431 = vmatpush.msra.mxu0 %v5777
      %6432 = vmatpush.msra.mxu0 %v5773
      %6433 = vmatpush.msra.mxu0 %v5769
      %6434 = vmatpush.msra.mxu0 %v5765
      %6435 = vmatmul.f32.gmra.mxu0 %v6198
      %v6436 = vpop.f32.mrf.mxu0
      %v6437 = vadd.f32 %v6417, %v6436
      %6438 = vdwg.mxu0
      %6439 = vmatpush.msra.mxu0 %v5634
      %6440 = vmatpush.msra.mxu0 %v5630
      %6441 = vmatpush.msra.mxu0 %v5626
      %6442 = vmatpush.msra.mxu0 %v5622
      %6443 = vmatpush.msra.mxu0 %v5618
      %6444 = vmatpush.msra.mxu0 %v5614
      %6445 = vmatpush.msra.mxu0 %v5610
      %6446 = vmatpush.msra.mxu0 %v5606
      %6447 = vmatpush.msra.mxu0 %v5602
      %6448 = vmatpush.msra.mxu0 %v5598
      %6449 = vmatpush.msra.mxu0 %v5594
      %6450 = vmatpush.msra.mxu0 %v5590
      %6451 = vmatpush.msra.mxu0 %v5586
      %6452 = vmatpush.msra.mxu0 %v5582
      %6453 = vmatpush.msra.mxu0 %v5578
      %6454 = vmatpush.msra.mxu0 %v5574
      %6455 = vmatmul.f32.gmra.mxu0 %v6195
      %v6456 = vpop.f32.mrf.mxu0
      %v6457 = vadd.f32 1e-05, %v6456
      %6458 = vdwg.mxu0
      %6459 = vmatpush.msra.mxu0 %v5698
      %6460 = vmatpush.msra.mxu0 %v5694
      %6461 = vmatpush.msra.mxu0 %v5690
      %6462 = vmatpush.msra.mxu0 %v5686
      %6463 = vmatpush.msra.mxu0 %v5682
      %6464 = vmatpush.msra.mxu0 %v5678
      %6465 = vmatpush.msra.mxu0 %v5674
      %6466 = vmatpush.msra.mxu0 %v5670
      %6467 = vmatpush.msra.mxu0 %v5666
      %6468 = vmatpush.msra.mxu0 %v5662
      %6469 = vmatpush.msra.mxu0 %v5658
      %6470 = vmatpush.msra.mxu0 %v5654
      %6471 = vmatpush.msra.mxu0 %v5650
      %6472 = vmatpush.msra.mxu0 %v5646
      %6473 = vmatpush.msra.mxu0 %v5642
      %6474 = vmatpush.msra.mxu0 %v5638
      %6475 = vmatmul.f32.gmra.mxu0 %v6196
      %v6476 = vpop.f32.mrf.mxu0
      %v6477 = vadd.f32 %v6457, %v6476
      %6478 = vdwg.mxu0
      %6479 = vmatpush.msra.mxu0 %v5762
      %6480 = vmatpush.msra.mxu0 %v5758
      %6481 = vmatpush.msra.mxu0 %v5754
      %6482 = vmatpush.msra.mxu0 %v5750
      %6483 = vmatpush.msra.mxu0 %v5746
      %6484 = vmatpush.msra.mxu0 %v5742
      %6485 = vmatpush.msra.mxu0 %v5738
      %6486 = vmatpush.msra.mxu0 %v5734
      %6487 = vmatpush.msra.mxu0 %v5730
      %6488 = vmatpush.msra.mxu0 %v5726
      %6489 = vmatpush.msra.mxu0 %v5722
      %6490 = vmatpush.msra.mxu0 %v5718
      %6491 = vmatpush.msra.mxu0 %v5714
      %6492 = vmatpush.msra.mxu0 %v5710
      %6493 = vmatpush.msra.mxu0 %v5706
      %6494 = vmatpush.msra.mxu0 %v5702
      %6495 = vmatmul.f32.gmra.mxu0 %v6197
      %v6496 = vpop.f32.mrf.mxu0
      %v6497 = vadd.f32 %v6477, %v6496
      %6498 = vdwg.mxu0
      %6499 = vmatpush.msra.mxu0 %v5826
      %6500 = vmatpush.msra.mxu0 %v5822
      %6501 = vmatpush.msra.mxu0 %v5818
      %6502 = vmatpush.msra.mxu0 %v5814
      %6503 = vmatpush.msra.mxu0 %v5810
      %6504 = vmatpush.msra.mxu0 %v5806
      %6505 = vmatpush.msra.mxu0 %v5802
      %6506 = vmatpush.msra.mxu0 %v5798
      %6507 = vmatpush.msra.mxu0 %v5794
      %6508 = vmatpush.msra.mxu0 %v5790
      %6509 = vmatpush.msra.mxu0 %v5786
      %6510 = vmatpush.msra.mxu0 %v5782
      %6511 = vmatpush.msra.mxu0 %v5778
      %6512 = vmatpush.msra.mxu0 %v5774
      %6513 = vmatpush.msra.mxu0 %v5770
      %6514 = vmatpush.msra.mxu0 %v5766
      %6515 = vmatmul.f32.gmra.mxu0 %v6198
      %v6516 = vpop.f32.mrf.mxu0
      %v6517 = vadd.f32 %v6497, %v6516
      %6518 = vdwg.mxu0
      %v6519 = vrsqrt.pop %v6277
      %v6520 = vmul.f32 %v6519, %v6277
      %v6521 = vmul.f32 %v6520, %v6519
      %v6522 = vmul.f32 0.5, %v6521
      %v6523 = vsub.f32 1.5, %v6522
      %v6524 = vmul.f32 %v6519, %v6523
      %vm6525 = vweird.f32 %v6277
      %vm6526 = vweird.f32 %v6519
      %vm6527 = vmor %vm6525, %vm6526
      %v6528 = vsel %vm6527, %v6519, %v6524
      %v6529 = vrsqrt.pop %v6357
      %v6530 = vmul.f32 %v6529, %v6357
      %v6531 = vmul.f32 %v6530, %v6529
      %v6532 = vmul.f32 0.5, %v6531
      %v6533 = vsub.f32 1.5, %v6532
      %v6534 = vmul.f32 %v6529, %v6533
      %vm6535 = vweird.f32 %v6357
      %vm6536 = vweird.f32 %v6529
      %vm6537 = vmor %vm6535, %vm6536
      %v6538 = vsel %vm6537, %v6529, %v6534
      %v6539 = vrsqrt.pop %v6437
      %v6540 = vmul.f32 %v6539, %v6437
      %v6541 = vmul.f32 %v6540, %v6539
      %v6542 = vmul.f32 0.5, %v6541
      %v6543 = vsub.f32 1.5, %v6542
      %v6544 = vmul.f32 %v6539, %v6543
      %vm6545 = vweird.f32 %v6437
      %vm6546 = vweird.f32 %v6539
      %vm6547 = vmor %vm6545, %vm6546
      %v6548 = vsel %vm6547, %v6539, %v6544
      %v6549 = vrsqrt.pop %v6517
      %v6550 = vmul.f32 %v6549, %v6517
      %v6551 = vmul.f32 %v6550, %v6549
      %v6552 = vmul.f32 0.5, %v6551
      %v6553 = vsub.f32 1.5, %v6552
      %v6554 = vmul.f32 %v6549, %v6553
      %vm6555 = vweird.f32 %v6517
      %vm6556 = vweird.f32 %v6549
      %vm6557 = vmor %vm6555, %vm6556
      %v6558 = vsel %vm6557, %v6549, %v6554
      %v6559 = vld [vmem:[%s8] sm:$0xf]
      %v6561 = vperm.slane %v6559, 0
      %v6562 = vperm.slane %v6559, 1
      %v6563 = vperm.slane %v6559, 2
      %v6564 = vperm.slane %v6559, 3
      %v6569 = vmul.f32 %v6528, %v6561
      %v6570 = vmul.f32 %v6538, %v6562
      %v6571 = vmul.f32 %v6548, %v6563
      %v6572 = vmul.f32 %v6558, %v6564
      %v6573 = vperm.slane %v6569, 0
      %v6574 = vperm.slane %v6570, 0
      %v6575 = vperm.slane %v6571, 0
      %v6576 = vperm.slane %v6572, 0
      %v6577 = vmul.f32 %v6151, %v6573
      %v6578 = vmul.f32 %v6152, %v6574
      %v6579 = vmul.f32 %v6153, %v6575
      %v6580 = vmul.f32 %v6154, %v6576
      %v6581 = vmul.f32 %v6155, %v6573
      %v6582 = vmul.f32 %v6156, %v6574
      %v6583 = vmul.f32 %v6157, %v6575
      %v6584 = vmul.f32 %v6158, %v6576
      %v6585 = vld [vmem:[%s9] sm:$0xf]
      %v6587 = vperm.slane %v6585, 0
      %v6588 = vperm.slane %v6585, 1
      %v6589 = vperm.slane %v6585, 2
      %v6590 = vperm.slane %v6585, 3
      %v6595 = vadd.f32 %v6577, %v6587
      %v6596 = vadd.f32 %v6578, %v6588
      %v6597 = vadd.f32 %v6579, %v6589
      %v6598 = vadd.f32 %v6580, %v6590
      %v6599 = vadd.f32 %v6581, %v6587
      %v6600 = vadd.f32 %v6582, %v6588
      %v6601 = vadd.f32 %v6583, %v6589
      %v6602 = vadd.f32 %v6584, %v6590
      %v6603 = vmax.f32 %v6595, 0.0
      %v6604 = vmax.f32 %v6596, 0.0
      %v6605 = vmax.f32 %v6597, 0.0
      %v6606 = vmax.f32 %v6598, 0.0
      %v6607 = vmax.f32 %v6599, 0.0
      %v6608 = vmax.f32 %v6600, 0.0
      %v6609 = vmax.f32 %v6601, 0.0
      %v6610 = vmax.f32 %v6602, 0.0
      %6611 = vst [vmem:[%s386] sm:$0xff] %v6603
      %6612 = vst [vmem:[%s386 + $0x8] sm:$0xff] %v6604
      %6613 = vst [vmem:[%s386 + $0x10] sm:$0xff] %v6605
      %6614 = vst [vmem:[%s386 + $0x18] sm:$0xff] %v6606
      %6615 = vst [vmem:[%s386 + $0x20] sm:$0xff] %v6607
      %6616 = vst [vmem:[%s386 + $0x28] sm:$0xff] %v6608
      %6617 = vst [vmem:[%s386 + $0x30] sm:$0xff] %v6609
      %6618 = vst [vmem:[%s386 + $0x38] sm:$0xff] %v6610
      %p6619 = scmp.lt.s32.totalorder %s22, 1
      %s6620 = scalar_select %p6619, %s22, 1
      %s6621 = smul.addr %s6620, 8
      %s6622 = smul.addr %s6621, 8
      %s6623 = scalar_lea.vmem %s11, %s6622
      // Predicated region
      $region65: #{sepconv.1} parent=63 // pred_check
        %p6624 = pneg %p276
      $region66: #{sepconv.1} parent=63 // pred_check_branch
        %6626 = sbr.rel (%p6624) target = $region68
      $region67: #{sepconv.1} parent=63 // pred_region
        _
      $region68: #{sepconv.1} parent=63 // pred_fallthru
        _
    $region64: #{sepconv.1} parent=5 // pred_fallthru
      _
    %p6627 = scmp.le.s32.totalorder 2, %s17
    // Predicated region
    $region69: #{sepconv.1} parent=5 // pred_check
      %p6628 = pneg %p6627
    $region70: #{sepconv.1} parent=5 // pred_check_branch
      %6630 = sbr.rel (%p6628) target = $region72
    $region71: #{sepconv.1} parent=5 // pred_region
      %s6631 = ssub.s32 %s17, 2
      // Predicated region
      $region73: #{sepconv.1} parent=71 // pred_check
        %p6632 = pneg %p282
      $region74: #{sepconv.1} parent=71 // pred_check_branch
        %6634 = sbr.rel (%p6632) target = $region76
      $region75: #{sepconv.1} parent=71 // pred_region
        %p6635 = scmp.lt.s32.totalorder %s23, 1
        %s6636 = scalar_select %p6635, %s23, 1
        %s6637 = smul.addr %s6636, 8
        %s6638 = smul.addr %s6637, 8
        %s6639 = scalar_lea.vmem %s11, %s6638
      $region76: #{sepconv.1} parent=71 // pred_fallthru
        _
    $region72: #{sepconv.1} parent=5 // pred_fallthru
      _
  $region6: #{sepconv.1} parent=0 // loop_footer
    %s21 = sadd.s32 1, %s17
  $region7: #{sepconv.1} parent=0 // loop_footer_branch
    %16 = sbr.rel target = $region3
  $region8: #{sepconv.1} parent=0 // loop_exit
    _

</llo_original>
